<compile_context>
chip_gen: v7x
topology: tpu7x:2x2x1
jax: 0.10.0
libtpu: 0.0.40
codegen_flags: <defaults>
</compile_context>

<pallas_src>
import functools

import jax
import jax.numpy as jnp
from jax.experimental import pallas as pl
from jax.experimental.pallas import tpu as pltpu

BN_EPS = 1e-5

TM_MATMUL_MAX = 2048          # max lane tile for the conv matmuls
TM_ACT_MAX = 4096             # max lane tile for the BN/ReLU pass
PATCH_BLOCK_BYTES = 3 << 20   # per-buffer budget for one patches block (bf16)
ACT_BLOCK_BYTES = 2 << 20     # per-buffer budget for one activation block
VMEM_LIMIT = 32 << 20         # scoped-VMEM request, safe on v5e/v6e/v7x


def _round_up(x, m):
    return ((x + m - 1) // m) * m


# ---------------------------------------------------------------------------
# Pallas kernels
# ---------------------------------------------------------------------------
def mm_bn_stats_kernel(w_ref, p_ref, y_ref, sum_ref, sq_ref):
    """y = W(bf16) @ patches(bf16) in f32; accumulate per-channel sum/sumsq.

    Grid = (group, m_tile).  sum/sq blocks are resident across the m axis
    (same block index) and zero-initialized at m == 0.
    """
    @pl.when(pl.program_id(1) == 0)
    def _():
        sum_ref[...] = jnp.zeros_like(sum_ref)
        sq_ref[...] = jnp.zeros_like(sq_ref)

    y = jnp.dot(w_ref[...], p_ref[...], preferred_element_type=jnp.float32)
    y_ref[...] = y.astype(y_ref.dtype)                 # bf16 intermediate
    rs = jnp.sum(y, axis=1, keepdims=True)             # f32 stats (BN accuracy)
    rq = jnp.sum(y * y, axis=1, keepdims=True)
    sum_ref[...] += jnp.broadcast_to(rs, sum_ref.shape)
    sq_ref[...] += jnp.broadcast_to(rq, sq_ref.shape)


def mm_tanh_kernel(w_ref, p_ref, o_ref):
    """Final layer: matmul + fused Tanh epilogue (single pass, no BN)."""
    y = jnp.dot(w_ref[...], p_ref[...], preferred_element_type=jnp.float32)
    o_ref[...] = jnp.tanh(y).astype(o_ref.dtype)


def bn_relu_kernel(y_ref, sum_ref, sq_ref, gamma_ref, beta_ref, o_ref, *,
                   inv_count):
    """Fused BatchNorm(train) finalize + affine + ReLU.

    sum/sq hold per-(group, channel) sums over the whole layer; the tiny
    per-channel finalize (mean/var/rsqrt/scale/shift) is recomputed per tile
    (negligible next to the tile's HBM traffic).
    """
    s = jnp.sum(sum_ref[...], axis=0)[:, 0:1]          # (Cp, 1) f32
    q = jnp.sum(sq_ref[...], axis=0)[:, 0:1]
    mean = s * inv_count
    var = q * inv_count - mean * mean
    var = jnp.maximum(var, 0.0)                        # guard f32 cancellation
    inv = jax.lax.rsqrt(var + BN_EPS)
    scale = gamma_ref[...] * inv                       # (Cp, 1)
    shift = beta_ref[...] - mean * scale
    y = y_ref[...].astype(jnp.float32)
    o_ref[...] = jnp.maximum(y * scale + shift, 0.0).astype(o_ref.dtype)


# ---------------------------------------------------------------------------
# Tiling helpers
# ---------------------------------------------------------------------------
def _pick_tm(col_bytes, M, tm_max, block_bytes):
    """Largest multiple of 128 dividing round_up(M, 128), under byte budget."""
    m128 = _round_up(M, 128) // 128
    cap = max(1, min(tm_max // 128, block_bytes // (col_bytes * 128)))
    cap = min(cap, m128)
    for d in range(cap, 0, -1):
        if m128 % d == 0:
            return d * 128
    return 128


def _pick_tm_act(Cp, Mp, tm):
    """Grow the BN/ReLU tile (multiple of the matmul tile) within budget."""
    n_m = Mp // tm
    best = tm
    for d in range(1, n_m + 1):
        if n_m % d == 0:
            cand = d * tm
            if cand <= TM_ACT_MAX and Cp * cand * 2 <= ACT_BLOCK_BYTES:
                best = cand
    return best


# ---------------------------------------------------------------------------
# Pallas wrappers
# ---------------------------------------------------------------------------
def pallas_conv_bn(w, p, tm):
    """w: (G, Cp, Kd) bf16, p: (GP, Kd, Mp) bf16 with GP in {1, G}.

    Returns y (G, Cp, Mp) bf16 plus per-group channel sum/sumsq (G, Cp, 128).
    """
    G, Cp, Kd = w.shape
    GP, _, Mp = p.shape
    n_m = Mp // tm
    if GP == G:
        p_idx = lambda g, m: (g, 0, m)
    else:                                              # shared patches (layer 1)
        p_idx = lambda g, m: (0, 0, m)
    return pl.pallas_call(
        mm_bn_stats_kernel,
        out_shape=(jax.ShapeDtypeStruct((G, Cp, Mp), jnp.bfloat16),
                   jax.ShapeDtypeStruct((G, Cp, 128), jnp.float32),
                   jax.ShapeDtypeStruct((G, Cp, 128), jnp.float32)),
        grid_spec=pltpu.PrefetchScalarGridSpec(
            num_scalar_prefetch=0,
            grid=(G, n_m),
            in_specs=[pl.BlockSpec((None, Cp, Kd), lambda g, m: (g, 0, 0)),
                      pl.BlockSpec((None, Kd, tm), p_idx)],
            out_specs=[pl.BlockSpec((None, Cp, tm), lambda g, m: (g, 0, m)),
                       pl.BlockSpec((None, Cp, 128), lambda g, m: (g, 0, 0)),
                       pl.BlockSpec((None, Cp, 128), lambda g, m: (g, 0, 0))]),
        compiler_params=pltpu.CompilerParams(
            dimension_semantics=("parallel", "arbitrary"),
            vmem_limit_bytes=VMEM_LIMIT),
    )(w, p)


def pallas_conv_tanh(w, p, tm):
    """Final layer: per-parity matmul with fused Tanh.  Returns (G, Cp, Mp) f32."""
    G, Cp, Kd = w.shape
    GP, _, Mp = p.shape
    n_m = Mp // tm
    if GP == G:
        p_idx = lambda g, m: (g, 0, m)
    else:
        p_idx = lambda g, m: (0, 0, m)
    return pl.pallas_call(
        mm_tanh_kernel,
        out_shape=jax.ShapeDtypeStruct((G, Cp, Mp), jnp.float32),
        grid_spec=pltpu.PrefetchScalarGridSpec(
            num_scalar_prefetch=0,
            grid=(G, n_m),
            in_specs=[pl.BlockSpec((None, Cp, Kd), lambda g, m: (g, 0, 0)),
                      pl.BlockSpec((None, Kd, tm), p_idx)],
            out_specs=pl.BlockSpec((None, Cp, tm), lambda g, m: (g, 0, m))),
        compiler_params=pltpu.CompilerParams(
            dimension_semantics=("parallel", "arbitrary"),
            vmem_limit_bytes=VMEM_LIMIT),
    )(w, p)


def pallas_bn_relu(y, s, q, gamma, beta, count, tm):
    """y: (G, Cp, Mp) bf16; s/q: (G, Cp, 128) f32; gamma/beta: (Cp, 1) f32."""
    G, Cp, Mp = y.shape
    n_m = Mp // tm
    kern = functools.partial(bn_relu_kernel, inv_count=1.0 / float(count))
    return pl.pallas_call(
        kern,
        out_shape=jax.ShapeDtypeStruct((G, Cp, Mp), jnp.bfloat16),
        grid_spec=pltpu.PrefetchScalarGridSpec(
            num_scalar_prefetch=0,
            grid=(G, n_m),
            in_specs=[pl.BlockSpec((None, Cp, tm), lambda g, m: (g, 0, m)),
                      pl.BlockSpec((G, Cp, 128), lambda g, m: (0, 0, 0)),
                      pl.BlockSpec((G, Cp, 128), lambda g, m: (0, 0, 0)),
                      pl.BlockSpec((Cp, 1), lambda g, m: (0, 0)),
                      pl.BlockSpec((Cp, 1), lambda g, m: (0, 0))],
            out_specs=pl.BlockSpec((None, Cp, tm), lambda g, m: (g, 0, m))),
        compiler_params=pltpu.CompilerParams(
            dimension_semantics=("parallel", "parallel"),
            vmem_limit_bytes=VMEM_LIMIT),
    )(y, s, q, gamma, beta)


# ---------------------------------------------------------------------------
# ConvTranspose2d lowering glue (sub-pixel / parity decomposition, bf16)
# ---------------------------------------------------------------------------
def build_first_layer_patches(x2d, Kd, Mp):
    """x2d: (Cin, N) -> (1, Kd, Mp) bf16 (shared by all 16 output-pixel groups)."""
    Cin, N = x2d.shape
    p = x2d.astype(jnp.bfloat16)
    if Kd > Cin or Mp > N:
        p = jnp.pad(p, ((0, Kd - Cin), (0, Mp - N)))
    return p[None]


def build_parity_patches(x, Kd, Mp):
    """x: (Cin, N, H, W) -> per-parity 2x2 im2col patches (4, Kd, Mp) bf16.

    Row order: ci*4 + dh*2 + dw; column order: n*H*W + r*W + c; group order
    g = a*2 + b where (a, b) = output-pixel parity (oh%2, ow%2).
    """
    Cin, N, H, W = x.shape
    M = N * H * W
    xP = jnp.pad(x.astype(jnp.bfloat16), ((0, 0), (0, 0), (1, 1), (1, 1)))
    groups = []
    for a in range(2):
        for b in range(2):
            wins = [xP[:, :, a + dh:a + dh + H, b + dw:b + dw + W]
                    for dh in range(2) for dw in range(2)]
            groups.append(jnp.stack(wins, axis=1).reshape(Cin * 4, M))
    p = jnp.stack(groups, axis=0)                      # (4, Cin*4, M)
    if Kd > Cin * 4 or Mp > M:
        p = jnp.pad(p, ((0, 0), (0, Kd - Cin * 4), (0, Mp - M)))
    return p


def prepare_params(params):
    """One-time weight/BN prep (hoisted out of the forward).

    Layer 0 (1x1 input, stride 1, pad 0): 16 groups, one per output pixel,
      W_g[co, ci] = W[ci, co, oh, ow] with g = oh*4 + ow.
    Layers 1..4 (stride 2, pad 1): 4 parity groups (a, b) = (oh%2, ow%2),
      W_g[co, ci*4 + dh*2 + dw] = W[ci, co, 3 - a - 2*dh, 3 - b - 2*dw].
    """
    prep, couts = [], []
    for i, (W, gamma, beta) in enumerate(params):
        Cin, Cout = W.shape[0], W.shape[1]
        if i == 0:
            Wg = W.transpose(2, 3, 1, 0).reshape(16, Cout, Cin)
            Kd = _round_up(Cin, 16)
        else:
            gs = []
            for a in range(2):
                for b in range(2):
                    taps = [W[:, :, 3 - a - 2 * dh, 3 - b - 2 * dw]
                            for dh in range(2) for dw in range(2)]
                    wt = jnp.stack(taps, axis=0)       # (4, Cin, Cout)
                    gs.append(wt.transpose(2, 1, 0).reshape(Cout, Cin * 4))
            Wg = jnp.stack(gs, axis=0)                 # (4, Cout, Cin*4)
            Kd = _round_up(Cin * 4, 16)
        Cp = _round_up(Cout, 16)                       # sublane pad only
        Wg = jnp.pad(Wg, ((0, 0), (0, Cp - Cout),
                          (0, Kd - Wg.shape[2]))).astype(jnp.bfloat16)
        if gamma is not None:
            g = jnp.pad(gamma, (0, Cp - Cout)).astype(jnp.float32).reshape(Cp, 1)
            b = jnp.pad(beta, (0, Cp - Cout)).astype(jnp.float32).reshape(Cp, 1)
        else:
            g = b = None
        prep.append((Wg, g, b))
        couts.append(Cout)
    return prep, tuple(couts)


# ---------------------------------------------------------------------------
# Generator forward (training-mode BatchNorm, PyTorch-faithful)
# ---------------------------------------------------------------------------
def generator_forward(x, prep, *, couts):
    N = x.shape[0]
    assert x.shape[2:] == (1, 1), "DCGAN latent must be (N, z, 1, 1)"
    xc = x.transpose(1, 0, 2, 3)                       # NCHW -> (C, N, 1, 1)
    for i, (Wg, gamma, beta) in enumerate(prep):
        Cout = couts[i]
        G, Cp, Kd = Wg.shape
        if i == 0:                                     # 1x1 input, stride 1
            Cin = xc.shape[0]
            M = N
            tm = _pick_tm(2 * Kd, M, TM_MATMUL_MAX, PATCH_BLOCK_BYTES)
            Mp = _round_up(M, 128)
            P = build_first_layer_patches(xc.reshape(Cin, N), Kd, Mp)
            OH = OW = 4
        else:                                          # stride-2 parity layers
            Cin, _, H, W = xc.shape
            M = N * H * W
            tm = _pick_tm(2 * Kd, M, TM_MATMUL_MAX, PATCH_BLOCK_BYTES)
            Mp = _round_up(M, 128)
            P = build_parity_patches(xc, Kd, Mp)
            OH, OW = 2 * H, 2 * W

        if gamma is not None:                          # ConvT + BN(train) + ReLU
            y, s, q = pallas_conv_bn(Wg, P, tm)
            tm_act = _pick_tm_act(Cp, Mp, tm)
            act = pallas_bn_relu(y, s, q, gamma, beta, G * M, tm_act)
        else:                                          # final ConvT + fused Tanh
            act = pallas_conv_tanh(Wg, P, tm)          # (4, Cp, Mp) f32

        if i == 0:                                     # groups = output pixels
            xc = act[:, :Cout, :M].reshape(4, 4, Cout, N).transpose(2, 3, 0, 1)
        else:                                          # interleave parities
            xc = (act[:, :Cout, :M]
                  .reshape(2, 2, Cout, N, H, W)
                  .transpose(2, 3, 4, 0, 5, 1)
                  .reshape(Cout, N, OH, OW))
    return xc.transpose(1, 0, 2, 3)                    # -> NCHW (f32 tanh out)


def init_params(key, z_dim, ngf):
    channels_in = [z_dim, ngf * 8, ngf * 4, ngf * 2, ngf]
    channels_out = [ngf * 8, ngf * 4, ngf * 2, ngf, 3]
    acts = ["relu", "relu", "relu", "relu", "tanh"]
    params = []
    for i in range(5):
        key, k_w, k_g = jax.random.split(key, 3)
        W = 0.02 * jax.random.normal(
            k_w, (channels_in[i], channels_out[i], 4, 4), jnp.float32)
        if acts[i] == "relu":
            gamma = 1.0 + 0.02 * jax.random.normal(
                k_g, (channels_out[i],), jnp.float32)
            beta = jnp.zeros((channels_out[i],), jnp.float32)
        else:
            gamma, beta = None, None
        params.append((W, gamma, beta))
    return params


if __name__ == "__main__":
    z_dim, ngf, batch = 16, 8, 2
    key = jax.random.PRNGKey(0)
    key, k_x = jax.random.split(key)
    params = init_params(key, z_dim, ngf)
    prep, couts = prepare_params(params)               # one-time weight prep
    x = jax.random.normal(k_x, (batch, z_dim, 1, 1), jnp.float32)  # NCHW latent

    fwd = jax.jit(functools.partial(generator_forward, couts=couts))
    out = jax.block_until_ready(fwd(x, prep))
    assert out.shape == (batch, 3, 64, 64), out.shape
    assert bool(jnp.all(jnp.isfinite(out)))
    assert bool(jnp.all(jnp.abs(out) <= 1.0 + 1e-5))   # tanh range sanity
    print("KERNEL_OK")
</pallas_src>

<mosaic_0001>
module attributes {stable_mosaic.version = 11 : i64} {
  func.func @mm_bn_stats_kernel(%arg0: i32, %arg1: i32, %arg2: memref<1x64x16xbf16, #tpu.memory_space<vmem>>, %arg3: memref<1x16x128xbf16, #tpu.memory_space<vmem>>, %arg4: memref<1x64x128xbf16, #tpu.memory_space<vmem>>, %arg5: memref<1x64x128xf32, #tpu.memory_space<vmem>>, %arg6: memref<1x64x128xf32, #tpu.memory_space<vmem>>) attributes {dimension_semantics = [#tpu.dimension_semantics<parallel>, #tpu.dimension_semantics<arbitrary>], iteration_bounds = array<i64: 16, 1>, scalar_prefetch = 0 : i64, scratch_operands = 0 : i64, tpu.core_type = #tpu.core_type<tc>, window_params = [{transform_indices = @transform_0, window_bounds = array<i64: 1, 64, 16>}, {transform_indices = @transform_1, window_bounds = array<i64: 1, 16, 128>}, {transform_indices = @transform_2, window_bounds = array<i64: 1, 64, 128>}, {transform_indices = @transform_3, window_bounds = array<i64: 1, 64, 128>}, {transform_indices = @transform_4, window_bounds = array<i64: 1, 64, 128>}]} {
    %c0_i32 = arith.constant 0 : i32
    %0 = arith.cmpi eq, %arg1, %c0_i32 : i32
    %1 = arith.extui %0 : i1 to i32
    %c0_i32_0 = arith.constant 0 : i32
    %2 = arith.cmpi ne, %1, %c0_i32_0 : i32
    scf.if %2 {
      %cst_23 = arith.constant 0.000000e+00 : f32
      %33 = vector.broadcast %cst_23 : f32 to vector<64x128xf32>
      %c0_24 = arith.constant 0 : index
      %c0_25 = arith.constant 0 : index
      %c0_26 = arith.constant 0 : index
      %34 = vector.load %arg5[%c0_24, %c0_25, %c0_26] : memref<1x64x128xf32, #tpu.memory_space<vmem>>, vector<1x64x128xf32>
      %35 = vector.shape_cast %34 : vector<1x64x128xf32> to vector<64x128xf32>
      %36 = vector.shape_cast %33 : vector<64x128xf32> to vector<1x64x128xf32>
      tpu.vector_store %arg5[%c0_24, %c0_25, %c0_26], %36 {strides = array<i32>} : memref<1x64x128xf32, #tpu.memory_space<vmem>>, vector<1x64x128xf32>,
      %cst_27 = arith.constant 0.000000e+00 : f32
      %37 = vector.broadcast %cst_27 : f32 to vector<64x128xf32>
      %c0_28 = arith.constant 0 : index
      %c0_29 = arith.constant 0 : index
      %c0_30 = arith.constant 0 : index
      %38 = vector.load %arg6[%c0_28, %c0_29, %c0_30] : memref<1x64x128xf32, #tpu.memory_space<vmem>>, vector<1x64x128xf32>
      %39 = vector.shape_cast %38 : vector<1x64x128xf32> to vector<64x128xf32>
      %40 = vector.shape_cast %37 : vector<64x128xf32> to vector<1x64x128xf32>
      tpu.vector_store %arg6[%c0_28, %c0_29, %c0_30], %40 {strides = array<i32>} : memref<1x64x128xf32, #tpu.memory_space<vmem>>, vector<1x64x128xf32>,
    } else {
    }
    %c0 = arith.constant 0 : index
    %c0_1 = arith.constant 0 : index
    %c0_2 = arith.constant 0 : index
    %3 = vector.load %arg2[%c0, %c0_1, %c0_2] : memref<1x64x16xbf16, #tpu.memory_space<vmem>>, vector<1x64x16xbf16>
    %4 = vector.shape_cast %3 : vector<1x64x16xbf16> to vector<64x16xbf16>
    %c0_3 = arith.constant 0 : index
    %c0_4 = arith.constant 0 : index
    %c0_5 = arith.constant 0 : index
    %5 = vector.load %arg3[%c0_3, %c0_4, %c0_5] : memref<1x16x128xbf16, #tpu.memory_space<vmem>>, vector<1x16x128xbf16>
    %6 = vector.shape_cast %5 : vector<1x16x128xbf16> to vector<16x128xbf16>
    %cst = arith.constant dense<0.000000e+00> : vector<64x128xf32>
    %7 = tpu.matmul %4, %6, %cst {dimension_numbers = #tpu.dot_dimension_numbers<[1], [0], [0], [1], [0, 0, 1, 1], [], []>} : vector<64x16xbf16>, vector<16x128xbf16>, vector<64x128xf32> -> vector<64x128xf32>
    %8 = arith.truncf %7 : vector<64x128xf32> to vector<64x128xbf16>
    %c0_6 = arith.constant 0 : index
    %c0_7 = arith.constant 0 : index
    %c0_8 = arith.constant 0 : index
    %9 = vector.load %arg4[%c0_6, %c0_7, %c0_8] : memref<1x64x128xbf16, #tpu.memory_space<vmem>>, vector<1x64x128xbf16>
    %10 = vector.shape_cast %9 : vector<1x64x128xbf16> to vector<64x128xbf16>
    %11 = vector.shape_cast %8 : vector<64x128xbf16> to vector<1x64x128xbf16>
    tpu.vector_store %arg4[%c0_6, %c0_7, %c0_8], %11 {strides = array<i32>} : memref<1x64x128xbf16, #tpu.memory_space<vmem>>, vector<1x64x128xbf16>,
    %cst_9 = arith.constant dense<0.000000e+00> : vector<64xf32>
    %12 = vector.multi_reduction <add>, %7, %cst_9 [1] : vector<64x128xf32> to vector<64xf32>
    %13 = vector.shape_cast %12 : vector<64xf32> to vector<64x1xf32>
    %14 = arith.mulf %7, %7 : vector<64x128xf32>
    %cst_10 = arith.constant dense<0.000000e+00> : vector<64xf32>
    %15 = vector.multi_reduction <add>, %14, %cst_10 [1] : vector<64x128xf32> to vector<64xf32>
    %16 = vector.shape_cast %15 : vector<64xf32> to vector<64x1xf32>
    %c0_11 = arith.constant 0 : index
    %c0_12 = arith.constant 0 : index
    %c0_13 = arith.constant 0 : index
    %17 = vector.load %arg5[%c0_11, %c0_12, %c0_13] : memref<1x64x128xf32, #tpu.memory_space<vmem>>, vector<1x64x128xf32>
    %18 = vector.shape_cast %17 : vector<1x64x128xf32> to vector<64x128xf32>
    %19 = vector.shape_cast %13 : vector<64x1xf32> to vector<64x1xf32>
    %20 = vector.broadcast %19 : vector<64x1xf32> to vector<64x128xf32>
    %21 = arith.addf %18, %20 : vector<64x128xf32>
    %c0_14 = arith.constant 0 : index
    %c0_15 = arith.constant 0 : index
    %c0_16 = arith.constant 0 : index
    %22 = vector.load %arg5[%c0_14, %c0_15, %c0_16] : memref<1x64x128xf32, #tpu.memory_space<vmem>>, vector<1x64x128xf32>
    %23 = vector.shape_cast %22 : vector<1x64x128xf32> to vector<64x128xf32>
    %24 = vector.shape_cast %21 : vector<64x128xf32> to vector<1x64x128xf32>
    tpu.vector_store %arg5[%c0_14, %c0_15, %c0_16], %24 {strides = array<i32>} : memref<1x64x128xf32, #tpu.memory_space<vmem>>, vector<1x64x128xf32>,
    %c0_17 = arith.constant 0 : index
    %c0_18 = arith.constant 0 : index
    %c0_19 = arith.constant 0 : index
    %25 = vector.load %arg6[%c0_17, %c0_18, %c0_19] : memref<1x64x128xf32, #tpu.memory_space<vmem>>, vector<1x64x128xf32>
    %26 = vector.shape_cast %25 : vector<1x64x128xf32> to vector<64x128xf32>
    %27 = vector.shape_cast %16 : vector<64x1xf32> to vector<64x1xf32>
    %28 = vector.broadcast %27 : vector<64x1xf32> to vector<64x128xf32>
    %29 = arith.addf %26, %28 : vector<64x128xf32>
    %c0_20 = arith.constant 0 : index
    %c0_21 = arith.constant 0 : index
    %c0_22 = arith.constant 0 : index
    %30 = vector.load %arg6[%c0_20, %c0_21, %c0_22] : memref<1x64x128xf32, #tpu.memory_space<vmem>>, vector<1x64x128xf32>
    %31 = vector.shape_cast %30 : vector<1x64x128xf32> to vector<64x128xf32>
    %32 = vector.shape_cast %29 : vector<64x128xf32> to vector<1x64x128xf32>
    tpu.vector_store %arg6[%c0_20, %c0_21, %c0_22], %32 {strides = array<i32>} : memref<1x64x128xf32, #tpu.memory_space<vmem>>, vector<1x64x128xf32>,
    return
  }
  func.func @transform_0(%arg0: i32, %arg1: i32) -> (i32, i32, i32) {
    %c0_i32 = arith.constant 0 : i32
    %c0_i32_0 = arith.constant 0 : i32
    %c0_i32_1 = arith.constant 0 : i32
    return %arg0, %c0_i32, %c0_i32_0 : i32, i32, i32
  }
  func.func @transform_1(%arg0: i32, %arg1: i32) -> (i32, i32, i32) {
    %c0_i32 = arith.constant 0 : i32
    %c0_i32_0 = arith.constant 0 : i32
    %c0_i32_1 = arith.constant 0 : i32
    return %c0_i32, %c0_i32_0, %arg1 : i32, i32, i32
  }
  func.func @transform_2(%arg0: i32, %arg1: i32) -> (i32, i32, i32) {
    %c0_i32 = arith.constant 0 : i32
    %c0_i32_0 = arith.constant 0 : i32
    return %arg0, %c0_i32, %arg1 : i32, i32, i32
  }
  func.func @transform_3(%arg0: i32, %arg1: i32) -> (i32, i32, i32) {
    %c0_i32 = arith.constant 0 : i32
    %c0_i32_0 = arith.constant 0 : i32
    %c0_i32_1 = arith.constant 0 : i32
    return %arg0, %c0_i32, %c0_i32_0 : i32, i32, i32
  }
  func.func @transform_4(%arg0: i32, %arg1: i32) -> (i32, i32, i32) {
    %c0_i32 = arith.constant 0 : i32
    %c0_i32_0 = arith.constant 0 : i32
    %c0_i32_1 = arith.constant 0 : i32
    return %arg0, %c0_i32, %c0_i32_0 : i32, i32, i32
  }
}

module attributes {stable_mosaic.version = 11 : i64} {
  func.func @bn_relu_kernel(%arg0: i32, %arg1: i32, %arg2: memref<1x64x128xbf16, #tpu.memory_space<vmem>>, %arg3: memref<16x64x128xf32, #tpu.memory_space<vmem>>, %arg4: memref<16x64x128xf32, #tpu.memory_space<vmem>>, %arg5: memref<64x1xf32, #tpu.memory_space<vmem>>, %arg6: memref<64x1xf32, #tpu.memory_space<vmem>>, %arg7: memref<1x64x128xbf16, #tpu.memory_space<vmem>>) attributes {dimension_semantics = [#tpu.dimension_semantics<parallel>, #tpu.dimension_semantics<parallel>], iteration_bounds = array<i64: 16, 1>, scalar_prefetch = 0 : i64, scratch_operands = 0 : i64, tpu.core_type = #tpu.core_type<tc>, window_params = [{transform_indices = @transform_0, window_bounds = array<i64: 1, 64, 128>}, {pipeline_mode = #tpu.pipeline_mode<synchronous>, transform_indices = @transform_1, window_bounds = array<i64: 16, 64, 128>}, {pipeline_mode = #tpu.pipeline_mode<synchronous>, transform_indices = @transform_2, window_bounds = array<i64: 16, 64, 128>}, {pipeline_mode = #tpu.pipeline_mode<synchronous>, transform_indices = @transform_3, window_bounds = array<i64: 64, 1>}, {pipeline_mode = #tpu.pipeline_mode<synchronous>, transform_indices = @transform_4, window_bounds = array<i64: 64, 1>}, {transform_indices = @transform_5, window_bounds = array<i64: 1, 64, 128>}]} {
    %c0 = arith.constant 0 : index
    %c0_0 = arith.constant 0 : index
    %c0_1 = arith.constant 0 : index
    %0 = vector.load %arg3[%c0, %c0_0, %c0_1] : memref<16x64x128xf32, #tpu.memory_space<vmem>>, vector<16x64x128xf32>
    %cst = arith.constant dense<0.000000e+00> : vector<64x128xf32>
    %1 = vector.multi_reduction <add>, %0, %cst [0] : vector<16x64x128xf32> to vector<64x128xf32>
    %2 = vector.extract_strided_slice %1 {offsets = [0, 0], sizes = [64, 1], strides = [1, 1]} : vector<64x128xf32> to vector<64x1xf32>
    %c0_2 = arith.constant 0 : index
    %c0_3 = arith.constant 0 : index
    %c0_4 = arith.constant 0 : index
    %3 = vector.load %arg4[%c0_2, %c0_3, %c0_4] : memref<16x64x128xf32, #tpu.memory_space<vmem>>, vector<16x64x128xf32>
    %cst_5 = arith.constant dense<0.000000e+00> : vector<64x128xf32>
    %4 = vector.multi_reduction <add>, %3, %cst_5 [0] : vector<16x64x128xf32> to vector<64x128xf32>
    %5 = vector.extract_strided_slice %4 {offsets = [0, 0], sizes = [64, 1], strides = [1, 1]} : vector<64x128xf32> to vector<64x1xf32>
    %cst_6 = arith.constant 3.125000e-02 : f32
    %6 = vector.broadcast %cst_6 : f32 to vector<64x1xf32>
    %7 = arith.mulf %2, %6 : vector<64x1xf32>
    %cst_7 = arith.constant 3.125000e-02 : f32
    %8 = vector.broadcast %cst_7 : f32 to vector<64x1xf32>
    %9 = arith.mulf %5, %8 : vector<64x1xf32>
    %10 = arith.mulf %7, %7 : vector<64x1xf32>
    %11 = arith.subf %9, %10 : vector<64x1xf32>
    %cst_8 = arith.constant 0.000000e+00 : f32
    %12 = vector.broadcast %cst_8 : f32 to vector<64x1xf32>
    %13 = arith.maximumf %11, %12 : vector<64x1xf32>
    %cst_9 = arith.constant 9.99999974E-6 : f32
    %14 = vector.broadcast %cst_9 : f32 to vector<64x1xf32>
    %15 = arith.addf %13, %14 : vector<64x1xf32>
    %16 = math.rsqrt %15 : vector<64x1xf32>
    %c0_10 = arith.constant 0 : index
    %c0_11 = arith.constant 0 : index
    %17 = vector.load %arg5[%c0_10, %c0_11] : memref<64x1xf32, #tpu.memory_space<vmem>>, vector<64x1xf32>
    %18 = arith.mulf %17, %16 : vector<64x1xf32>
    %c0_12 = arith.constant 0 : index
    %c0_13 = arith.constant 0 : index
    %19 = vector.load %arg6[%c0_12, %c0_13] : memref<64x1xf32, #tpu.memory_space<vmem>>, vector<64x1xf32>
    %20 = arith.mulf %7, %18 : vector<64x1xf32>
    %21 = arith.subf %19, %20 : vector<64x1xf32>
    %c0_14 = arith.constant 0 : index
    %c0_15 = arith.constant 0 : index
    %c0_16 = arith.constant 0 : index
    %22 = vector.load %arg2[%c0_14, %c0_15, %c0_16] : memref<1x64x128xbf16, #tpu.memory_space<vmem>>, vector<1x64x128xbf16>
    %23 = vector.shape_cast %22 : vector<1x64x128xbf16> to vector<64x128xbf16>
    %24 = arith.extf %23 : vector<64x128xbf16> to vector<64x128xf32>
    %25 = vector.broadcast %18 : vector<64x1xf32> to vector<64x128xf32>
    %26 = arith.mulf %24, %25 : vector<64x128xf32>
    %27 = vector.broadcast %21 : vector<64x1xf32> to vector<64x128xf32>
    %28 = arith.addf %26, %27 : vector<64x128xf32>
    %cst_17 = arith.constant 0.000000e+00 : f32
    %29 = vector.broadcast %cst_17 : f32 to vector<64x128xf32>
    %30 = arith.maximumf %28, %29 : vector<64x128xf32>
    %31 = arith.truncf %30 : vector<64x128xf32> to vector<64x128xbf16>
    %c0_18 = arith.constant 0 : index
    %c0_19 = arith.constant 0 : index
    %c0_20 = arith.constant 0 : index
    %32 = vector.load %arg7[%c0_18, %c0_19, %c0_20] : memref<1x64x128xbf16, #tpu.memory_space<vmem>>, vector<1x64x128xbf16>
    %33 = vector.shape_cast %32 : vector<1x64x128xbf16> to vector<64x128xbf16>
    %34 = vector.shape_cast %31 : vector<64x128xbf16> to vector<1x64x128xbf16>
    tpu.vector_store %arg7[%c0_18, %c0_19, %c0_20], %34 {strides = array<i32>} : memref<1x64x128xbf16, #tpu.memory_space<vmem>>, vector<1x64x128xbf16>,
    return
  }
  func.func @transform_0(%arg0: i32, %arg1: i32) -> (i32, i32, i32) {
    %c0_i32 = arith.constant 0 : i32
    %c0_i32_0 = arith.constant 0 : i32
    return %arg0, %c0_i32, %arg1 : i32, i32, i32
  }
  func.func @transform_1(%arg0: i32, %arg1: i32) -> (i32, i32, i32) {
    %c0_i32 = arith.constant 0 : i32
    %c0_i32_0 = arith.constant 0 : i32
    %c0_i32_1 = arith.constant 0 : i32
    %c0_i32_2 = arith.constant 0 : i32
    return %c0_i32, %c0_i32_0, %c0_i32_1 : i32, i32, i32
  }
  func.func @transform_2(%arg0: i32, %arg1: i32) -> (i32, i32, i32) {
    %c0_i32 = arith.constant 0 : i32
    %c0_i32_0 = arith.constant 0 : i32
    %c0_i32_1 = arith.constant 0 : i32
    %c0_i32_2 = arith.constant 0 : i32
    return %c0_i32, %c0_i32_0, %c0_i32_1 : i32, i32, i32
  }
  func.func @transform_3(%arg0: i32, %arg1: i32) -> (i32, i32) {
    %c0_i32 = arith.constant 0 : i32
    %c0_i32_0 = arith.constant 0 : i32
    %c0_i32_1 = arith.constant 0 : i32
    return %c0_i32, %c0_i32_0 : i32, i32
  }
  func.func @transform_4(%arg0: i32, %arg1: i32) -> (i32, i32) {
    %c0_i32 = arith.constant 0 : i32
    %c0_i32_0 = arith.constant 0 : i32
    %c0_i32_1 = arith.constant 0 : i32
    return %c0_i32, %c0_i32_0 : i32, i32
  }
  func.func @transform_5(%arg0: i32, %arg1: i32) -> (i32, i32, i32) {
    %c0_i32 = arith.constant 0 : i32
    %c0_i32_0 = arith.constant 0 : i32
    return %arg0, %c0_i32, %arg1 : i32, i32, i32
  }
}

module attributes {stable_mosaic.version = 11 : i64} {
  func.func @mm_bn_stats_kernel(%arg0: i32, %arg1: i32, %arg2: memref<1x32x256xbf16, #tpu.memory_space<vmem>>, %arg3: memref<1x256x128xbf16, #tpu.memory_space<vmem>>, %arg4: memref<1x32x128xbf16, #tpu.memory_space<vmem>>, %arg5: memref<1x32x128xf32, #tpu.memory_space<vmem>>, %arg6: memref<1x32x128xf32, #tpu.memory_space<vmem>>) attributes {dimension_semantics = [#tpu.dimension_semantics<parallel>, #tpu.dimension_semantics<arbitrary>], iteration_bounds = array<i64: 4, 1>, scalar_prefetch = 0 : i64, scratch_operands = 0 : i64, tpu.core_type = #tpu.core_type<tc>, window_params = [{transform_indices = @transform_0, window_bounds = array<i64: 1, 32, 256>}, {transform_indices = @transform_1, window_bounds = array<i64: 1, 256, 128>}, {transform_indices = @transform_2, window_bounds = array<i64: 1, 32, 128>}, {transform_indices = @transform_3, window_bounds = array<i64: 1, 32, 128>}, {transform_indices = @transform_4, window_bounds = array<i64: 1, 32, 128>}]} {
    %c0_i32 = arith.constant 0 : i32
    %0 = arith.cmpi eq, %arg1, %c0_i32 : i32
    %1 = arith.extui %0 : i1 to i32
    %c0_i32_0 = arith.constant 0 : i32
    %2 = arith.cmpi ne, %1, %c0_i32_0 : i32
    scf.if %2 {
      %cst_23 = arith.constant 0.000000e+00 : f32
      %33 = vector.broadcast %cst_23 : f32 to vector<32x128xf32>
      %c0_24 = arith.constant 0 : index
      %c0_25 = arith.constant 0 : index
      %c0_26 = arith.constant 0 : index
      %34 = vector.load %arg5[%c0_24, %c0_25, %c0_26] : memref<1x32x128xf32, #tpu.memory_space<vmem>>, vector<1x32x128xf32>
      %35 = vector.shape_cast %34 : vector<1x32x128xf32> to vector<32x128xf32>
      %36 = vector.shape_cast %33 : vector<32x128xf32> to vector<1x32x128xf32>
      tpu.vector_store %arg5[%c0_24, %c0_25, %c0_26], %36 {strides = array<i32>} : memref<1x32x128xf32, #tpu.memory_space<vmem>>, vector<1x32x128xf32>,
      %cst_27 = arith.constant 0.000000e+00 : f32
      %37 = vector.broadcast %cst_27 : f32 to vector<32x128xf32>
      %c0_28 = arith.constant 0 : index
      %c0_29 = arith.constant 0 : index
      %c0_30 = arith.constant 0 : index
      %38 = vector.load %arg6[%c0_28, %c0_29, %c0_30] : memref<1x32x128xf32, #tpu.memory_space<vmem>>, vector<1x32x128xf32>
      %39 = vector.shape_cast %38 : vector<1x32x128xf32> to vector<32x128xf32>
      %40 = vector.shape_cast %37 : vector<32x128xf32> to vector<1x32x128xf32>
      tpu.vector_store %arg6[%c0_28, %c0_29, %c0_30], %40 {strides = array<i32>} : memref<1x32x128xf32, #tpu.memory_space<vmem>>, vector<1x32x128xf32>,
    } else {
    }
    %c0 = arith.constant 0 : index
    %c0_1 = arith.constant 0 : index
    %c0_2 = arith.constant 0 : index
    %3 = vector.load %arg2[%c0, %c0_1, %c0_2] : memref<1x32x256xbf16, #tpu.memory_space<vmem>>, vector<1x32x256xbf16>
    %4 = vector.shape_cast %3 : vector<1x32x256xbf16> to vector<32x256xbf16>
    %c0_3 = arith.constant 0 : index
    %c0_4 = arith.constant 0 : index
    %c0_5 = arith.constant 0 : index
    %5 = vector.load %arg3[%c0_3, %c0_4, %c0_5] : memref<1x256x128xbf16, #tpu.memory_space<vmem>>, vector<1x256x128xbf16>
    %6 = vector.shape_cast %5 : vector<1x256x128xbf16> to vector<256x128xbf16>
    %cst = arith.constant dense<0.000000e+00> : vector<32x128xf32>
    %7 = tpu.matmul %4, %6, %cst {dimension_numbers = #tpu.dot_dimension_numbers<[1], [0], [0], [1], [0, 0, 1, 1], [], []>} : vector<32x256xbf16>, vector<256x128xbf16>, vector<32x128xf32> -> vector<32x128xf32>
    %8 = arith.truncf %7 : vector<32x128xf32> to vector<32x128xbf16>
    %c0_6 = arith.constant 0 : index
    %c0_7 = arith.constant 0 : index
    %c0_8 = arith.constant 0 : index
    %9 = vector.load %arg4[%c0_6, %c0_7, %c0_8] : memref<1x32x128xbf16, #tpu.memory_space<vmem>>, vector<1x32x128xbf16>
    %10 = vector.shape_cast %9 : vector<1x32x128xbf16> to vector<32x128xbf16>
    %11 = vector.shape_cast %8 : vector<32x128xbf16> to vector<1x32x128xbf16>
    tpu.vector_store %arg4[%c0_6, %c0_7, %c0_8], %11 {strides = array<i32>} : memref<1x32x128xbf16, #tpu.memory_space<vmem>>, vector<1x32x128xbf16>,
    %cst_9 = arith.constant dense<0.000000e+00> : vector<32xf32>
    %12 = vector.multi_reduction <add>, %7, %cst_9 [1] : vector<32x128xf32> to vector<32xf32>
    %13 = vector.shape_cast %12 : vector<32xf32> to vector<32x1xf32>
    %14 = arith.mulf %7, %7 : vector<32x128xf32>
    %cst_10 = arith.constant dense<0.000000e+00> : vector<32xf32>
    %15 = vector.multi_reduction <add>, %14, %cst_10 [1] : vector<32x128xf32> to vector<32xf32>
    %16 = vector.shape_cast %15 : vector<32xf32> to vector<32x1xf32>
    %c0_11 = arith.constant 0 : index
    %c0_12 = arith.constant 0 : index
    %c0_13 = arith.constant 0 : index
    %17 = vector.load %arg5[%c0_11, %c0_12, %c0_13] : memref<1x32x128xf32, #tpu.memory_space<vmem>>, vector<1x32x128xf32>
    %18 = vector.shape_cast %17 : vector<1x32x128xf32> to vector<32x128xf32>
    %19 = vector.shape_cast %13 : vector<32x1xf32> to vector<32x1xf32>
    %20 = vector.broadcast %19 : vector<32x1xf32> to vector<32x128xf32>
    %21 = arith.addf %18, %20 : vector<32x128xf32>
    %c0_14 = arith.constant 0 : index
    %c0_15 = arith.constant 0 : index
    %c0_16 = arith.constant 0 : index
    %22 = vector.load %arg5[%c0_14, %c0_15, %c0_16] : memref<1x32x128xf32, #tpu.memory_space<vmem>>, vector<1x32x128xf32>
    %23 = vector.shape_cast %22 : vector<1x32x128xf32> to vector<32x128xf32>
    %24 = vector.shape_cast %21 : vector<32x128xf32> to vector<1x32x128xf32>
    tpu.vector_store %arg5[%c0_14, %c0_15, %c0_16], %24 {strides = array<i32>} : memref<1x32x128xf32, #tpu.memory_space<vmem>>, vector<1x32x128xf32>,
    %c0_17 = arith.constant 0 : index
    %c0_18 = arith.constant 0 : index
    %c0_19 = arith.constant 0 : index
    %25 = vector.load %arg6[%c0_17, %c0_18, %c0_19] : memref<1x32x128xf32, #tpu.memory_space<vmem>>, vector<1x32x128xf32>
    %26 = vector.shape_cast %25 : vector<1x32x128xf32> to vector<32x128xf32>
    %27 = vector.shape_cast %16 : vector<32x1xf32> to vector<32x1xf32>
    %28 = vector.broadcast %27 : vector<32x1xf32> to vector<32x128xf32>
    %29 = arith.addf %26, %28 : vector<32x128xf32>
    %c0_20 = arith.constant 0 : index
    %c0_21 = arith.constant 0 : index
    %c0_22 = arith.constant 0 : index
    %30 = vector.load %arg6[%c0_20, %c0_21, %c0_22] : memref<1x32x128xf32, #tpu.memory_space<vmem>>, vector<1x32x128xf32>
    %31 = vector.shape_cast %30 : vector<1x32x128xf32> to vector<32x128xf32>
    %32 = vector.shape_cast %29 : vector<32x128xf32> to vector<1x32x128xf32>
    tpu.vector_store %arg6[%c0_20, %c0_21, %c0_22], %32 {strides = array<i32>} : memref<1x32x128xf32, #tpu.memory_space<vmem>>, vector<1x32x128xf32>,
    return
  }
  func.func @transform_0(%arg0: i32, %arg1: i32) -> (i32, i32, i32) {
    %c0_i32 = arith.constant 0 : i32
    %c0_i32_0 = arith.constant 0 : i32
    %c0_i32_1 = arith.constant 0 : i32
    return %arg0, %c0_i32, %c0_i32_0 : i32, i32, i32
  }
  func.func @transform_1(%arg0: i32, %arg1: i32) -> (i32, i32, i32) {
    %c0_i32 = arith.constant 0 : i32
    %c0_i32_0 = arith.constant 0 : i32
    return %arg0, %c0_i32, %arg1 : i32, i32, i32
  }
  func.func @transform_2(%arg0: i32, %arg1: i32) -> (i32, i32, i32) {
    %c0_i32 = arith.constant 0 : i32
    %c0_i32_0 = arith.constant 0 : i32
    return %arg0, %c0_i32, %arg1 : i32, i32, i32
  }
  func.func @transform_3(%arg0: i32, %arg1: i32) -> (i32, i32, i32) {
    %c0_i32 = arith.constant 0 : i32
    %c0_i32_0 = arith.constant 0 : i32
    %c0_i32_1 = arith.constant 0 : i32
    return %arg0, %c0_i32, %c0_i32_0 : i32, i32, i32
  }
  func.func @transform_4(%arg0: i32, %arg1: i32) -> (i32, i32, i32) {
    %c0_i32 = arith.constant 0 : i32
    %c0_i32_0 = arith.constant 0 : i32
    %c0_i32_1 = arith.constant 0 : i32
    return %arg0, %c0_i32, %c0_i32_0 : i32, i32, i32
  }
}

module attributes {stable_mosaic.version = 11 : i64} {
  func.func @bn_relu_kernel(%arg0: i32, %arg1: i32, %arg2: memref<1x32x128xbf16, #tpu.memory_space<vmem>>, %arg3: memref<4x32x128xf32, #tpu.memory_space<vmem>>, %arg4: memref<4x32x128xf32, #tpu.memory_space<vmem>>, %arg5: memref<32x1xf32, #tpu.memory_space<vmem>>, %arg6: memref<32x1xf32, #tpu.memory_space<vmem>>, %arg7: memref<1x32x128xbf16, #tpu.memory_space<vmem>>) attributes {dimension_semantics = [#tpu.dimension_semantics<parallel>, #tpu.dimension_semantics<parallel>], iteration_bounds = array<i64: 4, 1>, scalar_prefetch = 0 : i64, scratch_operands = 0 : i64, tpu.core_type = #tpu.core_type<tc>, window_params = [{transform_indices = @transform_0, window_bounds = array<i64: 1, 32, 128>}, {pipeline_mode = #tpu.pipeline_mode<synchronous>, transform_indices = @transform_1, window_bounds = array<i64: 4, 32, 128>}, {pipeline_mode = #tpu.pipeline_mode<synchronous>, transform_indices = @transform_2, window_bounds = array<i64: 4, 32, 128>}, {pipeline_mode = #tpu.pipeline_mode<synchronous>, transform_indices = @transform_3, window_bounds = array<i64: 32, 1>}, {pipeline_mode = #tpu.pipeline_mode<synchronous>, transform_indices = @transform_4, window_bounds = array<i64: 32, 1>}, {transform_indices = @transform_5, window_bounds = array<i64: 1, 32, 128>}]} {
    %c0 = arith.constant 0 : index
    %c0_0 = arith.constant 0 : index
    %c0_1 = arith.constant 0 : index
    %0 = vector.load %arg3[%c0, %c0_0, %c0_1] : memref<4x32x128xf32, #tpu.memory_space<vmem>>, vector<4x32x128xf32>
    %cst = arith.constant dense<0.000000e+00> : vector<32x128xf32>
    %1 = vector.multi_reduction <add>, %0, %cst [0] : vector<4x32x128xf32> to vector<32x128xf32>
    %2 = vector.extract_strided_slice %1 {offsets = [0, 0], sizes = [32, 1], strides = [1, 1]} : vector<32x128xf32> to vector<32x1xf32>
    %c0_2 = arith.constant 0 : index
    %c0_3 = arith.constant 0 : index
    %c0_4 = arith.constant 0 : index
    %3 = vector.load %arg4[%c0_2, %c0_3, %c0_4] : memref<4x32x128xf32, #tpu.memory_space<vmem>>, vector<4x32x128xf32>
    %cst_5 = arith.constant dense<0.000000e+00> : vector<32x128xf32>
    %4 = vector.multi_reduction <add>, %3, %cst_5 [0] : vector<4x32x128xf32> to vector<32x128xf32>
    %5 = vector.extract_strided_slice %4 {offsets = [0, 0], sizes = [32, 1], strides = [1, 1]} : vector<32x128xf32> to vector<32x1xf32>
    %cst_6 = arith.constant 7.812500e-03 : f32
    %6 = vector.broadcast %cst_6 : f32 to vector<32x1xf32>
    %7 = arith.mulf %2, %6 : vector<32x1xf32>
    %cst_7 = arith.constant 7.812500e-03 : f32
    %8 = vector.broadcast %cst_7 : f32 to vector<32x1xf32>
    %9 = arith.mulf %5, %8 : vector<32x1xf32>
    %10 = arith.mulf %7, %7 : vector<32x1xf32>
    %11 = arith.subf %9, %10 : vector<32x1xf32>
    %cst_8 = arith.constant 0.000000e+00 : f32
    %12 = vector.broadcast %cst_8 : f32 to vector<32x1xf32>
    %13 = arith.maximumf %11, %12 : vector<32x1xf32>
    %cst_9 = arith.constant 9.99999974E-6 : f32
    %14 = vector.broadcast %cst_9 : f32 to vector<32x1xf32>
    %15 = arith.addf %13, %14 : vector<32x1xf32>
    %16 = math.rsqrt %15 : vector<32x1xf32>
    %c0_10 = arith.constant 0 : index
    %c0_11 = arith.constant 0 : index
    %17 = vector.load %arg5[%c0_10, %c0_11] : memref<32x1xf32, #tpu.memory_space<vmem>>, vector<32x1xf32>
    %18 = arith.mulf %17, %16 : vector<32x1xf32>
    %c0_12 = arith.constant 0 : index
    %c0_13 = arith.constant 0 : index
    %19 = vector.load %arg6[%c0_12, %c0_13] : memref<32x1xf32, #tpu.memory_space<vmem>>, vector<32x1xf32>
    %20 = arith.mulf %7, %18 : vector<32x1xf32>
    %21 = arith.subf %19, %20 : vector<32x1xf32>
    %c0_14 = arith.constant 0 : index
    %c0_15 = arith.constant 0 : index
    %c0_16 = arith.constant 0 : index
    %22 = vector.load %arg2[%c0_14, %c0_15, %c0_16] : memref<1x32x128xbf16, #tpu.memory_space<vmem>>, vector<1x32x128xbf16>
    %23 = vector.shape_cast %22 : vector<1x32x128xbf16> to vector<32x128xbf16>
    %24 = arith.extf %23 : vector<32x128xbf16> to vector<32x128xf32>
    %25 = vector.broadcast %18 : vector<32x1xf32> to vector<32x128xf32>
    %26 = arith.mulf %24, %25 : vector<32x128xf32>
    %27 = vector.broadcast %21 : vector<32x1xf32> to vector<32x128xf32>
    %28 = arith.addf %26, %27 : vector<32x128xf32>
    %cst_17 = arith.constant 0.000000e+00 : f32
    %29 = vector.broadcast %cst_17 : f32 to vector<32x128xf32>
    %30 = arith.maximumf %28, %29 : vector<32x128xf32>
    %31 = arith.truncf %30 : vector<32x128xf32> to vector<32x128xbf16>
    %c0_18 = arith.constant 0 : index
    %c0_19 = arith.constant 0 : index
    %c0_20 = arith.constant 0 : index
    %32 = vector.load %arg7[%c0_18, %c0_19, %c0_20] : memref<1x32x128xbf16, #tpu.memory_space<vmem>>, vector<1x32x128xbf16>
    %33 = vector.shape_cast %32 : vector<1x32x128xbf16> to vector<32x128xbf16>
    %34 = vector.shape_cast %31 : vector<32x128xbf16> to vector<1x32x128xbf16>
    tpu.vector_store %arg7[%c0_18, %c0_19, %c0_20], %34 {strides = array<i32>} : memref<1x32x128xbf16, #tpu.memory_space<vmem>>, vector<1x32x128xbf16>,
    return
  }
  func.func @transform_0(%arg0: i32, %arg1: i32) -> (i32, i32, i32) {
    %c0_i32 = arith.constant 0 : i32
    %c0_i32_0 = arith.constant 0 : i32
    return %arg0, %c0_i32, %arg1 : i32, i32, i32
  }
  func.func @transform_1(%arg0: i32, %arg1: i32) -> (i32, i32, i32) {
    %c0_i32 = arith.constant 0 : i32
    %c0_i32_0 = arith.constant 0 : i32
    %c0_i32_1 = arith.constant 0 : i32
    %c0_i32_2 = arith.constant 0 : i32
    return %c0_i32, %c0_i32_0, %c0_i32_1 : i32, i32, i32
  }
  func.func @transform_2(%arg0: i32, %arg1: i32) -> (i32, i32, i32) {
    %c0_i32 = arith.constant 0 : i32
    %c0_i32_0 = arith.constant 0 : i32
    %c0_i32_1 = arith.constant 0 : i32
    %c0_i32_2 = arith.constant 0 : i32
    return %c0_i32, %c0_i32_0, %c0_i32_1 : i32, i32, i32
  }
  func.func @transform_3(%arg0: i32, %arg1: i32) -> (i32, i32) {
    %c0_i32 = arith.constant 0 : i32
    %c0_i32_0 = arith.constant 0 : i32
    %c0_i32_1 = arith.constant 0 : i32
    return %c0_i32, %c0_i32_0 : i32, i32
  }
  func.func @transform_4(%arg0: i32, %arg1: i32) -> (i32, i32) {
    %c0_i32 = arith.constant 0 : i32
    %c0_i32_0 = arith.constant 0 : i32
    %c0_i32_1 = arith.constant 0 : i32
    return %c0_i32, %c0_i32_0 : i32, i32
  }
  func.func @transform_5(%arg0: i32, %arg1: i32) -> (i32, i32, i32) {
    %c0_i32 = arith.constant 0 : i32
    %c0_i32_0 = arith.constant 0 : i32
    return %arg0, %c0_i32, %arg1 : i32, i32, i32
  }
}

module attributes {stable_mosaic.version = 11 : i64} {
  func.func @mm_bn_stats_kernel(%arg0: i32, %arg1: i32, %arg2: memref<1x16x128xbf16, #tpu.memory_space<vmem>>, %arg3: memref<1x128x128xbf16, #tpu.memory_space<vmem>>, %arg4: memref<1x16x128xbf16, #tpu.memory_space<vmem>>, %arg5: memref<1x16x128xf32, #tpu.memory_space<vmem>>, %arg6: memref<1x16x128xf32, #tpu.memory_space<vmem>>) attributes {dimension_semantics = [#tpu.dimension_semantics<parallel>, #tpu.dimension_semantics<arbitrary>], iteration_bounds = array<i64: 4, 1>, scalar_prefetch = 0 : i64, scratch_operands = 0 : i64, tpu.core_type = #tpu.core_type<tc>, window_params = [{transform_indices = @transform_0, window_bounds = array<i64: 1, 16, 128>}, {transform_indices = @transform_1, window_bounds = array<i64: 1, 128, 128>}, {transform_indices = @transform_2, window_bounds = array<i64: 1, 16, 128>}, {transform_indices = @transform_3, window_bounds = array<i64: 1, 16, 128>}, {transform_indices = @transform_4, window_bounds = array<i64: 1, 16, 128>}]} {
    %c0_i32 = arith.constant 0 : i32
    %0 = arith.cmpi eq, %arg1, %c0_i32 : i32
    %1 = arith.extui %0 : i1 to i32
    %c0_i32_0 = arith.constant 0 : i32
    %2 = arith.cmpi ne, %1, %c0_i32_0 : i32
    scf.if %2 {
      %cst_23 = arith.constant 0.000000e+00 : f32
      %33 = vector.broadcast %cst_23 : f32 to vector<16x128xf32>
      %c0_24 = arith.constant 0 : index
      %c0_25 = arith.constant 0 : index
      %c0_26 = arith.constant 0 : index
      %34 = vector.load %arg5[%c0_24, %c0_25, %c0_26] : memref<1x16x128xf32, #tpu.memory_space<vmem>>, vector<1x16x128xf32>
      %35 = vector.shape_cast %34 : vector<1x16x128xf32> to vector<16x128xf32>
      %36 = vector.shape_cast %33 : vector<16x128xf32> to vector<1x16x128xf32>
      tpu.vector_store %arg5[%c0_24, %c0_25, %c0_26], %36 {strides = array<i32>} : memref<1x16x128xf32, #tpu.memory_space<vmem>>, vector<1x16x128xf32>,
      %cst_27 = arith.constant 0.000000e+00 : f32
      %37 = vector.broadcast %cst_27 : f32 to vector<16x128xf32>
      %c0_28 = arith.constant 0 : index
      %c0_29 = arith.constant 0 : index
      %c0_30 = arith.constant 0 : index
      %38 = vector.load %arg6[%c0_28, %c0_29, %c0_30] : memref<1x16x128xf32, #tpu.memory_space<vmem>>, vector<1x16x128xf32>
      %39 = vector.shape_cast %38 : vector<1x16x128xf32> to vector<16x128xf32>
      %40 = vector.shape_cast %37 : vector<16x128xf32> to vector<1x16x128xf32>
      tpu.vector_store %arg6[%c0_28, %c0_29, %c0_30], %40 {strides = array<i32>} : memref<1x16x128xf32, #tpu.memory_space<vmem>>, vector<1x16x128xf32>,
    } else {
    }
    %c0 = arith.constant 0 : index
    %c0_1 = arith.constant 0 : index
    %c0_2 = arith.constant 0 : index
    %3 = vector.load %arg2[%c0, %c0_1, %c0_2] : memref<1x16x128xbf16, #tpu.memory_space<vmem>>, vector<1x16x128xbf16>
    %4 = vector.shape_cast %3 : vector<1x16x128xbf16> to vector<16x128xbf16>
    %c0_3 = arith.constant 0 : index
    %c0_4 = arith.constant 0 : index
    %c0_5 = arith.constant 0 : index
    %5 = vector.load %arg3[%c0_3, %c0_4, %c0_5] : memref<1x128x128xbf16, #tpu.memory_space<vmem>>, vector<1x128x128xbf16>
    %6 = vector.shape_cast %5 : vector<1x128x128xbf16> to vector<128x128xbf16>
    %cst = arith.constant dense<0.000000e+00> : vector<16x128xf32>
    %7 = tpu.matmul %4, %6, %cst {dimension_numbers = #tpu.dot_dimension_numbers<[1], [0], [0], [1], [0, 0, 1, 1], [], []>} : vector<16x128xbf16>, vector<128x128xbf16>, vector<16x128xf32> -> vector<16x128xf32>
    %8 = arith.truncf %7 : vector<16x128xf32> to vector<16x128xbf16>
    %c0_6 = arith.constant 0 : index
    %c0_7 = arith.constant 0 : index
    %c0_8 = arith.constant 0 : index
    %9 = vector.load %arg4[%c0_6, %c0_7, %c0_8] : memref<1x16x128xbf16, #tpu.memory_space<vmem>>, vector<1x16x128xbf16>
    %10 = vector.shape_cast %9 : vector<1x16x128xbf16> to vector<16x128xbf16>
    %11 = vector.shape_cast %8 : vector<16x128xbf16> to vector<1x16x128xbf16>
    tpu.vector_store %arg4[%c0_6, %c0_7, %c0_8], %11 {strides = array<i32>} : memref<1x16x128xbf16, #tpu.memory_space<vmem>>, vector<1x16x128xbf16>,
    %cst_9 = arith.constant dense<0.000000e+00> : vector<16xf32>
    %12 = vector.multi_reduction <add>, %7, %cst_9 [1] : vector<16x128xf32> to vector<16xf32>
    %13 = vector.shape_cast %12 : vector<16xf32> to vector<16x1xf32>
    %14 = arith.mulf %7, %7 : vector<16x128xf32>
    %cst_10 = arith.constant dense<0.000000e+00> : vector<16xf32>
    %15 = vector.multi_reduction <add>, %14, %cst_10 [1] : vector<16x128xf32> to vector<16xf32>
    %16 = vector.shape_cast %15 : vector<16xf32> to vector<16x1xf32>
    %c0_11 = arith.constant 0 : index
    %c0_12 = arith.constant 0 : index
    %c0_13 = arith.constant 0 : index
    %17 = vector.load %arg5[%c0_11, %c0_12, %c0_13] : memref<1x16x128xf32, #tpu.memory_space<vmem>>, vector<1x16x128xf32>
    %18 = vector.shape_cast %17 : vector<1x16x128xf32> to vector<16x128xf32>
    %19 = vector.shape_cast %13 : vector<16x1xf32> to vector<16x1xf32>
    %20 = vector.broadcast %19 : vector<16x1xf32> to vector<16x128xf32>
    %21 = arith.addf %18, %20 : vector<16x128xf32>
    %c0_14 = arith.constant 0 : index
    %c0_15 = arith.constant 0 : index
    %c0_16 = arith.constant 0 : index
    %22 = vector.load %arg5[%c0_14, %c0_15, %c0_16] : memref<1x16x128xf32, #tpu.memory_space<vmem>>, vector<1x16x128xf32>
    %23 = vector.shape_cast %22 : vector<1x16x128xf32> to vector<16x128xf32>
    %24 = vector.shape_cast %21 : vector<16x128xf32> to vector<1x16x128xf32>
    tpu.vector_store %arg5[%c0_14, %c0_15, %c0_16], %24 {strides = array<i32>} : memref<1x16x128xf32, #tpu.memory_space<vmem>>, vector<1x16x128xf32>,
    %c0_17 = arith.constant 0 : index
    %c0_18 = arith.constant 0 : index
    %c0_19 = arith.constant 0 : index
    %25 = vector.load %arg6[%c0_17, %c0_18, %c0_19] : memref<1x16x128xf32, #tpu.memory_space<vmem>>, vector<1x16x128xf32>
    %26 = vector.shape_cast %25 : vector<1x16x128xf32> to vector<16x128xf32>
    %27 = vector.shape_cast %16 : vector<16x1xf32> to vector<16x1xf32>
    %28 = vector.broadcast %27 : vector<16x1xf32> to vector<16x128xf32>
    %29 = arith.addf %26, %28 : vector<16x128xf32>
    %c0_20 = arith.constant 0 : index
    %c0_21 = arith.constant 0 : index
    %c0_22 = arith.constant 0 : index
    %30 = vector.load %arg6[%c0_20, %c0_21, %c0_22] : memref<1x16x128xf32, #tpu.memory_space<vmem>>, vector<1x16x128xf32>
    %31 = vector.shape_cast %30 : vector<1x16x128xf32> to vector<16x128xf32>
    %32 = vector.shape_cast %29 : vector<16x128xf32> to vector<1x16x128xf32>
    tpu.vector_store %arg6[%c0_20, %c0_21, %c0_22], %32 {strides = array<i32>} : memref<1x16x128xf32, #tpu.memory_space<vmem>>, vector<1x16x128xf32>,
    return
  }
  func.func @transform_0(%arg0: i32, %arg1: i32) -> (i32, i32, i32) {
    %c0_i32 = arith.constant 0 : i32
    %c0_i32_0 = arith.constant 0 : i32
    %c0_i32_1 = arith.constant 0 : i32
    return %arg0, %c0_i32, %c0_i32_0 : i32, i32, i32
  }
  func.func @transform_1(%arg0: i32, %arg1: i32) -> (i32, i32, i32) {
    %c0_i32 = arith.constant 0 : i32
    %c0_i32_0 = arith.constant 0 : i32
    return %arg0, %c0_i32, %arg1 : i32, i32, i32
  }
  func.func @transform_2(%arg0: i32, %arg1: i32) -> (i32, i32, i32) {
    %c0_i32 = arith.constant 0 : i32
    %c0_i32_0 = arith.constant 0 : i32
    return %arg0, %c0_i32, %arg1 : i32, i32, i32
  }
  func.func @transform_3(%arg0: i32, %arg1: i32) -> (i32, i32, i32) {
    %c0_i32 = arith.constant 0 : i32
    %c0_i32_0 = arith.constant 0 : i32
    %c0_i32_1 = arith.constant 0 : i32
    return %arg0, %c0_i32, %c0_i32_0 : i32, i32, i32
  }
  func.func @transform_4(%arg0: i32, %arg1: i32) -> (i32, i32, i32) {
    %c0_i32 = arith.constant 0 : i32
    %c0_i32_0 = arith.constant 0 : i32
    %c0_i32_1 = arith.constant 0 : i32
    return %arg0, %c0_i32, %c0_i32_0 : i32, i32, i32
  }
}

module attributes {stable_mosaic.version = 11 : i64} {
  func.func @bn_relu_kernel(%arg0: i32, %arg1: i32, %arg2: memref<1x16x128xbf16, #tpu.memory_space<vmem>>, %arg3: memref<4x16x128xf32, #tpu.memory_space<vmem>>, %arg4: memref<4x16x128xf32, #tpu.memory_space<vmem>>, %arg5: memref<16x1xf32, #tpu.memory_space<vmem>>, %arg6: memref<16x1xf32, #tpu.memory_space<vmem>>, %arg7: memref<1x16x128xbf16, #tpu.memory_space<vmem>>) attributes {dimension_semantics = [#tpu.dimension_semantics<parallel>, #tpu.dimension_semantics<parallel>], iteration_bounds = array<i64: 4, 1>, scalar_prefetch = 0 : i64, scratch_operands = 0 : i64, tpu.core_type = #tpu.core_type<tc>, window_params = [{transform_indices = @transform_0, window_bounds = array<i64: 1, 16, 128>}, {pipeline_mode = #tpu.pipeline_mode<synchronous>, transform_indices = @transform_1, window_bounds = array<i64: 4, 16, 128>}, {pipeline_mode = #tpu.pipeline_mode<synchronous>, transform_indices = @transform_2, window_bounds = array<i64: 4, 16, 128>}, {pipeline_mode = #tpu.pipeline_mode<synchronous>, transform_indices = @transform_3, window_bounds = array<i64: 16, 1>}, {pipeline_mode = #tpu.pipeline_mode<synchronous>, transform_indices = @transform_4, window_bounds = array<i64: 16, 1>}, {transform_indices = @transform_5, window_bounds = array<i64: 1, 16, 128>}]} {
    %c0 = arith.constant 0 : index
    %c0_0 = arith.constant 0 : index
    %c0_1 = arith.constant 0 : index
    %0 = vector.load %arg3[%c0, %c0_0, %c0_1] : memref<4x16x128xf32, #tpu.memory_space<vmem>>, vector<4x16x128xf32>
    %cst = arith.constant dense<0.000000e+00> : vector<16x128xf32>
    %1 = vector.multi_reduction <add>, %0, %cst [0] : vector<4x16x128xf32> to vector<16x128xf32>
    %2 = vector.extract_strided_slice %1 {offsets = [0, 0], sizes = [16, 1], strides = [1, 1]} : vector<16x128xf32> to vector<16x1xf32>
    %c0_2 = arith.constant 0 : index
    %c0_3 = arith.constant 0 : index
    %c0_4 = arith.constant 0 : index
    %3 = vector.load %arg4[%c0_2, %c0_3, %c0_4] : memref<4x16x128xf32, #tpu.memory_space<vmem>>, vector<4x16x128xf32>
    %cst_5 = arith.constant dense<0.000000e+00> : vector<16x128xf32>
    %4 = vector.multi_reduction <add>, %3, %cst_5 [0] : vector<4x16x128xf32> to vector<16x128xf32>
    %5 = vector.extract_strided_slice %4 {offsets = [0, 0], sizes = [16, 1], strides = [1, 1]} : vector<16x128xf32> to vector<16x1xf32>
    %cst_6 = arith.constant 0.001953125 : f32
    %6 = vector.broadcast %cst_6 : f32 to vector<16x1xf32>
    %7 = arith.mulf %2, %6 : vector<16x1xf32>
    %cst_7 = arith.constant 0.001953125 : f32
    %8 = vector.broadcast %cst_7 : f32 to vector<16x1xf32>
    %9 = arith.mulf %5, %8 : vector<16x1xf32>
    %10 = arith.mulf %7, %7 : vector<16x1xf32>
    %11 = arith.subf %9, %10 : vector<16x1xf32>
    %cst_8 = arith.constant 0.000000e+00 : f32
    %12 = vector.broadcast %cst_8 : f32 to vector<16x1xf32>
    %13 = arith.maximumf %11, %12 : vector<16x1xf32>
    %cst_9 = arith.constant 9.99999974E-6 : f32
    %14 = vector.broadcast %cst_9 : f32 to vector<16x1xf32>
    %15 = arith.addf %13, %14 : vector<16x1xf32>
    %16 = math.rsqrt %15 : vector<16x1xf32>
    %c0_10 = arith.constant 0 : index
    %c0_11 = arith.constant 0 : index
    %17 = vector.load %arg5[%c0_10, %c0_11] : memref<16x1xf32, #tpu.memory_space<vmem>>, vector<16x1xf32>
    %18 = arith.mulf %17, %16 : vector<16x1xf32>
    %c0_12 = arith.constant 0 : index
    %c0_13 = arith.constant 0 : index
    %19 = vector.load %arg6[%c0_12, %c0_13] : memref<16x1xf32, #tpu.memory_space<vmem>>, vector<16x1xf32>
    %20 = arith.mulf %7, %18 : vector<16x1xf32>
    %21 = arith.subf %19, %20 : vector<16x1xf32>
    %c0_14 = arith.constant 0 : index
    %c0_15 = arith.constant 0 : index
    %c0_16 = arith.constant 0 : index
    %22 = vector.load %arg2[%c0_14, %c0_15, %c0_16] : memref<1x16x128xbf16, #tpu.memory_space<vmem>>, vector<1x16x128xbf16>
    %23 = vector.shape_cast %22 : vector<1x16x128xbf16> to vector<16x128xbf16>
    %24 = arith.extf %23 : vector<16x128xbf16> to vector<16x128xf32>
    %25 = vector.broadcast %18 : vector<16x1xf32> to vector<16x128xf32>
    %26 = arith.mulf %24, %25 : vector<16x128xf32>
    %27 = vector.broadcast %21 : vector<16x1xf32> to vector<16x128xf32>
    %28 = arith.addf %26, %27 : vector<16x128xf32>
    %cst_17 = arith.constant 0.000000e+00 : f32
    %29 = vector.broadcast %cst_17 : f32 to vector<16x128xf32>
    %30 = arith.maximumf %28, %29 : vector<16x128xf32>
    %31 = arith.truncf %30 : vector<16x128xf32> to vector<16x128xbf16>
    %c0_18 = arith.constant 0 : index
    %c0_19 = arith.constant 0 : index
    %c0_20 = arith.constant 0 : index
    %32 = vector.load %arg7[%c0_18, %c0_19, %c0_20] : memref<1x16x128xbf16, #tpu.memory_space<vmem>>, vector<1x16x128xbf16>
    %33 = vector.shape_cast %32 : vector<1x16x128xbf16> to vector<16x128xbf16>
    %34 = vector.shape_cast %31 : vector<16x128xbf16> to vector<1x16x128xbf16>
    tpu.vector_store %arg7[%c0_18, %c0_19, %c0_20], %34 {strides = array<i32>} : memref<1x16x128xbf16, #tpu.memory_space<vmem>>, vector<1x16x128xbf16>,
    return
  }
  func.func @transform_0(%arg0: i32, %arg1: i32) -> (i32, i32, i32) {
    %c0_i32 = arith.constant 0 : i32
    %c0_i32_0 = arith.constant 0 : i32
    return %arg0, %c0_i32, %arg1 : i32, i32, i32
  }
  func.func @transform_1(%arg0: i32, %arg1: i32) -> (i32, i32, i32) {
    %c0_i32 = arith.constant 0 : i32
    %c0_i32_0 = arith.constant 0 : i32
    %c0_i32_1 = arith.constant 0 : i32
    %c0_i32_2 = arith.constant 0 : i32
    return %c0_i32, %c0_i32_0, %c0_i32_1 : i32, i32, i32
  }
  func.func @transform_2(%arg0: i32, %arg1: i32) -> (i32, i32, i32) {
    %c0_i32 = arith.constant 0 : i32
    %c0_i32_0 = arith.constant 0 : i32
    %c0_i32_1 = arith.constant 0 : i32
    %c0_i32_2 = arith.constant 0 : i32
    return %c0_i32, %c0_i32_0, %c0_i32_1 : i32, i32, i32
  }
  func.func @transform_3(%arg0: i32, %arg1: i32) -> (i32, i32) {
    %c0_i32 = arith.constant 0 : i32
    %c0_i32_0 = arith.constant 0 : i32
    %c0_i32_1 = arith.constant 0 : i32
    return %c0_i32, %c0_i32_0 : i32, i32
  }
  func.func @transform_4(%arg0: i32, %arg1: i32) -> (i32, i32) {
    %c0_i32 = arith.constant 0 : i32
    %c0_i32_0 = arith.constant 0 : i32
    %c0_i32_1 = arith.constant 0 : i32
    return %c0_i32, %c0_i32_0 : i32, i32
  }
  func.func @transform_5(%arg0: i32, %arg1: i32) -> (i32, i32, i32) {
    %c0_i32 = arith.constant 0 : i32
    %c0_i32_0 = arith.constant 0 : i32
    return %arg0, %c0_i32, %arg1 : i32, i32, i32
  }
}

module attributes {stable_mosaic.version = 11 : i64} {
  func.func @mm_bn_stats_kernel(%arg0: i32, %arg1: i32, %arg2: memref<1x16x64xbf16, #tpu.memory_space<vmem>>, %arg3: memref<1x64x512xbf16, #tpu.memory_space<vmem>>, %arg4: memref<1x16x512xbf16, #tpu.memory_space<vmem>>, %arg5: memref<1x16x128xf32, #tpu.memory_space<vmem>>, %arg6: memref<1x16x128xf32, #tpu.memory_space<vmem>>) attributes {dimension_semantics = [#tpu.dimension_semantics<parallel>, #tpu.dimension_semantics<arbitrary>], iteration_bounds = array<i64: 4, 1>, scalar_prefetch = 0 : i64, scratch_operands = 0 : i64, tpu.core_type = #tpu.core_type<tc>, window_params = [{transform_indices = @transform_0, window_bounds = array<i64: 1, 16, 64>}, {transform_indices = @transform_1, window_bounds = array<i64: 1, 64, 512>}, {transform_indices = @transform_2, window_bounds = array<i64: 1, 16, 512>}, {transform_indices = @transform_3, window_bounds = array<i64: 1, 16, 128>}, {transform_indices = @transform_4, window_bounds = array<i64: 1, 16, 128>}]} {
    %c0_i32 = arith.constant 0 : i32
    %0 = arith.cmpi eq, %arg1, %c0_i32 : i32
    %1 = arith.extui %0 : i1 to i32
    %c0_i32_0 = arith.constant 0 : i32
    %2 = arith.cmpi ne, %1, %c0_i32_0 : i32
    scf.if %2 {
      %cst_23 = arith.constant 0.000000e+00 : f32
      %33 = vector.broadcast %cst_23 : f32 to vector<16x128xf32>
      %c0_24 = arith.constant 0 : index
      %c0_25 = arith.constant 0 : index
      %c0_26 = arith.constant 0 : index
      %34 = vector.load %arg5[%c0_24, %c0_25, %c0_26] : memref<1x16x128xf32, #tpu.memory_space<vmem>>, vector<1x16x128xf32>
      %35 = vector.shape_cast %34 : vector<1x16x128xf32> to vector<16x128xf32>
      %36 = vector.shape_cast %33 : vector<16x128xf32> to vector<1x16x128xf32>
      tpu.vector_store %arg5[%c0_24, %c0_25, %c0_26], %36 {strides = array<i32>} : memref<1x16x128xf32, #tpu.memory_space<vmem>>, vector<1x16x128xf32>,
      %cst_27 = arith.constant 0.000000e+00 : f32
      %37 = vector.broadcast %cst_27 : f32 to vector<16x128xf32>
      %c0_28 = arith.constant 0 : index
      %c0_29 = arith.constant 0 : index
      %c0_30 = arith.constant 0 : index
      %38 = vector.load %arg6[%c0_28, %c0_29, %c0_30] : memref<1x16x128xf32, #tpu.memory_space<vmem>>, vector<1x16x128xf32>
      %39 = vector.shape_cast %38 : vector<1x16x128xf32> to vector<16x128xf32>
      %40 = vector.shape_cast %37 : vector<16x128xf32> to vector<1x16x128xf32>
      tpu.vector_store %arg6[%c0_28, %c0_29, %c0_30], %40 {strides = array<i32>} : memref<1x16x128xf32, #tpu.memory_space<vmem>>, vector<1x16x128xf32>,
    } else {
    }
    %c0 = arith.constant 0 : index
    %c0_1 = arith.constant 0 : index
    %c0_2 = arith.constant 0 : index
    %3 = vector.load %arg2[%c0, %c0_1, %c0_2] : memref<1x16x64xbf16, #tpu.memory_space<vmem>>, vector<1x16x64xbf16>
    %4 = vector.shape_cast %3 : vector<1x16x64xbf16> to vector<16x64xbf16>
    %c0_3 = arith.constant 0 : index
    %c0_4 = arith.constant 0 : index
    %c0_5 = arith.constant 0 : index
    %5 = vector.load %arg3[%c0_3, %c0_4, %c0_5] : memref<1x64x512xbf16, #tpu.memory_space<vmem>>, vector<1x64x512xbf16>
    %6 = vector.shape_cast %5 : vector<1x64x512xbf16> to vector<64x512xbf16>
    %cst = arith.constant dense<0.000000e+00> : vector<16x512xf32>
    %7 = tpu.matmul %4, %6, %cst {dimension_numbers = #tpu.dot_dimension_numbers<[1], [0], [0], [1], [0, 0, 1, 1], [], []>} : vector<16x64xbf16>, vector<64x512xbf16>, vector<16x512xf32> -> vector<16x512xf32>
    %8 = arith.truncf %7 : vector<16x512xf32> to vector<16x512xbf16>
    %c0_6 = arith.constant 0 : index
    %c0_7 = arith.constant 0 : index
    %c0_8 = arith.constant 0 : index
    %9 = vector.load %arg4[%c0_6, %c0_7, %c0_8] : memref<1x16x512xbf16, #tpu.memory_space<vmem>>, vector<1x16x512xbf16>
    %10 = vector.shape_cast %9 : vector<1x16x512xbf16> to vector<16x512xbf16>
    %11 = vector.shape_cast %8 : vector<16x512xbf16> to vector<1x16x512xbf16>
    tpu.vector_store %arg4[%c0_6, %c0_7, %c0_8], %11 {strides = array<i32>} : memref<1x16x512xbf16, #tpu.memory_space<vmem>>, vector<1x16x512xbf16>,
    %cst_9 = arith.constant dense<0.000000e+00> : vector<16xf32>
    %12 = vector.multi_reduction <add>, %7, %cst_9 [1] : vector<16x512xf32> to vector<16xf32>
    %13 = vector.shape_cast %12 : vector<16xf32> to vector<16x1xf32>
    %14 = arith.mulf %7, %7 : vector<16x512xf32>
    %cst_10 = arith.constant dense<0.000000e+00> : vector<16xf32>
    %15 = vector.multi_reduction <add>, %14, %cst_10 [1] : vector<16x512xf32> to vector<16xf32>
    %16 = vector.shape_cast %15 : vector<16xf32> to vector<16x1xf32>
    %c0_11 = arith.constant 0 : index
    %c0_12 = arith.constant 0 : index
    %c0_13 = arith.constant 0 : index
    %17 = vector.load %arg5[%c0_11, %c0_12, %c0_13] : memref<1x16x128xf32, #tpu.memory_space<vmem>>, vector<1x16x128xf32>
    %18 = vector.shape_cast %17 : vector<1x16x128xf32> to vector<16x128xf32>
    %19 = vector.shape_cast %13 : vector<16x1xf32> to vector<16x1xf32>
    %20 = vector.broadcast %19 : vector<16x1xf32> to vector<16x128xf32>
    %21 = arith.addf %18, %20 : vector<16x128xf32>
    %c0_14 = arith.constant 0 : index
    %c0_15 = arith.constant 0 : index
    %c0_16 = arith.constant 0 : index
    %22 = vector.load %arg5[%c0_14, %c0_15, %c0_16] : memref<1x16x128xf32, #tpu.memory_space<vmem>>, vector<1x16x128xf32>
    %23 = vector.shape_cast %22 : vector<1x16x128xf32> to vector<16x128xf32>
    %24 = vector.shape_cast %21 : vector<16x128xf32> to vector<1x16x128xf32>
    tpu.vector_store %arg5[%c0_14, %c0_15, %c0_16], %24 {strides = array<i32>} : memref<1x16x128xf32, #tpu.memory_space<vmem>>, vector<1x16x128xf32>,
    %c0_17 = arith.constant 0 : index
    %c0_18 = arith.constant 0 : index
    %c0_19 = arith.constant 0 : index
    %25 = vector.load %arg6[%c0_17, %c0_18, %c0_19] : memref<1x16x128xf32, #tpu.memory_space<vmem>>, vector<1x16x128xf32>
    %26 = vector.shape_cast %25 : vector<1x16x128xf32> to vector<16x128xf32>
    %27 = vector.shape_cast %16 : vector<16x1xf32> to vector<16x1xf32>
    %28 = vector.broadcast %27 : vector<16x1xf32> to vector<16x128xf32>
    %29 = arith.addf %26, %28 : vector<16x128xf32>
    %c0_20 = arith.constant 0 : index
    %c0_21 = arith.constant 0 : index
    %c0_22 = arith.constant 0 : index
    %30 = vector.load %arg6[%c0_20, %c0_21, %c0_22] : memref<1x16x128xf32, #tpu.memory_space<vmem>>, vector<1x16x128xf32>
    %31 = vector.shape_cast %30 : vector<1x16x128xf32> to vector<16x128xf32>
    %32 = vector.shape_cast %29 : vector<16x128xf32> to vector<1x16x128xf32>
    tpu.vector_store %arg6[%c0_20, %c0_21, %c0_22], %32 {strides = array<i32>} : memref<1x16x128xf32, #tpu.memory_space<vmem>>, vector<1x16x128xf32>,
    return
  }
  func.func @transform_0(%arg0: i32, %arg1: i32) -> (i32, i32, i32) {
    %c0_i32 = arith.constant 0 : i32
    %c0_i32_0 = arith.constant 0 : i32
    %c0_i32_1 = arith.constant 0 : i32
    return %arg0, %c0_i32, %c0_i32_0 : i32, i32, i32
  }
  func.func @transform_1(%arg0: i32, %arg1: i32) -> (i32, i32, i32) {
    %c0_i32 = arith.constant 0 : i32
    %c0_i32_0 = arith.constant 0 : i32
    return %arg0, %c0_i32, %arg1 : i32, i32, i32
  }
  func.func @transform_2(%arg0: i32, %arg1: i32) -> (i32, i32, i32) {
    %c0_i32 = arith.constant 0 : i32
    %c0_i32_0 = arith.constant 0 : i32
    return %arg0, %c0_i32, %arg1 : i32, i32, i32
  }
  func.func @transform_3(%arg0: i32, %arg1: i32) -> (i32, i32, i32) {
    %c0_i32 = arith.constant 0 : i32
    %c0_i32_0 = arith.constant 0 : i32
    %c0_i32_1 = arith.constant 0 : i32
    return %arg0, %c0_i32, %c0_i32_0 : i32, i32, i32
  }
  func.func @transform_4(%arg0: i32, %arg1: i32) -> (i32, i32, i32) {
    %c0_i32 = arith.constant 0 : i32
    %c0_i32_0 = arith.constant 0 : i32
    %c0_i32_1 = arith.constant 0 : i32
    return %arg0, %c0_i32, %c0_i32_0 : i32, i32, i32
  }
}

module attributes {stable_mosaic.version = 11 : i64} {
  func.func @bn_relu_kernel(%arg0: i32, %arg1: i32, %arg2: memref<1x16x512xbf16, #tpu.memory_space<vmem>>, %arg3: memref<4x16x128xf32, #tpu.memory_space<vmem>>, %arg4: memref<4x16x128xf32, #tpu.memory_space<vmem>>, %arg5: memref<16x1xf32, #tpu.memory_space<vmem>>, %arg6: memref<16x1xf32, #tpu.memory_space<vmem>>, %arg7: memref<1x16x512xbf16, #tpu.memory_space<vmem>>) attributes {dimension_semantics = [#tpu.dimension_semantics<parallel>, #tpu.dimension_semantics<parallel>], iteration_bounds = array<i64: 4, 1>, scalar_prefetch = 0 : i64, scratch_operands = 0 : i64, tpu.core_type = #tpu.core_type<tc>, window_params = [{transform_indices = @transform_0, window_bounds = array<i64: 1, 16, 512>}, {pipeline_mode = #tpu.pipeline_mode<synchronous>, transform_indices = @transform_1, window_bounds = array<i64: 4, 16, 128>}, {pipeline_mode = #tpu.pipeline_mode<synchronous>, transform_indices = @transform_2, window_bounds = array<i64: 4, 16, 128>}, {pipeline_mode = #tpu.pipeline_mode<synchronous>, transform_indices = @transform_3, window_bounds = array<i64: 16, 1>}, {pipeline_mode = #tpu.pipeline_mode<synchronous>, transform_indices = @transform_4, window_bounds = array<i64: 16, 1>}, {transform_indices = @transform_5, window_bounds = array<i64: 1, 16, 512>}]} {
    %c0 = arith.constant 0 : index
    %c0_0 = arith.constant 0 : index
    %c0_1 = arith.constant 0 : index
    %0 = vector.load %arg3[%c0, %c0_0, %c0_1] : memref<4x16x128xf32, #tpu.memory_space<vmem>>, vector<4x16x128xf32>
    %cst = arith.constant dense<0.000000e+00> : vector<16x128xf32>
    %1 = vector.multi_reduction <add>, %0, %cst [0] : vector<4x16x128xf32> to vector<16x128xf32>
    %2 = vector.extract_strided_slice %1 {offsets = [0, 0], sizes = [16, 1], strides = [1, 1]} : vector<16x128xf32> to vector<16x1xf32>
    %c0_2 = arith.constant 0 : index
    %c0_3 = arith.constant 0 : index
    %c0_4 = arith.constant 0 : index
    %3 = vector.load %arg4[%c0_2, %c0_3, %c0_4] : memref<4x16x128xf32, #tpu.memory_space<vmem>>, vector<4x16x128xf32>
    %cst_5 = arith.constant dense<0.000000e+00> : vector<16x128xf32>
    %4 = vector.multi_reduction <add>, %3, %cst_5 [0] : vector<4x16x128xf32> to vector<16x128xf32>
    %5 = vector.extract_strided_slice %4 {offsets = [0, 0], sizes = [16, 1], strides = [1, 1]} : vector<16x128xf32> to vector<16x1xf32>
    %cst_6 = arith.constant 4.8828125E-4 : f32
    %6 = vector.broadcast %cst_6 : f32 to vector<16x1xf32>
    %7 = arith.mulf %2, %6 : vector<16x1xf32>
    %cst_7 = arith.constant 4.8828125E-4 : f32
    %8 = vector.broadcast %cst_7 : f32 to vector<16x1xf32>
    %9 = arith.mulf %5, %8 : vector<16x1xf32>
    %10 = arith.mulf %7, %7 : vector<16x1xf32>
    %11 = arith.subf %9, %10 : vector<16x1xf32>
    %cst_8 = arith.constant 0.000000e+00 : f32
    %12 = vector.broadcast %cst_8 : f32 to vector<16x1xf32>
    %13 = arith.maximumf %11, %12 : vector<16x1xf32>
    %cst_9 = arith.constant 9.99999974E-6 : f32
    %14 = vector.broadcast %cst_9 : f32 to vector<16x1xf32>
    %15 = arith.addf %13, %14 : vector<16x1xf32>
    %16 = math.rsqrt %15 : vector<16x1xf32>
    %c0_10 = arith.constant 0 : index
    %c0_11 = arith.constant 0 : index
    %17 = vector.load %arg5[%c0_10, %c0_11] : memref<16x1xf32, #tpu.memory_space<vmem>>, vector<16x1xf32>
    %18 = arith.mulf %17, %16 : vector<16x1xf32>
    %c0_12 = arith.constant 0 : index
    %c0_13 = arith.constant 0 : index
    %19 = vector.load %arg6[%c0_12, %c0_13] : memref<16x1xf32, #tpu.memory_space<vmem>>, vector<16x1xf32>
    %20 = arith.mulf %7, %18 : vector<16x1xf32>
    %21 = arith.subf %19, %20 : vector<16x1xf32>
    %c0_14 = arith.constant 0 : index
    %c0_15 = arith.constant 0 : index
    %c0_16 = arith.constant 0 : index
    %22 = vector.load %arg2[%c0_14, %c0_15, %c0_16] : memref<1x16x512xbf16, #tpu.memory_space<vmem>>, vector<1x16x512xbf16>
    %23 = vector.shape_cast %22 : vector<1x16x512xbf16> to vector<16x512xbf16>
    %24 = arith.extf %23 : vector<16x512xbf16> to vector<16x512xf32>
    %25 = vector.broadcast %18 : vector<16x1xf32> to vector<16x512xf32>
    %26 = arith.mulf %24, %25 : vector<16x512xf32>
    %27 = vector.broadcast %21 : vector<16x1xf32> to vector<16x512xf32>
    %28 = arith.addf %26, %27 : vector<16x512xf32>
    %cst_17 = arith.constant 0.000000e+00 : f32
    %29 = vector.broadcast %cst_17 : f32 to vector<16x512xf32>
    %30 = arith.maximumf %28, %29 : vector<16x512xf32>
    %31 = arith.truncf %30 : vector<16x512xf32> to vector<16x512xbf16>
    %c0_18 = arith.constant 0 : index
    %c0_19 = arith.constant 0 : index
    %c0_20 = arith.constant 0 : index
    %32 = vector.load %arg7[%c0_18, %c0_19, %c0_20] : memref<1x16x512xbf16, #tpu.memory_space<vmem>>, vector<1x16x512xbf16>
    %33 = vector.shape_cast %32 : vector<1x16x512xbf16> to vector<16x512xbf16>
    %34 = vector.shape_cast %31 : vector<16x512xbf16> to vector<1x16x512xbf16>
    tpu.vector_store %arg7[%c0_18, %c0_19, %c0_20], %34 {strides = array<i32>} : memref<1x16x512xbf16, #tpu.memory_space<vmem>>, vector<1x16x512xbf16>,
    return
  }
  func.func @transform_0(%arg0: i32, %arg1: i32) -> (i32, i32, i32) {
    %c0_i32 = arith.constant 0 : i32
    %c0_i32_0 = arith.constant 0 : i32
    return %arg0, %c0_i32, %arg1 : i32, i32, i32
  }
  func.func @transform_1(%arg0: i32, %arg1: i32) -> (i32, i32, i32) {
    %c0_i32 = arith.constant 0 : i32
    %c0_i32_0 = arith.constant 0 : i32
    %c0_i32_1 = arith.constant 0 : i32
    %c0_i32_2 = arith.constant 0 : i32
    return %c0_i32, %c0_i32_0, %c0_i32_1 : i32, i32, i32
  }
  func.func @transform_2(%arg0: i32, %arg1: i32) -> (i32, i32, i32) {
    %c0_i32 = arith.constant 0 : i32
    %c0_i32_0 = arith.constant 0 : i32
    %c0_i32_1 = arith.constant 0 : i32
    %c0_i32_2 = arith.constant 0 : i32
    return %c0_i32, %c0_i32_0, %c0_i32_1 : i32, i32, i32
  }
  func.func @transform_3(%arg0: i32, %arg1: i32) -> (i32, i32) {
    %c0_i32 = arith.constant 0 : i32
    %c0_i32_0 = arith.constant 0 : i32
    %c0_i32_1 = arith.constant 0 : i32
    return %c0_i32, %c0_i32_0 : i32, i32
  }
  func.func @transform_4(%arg0: i32, %arg1: i32) -> (i32, i32) {
    %c0_i32 = arith.constant 0 : i32
    %c0_i32_0 = arith.constant 0 : i32
    %c0_i32_1 = arith.constant 0 : i32
    return %c0_i32, %c0_i32_0 : i32, i32
  }
  func.func @transform_5(%arg0: i32, %arg1: i32) -> (i32, i32, i32) {
    %c0_i32 = arith.constant 0 : i32
    %c0_i32_0 = arith.constant 0 : i32
    return %arg0, %c0_i32, %arg1 : i32, i32, i32
  }
}

module attributes {stable_mosaic.version = 11 : i64} {
  func.func @mm_tanh_kernel(%arg0: i32, %arg1: i32, %arg2: memref<1x16x32xbf16, #tpu.memory_space<vmem>>, %arg3: memref<1x32x2048xbf16, #tpu.memory_space<vmem>>, %arg4: memref<1x16x2048xf32, #tpu.memory_space<vmem>>) attributes {dimension_semantics = [#tpu.dimension_semantics<parallel>, #tpu.dimension_semantics<arbitrary>], iteration_bounds = array<i64: 4, 1>, scalar_prefetch = 0 : i64, scratch_operands = 0 : i64, tpu.core_type = #tpu.core_type<tc>, window_params = [{transform_indices = @transform_0, window_bounds = array<i64: 1, 16, 32>}, {transform_indices = @transform_1, window_bounds = array<i64: 1, 32, 2048>}, {transform_indices = @transform_2, window_bounds = array<i64: 1, 16, 2048>}]} {
    %c0 = arith.constant 0 : index
    %c0_0 = arith.constant 0 : index
    %c0_1 = arith.constant 0 : index
    %0 = vector.load %arg2[%c0, %c0_0, %c0_1] : memref<1x16x32xbf16, #tpu.memory_space<vmem>>, vector<1x16x32xbf16>
    %1 = vector.shape_cast %0 : vector<1x16x32xbf16> to vector<16x32xbf16>
    %c0_2 = arith.constant 0 : index
    %c0_3 = arith.constant 0 : index
    %c0_4 = arith.constant 0 : index
    %2 = vector.load %arg3[%c0_2, %c0_3, %c0_4] : memref<1x32x2048xbf16, #tpu.memory_space<vmem>>, vector<1x32x2048xbf16>
    %3 = vector.shape_cast %2 : vector<1x32x2048xbf16> to vector<32x2048xbf16>
    %cst = arith.constant dense<0.000000e+00> : vector<16x2048xf32>
    %4 = tpu.matmul %1, %3, %cst {dimension_numbers = #tpu.dot_dimension_numbers<[1], [0], [0], [1], [0, 0, 1, 1], [], []>} : vector<16x32xbf16>, vector<32x2048xbf16>, vector<16x2048xf32> -> vector<16x2048xf32>
    %5 = math.tanh %4 : vector<16x2048xf32>
    %c0_5 = arith.constant 0 : index
    %c0_6 = arith.constant 0 : index
    %c0_7 = arith.constant 0 : index
    %6 = vector.load %arg4[%c0_5, %c0_6, %c0_7] : memref<1x16x2048xf32, #tpu.memory_space<vmem>>, vector<1x16x2048xf32>
    %7 = vector.shape_cast %6 : vector<1x16x2048xf32> to vector<16x2048xf32>
    %8 = vector.shape_cast %5 : vector<16x2048xf32> to vector<1x16x2048xf32>
    tpu.vector_store %arg4[%c0_5, %c0_6, %c0_7], %8 {strides = array<i32>} : memref<1x16x2048xf32, #tpu.memory_space<vmem>>, vector<1x16x2048xf32>,
    return
  }
  func.func @transform_0(%arg0: i32, %arg1: i32) -> (i32, i32, i32) {
    %c0_i32 = arith.constant 0 : i32
    %c0_i32_0 = arith.constant 0 : i32
    %c0_i32_1 = arith.constant 0 : i32
    return %arg0, %c0_i32, %c0_i32_0 : i32, i32, i32
  }
  func.func @transform_1(%arg0: i32, %arg1: i32) -> (i32, i32, i32) {
    %c0_i32 = arith.constant 0 : i32
    %c0_i32_0 = arith.constant 0 : i32
    return %arg0, %c0_i32, %arg1 : i32, i32, i32
  }
  func.func @transform_2(%arg0: i32, %arg1: i32) -> (i32, i32, i32) {
    %c0_i32 = arith.constant 0 : i32
    %c0_i32_0 = arith.constant 0 : i32
    return %arg0, %c0_i32, %arg1 : i32, i32, i32
  }
}

</mosaic_0001>

<llo_original>
// kernel: generator_forward.9
$region0: #{generator_forward.9}
  #allocation0 [shape = 'u32[]', space=smem, size = 0x4, offset = 0x4, fixed_abs, tag = 'smem constant byte address 0x4 - core index']
  #allocation1 [shape = 'u32[144,128]{1,0:T(1,128)}', space=vmem, size = 0x12000, scoped, tag = 'internal scratch']
  %s0 = inlined_call_operand.vmem [shape: bf16[16,64,16], index: 0, kind: input, shape index: {}]
  %s1 = inlined_call_operand.vmem [shape: bf16[1,16,128], index: 1, kind: input, shape index: {}]
  %s2 = inlined_call_operand.vmem [shape: bf16[16,64,128], index: 2, kind: output, shape index: {0}]
  %s3 = inlined_call_operand.vmem [shape: f32[16,64,128], index: 3, kind: output, shape index: {1}]
  %s4 = inlined_call_operand.vmem [shape: f32[16,64,128], index: 4, kind: output, shape index: {2}]
  %5 = xla_tuple %s2, %s3, %s4
  %s6 = sld [smem:[#allocation0]]
  $region61: #{generator_forward.9} parent=0
    _
  %s8 = ssub.s32 1, %s6
  %s9 = scalar_select 0, %s8, %s6
  loop: start=0, step=1, limit=18
  $region2: #{generator_forward.9} parent=0 // loop_pre_header
    _
  $region3: #{generator_forward.9} parent=0 // loop_header
    %s11 = sphi 0, %s15
    %p12 = scmp.ge.s32.totalorder %s11, 18
    %s18 = sphi 0, %s30
    %s19 = sphi 0, %s26
    %s20 = sphi 0, %s18
    %s21 = sphi 0, %s19
    %s22 = sphi 0, %s20
    %s23 = sphi 0, %s21
    %s33 = sphi 0, %s35
    %s36 = sphi 0, %s33
    %s37 = sphi 0, %s36
    %s53 = sphi 0, %s37
    %s59 = sphi 0, %s61
    %s62 = sphi 0, %s59
    %s63 = sphi 0, %s62
    %s79 = sphi 0, %s63
    %s87 = sphi 0, %s89
    %s90 = sphi 0, %s87
    %s91 = sphi 0, %s90
    %s107 = sphi 0, %s91
    %s113 = sphi 0, %s115
    %s116 = sphi 0, %s113
    %s117 = sphi 0, %s116
    %s133 = sphi 0, %s117
    %s139 = sphi 0, %s141
    %s142 = sphi 0, %s139
    %s143 = sphi 0, %s142
    %s159 = sphi 0, %s143
  $region4: #{generator_forward.9} parent=0 // loop_header_branch
    %14 = sbr.rel (%p12) target = $region8
  $region5: #{generator_forward.9} parent=0 // loop_body
    %s16 = ssub.s32 %s11, 1
    %s17 = ssub.s32 %s11, 2
    %s24 = sadd.s32 1, %s19
    %p25 = scmp.ge.s32.totalorder %s24, 1
    %s26 = scalar_select %p25, 0, %s24
    %s27 = sadd.s32 1, %s18
    %s28 = scalar_select %p25, %s27, %s18
    %p29 = scmp.ge.s32.totalorder %s28, 16
    %s30 = scalar_select %p29, 0, %s28
    %s31 = ssub.s32 %s18, %s30
    %p32 = scmp.eq.s32.totalorder %s31, 0
    %s34 = sadd.s32 %s33, 1
    %s35 = scalar_select %p32, %s33, %s34
    %p38 = pneg %p32
    %p39 = scmp.eq.s32.totalorder %s11, 15
    %p40 = por %p38, %p39
    %p41 = scmp.ne.s32.totalorder %s33, %s36
    %p42 = scmp.eq.s32.totalorder %s11, 0
    %p43 = por %p41, %p42
    %p44 = scmp.ne.s32.totalorder %s33, %s36
    %p45 = scmp.eq.s32.totalorder %s16, 15
    %p46 = por %p44, %p45
    %p47 = scmp.ne.s32.totalorder %s36, %s37
    %p48 = scmp.eq.s32.totalorder %s16, 0
    %p49 = por %p47, %p48
    %p50 = scmp.ne.s32.totalorder %s36, %s37
    %p51 = scmp.eq.s32.totalorder %s17, 15
    %p52 = por %p50, %p51
    %p54 = scmp.ne.s32.totalorder %s37, %s53
    %p55 = scmp.eq.s32.totalorder %s17, 0
    %p56 = por %p54, %p55
    %s57 = ssub.s32 %s19, %s26
    %p58 = scmp.eq.s32.totalorder %s57, 0
    %s60 = sadd.s32 %s59, 1
    %s61 = scalar_select %p58, %s59, %s60
    %p64 = pneg %p58
    %p65 = scmp.eq.s32.totalorder %s11, 15
    %p66 = por %p64, %p65
    %p67 = scmp.ne.s32.totalorder %s59, %s62
    %p68 = scmp.eq.s32.totalorder %s11, 0
    %p69 = por %p67, %p68
    %p70 = scmp.ne.s32.totalorder %s59, %s62
    %p71 = scmp.eq.s32.totalorder %s16, 15
    %p72 = por %p70, %p71
    %p73 = scmp.ne.s32.totalorder %s62, %s63
    %p74 = scmp.eq.s32.totalorder %s16, 0
    %p75 = por %p73, %p74
    %p76 = scmp.ne.s32.totalorder %s62, %s63
    %p77 = scmp.eq.s32.totalorder %s17, 15
    %p78 = por %p76, %p77
    %p80 = scmp.ne.s32.totalorder %s63, %s79
    %p81 = scmp.eq.s32.totalorder %s17, 0
    %p82 = por %p80, %p81
    %s83 = ssub.s32 %s18, %s30
    %s84 = ssub.s32 %s19, %s26
    %s85 = sor.u32 %s83, %s84
    %p86 = scmp.eq.s32.totalorder %s85, 0
    %s88 = sadd.s32 %s87, 1
    %s89 = scalar_select %p86, %s87, %s88
    %p92 = pneg %p86
    %p93 = scmp.eq.s32.totalorder %s11, 15
    %p94 = por %p92, %p93
    %p95 = scmp.ne.s32.totalorder %s87, %s90
    %p96 = scmp.eq.s32.totalorder %s11, 0
    %p97 = por %p95, %p96
    %p98 = scmp.ne.s32.totalorder %s87, %s90
    %p99 = scmp.eq.s32.totalorder %s16, 15
    %p100 = por %p98, %p99
    %p101 = scmp.ne.s32.totalorder %s90, %s91
    %p102 = scmp.eq.s32.totalorder %s16, 0
    %p103 = por %p101, %p102
    %p104 = scmp.ne.s32.totalorder %s90, %s91
    %p105 = scmp.eq.s32.totalorder %s17, 15
    %p106 = por %p104, %p105
    %p108 = scmp.ne.s32.totalorder %s91, %s107
    %p109 = scmp.eq.s32.totalorder %s17, 0
    %p110 = por %p108, %p109
    %s111 = ssub.s32 %s18, %s30
    %p112 = scmp.eq.s32.totalorder %s111, 0
    %s114 = sadd.s32 %s113, 1
    %s115 = scalar_select %p112, %s113, %s114
    %p118 = pneg %p112
    %p119 = scmp.eq.s32.totalorder %s11, 15
    %p120 = por %p118, %p119
    %p121 = scmp.ne.s32.totalorder %s113, %s116
    %p122 = scmp.eq.s32.totalorder %s11, 0
    %p123 = por %p121, %p122
    %p124 = scmp.ne.s32.totalorder %s113, %s116
    %p125 = scmp.eq.s32.totalorder %s16, 15
    %p126 = por %p124, %p125
    %p127 = scmp.ne.s32.totalorder %s116, %s117
    %p128 = scmp.eq.s32.totalorder %s16, 0
    %p129 = por %p127, %p128
    %p130 = scmp.ne.s32.totalorder %s116, %s117
    %p131 = scmp.eq.s32.totalorder %s17, 15
    %p132 = por %p130, %p131
    %p134 = scmp.ne.s32.totalorder %s117, %s133
    %p135 = scmp.eq.s32.totalorder %s17, 0
    %p136 = por %p134, %p135
    %s137 = ssub.s32 %s18, %s30
    %p138 = scmp.eq.s32.totalorder %s137, 0
    %s140 = sadd.s32 %s139, 1
    %s141 = scalar_select %p138, %s139, %s140
    %p144 = pneg %p138
    %p145 = scmp.eq.s32.totalorder %s11, 15
    %p146 = por %p144, %p145
    %p147 = scmp.ne.s32.totalorder %s139, %s142
    %p148 = scmp.eq.s32.totalorder %s11, 0
    %p149 = por %p147, %p148
    %p150 = scmp.ne.s32.totalorder %s139, %s142
    %p151 = scmp.eq.s32.totalorder %s16, 15
    %p152 = por %p150, %p151
    %p153 = scmp.ne.s32.totalorder %s142, %s143
    %p154 = scmp.eq.s32.totalorder %s16, 0
    %p155 = por %p153, %p154
    %p156 = scmp.ne.s32.totalorder %s142, %s143
    %p157 = scmp.eq.s32.totalorder %s17, 15
    %p158 = por %p156, %p157
    %p160 = scmp.ne.s32.totalorder %s143, %s159
    %p161 = scmp.eq.s32.totalorder %s17, 0
    %p162 = por %p160, %p161
    %p163 = scmp.le.s32.totalorder 1, %s11
    %p164 = scmp.lt.s32.totalorder %s11, 17
    %p165 = pnand %p163, %p164
    %p166 = pneg %p165
    // Predicated region
    $region9: #{generator_forward.9} parent=5 // pred_check
      _
    $region10: #{generator_forward.9} parent=5 // pred_check_branch
      %168 = sbr.rel (%p165) target = $region12
    $region11: #{generator_forward.9} parent=5 // pred_region
      %s169 = ssub.s32 %s11, 1
      // Predicated region
      $region13: #{generator_forward.9} parent=11 // pred_check
        %p170 = pneg %p75
      $region14: #{generator_forward.9} parent=11 // pred_check_branch
        %172 = sbr.rel (%p170) target = $region16
      $region15: #{generator_forward.9} parent=11 // pred_region
        %p173 = scmp.lt.s32.totalorder %s21, 0
        %s174 = scalar_select %p173, %s21, 0
        %s175 = smul.addr %s174, 4
        %s176 = scalar_lea.vmem %s1, %s175
      $region16: #{generator_forward.9} parent=11 // pred_fallthru
        _
    $region12: #{generator_forward.9} parent=5 // pred_fallthru
      _
    %p177 = scmp.lt.s32.totalorder %s11, 16
    // Predicated region
    $region17: #{generator_forward.9} parent=5 // pred_check
      %p178 = pneg %p177
    $region18: #{generator_forward.9} parent=5 // pred_check_branch
      %180 = sbr.rel (%p178) target = $region20
    $region19: #{generator_forward.9} parent=5 // pred_region
      // Predicated region
      $region21: #{generator_forward.9} parent=19 // pred_check
        %p181 = pneg %p43
      $region22: #{generator_forward.9} parent=19 // pred_check_branch
        %183 = sbr.rel (%p181) target = $region24
      $region23: #{generator_forward.9} parent=19 // pred_region
        %p184 = scmp.lt.s32.totalorder %s18, 15
        %s185 = scalar_select %p184, %s18, 15
        %s186 = smul.addr %s185, 8
        %s187 = smul.addr %s186, 4
        %s188 = scalar_lea.vmem %s0, %s187
      $region24: #{generator_forward.9} parent=19 // pred_fallthru
        _
    $region20: #{generator_forward.9} parent=5 // pred_fallthru
      _
    %p189 = scmp.le.s32.totalorder 1, %s11
    %p190 = scmp.lt.s32.totalorder %s11, 17
    %p191 = pnand %p189, %p190
    %p192 = pneg %p191
    // Predicated region
    $region25: #{generator_forward.9} parent=5 // pred_check
      _
    $region26: #{generator_forward.9} parent=5 // pred_check_branch
      %194 = sbr.rel (%p191) target = $region28
    $region27: #{generator_forward.9} parent=5 // pred_region
      %s195 = ssub.s32 %s11, 1
      %p196 = scmp.lt.s32.totalorder %s20, 15
      %s197 = scalar_select %p196, %s20, 15
      %s198 = smul.addr %s197, 8
      %s199 = smul.addr %s198, 4
      %s200 = scalar_lea.vmem %s0, %s199
      %p201 = pneg %p49
      %p202 = pneg %p46
      %p203 = scmp.lt.s32.totalorder %s21, 0
      %s204 = scalar_select %p203, %s21, 0
      %s205 = smul.addr %s204, 4
      %s206 = scalar_lea.vmem %s1, %s205
      %p207 = pneg %p75
      %p208 = pneg %p72
      %p209 = pneg %p103
      %p210 = pneg %p100
      %p211 = scmp.lt.s32.totalorder %s20, 15
      %s212 = scalar_select %p211, %s20, 15
      %p213 = scmp.lt.s32.totalorder %s21, 0
      %s214 = scalar_select %p213, %s21, 0
      %s215 = smul.addr %s212, 8
      %s216 = sadd.s32 %s214, %s215
      %s217 = smul.addr %s216, 4
      %s218 = scalar_lea.vmem %s2, %s217
      %p219 = pneg %p129
      %p220 = pneg %p126
      %p221 = scmp.lt.s32.totalorder %s20, 15
      %s222 = scalar_select %p221, %s20, 15
      %s223 = smul.addr %s222, 8
      %s224 = smul.addr %s223, 8
      %s225 = scalar_lea.vmem %s3, %s224
      %p226 = pneg %p155
      %p227 = pneg %p152
      %p228 = scmp.lt.s32.totalorder %s20, 15
      %s229 = scalar_select %p228, %s20, 15
      %s230 = smul.addr %s229, 8
      %s231 = smul.addr %s230, 8
      %s232 = scalar_lea.vmem %s4, %s231
      %p233 = scmp.lt.s32.totalorder %s20, 15
      %s234 = scalar_select %p233, %s20, 15
      %s235 = smul.addr %s234, 8
      %s236 = smul.addr %s235, 4
      %s237 = scalar_lea.vmem %s0, %s236
      %p238 = scmp.lt.s32.totalorder %s21, 0
      %s239 = scalar_select %p238, %s21, 0
      %s240 = smul.addr %s239, 4
      %s241 = scalar_lea.vmem %s1, %s240
      %p242 = scmp.lt.s32.totalorder %s20, 15
      %s243 = scalar_select %p242, %s20, 15
      %p244 = scmp.lt.s32.totalorder %s21, 0
      %s245 = scalar_select %p244, %s21, 0
      %s246 = smul.addr %s243, 8
      %s247 = sadd.s32 %s245, %s246
      %s248 = smul.addr %s247, 4
      %s249 = scalar_lea.vmem %s2, %s248
      %p250 = scmp.lt.s32.totalorder %s20, 15
      %s251 = scalar_select %p250, %s20, 15
      %s252 = smul.addr %s251, 8
      %s253 = smul.addr %s252, 8
      %s254 = scalar_lea.vmem %s3, %s253
      %p255 = scmp.lt.s32.totalorder %s20, 15
      %s256 = scalar_select %p255, %s20, 15
      %s257 = smul.addr %s256, 8
      %s258 = smul.addr %s257, 8
      %s259 = scalar_lea.vmem %s4, %s258
      %p261 = scmp.eq.s32.totalorder %s21, 0
      // Predicated region
      $region29: #{generator_forward.9} parent=27 // pred_check
        %p262 = pneg %p261
      $region30: #{generator_forward.9} parent=27 // pred_check_branch
        %264 = sbr.rel (%p262) target = $region32
      $region31: #{generator_forward.9} parent=27 // pred_region
        %265 = vst [vmem:[%s254] sm:$0xff] 0.0
        %266 = vst [vmem:[%s254 + $0x8] sm:$0xff] 0.0
        %267 = vst [vmem:[%s254 + $0x10] sm:$0xff] 0.0
        %268 = vst [vmem:[%s254 + $0x18] sm:$0xff] 0.0
        %269 = vst [vmem:[%s254 + $0x20] sm:$0xff] 0.0
        %270 = vst [vmem:[%s254 + $0x28] sm:$0xff] 0.0
        %271 = vst [vmem:[%s254 + $0x30] sm:$0xff] 0.0
        %272 = vst [vmem:[%s254 + $0x38] sm:$0xff] 0.0
        %273 = vst [vmem:[%s259] sm:$0xff] 0.0
        %274 = vst [vmem:[%s259 + $0x8] sm:$0xff] 0.0
        %275 = vst [vmem:[%s259 + $0x10] sm:$0xff] 0.0
        %276 = vst [vmem:[%s259 + $0x18] sm:$0xff] 0.0
        %277 = vst [vmem:[%s259 + $0x20] sm:$0xff] 0.0
        %278 = vst [vmem:[%s259 + $0x28] sm:$0xff] 0.0
        %279 = vst [vmem:[%s259 + $0x30] sm:$0xff] 0.0
        %280 = vst [vmem:[%s259 + $0x38] sm:$0xff] 0.0
      $region32: #{generator_forward.9} parent=27 // pred_fallthru
        _
      %v281 = vld [vmem:[%s237] sm:$0xf]
      %v282 = vld [vmem:[%s237 + $0x4] sm:$0xf]
      %v283 = vld [vmem:[%s237 + $0x8] sm:$0xf]
      %v284 = vld [vmem:[%s237 + $0xc] sm:$0xf]
      %v285 = vld [vmem:[%s237 + $0x10] sm:$0xf]
      %v286 = vld [vmem:[%s237 + $0x14] sm:$0xf]
      %v287 = vld [vmem:[%s237 + $0x18] sm:$0xf]
      %v288 = vld [vmem:[%s237 + $0x1c] sm:$0xf]
      %v289 = vld [vmem:[%s241] sm:$0xf]
      %v290 = vld [vmem:[%s241 + $0x4] sm:$0xf]
      %v299 = vunpack.c.l.b16 %v281
      %v300 = vunpack.c.l.b16 %v282
      %v301 = vunpack.c.l.b16 %v283
      %v302 = vunpack.c.l.b16 %v284
      %v303 = vunpack.c.l.b16 %v285
      %v304 = vunpack.c.l.b16 %v286
      %v305 = vunpack.c.l.b16 %v287
      %v306 = vunpack.c.l.b16 %v288
      %v307 = vpack.c.b16 %v300, %v299
      %v308 = vpack.c.b16 %v302, %v301
      %v309 = vpack.c.b16 %v304, %v303
      %v310 = vpack.c.b16 %v306, %v305
      %v313 = vunpack.c.l.b16 %v289
      %v314 = vunpack.c.l.b16 %v290
      %v315 = vpack.c.b16 %v314, %v313
      %vm317 = vcmask 130048
      %v319 = vsel %vm317, %v307, 0
      %v322 = vsel %vm317, %v308, 0
      %v325 = vsel %vm317, %v309, 0
      %v328 = vsel %vm317, %v310, 0
      %330 = vmatprep.subr.bf16.mxu0 0
      %331 = vmatpush1.bf16.msra.mxu0 %v315
      %332 = vmatprep.subr.bf16.mxu0 0
      %333 = vmatpush1.bf16.msra.mxu0 0
      %334 = vmatprep.subr.bf16.mxu0 0
      %335 = vmatpush1.bf16.msra.mxu0 0
      %336 = vmatprep.subr.bf16.mxu0 0
      %337 = vmatpush1.bf16.msra.mxu0 0
      %338 = vmatprep.subr.bf16.mxu0 0
      %339 = vmatpush1.bf16.msra.mxu0 0
      %340 = vmatprep.subr.bf16.mxu0 0
      %341 = vmatpush1.bf16.msra.mxu0 0
      %342 = vmatprep.subr.bf16.mxu0 0
      %343 = vmatpush1.bf16.msra.mxu0 0
      %344 = vmatprep.subr.bf16.mxu0 0
      %345 = vmatpush1.bf16.msra.mxu0 0
      %346 = vmatprep.subr.bf16.mxu0 0
      %347 = vmatpush1.bf16.msra.mxu0 0
      %348 = vmatprep.subr.bf16.mxu0 0
      %349 = vmatpush1.bf16.msra.mxu0 0
      %350 = vmatprep.subr.bf16.mxu0 0
      %351 = vmatpush1.bf16.msra.mxu0 0
      %352 = vmatprep.subr.bf16.mxu0 0
      %353 = vmatpush1.bf16.msra.mxu0 0
      %354 = vmatprep.subr.bf16.mxu0 0
      %355 = vmatpush1.bf16.msra.mxu0 0
      %356 = vmatprep.subr.bf16.mxu0 0
      %357 = vmatpush1.bf16.msra.mxu0 0
      %358 = vmatprep.subr.bf16.mxu0 0
      %359 = vmatpush1.bf16.msra.mxu0 0
      %360 = vmatprep.subr.bf16.mxu0 0
      %361 = vmatpush1.bf16.msra.mxu0 0
      %362 = vmatprep.mubr.bf16.mxu0 0
      %363 = vmatmul.mubr.bf16.gmra.mrb[0].mxu0 %v319
      %v364 = vpop.f32.mrb[0].mxu0
      %v365 = vadd.f32 0.0, %v364
      %v366 = vpop.f32.mrb[0].mxu0
      %v367 = vpop.f32.mrb[0].mxu0
      %v368 = vadd.f32 0.0, %v367
      %v369 = vpop.f32.mrb[0].mxu0
      %370 = vmatprep.mubr.bf16.mxu0 0
      %371 = vmatmul.mubr.bf16.gmra.mrb[0].mxu0 %v322
      %v372 = vpop.f32.mrb[0].mxu0
      %v373 = vadd.f32 0.0, %v372
      %v374 = vpop.f32.mrb[0].mxu0
      %v375 = vpop.f32.mrb[0].mxu0
      %v376 = vadd.f32 0.0, %v375
      %v377 = vpop.f32.mrb[0].mxu0
      %378 = vmatprep.mubr.bf16.mxu0 0
      %379 = vmatmul.mubr.bf16.gmra.mrb[0].mxu0 %v325
      %v380 = vpop.f32.mrb[0].mxu0
      %v381 = vadd.f32 0.0, %v380
      %v382 = vpop.f32.mrb[0].mxu0
      %v383 = vpop.f32.mrb[0].mxu0
      %v384 = vadd.f32 0.0, %v383
      %v385 = vpop.f32.mrb[0].mxu0
      %386 = vmatprep.mubr.bf16.mxu0 0
      %387 = vmatmul.mubr.bf16.gmra.mrb[0].mxu0 %v328
      %v388 = vpop.f32.mrb[0].mxu0
      %v389 = vadd.f32 0.0, %v388
      %v390 = vpop.f32.mrb[0].mxu0
      %v391 = vpop.f32.mrb[0].mxu0
      %v392 = vadd.f32 0.0, %v391
      %v393 = vpop.f32.mrb[0].mxu0
      %394 = vdwg.mxu0
      %v395 = vpack.c.bf16 %v368, %v365
      %v396 = vpack.c.bf16 %v376, %v373
      %v397 = vpack.c.bf16 %v384, %v381
      %v398 = vpack.c.bf16 %v392, %v389
      %v403 = vunpack.c.l.b16 %v395
      %v404 = vunpack.c.h.b16 %v395
      %v405 = vunpack.c.l.b16 %v396
      %v406 = vunpack.c.h.b16 %v396
      %v407 = vunpack.c.l.b16 %v397
      %v408 = vunpack.c.h.b16 %v397
      %v409 = vunpack.c.l.b16 %v398
      %v410 = vunpack.c.h.b16 %v398
      %v411 = vpack.c.b16 %v403, %v403
      %v412 = vpack.c.b16 %v404, %v404
      %v413 = vpack.c.b16 %v405, %v405
      %v414 = vpack.c.b16 %v406, %v406
      %v415 = vpack.c.b16 %v407, %v407
      %v416 = vpack.c.b16 %v408, %v408
      %v417 = vpack.c.b16 %v409, %v409
      %v418 = vpack.c.b16 %v410, %v410
      %427 = vst [vmem:[%s249] sm:$0xf] %v411
      %428 = vst [vmem:[%s249 + $0x4] sm:$0xf] %v412
      %429 = vst [vmem:[%s249 + $0x8] sm:$0xf] %v413
      %430 = vst [vmem:[%s249 + $0xc] sm:$0xf] %v414
      %431 = vst [vmem:[%s249 + $0x10] sm:$0xf] %v415
      %432 = vst [vmem:[%s249 + $0x14] sm:$0xf] %v416
      %433 = vst [vmem:[%s249 + $0x18] sm:$0xf] %v417
      %434 = vst [vmem:[%s249 + $0x1c] sm:$0xf] %v418
      %435 = vadd.xlane.f32.xlu0 %v365
      %v436 = vpop.xlane.xlu0 %435
      %437 = vadd.xlane.f32.xlu0 %v368
      %v438 = vpop.xlane.xlu0 %437
      %439 = vadd.xlane.f32.xlu0 %v373
      %v440 = vpop.xlane.xlu0 %439
      %441 = vadd.xlane.f32.xlu0 %v376
      %v442 = vpop.xlane.xlu0 %441
      %443 = vadd.xlane.f32.xlu0 %v381
      %v444 = vpop.xlane.xlu0 %443
      %445 = vadd.xlane.f32.xlu0 %v384
      %v446 = vpop.xlane.xlu0 %445
      %447 = vadd.xlane.f32.xlu0 %v389
      %v448 = vpop.xlane.xlu0 %447
      %449 = vadd.xlane.f32.xlu0 %v392
      %v450 = vpop.xlane.xlu0 %449
      %v451 = vmul.f32 %v365, %v365
      %v452 = vmul.f32 %v368, %v368
      %v453 = vmul.f32 %v373, %v373
      %v454 = vmul.f32 %v376, %v376
      %v455 = vmul.f32 %v381, %v381
      %v456 = vmul.f32 %v384, %v384
      %v457 = vmul.f32 %v389, %v389
      %v458 = vmul.f32 %v392, %v392
      %459 = vadd.xlane.f32.xlu0 %v451
      %v460 = vpop.xlane.xlu0 %459
      %461 = vadd.xlane.f32.xlu0 %v452
      %v462 = vpop.xlane.xlu0 %461
      %463 = vadd.xlane.f32.xlu0 %v453
      %v464 = vpop.xlane.xlu0 %463
      %465 = vadd.xlane.f32.xlu0 %v454
      %v466 = vpop.xlane.xlu0 %465
      %467 = vadd.xlane.f32.xlu0 %v455
      %v468 = vpop.xlane.xlu0 %467
      %469 = vadd.xlane.f32.xlu0 %v456
      %v470 = vpop.xlane.xlu0 %469
      %471 = vadd.xlane.f32.xlu0 %v457
      %v472 = vpop.xlane.xlu0 %471
      %473 = vadd.xlane.f32.xlu0 %v458
      %v474 = vpop.xlane.xlu0 %473
      %v475 = vld [vmem:[%s254] sm:$0xff]
      %v476 = vld [vmem:[%s254 + $0x8] sm:$0xff]
      %v477 = vld [vmem:[%s254 + $0x10] sm:$0xff]
      %v478 = vld [vmem:[%s254 + $0x18] sm:$0xff]
      %v479 = vld [vmem:[%s254 + $0x20] sm:$0xff]
      %v480 = vld [vmem:[%s254 + $0x28] sm:$0xff]
      %v481 = vld [vmem:[%s254 + $0x30] sm:$0xff]
      %v482 = vld [vmem:[%s254 + $0x38] sm:$0xff]
      %v483 = vadd.f32 %v475, %v436
      %v484 = vadd.f32 %v476, %v438
      %v485 = vadd.f32 %v477, %v440
      %v486 = vadd.f32 %v478, %v442
      %v487 = vadd.f32 %v479, %v444
      %v488 = vadd.f32 %v480, %v446
      %v489 = vadd.f32 %v481, %v448
      %v490 = vadd.f32 %v482, %v450
      %491 = vst [vmem:[%s254] sm:$0xff] %v483
      %492 = vst [vmem:[%s254 + $0x8] sm:$0xff] %v484
      %493 = vst [vmem:[%s254 + $0x10] sm:$0xff] %v485
      %494 = vst [vmem:[%s254 + $0x18] sm:$0xff] %v486
      %495 = vst [vmem:[%s254 + $0x20] sm:$0xff] %v487
      %496 = vst [vmem:[%s254 + $0x28] sm:$0xff] %v488
      %497 = vst [vmem:[%s254 + $0x30] sm:$0xff] %v489
      %498 = vst [vmem:[%s254 + $0x38] sm:$0xff] %v490
      %v499 = vld [vmem:[%s259] sm:$0xff]
      %v500 = vld [vmem:[%s259 + $0x8] sm:$0xff]
      %v501 = vld [vmem:[%s259 + $0x10] sm:$0xff]
      %v502 = vld [vmem:[%s259 + $0x18] sm:$0xff]
      %v503 = vld [vmem:[%s259 + $0x20] sm:$0xff]
      %v504 = vld [vmem:[%s259 + $0x28] sm:$0xff]
      %v505 = vld [vmem:[%s259 + $0x30] sm:$0xff]
      %v506 = vld [vmem:[%s259 + $0x38] sm:$0xff]
      %v507 = vadd.f32 %v499, %v460
      %v508 = vadd.f32 %v500, %v462
      %v509 = vadd.f32 %v501, %v464
      %v510 = vadd.f32 %v502, %v466
      %v511 = vadd.f32 %v503, %v468
      %v512 = vadd.f32 %v504, %v470
      %v513 = vadd.f32 %v505, %v472
      %v514 = vadd.f32 %v506, %v474
      %515 = vst [vmem:[%s259] sm:$0xff] %v507
      %516 = vst [vmem:[%s259 + $0x8] sm:$0xff] %v508
      %517 = vst [vmem:[%s259 + $0x10] sm:$0xff] %v509
      %518 = vst [vmem:[%s259 + $0x18] sm:$0xff] %v510
      %519 = vst [vmem:[%s259 + $0x20] sm:$0xff] %v511
      %520 = vst [vmem:[%s259 + $0x28] sm:$0xff] %v512
      %521 = vst [vmem:[%s259 + $0x30] sm:$0xff] %v513
      %522 = vst [vmem:[%s259 + $0x38] sm:$0xff] %v514
      %p523 = scmp.lt.s32.totalorder %s20, 15
      %s524 = scalar_select %p523, %s20, 15
      %p525 = scmp.lt.s32.totalorder %s21, 0
      %s526 = scalar_select %p525, %s21, 0
      %s527 = smul.addr %s524, 8
      %s528 = sadd.s32 %s526, %s527
      %s529 = smul.addr %s528, 4
      %s530 = scalar_lea.vmem %s2, %s529
      %p531 = scmp.lt.s32.totalorder %s20, 15
      %s532 = scalar_select %p531, %s20, 15
      %s533 = smul.addr %s532, 8
      %s534 = smul.addr %s533, 8
      %s535 = scalar_lea.vmem %s3, %s534
      %p536 = scmp.lt.s32.totalorder %s20, 15
      %s537 = scalar_select %p536, %s20, 15
      %s538 = smul.addr %s537, 8
      %s539 = smul.addr %s538, 8
      %s540 = scalar_lea.vmem %s4, %s539
      // Predicated region
      $region33: #{generator_forward.9} parent=27 // pred_check
        %p541 = pneg %p100
      $region34: #{generator_forward.9} parent=27 // pred_check_branch
        %543 = sbr.rel (%p541) target = $region36
      $region35: #{generator_forward.9} parent=27 // pred_region
        _
      $region36: #{generator_forward.9} parent=27 // pred_fallthru
        _
      // Predicated region
      $region37: #{generator_forward.9} parent=27 // pred_check
        %p544 = pneg %p126
      $region38: #{generator_forward.9} parent=27 // pred_check_branch
        %546 = sbr.rel (%p544) target = $region40
      $region39: #{generator_forward.9} parent=27 // pred_region
        _
      $region40: #{generator_forward.9} parent=27 // pred_fallthru
        _
      // Predicated region
      $region41: #{generator_forward.9} parent=27 // pred_check
        %p547 = pneg %p152
      $region42: #{generator_forward.9} parent=27 // pred_check_branch
        %549 = sbr.rel (%p547) target = $region44
      $region43: #{generator_forward.9} parent=27 // pred_region
        _
      $region44: #{generator_forward.9} parent=27 // pred_fallthru
        _
    $region28: #{generator_forward.9} parent=5 // pred_fallthru
      _
    %p550 = scmp.le.s32.totalorder 2, %s11
    // Predicated region
    $region45: #{generator_forward.9} parent=5 // pred_check
      %p551 = pneg %p550
    $region46: #{generator_forward.9} parent=5 // pred_check_branch
      %553 = sbr.rel (%p551) target = $region48
    $region47: #{generator_forward.9} parent=5 // pred_region
      %s554 = ssub.s32 %s11, 2
      // Predicated region
      $region49: #{generator_forward.9} parent=47 // pred_check
        %p555 = pneg %p106
      $region50: #{generator_forward.9} parent=47 // pred_check_branch
        %557 = sbr.rel (%p555) target = $region52
      $region51: #{generator_forward.9} parent=47 // pred_region
        %p558 = scmp.lt.s32.totalorder %s22, 15
        %s559 = scalar_select %p558, %s22, 15
        %p560 = scmp.lt.s32.totalorder %s23, 0
        %s561 = scalar_select %p560, %s23, 0
        %s562 = smul.addr %s559, 8
        %s563 = sadd.s32 %s561, %s562
        %s564 = smul.addr %s563, 4
        %s565 = scalar_lea.vmem %s2, %s564
      $region52: #{generator_forward.9} parent=47 // pred_fallthru
        _
      // Predicated region
      $region53: #{generator_forward.9} parent=47 // pred_check
        %p566 = pneg %p132
      $region54: #{generator_forward.9} parent=47 // pred_check_branch
        %568 = sbr.rel (%p566) target = $region56
      $region55: #{generator_forward.9} parent=47 // pred_region
        %p569 = scmp.lt.s32.totalorder %s22, 15
        %s570 = scalar_select %p569, %s22, 15
        %s571 = smul.addr %s570, 8
        %s572 = smul.addr %s571, 8
        %s573 = scalar_lea.vmem %s3, %s572
      $region56: #{generator_forward.9} parent=47 // pred_fallthru
        _
      // Predicated region
      $region57: #{generator_forward.9} parent=47 // pred_check
        %p574 = pneg %p158
      $region58: #{generator_forward.9} parent=47 // pred_check_branch
        %576 = sbr.rel (%p574) target = $region60
      $region59: #{generator_forward.9} parent=47 // pred_region
        %p577 = scmp.lt.s32.totalorder %s22, 15
        %s578 = scalar_select %p577, %s22, 15
        %s579 = smul.addr %s578, 8
        %s580 = smul.addr %s579, 8
        %s581 = scalar_lea.vmem %s4, %s580
      $region60: #{generator_forward.9} parent=47 // pred_fallthru
        _
    $region48: #{generator_forward.9} parent=5 // pred_fallthru
      _
  $region6: #{generator_forward.9} parent=0 // loop_footer
    %s15 = sadd.s32 1, %s11
  $region7: #{generator_forward.9} parent=0 // loop_footer_branch
    %10 = sbr.rel target = $region3
  $region8: #{generator_forward.9} parent=0 // loop_exit
    _

// kernel: generator_forward.10
$region0: #{generator_forward.10}
  #allocation0 [shape = 'u32[]', space=smem, size = 0x4, offset = 0x4, fixed_abs, tag = 'smem constant byte address 0x4 - core index']
  #allocation1 [shape = 'u32[144,128]{1,0:T(1,128)}', space=vmem, size = 0x12000, scoped, tag = 'internal scratch']
  %s0 = inlined_call_operand.vmem [shape: bf16[16,64,128], index: 0, kind: input, shape index: {}]
  %s1 = inlined_call_operand.vmem [shape: f32[16,64,128], index: 1, kind: input, shape index: {}]
  %s2 = inlined_call_operand.vmem [shape: f32[16,64,128], index: 2, kind: input, shape index: {}]
  %s3 = inlined_call_operand.vmem [shape: f32[64,1], index: 3, kind: input, shape index: {}]
  %s4 = inlined_call_operand.vmem [shape: f32[64,1], index: 4, kind: input, shape index: {}]
  %s5 = inlined_call_operand.vmem [shape: bf16[16,64,128], index: 5, kind: output, shape index: {}]
  %s6 = sld [smem:[#allocation0]]
  $region53: #{generator_forward.10} parent=0
    _
  %s8 = ssub.s32 1, %s6
  %s9 = scalar_select 0, %s8, %s6
  loop: start=0, step=1, limit=18
  $region2: #{generator_forward.10} parent=0 // loop_pre_header
    _
  $region3: #{generator_forward.10} parent=0 // loop_header
    %s11 = sphi 0, %s15
    %p12 = scmp.ge.s32.totalorder %s11, 18
    %s18 = sphi 0, %s30
    %s19 = sphi 0, %s26
    %s20 = sphi 0, %s18
    %s21 = sphi 0, %s19
    %s22 = sphi 0, %s20
    %s23 = sphi 0, %s21
    %s35 = sphi 0, %s37
    %s38 = sphi 0, %s35
    %s39 = sphi 0, %s38
    %s55 = sphi 0, %s39
    %s59 = sphi 0, %s59
    %s61 = sphi 0, %s59
    %s62 = sphi 0, %s61
    %s76 = sphi 0, %s62
    %s80 = sphi 0, %s80
    %s82 = sphi 0, %s80
    %s83 = sphi 0, %s82
    %s97 = sphi 0, %s83
    %s101 = sphi 0, %s101
    %s103 = sphi 0, %s101
    %s104 = sphi 0, %s103
    %s118 = sphi 0, %s104
    %s122 = sphi 0, %s122
    %s124 = sphi 0, %s122
    %s125 = sphi 0, %s124
    %s139 = sphi 0, %s125
    %s147 = sphi 0, %s149
    %s150 = sphi 0, %s147
    %s151 = sphi 0, %s150
    %s167 = sphi 0, %s151
  $region4: #{generator_forward.10} parent=0 // loop_header_branch
    %14 = sbr.rel (%p12) target = $region8
  $region5: #{generator_forward.10} parent=0 // loop_body
    %s16 = ssub.s32 %s11, 1
    %s17 = ssub.s32 %s11, 2
    %s24 = sadd.s32 1, %s19
    %p25 = scmp.ge.s32.totalorder %s24, 1
    %s26 = scalar_select %p25, 0, %s24
    %s27 = sadd.s32 1, %s18
    %s28 = scalar_select %p25, %s27, %s18
    %p29 = scmp.ge.s32.totalorder %s28, 16
    %s30 = scalar_select %p29, 0, %s28
    %s31 = ssub.s32 %s18, %s30
    %s32 = ssub.s32 %s19, %s26
    %s33 = sor.u32 %s31, %s32
    %p34 = scmp.eq.s32.totalorder %s33, 0
    %s36 = sadd.s32 %s35, 1
    %s37 = scalar_select %p34, %s35, %s36
    %p40 = pneg %p34
    %p41 = scmp.eq.s32.totalorder %s11, 15
    %p42 = por %p40, %p41
    %p43 = scmp.ne.s32.totalorder %s35, %s38
    %p44 = scmp.eq.s32.totalorder %s11, 0
    %p45 = por %p43, %p44
    %p46 = scmp.ne.s32.totalorder %s35, %s38
    %p47 = scmp.eq.s32.totalorder %s16, 15
    %p48 = por %p46, %p47
    %p49 = scmp.ne.s32.totalorder %s38, %s39
    %p50 = scmp.eq.s32.totalorder %s16, 0
    %p51 = por %p49, %p50
    %p52 = scmp.ne.s32.totalorder %s38, %s39
    %p53 = scmp.eq.s32.totalorder %s17, 15
    %p54 = por %p52, %p53
    %p56 = scmp.ne.s32.totalorder %s39, %s55
    %p57 = scmp.eq.s32.totalorder %s17, 0
    %p58 = por %p56, %p57
    %s60 = sadd.s32 %s59, 1
    %p63 = scmp.eq.s32.totalorder %s11, 15
    %p64 = scmp.ne.s32.totalorder %s59, %s61
    %p65 = scmp.eq.s32.totalorder %s11, 0
    %p66 = por %p64, %p65
    %p67 = scmp.ne.s32.totalorder %s59, %s61
    %p68 = scmp.eq.s32.totalorder %s16, 15
    %p69 = por %p67, %p68
    %p70 = scmp.ne.s32.totalorder %s61, %s62
    %p71 = scmp.eq.s32.totalorder %s16, 0
    %p72 = por %p70, %p71
    %p73 = scmp.ne.s32.totalorder %s61, %s62
    %p74 = scmp.eq.s32.totalorder %s17, 15
    %p75 = por %p73, %p74
    %p77 = scmp.ne.s32.totalorder %s62, %s76
    %p78 = scmp.eq.s32.totalorder %s17, 0
    %p79 = por %p77, %p78
    %s81 = sadd.s32 %s80, 1
    %p84 = scmp.eq.s32.totalorder %s11, 15
    %p85 = scmp.ne.s32.totalorder %s80, %s82
    %p86 = scmp.eq.s32.totalorder %s11, 0
    %p87 = por %p85, %p86
    %p88 = scmp.ne.s32.totalorder %s80, %s82
    %p89 = scmp.eq.s32.totalorder %s16, 15
    %p90 = por %p88, %p89
    %p91 = scmp.ne.s32.totalorder %s82, %s83
    %p92 = scmp.eq.s32.totalorder %s16, 0
    %p93 = por %p91, %p92
    %p94 = scmp.ne.s32.totalorder %s82, %s83
    %p95 = scmp.eq.s32.totalorder %s17, 15
    %p96 = por %p94, %p95
    %p98 = scmp.ne.s32.totalorder %s83, %s97
    %p99 = scmp.eq.s32.totalorder %s17, 0
    %p100 = por %p98, %p99
    %s102 = sadd.s32 %s101, 1
    %p105 = scmp.eq.s32.totalorder %s11, 15
    %p106 = scmp.ne.s32.totalorder %s101, %s103
    %p107 = scmp.eq.s32.totalorder %s11, 0
    %p108 = por %p106, %p107
    %p109 = scmp.ne.s32.totalorder %s101, %s103
    %p110 = scmp.eq.s32.totalorder %s16, 15
    %p111 = por %p109, %p110
    %p112 = scmp.ne.s32.totalorder %s103, %s104
    %p113 = scmp.eq.s32.totalorder %s16, 0
    %p114 = por %p112, %p113
    %p115 = scmp.ne.s32.totalorder %s103, %s104
    %p116 = scmp.eq.s32.totalorder %s17, 15
    %p117 = por %p115, %p116
    %p119 = scmp.ne.s32.totalorder %s104, %s118
    %p120 = scmp.eq.s32.totalorder %s17, 0
    %p121 = por %p119, %p120
    %s123 = sadd.s32 %s122, 1
    %p126 = scmp.eq.s32.totalorder %s11, 15
    %p127 = scmp.ne.s32.totalorder %s122, %s124
    %p128 = scmp.eq.s32.totalorder %s11, 0
    %p129 = por %p127, %p128
    %p130 = scmp.ne.s32.totalorder %s122, %s124
    %p131 = scmp.eq.s32.totalorder %s16, 15
    %p132 = por %p130, %p131
    %p133 = scmp.ne.s32.totalorder %s124, %s125
    %p134 = scmp.eq.s32.totalorder %s16, 0
    %p135 = por %p133, %p134
    %p136 = scmp.ne.s32.totalorder %s124, %s125
    %p137 = scmp.eq.s32.totalorder %s17, 15
    %p138 = por %p136, %p137
    %p140 = scmp.ne.s32.totalorder %s125, %s139
    %p141 = scmp.eq.s32.totalorder %s17, 0
    %p142 = por %p140, %p141
    %s143 = ssub.s32 %s18, %s30
    %s144 = ssub.s32 %s19, %s26
    %s145 = sor.u32 %s143, %s144
    %p146 = scmp.eq.s32.totalorder %s145, 0
    %s148 = sadd.s32 %s147, 1
    %s149 = scalar_select %p146, %s147, %s148
    %p152 = pneg %p146
    %p153 = scmp.eq.s32.totalorder %s11, 15
    %p154 = por %p152, %p153
    %p155 = scmp.ne.s32.totalorder %s147, %s150
    %p156 = scmp.eq.s32.totalorder %s11, 0
    %p157 = por %p155, %p156
    %p158 = scmp.ne.s32.totalorder %s147, %s150
    %p159 = scmp.eq.s32.totalorder %s16, 15
    %p160 = por %p158, %p159
    %p161 = scmp.ne.s32.totalorder %s150, %s151
    %p162 = scmp.eq.s32.totalorder %s16, 0
    %p163 = por %p161, %p162
    %p164 = scmp.ne.s32.totalorder %s150, %s151
    %p165 = scmp.eq.s32.totalorder %s17, 15
    %p166 = por %p164, %p165
    %p168 = scmp.ne.s32.totalorder %s151, %s167
    %p169 = scmp.eq.s32.totalorder %s17, 0
    %p170 = por %p168, %p169
    %p171 = scmp.le.s32.totalorder 1, %s11
    %p172 = scmp.lt.s32.totalorder %s11, 17
    %p173 = pnand %p171, %p172
    %p174 = pneg %p173
    // Predicated region
    $region9: #{generator_forward.10} parent=5 // pred_check
      _
    $region10: #{generator_forward.10} parent=5 // pred_check_branch
      %176 = sbr.rel (%p173) target = $region12
    $region11: #{generator_forward.10} parent=5 // pred_region
      %s177 = ssub.s32 %s11, 1
      // Predicated region
      $region13: #{generator_forward.10} parent=11 // pred_check
        %p178 = pneg %p72
      $region14: #{generator_forward.10} parent=11 // pred_check_branch
        %180 = sbr.rel (%p178) target = $region16
      $region15: #{generator_forward.10} parent=11 // pred_region
        _
      $region16: #{generator_forward.10} parent=11 // pred_fallthru
        _
      // Predicated region
      $region17: #{generator_forward.10} parent=11 // pred_check
        %p181 = pneg %p93
      $region18: #{generator_forward.10} parent=11 // pred_check_branch
        %183 = sbr.rel (%p181) target = $region20
      $region19: #{generator_forward.10} parent=11 // pred_region
        _
      $region20: #{generator_forward.10} parent=11 // pred_fallthru
        _
      // Predicated region
      $region21: #{generator_forward.10} parent=11 // pred_check
        %p184 = pneg %p114
      $region22: #{generator_forward.10} parent=11 // pred_check_branch
        %186 = sbr.rel (%p184) target = $region24
      $region23: #{generator_forward.10} parent=11 // pred_region
        _
      $region24: #{generator_forward.10} parent=11 // pred_fallthru
        _
      // Predicated region
      $region25: #{generator_forward.10} parent=11 // pred_check
        %p187 = pneg %p135
      $region26: #{generator_forward.10} parent=11 // pred_check_branch
        %189 = sbr.rel (%p187) target = $region28
      $region27: #{generator_forward.10} parent=11 // pred_region
        _
      $region28: #{generator_forward.10} parent=11 // pred_fallthru
        _
    $region12: #{generator_forward.10} parent=5 // pred_fallthru
      _
    %p190 = scmp.lt.s32.totalorder %s11, 16
    // Predicated region
    $region29: #{generator_forward.10} parent=5 // pred_check
      %p191 = pneg %p190
    $region30: #{generator_forward.10} parent=5 // pred_check_branch
      %193 = sbr.rel (%p191) target = $region32
    $region31: #{generator_forward.10} parent=5 // pred_region
      // Predicated region
      $region33: #{generator_forward.10} parent=31 // pred_check
        %p194 = pneg %p45
      $region34: #{generator_forward.10} parent=31 // pred_check_branch
        %196 = sbr.rel (%p194) target = $region36
      $region35: #{generator_forward.10} parent=31 // pred_region
        %p197 = scmp.lt.s32.totalorder %s18, 15
        %s198 = scalar_select %p197, %s18, 15
        %p199 = scmp.lt.s32.totalorder %s19, 0
        %s200 = scalar_select %p199, %s19, 0
        %s201 = smul.addr %s198, 8
        %s202 = sadd.s32 %s200, %s201
        %s203 = smul.addr %s202, 4
        %s204 = scalar_lea.vmem %s0, %s203
      $region36: #{generator_forward.10} parent=31 // pred_fallthru
        _
    $region32: #{generator_forward.10} parent=5 // pred_fallthru
      _
    %p205 = scmp.le.s32.totalorder 1, %s11
    %p206 = scmp.lt.s32.totalorder %s11, 17
    %p207 = pnand %p205, %p206
    %p208 = pneg %p207
    // Predicated region
    $region37: #{generator_forward.10} parent=5 // pred_check
      _
    $region38: #{generator_forward.10} parent=5 // pred_check_branch
      %210 = sbr.rel (%p207) target = $region40
    $region39: #{generator_forward.10} parent=5 // pred_region
      %s211 = ssub.s32 %s11, 1
      %p212 = scmp.lt.s32.totalorder %s20, 15
      %s213 = scalar_select %p212, %s20, 15
      %p214 = scmp.lt.s32.totalorder %s21, 0
      %s215 = scalar_select %p214, %s21, 0
      %s216 = smul.addr %s213, 8
      %s217 = sadd.s32 %s215, %s216
      %s218 = smul.addr %s217, 4
      %s219 = scalar_lea.vmem %s0, %s218
      %p220 = pneg %p51
      %p221 = pneg %p48
      %p222 = pneg %p72
      %p223 = pneg %p69
      %p224 = pneg %p93
      %p225 = pneg %p90
      %p226 = pneg %p114
      %p227 = pneg %p111
      %p228 = pneg %p135
      %p229 = pneg %p132
      %p230 = pneg %p163
      %p231 = pneg %p160
      %p232 = scmp.lt.s32.totalorder %s20, 15
      %s233 = scalar_select %p232, %s20, 15
      %p234 = scmp.lt.s32.totalorder %s21, 0
      %s235 = scalar_select %p234, %s21, 0
      %s236 = smul.addr %s233, 8
      %s237 = sadd.s32 %s235, %s236
      %s238 = smul.addr %s237, 4
      %s239 = scalar_lea.vmem %s5, %s238
      %p240 = scmp.lt.s32.totalorder %s20, 15
      %s241 = scalar_select %p240, %s20, 15
      %p242 = scmp.lt.s32.totalorder %s21, 0
      %s243 = scalar_select %p242, %s21, 0
      %s244 = smul.addr %s241, 8
      %s245 = sadd.s32 %s243, %s244
      %s246 = smul.addr %s245, 4
      %s247 = scalar_lea.vmem %s0, %s246
      %p248 = scmp.lt.s32.totalorder %s20, 15
      %s249 = scalar_select %p248, %s20, 15
      %p250 = scmp.lt.s32.totalorder %s21, 0
      %s251 = scalar_select %p250, %s21, 0
      %s252 = smul.addr %s249, 8
      %s253 = sadd.s32 %s251, %s252
      %s254 = smul.addr %s253, 4
      %s255 = scalar_lea.vmem %s5, %s254
      %v256 = vld [vmem:[%s1] sm:$0xff]
      %v257 = vld [vmem:[%s1 + $0x8] sm:$0xff]
      %v258 = vld [vmem:[%s1 + $0x10] sm:$0xff]
      %v259 = vld [vmem:[%s1 + $0x18] sm:$0xff]
      %v260 = vld [vmem:[%s1 + $0x20] sm:$0xff]
      %v261 = vld [vmem:[%s1 + $0x28] sm:$0xff]
      %v262 = vld [vmem:[%s1 + $0x30] sm:$0xff]
      %v263 = vld [vmem:[%s1 + $0x38] sm:$0xff]
      %v264 = vld [vmem:[%s1 + $0x40] sm:$0xff]
      %v265 = vld [vmem:[%s1 + $0x48] sm:$0xff]
      %v266 = vld [vmem:[%s1 + $0x50] sm:$0xff]
      %v267 = vld [vmem:[%s1 + $0x58] sm:$0xff]
      %v268 = vld [vmem:[%s1 + $0x60] sm:$0xff]
      %v269 = vld [vmem:[%s1 + $0x68] sm:$0xff]
      %v270 = vld [vmem:[%s1 + $0x70] sm:$0xff]
      %v271 = vld [vmem:[%s1 + $0x78] sm:$0xff]
      %v272 = vld [vmem:[%s1 + $0x80] sm:$0xff]
      %v273 = vld [vmem:[%s1 + $0x88] sm:$0xff]
      %v274 = vld [vmem:[%s1 + $0x90] sm:$0xff]
      %v275 = vld [vmem:[%s1 + $0x98] sm:$0xff]
      %v276 = vld [vmem:[%s1 + $0xa0] sm:$0xff]
      %v277 = vld [vmem:[%s1 + $0xa8] sm:$0xff]
      %v278 = vld [vmem:[%s1 + $0xb0] sm:$0xff]
      %v279 = vld [vmem:[%s1 + $0xb8] sm:$0xff]
      %v280 = vld [vmem:[%s1 + $0xc0] sm:$0xff]
      %v281 = vld [vmem:[%s1 + $0xc8] sm:$0xff]
      %v282 = vld [vmem:[%s1 + $0xd0] sm:$0xff]
      %v283 = vld [vmem:[%s1 + $0xd8] sm:$0xff]
      %v284 = vld [vmem:[%s1 + $0xe0] sm:$0xff]
      %v285 = vld [vmem:[%s1 + $0xe8] sm:$0xff]
      %v286 = vld [vmem:[%s1 + $0xf0] sm:$0xff]
      %v287 = vld [vmem:[%s1 + $0xf8] sm:$0xff]
      %v288 = vld [vmem:[%s1 + $0x100] sm:$0xff]
      %v289 = vld [vmem:[%s1 + $0x108] sm:$0xff]
      %v290 = vld [vmem:[%s1 + $0x110] sm:$0xff]
      %v291 = vld [vmem:[%s1 + $0x118] sm:$0xff]
      %v292 = vld [vmem:[%s1 + $0x120] sm:$0xff]
      %v293 = vld [vmem:[%s1 + $0x128] sm:$0xff]
      %v294 = vld [vmem:[%s1 + $0x130] sm:$0xff]
      %v295 = vld [vmem:[%s1 + $0x138] sm:$0xff]
      %v296 = vld [vmem:[%s1 + $0x140] sm:$0xff]
      %v297 = vld [vmem:[%s1 + $0x148] sm:$0xff]
      %v298 = vld [vmem:[%s1 + $0x150] sm:$0xff]
      %v299 = vld [vmem:[%s1 + $0x158] sm:$0xff]
      %v300 = vld [vmem:[%s1 + $0x160] sm:$0xff]
      %v301 = vld [vmem:[%s1 + $0x168] sm:$0xff]
      %v302 = vld [vmem:[%s1 + $0x170] sm:$0xff]
      %v303 = vld [vmem:[%s1 + $0x178] sm:$0xff]
      %v304 = vld [vmem:[%s1 + $0x180] sm:$0xff]
      %v305 = vld [vmem:[%s1 + $0x188] sm:$0xff]
      %v306 = vld [vmem:[%s1 + $0x190] sm:$0xff]
      %v307 = vld [vmem:[%s1 + $0x198] sm:$0xff]
      %v308 = vld [vmem:[%s1 + $0x1a0] sm:$0xff]
      %v309 = vld [vmem:[%s1 + $0x1a8] sm:$0xff]
      %v310 = vld [vmem:[%s1 + $0x1b0] sm:$0xff]
      %v311 = vld [vmem:[%s1 + $0x1b8] sm:$0xff]
      %v312 = vld [vmem:[%s1 + $0x1c0] sm:$0xff]
      %v313 = vld [vmem:[%s1 + $0x1c8] sm:$0xff]
      %v314 = vld [vmem:[%s1 + $0x1d0] sm:$0xff]
      %v315 = vld [vmem:[%s1 + $0x1d8] sm:$0xff]
      %v316 = vld [vmem:[%s1 + $0x1e0] sm:$0xff]
      %v317 = vld [vmem:[%s1 + $0x1e8] sm:$0xff]
      %v318 = vld [vmem:[%s1 + $0x1f0] sm:$0xff]
      %v319 = vld [vmem:[%s1 + $0x1f8] sm:$0xff]
      %v320 = vld [vmem:[%s1 + $0x200] sm:$0xff]
      %v321 = vld [vmem:[%s1 + $0x208] sm:$0xff]
      %v322 = vld [vmem:[%s1 + $0x210] sm:$0xff]
      %v323 = vld [vmem:[%s1 + $0x218] sm:$0xff]
      %v324 = vld [vmem:[%s1 + $0x220] sm:$0xff]
      %v325 = vld [vmem:[%s1 + $0x228] sm:$0xff]
      %v326 = vld [vmem:[%s1 + $0x230] sm:$0xff]
      %v327 = vld [vmem:[%s1 + $0x238] sm:$0xff]
      %v328 = vld [vmem:[%s1 + $0x240] sm:$0xff]
      %v329 = vld [vmem:[%s1 + $0x248] sm:$0xff]
      %v330 = vld [vmem:[%s1 + $0x250] sm:$0xff]
      %v331 = vld [vmem:[%s1 + $0x258] sm:$0xff]
      %v332 = vld [vmem:[%s1 + $0x260] sm:$0xff]
      %v333 = vld [vmem:[%s1 + $0x268] sm:$0xff]
      %v334 = vld [vmem:[%s1 + $0x270] sm:$0xff]
      %v335 = vld [vmem:[%s1 + $0x278] sm:$0xff]
      %v336 = vld [vmem:[%s1 + $0x280] sm:$0xff]
      %v337 = vld [vmem:[%s1 + $0x288] sm:$0xff]
      %v338 = vld [vmem:[%s1 + $0x290] sm:$0xff]
      %v339 = vld [vmem:[%s1 + $0x298] sm:$0xff]
      %v340 = vld [vmem:[%s1 + $0x2a0] sm:$0xff]
      %v341 = vld [vmem:[%s1 + $0x2a8] sm:$0xff]
      %v342 = vld [vmem:[%s1 + $0x2b0] sm:$0xff]
      %v343 = vld [vmem:[%s1 + $0x2b8] sm:$0xff]
      %v344 = vld [vmem:[%s1 + $0x2c0] sm:$0xff]
      %v345 = vld [vmem:[%s1 + $0x2c8] sm:$0xff]
      %v346 = vld [vmem:[%s1 + $0x2d0] sm:$0xff]
      %v347 = vld [vmem:[%s1 + $0x2d8] sm:$0xff]
      %v348 = vld [vmem:[%s1 + $0x2e0] sm:$0xff]
      %v349 = vld [vmem:[%s1 + $0x2e8] sm:$0xff]
      %v350 = vld [vmem:[%s1 + $0x2f0] sm:$0xff]
      %v351 = vld [vmem:[%s1 + $0x2f8] sm:$0xff]
      %v352 = vld [vmem:[%s1 + $0x300] sm:$0xff]
      %v353 = vld [vmem:[%s1 + $0x308] sm:$0xff]
      %v354 = vld [vmem:[%s1 + $0x310] sm:$0xff]
      %v355 = vld [vmem:[%s1 + $0x318] sm:$0xff]
      %v356 = vld [vmem:[%s1 + $0x320] sm:$0xff]
      %v357 = vld [vmem:[%s1 + $0x328] sm:$0xff]
      %v358 = vld [vmem:[%s1 + $0x330] sm:$0xff]
      %v359 = vld [vmem:[%s1 + $0x338] sm:$0xff]
      %v360 = vld [vmem:[%s1 + $0x340] sm:$0xff]
      %v361 = vld [vmem:[%s1 + $0x348] sm:$0xff]
      %v362 = vld [vmem:[%s1 + $0x350] sm:$0xff]
      %v363 = vld [vmem:[%s1 + $0x358] sm:$0xff]
      %v364 = vld [vmem:[%s1 + $0x360] sm:$0xff]
      %v365 = vld [vmem:[%s1 + $0x368] sm:$0xff]
      %v366 = vld [vmem:[%s1 + $0x370] sm:$0xff]
      %v367 = vld [vmem:[%s1 + $0x378] sm:$0xff]
      %v368 = vld [vmem:[%s1 + $0x380] sm:$0xff]
      %v369 = vld [vmem:[%s1 + $0x388] sm:$0xff]
      %v370 = vld [vmem:[%s1 + $0x390] sm:$0xff]
      %v371 = vld [vmem:[%s1 + $0x398] sm:$0xff]
      %v372 = vld [vmem:[%s1 + $0x3a0] sm:$0xff]
      %v373 = vld [vmem:[%s1 + $0x3a8] sm:$0xff]
      %v374 = vld [vmem:[%s1 + $0x3b0] sm:$0xff]
      %v375 = vld [vmem:[%s1 + $0x3b8] sm:$0xff]
      %v376 = vld [vmem:[%s1 + $0x3c0] sm:$0xff]
      %v377 = vld [vmem:[%s1 + $0x3c8] sm:$0xff]
      %v378 = vld [vmem:[%s1 + $0x3d0] sm:$0xff]
      %v379 = vld [vmem:[%s1 + $0x3d8] sm:$0xff]
      %v380 = vld [vmem:[%s1 + $0x3e0] sm:$0xff]
      %v381 = vld [vmem:[%s1 + $0x3e8] sm:$0xff]
      %v382 = vld [vmem:[%s1 + $0x3f0] sm:$0xff]
      %v383 = vld [vmem:[%s1 + $0x3f8] sm:$0xff]
      %v384 = vadd.f32 %v256, %v264
      %v385 = vadd.f32 %v384, %v272
      %v386 = vadd.f32 %v385, %v280
      %v387 = vadd.f32 %v386, %v288
      %v388 = vadd.f32 %v387, %v296
      %v389 = vadd.f32 %v388, %v304
      %v390 = vadd.f32 %v389, %v312
      %v391 = vadd.f32 %v390, %v320
      %v392 = vadd.f32 %v391, %v328
      %v393 = vadd.f32 %v392, %v336
      %v394 = vadd.f32 %v393, %v344
      %v395 = vadd.f32 %v394, %v352
      %v396 = vadd.f32 %v395, %v360
      %v397 = vadd.f32 %v396, %v368
      %v398 = vadd.f32 %v397, %v376
      %v399 = vadd.f32 %v257, %v265
      %v400 = vadd.f32 %v399, %v273
      %v401 = vadd.f32 %v400, %v281
      %v402 = vadd.f32 %v401, %v289
      %v403 = vadd.f32 %v402, %v297
      %v404 = vadd.f32 %v403, %v305
      %v405 = vadd.f32 %v404, %v313
      %v406 = vadd.f32 %v405, %v321
      %v407 = vadd.f32 %v406, %v329
      %v408 = vadd.f32 %v407, %v337
      %v409 = vadd.f32 %v408, %v345
      %v410 = vadd.f32 %v409, %v353
      %v411 = vadd.f32 %v410, %v361
      %v412 = vadd.f32 %v411, %v369
      %v413 = vadd.f32 %v412, %v377
      %v414 = vadd.f32 %v258, %v266
      %v415 = vadd.f32 %v414, %v274
      %v416 = vadd.f32 %v415, %v282
      %v417 = vadd.f32 %v416, %v290
      %v418 = vadd.f32 %v417, %v298
      %v419 = vadd.f32 %v418, %v306
      %v420 = vadd.f32 %v419, %v314
      %v421 = vadd.f32 %v420, %v322
      %v422 = vadd.f32 %v421, %v330
      %v423 = vadd.f32 %v422, %v338
      %v424 = vadd.f32 %v423, %v346
      %v425 = vadd.f32 %v424, %v354
      %v426 = vadd.f32 %v425, %v362
      %v427 = vadd.f32 %v426, %v370
      %v428 = vadd.f32 %v427, %v378
      %v429 = vadd.f32 %v259, %v267
      %v430 = vadd.f32 %v429, %v275
      %v431 = vadd.f32 %v430, %v283
      %v432 = vadd.f32 %v431, %v291
      %v433 = vadd.f32 %v432, %v299
      %v434 = vadd.f32 %v433, %v307
      %v435 = vadd.f32 %v434, %v315
      %v436 = vadd.f32 %v435, %v323
      %v437 = vadd.f32 %v436, %v331
      %v438 = vadd.f32 %v437, %v339
      %v439 = vadd.f32 %v438, %v347
      %v440 = vadd.f32 %v439, %v355
      %v441 = vadd.f32 %v440, %v363
      %v442 = vadd.f32 %v441, %v371
      %v443 = vadd.f32 %v442, %v379
      %v444 = vadd.f32 %v260, %v268
      %v445 = vadd.f32 %v444, %v276
      %v446 = vadd.f32 %v445, %v284
      %v447 = vadd.f32 %v446, %v292
      %v448 = vadd.f32 %v447, %v300
      %v449 = vadd.f32 %v448, %v308
      %v450 = vadd.f32 %v449, %v316
      %v451 = vadd.f32 %v450, %v324
      %v452 = vadd.f32 %v451, %v332
      %v453 = vadd.f32 %v452, %v340
      %v454 = vadd.f32 %v453, %v348
      %v455 = vadd.f32 %v454, %v356
      %v456 = vadd.f32 %v455, %v364
      %v457 = vadd.f32 %v456, %v372
      %v458 = vadd.f32 %v457, %v380
      %v459 = vadd.f32 %v261, %v269
      %v460 = vadd.f32 %v459, %v277
      %v461 = vadd.f32 %v460, %v285
      %v462 = vadd.f32 %v461, %v293
      %v463 = vadd.f32 %v462, %v301
      %v464 = vadd.f32 %v463, %v309
      %v465 = vadd.f32 %v464, %v317
      %v466 = vadd.f32 %v465, %v325
      %v467 = vadd.f32 %v466, %v333
      %v468 = vadd.f32 %v467, %v341
      %v469 = vadd.f32 %v468, %v349
      %v470 = vadd.f32 %v469, %v357
      %v471 = vadd.f32 %v470, %v365
      %v472 = vadd.f32 %v471, %v373
      %v473 = vadd.f32 %v472, %v381
      %v474 = vadd.f32 %v262, %v270
      %v475 = vadd.f32 %v474, %v278
      %v476 = vadd.f32 %v475, %v286
      %v477 = vadd.f32 %v476, %v294
      %v478 = vadd.f32 %v477, %v302
      %v479 = vadd.f32 %v478, %v310
      %v480 = vadd.f32 %v479, %v318
      %v481 = vadd.f32 %v480, %v326
      %v482 = vadd.f32 %v481, %v334
      %v483 = vadd.f32 %v482, %v342
      %v484 = vadd.f32 %v483, %v350
      %v485 = vadd.f32 %v484, %v358
      %v486 = vadd.f32 %v485, %v366
      %v487 = vadd.f32 %v486, %v374
      %v488 = vadd.f32 %v487, %v382
      %v489 = vadd.f32 %v263, %v271
      %v490 = vadd.f32 %v489, %v279
      %v491 = vadd.f32 %v490, %v287
      %v492 = vadd.f32 %v491, %v295
      %v493 = vadd.f32 %v492, %v303
      %v494 = vadd.f32 %v493, %v311
      %v495 = vadd.f32 %v494, %v319
      %v496 = vadd.f32 %v495, %v327
      %v497 = vadd.f32 %v496, %v335
      %v498 = vadd.f32 %v497, %v343
      %v499 = vadd.f32 %v498, %v351
      %v500 = vadd.f32 %v499, %v359
      %v501 = vadd.f32 %v500, %v367
      %v502 = vadd.f32 %v501, %v375
      %v503 = vadd.f32 %v502, %v383
      %v504 = vld [vmem:[%s2] sm:$0xff]
      %v505 = vld [vmem:[%s2 + $0x8] sm:$0xff]
      %v506 = vld [vmem:[%s2 + $0x10] sm:$0xff]
      %v507 = vld [vmem:[%s2 + $0x18] sm:$0xff]
      %v508 = vld [vmem:[%s2 + $0x20] sm:$0xff]
      %v509 = vld [vmem:[%s2 + $0x28] sm:$0xff]
      %v510 = vld [vmem:[%s2 + $0x30] sm:$0xff]
      %v511 = vld [vmem:[%s2 + $0x38] sm:$0xff]
      %v512 = vld [vmem:[%s2 + $0x40] sm:$0xff]
      %v513 = vld [vmem:[%s2 + $0x48] sm:$0xff]
      %v514 = vld [vmem:[%s2 + $0x50] sm:$0xff]
      %v515 = vld [vmem:[%s2 + $0x58] sm:$0xff]
      %v516 = vld [vmem:[%s2 + $0x60] sm:$0xff]
      %v517 = vld [vmem:[%s2 + $0x68] sm:$0xff]
      %v518 = vld [vmem:[%s2 + $0x70] sm:$0xff]
      %v519 = vld [vmem:[%s2 + $0x78] sm:$0xff]
      %v520 = vld [vmem:[%s2 + $0x80] sm:$0xff]
      %v521 = vld [vmem:[%s2 + $0x88] sm:$0xff]
      %v522 = vld [vmem:[%s2 + $0x90] sm:$0xff]
      %v523 = vld [vmem:[%s2 + $0x98] sm:$0xff]
      %v524 = vld [vmem:[%s2 + $0xa0] sm:$0xff]
      %v525 = vld [vmem:[%s2 + $0xa8] sm:$0xff]
      %v526 = vld [vmem:[%s2 + $0xb0] sm:$0xff]
      %v527 = vld [vmem:[%s2 + $0xb8] sm:$0xff]
      %v528 = vld [vmem:[%s2 + $0xc0] sm:$0xff]
      %v529 = vld [vmem:[%s2 + $0xc8] sm:$0xff]
      %v530 = vld [vmem:[%s2 + $0xd0] sm:$0xff]
      %v531 = vld [vmem:[%s2 + $0xd8] sm:$0xff]
      %v532 = vld [vmem:[%s2 + $0xe0] sm:$0xff]
      %v533 = vld [vmem:[%s2 + $0xe8] sm:$0xff]
      %v534 = vld [vmem:[%s2 + $0xf0] sm:$0xff]
      %v535 = vld [vmem:[%s2 + $0xf8] sm:$0xff]
      %v536 = vld [vmem:[%s2 + $0x100] sm:$0xff]
      %v537 = vld [vmem:[%s2 + $0x108] sm:$0xff]
      %v538 = vld [vmem:[%s2 + $0x110] sm:$0xff]
      %v539 = vld [vmem:[%s2 + $0x118] sm:$0xff]
      %v540 = vld [vmem:[%s2 + $0x120] sm:$0xff]
      %v541 = vld [vmem:[%s2 + $0x128] sm:$0xff]
      %v542 = vld [vmem:[%s2 + $0x130] sm:$0xff]
      %v543 = vld [vmem:[%s2 + $0x138] sm:$0xff]
      %v544 = vld [vmem:[%s2 + $0x140] sm:$0xff]
      %v545 = vld [vmem:[%s2 + $0x148] sm:$0xff]
      %v546 = vld [vmem:[%s2 + $0x150] sm:$0xff]
      %v547 = vld [vmem:[%s2 + $0x158] sm:$0xff]
      %v548 = vld [vmem:[%s2 + $0x160] sm:$0xff]
      %v549 = vld [vmem:[%s2 + $0x168] sm:$0xff]
      %v550 = vld [vmem:[%s2 + $0x170] sm:$0xff]
      %v551 = vld [vmem:[%s2 + $0x178] sm:$0xff]
      %v552 = vld [vmem:[%s2 + $0x180] sm:$0xff]
      %v553 = vld [vmem:[%s2 + $0x188] sm:$0xff]
      %v554 = vld [vmem:[%s2 + $0x190] sm:$0xff]
      %v555 = vld [vmem:[%s2 + $0x198] sm:$0xff]
      %v556 = vld [vmem:[%s2 + $0x1a0] sm:$0xff]
      %v557 = vld [vmem:[%s2 + $0x1a8] sm:$0xff]
      %v558 = vld [vmem:[%s2 + $0x1b0] sm:$0xff]
      %v559 = vld [vmem:[%s2 + $0x1b8] sm:$0xff]
      %v560 = vld [vmem:[%s2 + $0x1c0] sm:$0xff]
      %v561 = vld [vmem:[%s2 + $0x1c8] sm:$0xff]
      %v562 = vld [vmem:[%s2 + $0x1d0] sm:$0xff]
      %v563 = vld [vmem:[%s2 + $0x1d8] sm:$0xff]
      %v564 = vld [vmem:[%s2 + $0x1e0] sm:$0xff]
      %v565 = vld [vmem:[%s2 + $0x1e8] sm:$0xff]
      %v566 = vld [vmem:[%s2 + $0x1f0] sm:$0xff]
      %v567 = vld [vmem:[%s2 + $0x1f8] sm:$0xff]
      %v568 = vld [vmem:[%s2 + $0x200] sm:$0xff]
      %v569 = vld [vmem:[%s2 + $0x208] sm:$0xff]
      %v570 = vld [vmem:[%s2 + $0x210] sm:$0xff]
      %v571 = vld [vmem:[%s2 + $0x218] sm:$0xff]
      %v572 = vld [vmem:[%s2 + $0x220] sm:$0xff]
      %v573 = vld [vmem:[%s2 + $0x228] sm:$0xff]
      %v574 = vld [vmem:[%s2 + $0x230] sm:$0xff]
      %v575 = vld [vmem:[%s2 + $0x238] sm:$0xff]
      %v576 = vld [vmem:[%s2 + $0x240] sm:$0xff]
      %v577 = vld [vmem:[%s2 + $0x248] sm:$0xff]
      %v578 = vld [vmem:[%s2 + $0x250] sm:$0xff]
      %v579 = vld [vmem:[%s2 + $0x258] sm:$0xff]
      %v580 = vld [vmem:[%s2 + $0x260] sm:$0xff]
      %v581 = vld [vmem:[%s2 + $0x268] sm:$0xff]
      %v582 = vld [vmem:[%s2 + $0x270] sm:$0xff]
      %v583 = vld [vmem:[%s2 + $0x278] sm:$0xff]
      %v584 = vld [vmem:[%s2 + $0x280] sm:$0xff]
      %v585 = vld [vmem:[%s2 + $0x288] sm:$0xff]
      %v586 = vld [vmem:[%s2 + $0x290] sm:$0xff]
      %v587 = vld [vmem:[%s2 + $0x298] sm:$0xff]
      %v588 = vld [vmem:[%s2 + $0x2a0] sm:$0xff]
      %v589 = vld [vmem:[%s2 + $0x2a8] sm:$0xff]
      %v590 = vld [vmem:[%s2 + $0x2b0] sm:$0xff]
      %v591 = vld [vmem:[%s2 + $0x2b8] sm:$0xff]
      %v592 = vld [vmem:[%s2 + $0x2c0] sm:$0xff]
      %v593 = vld [vmem:[%s2 + $0x2c8] sm:$0xff]
      %v594 = vld [vmem:[%s2 + $0x2d0] sm:$0xff]
      %v595 = vld [vmem:[%s2 + $0x2d8] sm:$0xff]
      %v596 = vld [vmem:[%s2 + $0x2e0] sm:$0xff]
      %v597 = vld [vmem:[%s2 + $0x2e8] sm:$0xff]
      %v598 = vld [vmem:[%s2 + $0x2f0] sm:$0xff]
      %v599 = vld [vmem:[%s2 + $0x2f8] sm:$0xff]
      %v600 = vld [vmem:[%s2 + $0x300] sm:$0xff]
      %v601 = vld [vmem:[%s2 + $0x308] sm:$0xff]
      %v602 = vld [vmem:[%s2 + $0x310] sm:$0xff]
      %v603 = vld [vmem:[%s2 + $0x318] sm:$0xff]
      %v604 = vld [vmem:[%s2 + $0x320] sm:$0xff]
      %v605 = vld [vmem:[%s2 + $0x328] sm:$0xff]
      %v606 = vld [vmem:[%s2 + $0x330] sm:$0xff]
      %v607 = vld [vmem:[%s2 + $0x338] sm:$0xff]
      %v608 = vld [vmem:[%s2 + $0x340] sm:$0xff]
      %v609 = vld [vmem:[%s2 + $0x348] sm:$0xff]
      %v610 = vld [vmem:[%s2 + $0x350] sm:$0xff]
      %v611 = vld [vmem:[%s2 + $0x358] sm:$0xff]
      %v612 = vld [vmem:[%s2 + $0x360] sm:$0xff]
      %v613 = vld [vmem:[%s2 + $0x368] sm:$0xff]
      %v614 = vld [vmem:[%s2 + $0x370] sm:$0xff]
      %v615 = vld [vmem:[%s2 + $0x378] sm:$0xff]
      %v616 = vld [vmem:[%s2 + $0x380] sm:$0xff]
      %v617 = vld [vmem:[%s2 + $0x388] sm:$0xff]
      %v618 = vld [vmem:[%s2 + $0x390] sm:$0xff]
      %v619 = vld [vmem:[%s2 + $0x398] sm:$0xff]
      %v620 = vld [vmem:[%s2 + $0x3a0] sm:$0xff]
      %v621 = vld [vmem:[%s2 + $0x3a8] sm:$0xff]
      %v622 = vld [vmem:[%s2 + $0x3b0] sm:$0xff]
      %v623 = vld [vmem:[%s2 + $0x3b8] sm:$0xff]
      %v624 = vld [vmem:[%s2 + $0x3c0] sm:$0xff]
      %v625 = vld [vmem:[%s2 + $0x3c8] sm:$0xff]
      %v626 = vld [vmem:[%s2 + $0x3d0] sm:$0xff]
      %v627 = vld [vmem:[%s2 + $0x3d8] sm:$0xff]
      %v628 = vld [vmem:[%s2 + $0x3e0] sm:$0xff]
      %v629 = vld [vmem:[%s2 + $0x3e8] sm:$0xff]
      %v630 = vld [vmem:[%s2 + $0x3f0] sm:$0xff]
      %v631 = vld [vmem:[%s2 + $0x3f8] sm:$0xff]
      %v632 = vadd.f32 %v504, %v512
      %v633 = vadd.f32 %v632, %v520
      %v634 = vadd.f32 %v633, %v528
      %v635 = vadd.f32 %v634, %v536
      %v636 = vadd.f32 %v635, %v544
      %v637 = vadd.f32 %v636, %v552
      %v638 = vadd.f32 %v637, %v560
      %v639 = vadd.f32 %v638, %v568
      %v640 = vadd.f32 %v639, %v576
      %v641 = vadd.f32 %v640, %v584
      %v642 = vadd.f32 %v641, %v592
      %v643 = vadd.f32 %v642, %v600
      %v644 = vadd.f32 %v643, %v608
      %v645 = vadd.f32 %v644, %v616
      %v646 = vadd.f32 %v645, %v624
      %v647 = vadd.f32 %v505, %v513
      %v648 = vadd.f32 %v647, %v521
      %v649 = vadd.f32 %v648, %v529
      %v650 = vadd.f32 %v649, %v537
      %v651 = vadd.f32 %v650, %v545
      %v652 = vadd.f32 %v651, %v553
      %v653 = vadd.f32 %v652, %v561
      %v654 = vadd.f32 %v653, %v569
      %v655 = vadd.f32 %v654, %v577
      %v656 = vadd.f32 %v655, %v585
      %v657 = vadd.f32 %v656, %v593
      %v658 = vadd.f32 %v657, %v601
      %v659 = vadd.f32 %v658, %v609
      %v660 = vadd.f32 %v659, %v617
      %v661 = vadd.f32 %v660, %v625
      %v662 = vadd.f32 %v506, %v514
      %v663 = vadd.f32 %v662, %v522
      %v664 = vadd.f32 %v663, %v530
      %v665 = vadd.f32 %v664, %v538
      %v666 = vadd.f32 %v665, %v546
      %v667 = vadd.f32 %v666, %v554
      %v668 = vadd.f32 %v667, %v562
      %v669 = vadd.f32 %v668, %v570
      %v670 = vadd.f32 %v669, %v578
      %v671 = vadd.f32 %v670, %v586
      %v672 = vadd.f32 %v671, %v594
      %v673 = vadd.f32 %v672, %v602
      %v674 = vadd.f32 %v673, %v610
      %v675 = vadd.f32 %v674, %v618
      %v676 = vadd.f32 %v675, %v626
      %v677 = vadd.f32 %v507, %v515
      %v678 = vadd.f32 %v677, %v523
      %v679 = vadd.f32 %v678, %v531
      %v680 = vadd.f32 %v679, %v539
      %v681 = vadd.f32 %v680, %v547
      %v682 = vadd.f32 %v681, %v555
      %v683 = vadd.f32 %v682, %v563
      %v684 = vadd.f32 %v683, %v571
      %v685 = vadd.f32 %v684, %v579
      %v686 = vadd.f32 %v685, %v587
      %v687 = vadd.f32 %v686, %v595
      %v688 = vadd.f32 %v687, %v603
      %v689 = vadd.f32 %v688, %v611
      %v690 = vadd.f32 %v689, %v619
      %v691 = vadd.f32 %v690, %v627
      %v692 = vadd.f32 %v508, %v516
      %v693 = vadd.f32 %v692, %v524
      %v694 = vadd.f32 %v693, %v532
      %v695 = vadd.f32 %v694, %v540
      %v696 = vadd.f32 %v695, %v548
      %v697 = vadd.f32 %v696, %v556
      %v698 = vadd.f32 %v697, %v564
      %v699 = vadd.f32 %v698, %v572
      %v700 = vadd.f32 %v699, %v580
      %v701 = vadd.f32 %v700, %v588
      %v702 = vadd.f32 %v701, %v596
      %v703 = vadd.f32 %v702, %v604
      %v704 = vadd.f32 %v703, %v612
      %v705 = vadd.f32 %v704, %v620
      %v706 = vadd.f32 %v705, %v628
      %v707 = vadd.f32 %v509, %v517
      %v708 = vadd.f32 %v707, %v525
      %v709 = vadd.f32 %v708, %v533
      %v710 = vadd.f32 %v709, %v541
      %v711 = vadd.f32 %v710, %v549
      %v712 = vadd.f32 %v711, %v557
      %v713 = vadd.f32 %v712, %v565
      %v714 = vadd.f32 %v713, %v573
      %v715 = vadd.f32 %v714, %v581
      %v716 = vadd.f32 %v715, %v589
      %v717 = vadd.f32 %v716, %v597
      %v718 = vadd.f32 %v717, %v605
      %v719 = vadd.f32 %v718, %v613
      %v720 = vadd.f32 %v719, %v621
      %v721 = vadd.f32 %v720, %v629
      %v722 = vadd.f32 %v510, %v518
      %v723 = vadd.f32 %v722, %v526
      %v724 = vadd.f32 %v723, %v534
      %v725 = vadd.f32 %v724, %v542
      %v726 = vadd.f32 %v725, %v550
      %v727 = vadd.f32 %v726, %v558
      %v728 = vadd.f32 %v727, %v566
      %v729 = vadd.f32 %v728, %v574
      %v730 = vadd.f32 %v729, %v582
      %v731 = vadd.f32 %v730, %v590
      %v732 = vadd.f32 %v731, %v598
      %v733 = vadd.f32 %v732, %v606
      %v734 = vadd.f32 %v733, %v614
      %v735 = vadd.f32 %v734, %v622
      %v736 = vadd.f32 %v735, %v630
      %v737 = vadd.f32 %v511, %v519
      %v738 = vadd.f32 %v737, %v527
      %v739 = vadd.f32 %v738, %v535
      %v740 = vadd.f32 %v739, %v543
      %v741 = vadd.f32 %v740, %v551
      %v742 = vadd.f32 %v741, %v559
      %v743 = vadd.f32 %v742, %v567
      %v744 = vadd.f32 %v743, %v575
      %v745 = vadd.f32 %v744, %v583
      %v746 = vadd.f32 %v745, %v591
      %v747 = vadd.f32 %v746, %v599
      %v748 = vadd.f32 %v747, %v607
      %v749 = vadd.f32 %v748, %v615
      %v750 = vadd.f32 %v749, %v623
      %v751 = vadd.f32 %v750, %v631
      %v752 = vmul.f32 %v398, 0.03125
      %v753 = vmul.f32 %v413, 0.03125
      %v754 = vmul.f32 %v428, 0.03125
      %v755 = vmul.f32 %v443, 0.03125
      %v756 = vmul.f32 %v458, 0.03125
      %v757 = vmul.f32 %v473, 0.03125
      %v758 = vmul.f32 %v488, 0.03125
      %v759 = vmul.f32 %v503, 0.03125
      %v760 = vmul.f32 %v646, 0.03125
      %v761 = vmul.f32 %v661, 0.03125
      %v762 = vmul.f32 %v676, 0.03125
      %v763 = vmul.f32 %v691, 0.03125
      %v764 = vmul.f32 %v706, 0.03125
      %v765 = vmul.f32 %v721, 0.03125
      %v766 = vmul.f32 %v736, 0.03125
      %v767 = vmul.f32 %v751, 0.03125
      %v768 = vmul.f32 %v752, %v752
      %v769 = vmul.f32 %v753, %v753
      %v770 = vmul.f32 %v754, %v754
      %v771 = vmul.f32 %v755, %v755
      %v772 = vmul.f32 %v756, %v756
      %v773 = vmul.f32 %v757, %v757
      %v774 = vmul.f32 %v758, %v758
      %v775 = vmul.f32 %v759, %v759
      %v776 = vsub.f32 %v760, %v768
      %v777 = vsub.f32 %v761, %v769
      %v778 = vsub.f32 %v762, %v770
      %v779 = vsub.f32 %v763, %v771
      %v780 = vsub.f32 %v764, %v772
      %v781 = vsub.f32 %v765, %v773
      %v782 = vsub.f32 %v766, %v774
      %v783 = vsub.f32 %v767, %v775
      %v784 = vmax.f32 %v776, 0.0
      %v785 = vmax.f32 %v777, 0.0
      %v786 = vmax.f32 %v778, 0.0
      %v787 = vmax.f32 %v779, 0.0
      %v788 = vmax.f32 %v780, 0.0
      %v789 = vmax.f32 %v781, 0.0
      %v790 = vmax.f32 %v782, 0.0
      %v791 = vmax.f32 %v783, 0.0
      %v792 = vadd.f32 %v784, 1e-05
      %v793 = vadd.f32 %v785, 1e-05
      %v794 = vadd.f32 %v786, 1e-05
      %v795 = vadd.f32 %v787, 1e-05
      %v796 = vadd.f32 %v788, 1e-05
      %v797 = vadd.f32 %v789, 1e-05
      %v798 = vadd.f32 %v790, 1e-05
      %v799 = vadd.f32 %v791, 1e-05
      %v800 = vrsqrt.pop %v792
      %v801 = vrsqrt.pop %v793
      %v802 = vrsqrt.pop %v794
      %v803 = vrsqrt.pop %v795
      %v804 = vrsqrt.pop %v796
      %v805 = vrsqrt.pop %v797
      %v806 = vrsqrt.pop %v798
      %v807 = vrsqrt.pop %v799
      %v808 = vld [vmem:[%s3] sm:$0xff]
      %v809 = vld [vmem:[%s3 + $0x8] sm:$0xff]
      %v810 = vld [vmem:[%s3 + $0x10] sm:$0xff]
      %v811 = vld [vmem:[%s3 + $0x18] sm:$0xff]
      %v812 = vld [vmem:[%s3 + $0x20] sm:$0xff]
      %v813 = vld [vmem:[%s3 + $0x28] sm:$0xff]
      %v814 = vld [vmem:[%s3 + $0x30] sm:$0xff]
      %v815 = vld [vmem:[%s3 + $0x38] sm:$0xff]
      %v816 = vmul.f32 %v808, %v800
      %v817 = vmul.f32 %v809, %v801
      %v818 = vmul.f32 %v810, %v802
      %v819 = vmul.f32 %v811, %v803
      %v820 = vmul.f32 %v812, %v804
      %v821 = vmul.f32 %v813, %v805
      %v822 = vmul.f32 %v814, %v806
      %v823 = vmul.f32 %v815, %v807
      %v824 = vld [vmem:[%s4] sm:$0xff]
      %v825 = vld [vmem:[%s4 + $0x8] sm:$0xff]
      %v826 = vld [vmem:[%s4 + $0x10] sm:$0xff]
      %v827 = vld [vmem:[%s4 + $0x18] sm:$0xff]
      %v828 = vld [vmem:[%s4 + $0x20] sm:$0xff]
      %v829 = vld [vmem:[%s4 + $0x28] sm:$0xff]
      %v830 = vld [vmem:[%s4 + $0x30] sm:$0xff]
      %v831 = vld [vmem:[%s4 + $0x38] sm:$0xff]
      %v832 = vmul.f32 %v752, %v816
      %v833 = vmul.f32 %v753, %v817
      %v834 = vmul.f32 %v754, %v818
      %v835 = vmul.f32 %v755, %v819
      %v836 = vmul.f32 %v756, %v820
      %v837 = vmul.f32 %v757, %v821
      %v838 = vmul.f32 %v758, %v822
      %v839 = vmul.f32 %v759, %v823
      %v840 = vsub.f32 %v824, %v832
      %v841 = vsub.f32 %v825, %v833
      %v842 = vsub.f32 %v826, %v834
      %v843 = vsub.f32 %v827, %v835
      %v844 = vsub.f32 %v828, %v836
      %v845 = vsub.f32 %v829, %v837
      %v846 = vsub.f32 %v830, %v838
      %v847 = vsub.f32 %v831, %v839
      %v848 = vld [vmem:[%s247] sm:$0xf]
      %v849 = vld [vmem:[%s247 + $0x4] sm:$0xf]
      %v850 = vld [vmem:[%s247 + $0x8] sm:$0xf]
      %v851 = vld [vmem:[%s247 + $0xc] sm:$0xf]
      %v852 = vld [vmem:[%s247 + $0x10] sm:$0xf]
      %v853 = vld [vmem:[%s247 + $0x14] sm:$0xf]
      %v854 = vld [vmem:[%s247 + $0x18] sm:$0xf]
      %v855 = vld [vmem:[%s247 + $0x1c] sm:$0xf]
      %v856 = vunpack.c.l.bf16 %v848
      %v857 = vunpack.c.l.bf16 %v849
      %v858 = vunpack.c.l.bf16 %v850
      %v859 = vunpack.c.l.bf16 %v851
      %v860 = vunpack.c.l.bf16 %v852
      %v861 = vunpack.c.l.bf16 %v853
      %v862 = vunpack.c.l.bf16 %v854
      %v863 = vunpack.c.l.bf16 %v855
      %865 = vset.pattern.permute.xlu0 0
      %866 = vperm.xlu0 %865, %v816
      %v867 = vpop.permute.xlu0 %866
      %870 = vset.pattern.permute.xlu0 0
      %871 = vperm.xlu0 %870, %v817
      %v872 = vpop.permute.xlu0 %871
      %875 = vset.pattern.permute.xlu0 0
      %876 = vperm.xlu0 %875, %v818
      %v877 = vpop.permute.xlu0 %876
      %880 = vset.pattern.permute.xlu0 0
      %881 = vperm.xlu0 %880, %v819
      %v882 = vpop.permute.xlu0 %881
      %885 = vset.pattern.permute.xlu0 0
      %886 = vperm.xlu0 %885, %v820
      %v887 = vpop.permute.xlu0 %886
      %890 = vset.pattern.permute.xlu0 0
      %891 = vperm.xlu0 %890, %v821
      %v892 = vpop.permute.xlu0 %891
      %895 = vset.pattern.permute.xlu0 0
      %896 = vperm.xlu0 %895, %v822
      %v897 = vpop.permute.xlu0 %896
      %900 = vset.pattern.permute.xlu0 0
      %901 = vperm.xlu0 %900, %v823
      %v902 = vpop.permute.xlu0 %901
      %v904 = vmul.f32 %v856, %v867
      %v905 = vmul.f32 %v857, %v872
      %v906 = vmul.f32 %v858, %v877
      %v907 = vmul.f32 %v859, %v882
      %v908 = vmul.f32 %v860, %v887
      %v909 = vmul.f32 %v861, %v892
      %v910 = vmul.f32 %v862, %v897
      %v911 = vmul.f32 %v863, %v902
      %913 = vset.pattern.permute.xlu0 0
      %914 = vperm.xlu0 %913, %v840
      %v915 = vpop.permute.xlu0 %914
      %918 = vset.pattern.permute.xlu0 0
      %919 = vperm.xlu0 %918, %v841
      %v920 = vpop.permute.xlu0 %919
      %923 = vset.pattern.permute.xlu0 0
      %924 = vperm.xlu0 %923, %v842
      %v925 = vpop.permute.xlu0 %924
      %928 = vset.pattern.permute.xlu0 0
      %929 = vperm.xlu0 %928, %v843
      %v930 = vpop.permute.xlu0 %929
      %933 = vset.pattern.permute.xlu0 0
      %934 = vperm.xlu0 %933, %v844
      %v935 = vpop.permute.xlu0 %934
      %938 = vset.pattern.permute.xlu0 0
      %939 = vperm.xlu0 %938, %v845
      %v940 = vpop.permute.xlu0 %939
      %943 = vset.pattern.permute.xlu0 0
      %944 = vperm.xlu0 %943, %v846
      %v945 = vpop.permute.xlu0 %944
      %948 = vset.pattern.permute.xlu0 0
      %949 = vperm.xlu0 %948, %v847
      %v950 = vpop.permute.xlu0 %949
      %v952 = vadd.f32 %v904, %v915
      %v953 = vadd.f32 %v905, %v920
      %v954 = vadd.f32 %v906, %v925
      %v955 = vadd.f32 %v907, %v930
      %v956 = vadd.f32 %v908, %v935
      %v957 = vadd.f32 %v909, %v940
      %v958 = vadd.f32 %v910, %v945
      %v959 = vadd.f32 %v911, %v950
      %v960 = vmax.f32 %v952, 0.0
      %v961 = vmax.f32 %v953, 0.0
      %v962 = vmax.f32 %v954, 0.0
      %v963 = vmax.f32 %v955, 0.0
      %v964 = vmax.f32 %v956, 0.0
      %v965 = vmax.f32 %v957, 0.0
      %v966 = vmax.f32 %v958, 0.0
      %v967 = vmax.f32 %v959, 0.0
      %v968 = vpack.c.bf16 %v961, %v960
      %v969 = vpack.c.bf16 %v963, %v962
      %v970 = vpack.c.bf16 %v965, %v964
      %v971 = vpack.c.bf16 %v967, %v966
      %v976 = vunpack.c.l.b16 %v968
      %v977 = vunpack.c.h.b16 %v968
      %v978 = vunpack.c.l.b16 %v969
      %v979 = vunpack.c.h.b16 %v969
      %v980 = vunpack.c.l.b16 %v970
      %v981 = vunpack.c.h.b16 %v970
      %v982 = vunpack.c.l.b16 %v971
      %v983 = vunpack.c.h.b16 %v971
      %v984 = vpack.c.b16 %v976, %v976
      %v985 = vpack.c.b16 %v977, %v977
      %v986 = vpack.c.b16 %v978, %v978
      %v987 = vpack.c.b16 %v979, %v979
      %v988 = vpack.c.b16 %v980, %v980
      %v989 = vpack.c.b16 %v981, %v981
      %v990 = vpack.c.b16 %v982, %v982
      %v991 = vpack.c.b16 %v983, %v983
      %1000 = vst [vmem:[%s255] sm:$0xf] %v984
      %1001 = vst [vmem:[%s255 + $0x4] sm:$0xf] %v985
      %1002 = vst [vmem:[%s255 + $0x8] sm:$0xf] %v986
      %1003 = vst [vmem:[%s255 + $0xc] sm:$0xf] %v987
      %1004 = vst [vmem:[%s255 + $0x10] sm:$0xf] %v988
      %1005 = vst [vmem:[%s255 + $0x14] sm:$0xf] %v989
      %1006 = vst [vmem:[%s255 + $0x18] sm:$0xf] %v990
      %1007 = vst [vmem:[%s255 + $0x1c] sm:$0xf] %v991
      %p1008 = scmp.lt.s32.totalorder %s20, 15
      %s1009 = scalar_select %p1008, %s20, 15
      %p1010 = scmp.lt.s32.totalorder %s21, 0
      %s1011 = scalar_select %p1010, %s21, 0
      %s1012 = smul.addr %s1009, 8
      %s1013 = sadd.s32 %s1011, %s1012
      %s1014 = smul.addr %s1013, 4
      %s1015 = scalar_lea.vmem %s5, %s1014
      // Predicated region
      $region41: #{generator_forward.10} parent=39 // pred_check
        %p1016 = pneg %p160
      $region42: #{generator_forward.10} parent=39 // pred_check_branch
        %1018 = sbr.rel (%p1016) target = $region44
      $region43: #{generator_forward.10} parent=39 // pred_region
        _
      $region44: #{generator_forward.10} parent=39 // pred_fallthru
        _
    $region40: #{generator_forward.10} parent=5 // pred_fallthru
      _
    %p1019 = scmp.le.s32.totalorder 2, %s11
    // Predicated region
    $region45: #{generator_forward.10} parent=5 // pred_check
      %p1020 = pneg %p1019
    $region46: #{generator_forward.10} parent=5 // pred_check_branch
      %1022 = sbr.rel (%p1020) target = $region48
    $region47: #{generator_forward.10} parent=5 // pred_region
      %s1023 = ssub.s32 %s11, 2
      // Predicated region
      $region49: #{generator_forward.10} parent=47 // pred_check
        %p1024 = pneg %p166
      $region50: #{generator_forward.10} parent=47 // pred_check_branch
        %1026 = sbr.rel (%p1024) target = $region52
      $region51: #{generator_forward.10} parent=47 // pred_region
        %p1027 = scmp.lt.s32.totalorder %s22, 15
        %s1028 = scalar_select %p1027, %s22, 15
        %p1029 = scmp.lt.s32.totalorder %s23, 0
        %s1030 = scalar_select %p1029, %s23, 0
        %s1031 = smul.addr %s1028, 8
        %s1032 = sadd.s32 %s1030, %s1031
        %s1033 = smul.addr %s1032, 4
        %s1034 = scalar_lea.vmem %s5, %s1033
      $region52: #{generator_forward.10} parent=47 // pred_fallthru
        _
    $region48: #{generator_forward.10} parent=5 // pred_fallthru
      _
  $region6: #{generator_forward.10} parent=0 // loop_footer
    %s15 = sadd.s32 1, %s11
  $region7: #{generator_forward.10} parent=0 // loop_footer_branch
    %10 = sbr.rel target = $region3
  $region8: #{generator_forward.10} parent=0 // loop_exit
    _

// kernel: generator_forward.11
$region0: #{generator_forward.11}
  #allocation0 [shape = 'u32[]', space=smem, size = 0x4, offset = 0x4, fixed_abs, tag = 'smem constant byte address 0x4 - core index']
  #allocation1 [shape = 'u32[144,128]{1,0:T(1,128)}', space=vmem, size = 0x12000, scoped, tag = 'internal scratch']
  %s0 = inlined_call_operand.vmem [shape: bf16[4,32,256], index: 0, kind: input, shape index: {}]
  %s1 = inlined_call_operand.vmem [shape: bf16[4,256,128], index: 1, kind: input, shape index: {}]
  %s2 = inlined_call_operand.vmem [shape: bf16[4,32,128], index: 2, kind: output, shape index: {0}]
  %s3 = inlined_call_operand.vmem [shape: f32[4,32,128], index: 3, kind: output, shape index: {1}]
  %s4 = inlined_call_operand.vmem [shape: f32[4,32,128], index: 4, kind: output, shape index: {2}]
  %5 = xla_tuple %s2, %s3, %s4
  %s6 = sld [smem:[#allocation0]]
  $region61: #{generator_forward.11} parent=0
    _
  %s8 = ssub.s32 1, %s6
  %s9 = scalar_select 0, %s8, %s6
  loop: start=0, step=1, limit=6
  $region2: #{generator_forward.11} parent=0 // loop_pre_header
    _
  $region3: #{generator_forward.11} parent=0 // loop_header
    %s11 = sphi 0, %s15
    %p12 = scmp.ge.s32.totalorder %s11, 6
    %s18 = sphi 0, %s30
    %s19 = sphi 0, %s26
    %s20 = sphi 0, %s18
    %s21 = sphi 0, %s19
    %s22 = sphi 0, %s20
    %s23 = sphi 0, %s21
    %s33 = sphi 0, %s35
    %s36 = sphi 0, %s33
    %s37 = sphi 0, %s36
    %s53 = sphi 0, %s37
    %s61 = sphi 0, %s63
    %s64 = sphi 0, %s61
    %s65 = sphi 0, %s64
    %s81 = sphi 0, %s65
    %s89 = sphi 0, %s91
    %s92 = sphi 0, %s89
    %s93 = sphi 0, %s92
    %s109 = sphi 0, %s93
    %s115 = sphi 0, %s117
    %s118 = sphi 0, %s115
    %s119 = sphi 0, %s118
    %s135 = sphi 0, %s119
    %s141 = sphi 0, %s143
    %s144 = sphi 0, %s141
    %s145 = sphi 0, %s144
    %s161 = sphi 0, %s145
  $region4: #{generator_forward.11} parent=0 // loop_header_branch
    %14 = sbr.rel (%p12) target = $region8
  $region5: #{generator_forward.11} parent=0 // loop_body
    %s16 = ssub.s32 %s11, 1
    %s17 = ssub.s32 %s11, 2
    %s24 = sadd.s32 1, %s19
    %p25 = scmp.ge.s32.totalorder %s24, 1
    %s26 = scalar_select %p25, 0, %s24
    %s27 = sadd.s32 1, %s18
    %s28 = scalar_select %p25, %s27, %s18
    %p29 = scmp.ge.s32.totalorder %s28, 4
    %s30 = scalar_select %p29, 0, %s28
    %s31 = ssub.s32 %s18, %s30
    %p32 = scmp.eq.s32.totalorder %s31, 0
    %s34 = sadd.s32 %s33, 1
    %s35 = scalar_select %p32, %s33, %s34
    %p38 = pneg %p32
    %p39 = scmp.eq.s32.totalorder %s11, 3
    %p40 = por %p38, %p39
    %p41 = scmp.ne.s32.totalorder %s33, %s36
    %p42 = scmp.eq.s32.totalorder %s11, 0
    %p43 = por %p41, %p42
    %p44 = scmp.ne.s32.totalorder %s33, %s36
    %p45 = scmp.eq.s32.totalorder %s16, 3
    %p46 = por %p44, %p45
    %p47 = scmp.ne.s32.totalorder %s36, %s37
    %p48 = scmp.eq.s32.totalorder %s16, 0
    %p49 = por %p47, %p48
    %p50 = scmp.ne.s32.totalorder %s36, %s37
    %p51 = scmp.eq.s32.totalorder %s17, 3
    %p52 = por %p50, %p51
    %p54 = scmp.ne.s32.totalorder %s37, %s53
    %p55 = scmp.eq.s32.totalorder %s17, 0
    %p56 = por %p54, %p55
    %s57 = ssub.s32 %s18, %s30
    %s58 = ssub.s32 %s19, %s26
    %s59 = sor.u32 %s57, %s58
    %p60 = scmp.eq.s32.totalorder %s59, 0
    %s62 = sadd.s32 %s61, 1
    %s63 = scalar_select %p60, %s61, %s62
    %p66 = pneg %p60
    %p67 = scmp.eq.s32.totalorder %s11, 3
    %p68 = por %p66, %p67
    %p69 = scmp.ne.s32.totalorder %s61, %s64
    %p70 = scmp.eq.s32.totalorder %s11, 0
    %p71 = por %p69, %p70
    %p72 = scmp.ne.s32.totalorder %s61, %s64
    %p73 = scmp.eq.s32.totalorder %s16, 3
    %p74 = por %p72, %p73
    %p75 = scmp.ne.s32.totalorder %s64, %s65
    %p76 = scmp.eq.s32.totalorder %s16, 0
    %p77 = por %p75, %p76
    %p78 = scmp.ne.s32.totalorder %s64, %s65
    %p79 = scmp.eq.s32.totalorder %s17, 3
    %p80 = por %p78, %p79
    %p82 = scmp.ne.s32.totalorder %s65, %s81
    %p83 = scmp.eq.s32.totalorder %s17, 0
    %p84 = por %p82, %p83
    %s85 = ssub.s32 %s18, %s30
    %s86 = ssub.s32 %s19, %s26
    %s87 = sor.u32 %s85, %s86
    %p88 = scmp.eq.s32.totalorder %s87, 0
    %s90 = sadd.s32 %s89, 1
    %s91 = scalar_select %p88, %s89, %s90
    %p94 = pneg %p88
    %p95 = scmp.eq.s32.totalorder %s11, 3
    %p96 = por %p94, %p95
    %p97 = scmp.ne.s32.totalorder %s89, %s92
    %p98 = scmp.eq.s32.totalorder %s11, 0
    %p99 = por %p97, %p98
    %p100 = scmp.ne.s32.totalorder %s89, %s92
    %p101 = scmp.eq.s32.totalorder %s16, 3
    %p102 = por %p100, %p101
    %p103 = scmp.ne.s32.totalorder %s92, %s93
    %p104 = scmp.eq.s32.totalorder %s16, 0
    %p105 = por %p103, %p104
    %p106 = scmp.ne.s32.totalorder %s92, %s93
    %p107 = scmp.eq.s32.totalorder %s17, 3
    %p108 = por %p106, %p107
    %p110 = scmp.ne.s32.totalorder %s93, %s109
    %p111 = scmp.eq.s32.totalorder %s17, 0
    %p112 = por %p110, %p111
    %s113 = ssub.s32 %s18, %s30
    %p114 = scmp.eq.s32.totalorder %s113, 0
    %s116 = sadd.s32 %s115, 1
    %s117 = scalar_select %p114, %s115, %s116
    %p120 = pneg %p114
    %p121 = scmp.eq.s32.totalorder %s11, 3
    %p122 = por %p120, %p121
    %p123 = scmp.ne.s32.totalorder %s115, %s118
    %p124 = scmp.eq.s32.totalorder %s11, 0
    %p125 = por %p123, %p124
    %p126 = scmp.ne.s32.totalorder %s115, %s118
    %p127 = scmp.eq.s32.totalorder %s16, 3
    %p128 = por %p126, %p127
    %p129 = scmp.ne.s32.totalorder %s118, %s119
    %p130 = scmp.eq.s32.totalorder %s16, 0
    %p131 = por %p129, %p130
    %p132 = scmp.ne.s32.totalorder %s118, %s119
    %p133 = scmp.eq.s32.totalorder %s17, 3
    %p134 = por %p132, %p133
    %p136 = scmp.ne.s32.totalorder %s119, %s135
    %p137 = scmp.eq.s32.totalorder %s17, 0
    %p138 = por %p136, %p137
    %s139 = ssub.s32 %s18, %s30
    %p140 = scmp.eq.s32.totalorder %s139, 0
    %s142 = sadd.s32 %s141, 1
    %s143 = scalar_select %p140, %s141, %s142
    %p146 = pneg %p140
    %p147 = scmp.eq.s32.totalorder %s11, 3
    %p148 = por %p146, %p147
    %p149 = scmp.ne.s32.totalorder %s141, %s144
    %p150 = scmp.eq.s32.totalorder %s11, 0
    %p151 = por %p149, %p150
    %p152 = scmp.ne.s32.totalorder %s141, %s144
    %p153 = scmp.eq.s32.totalorder %s16, 3
    %p154 = por %p152, %p153
    %p155 = scmp.ne.s32.totalorder %s144, %s145
    %p156 = scmp.eq.s32.totalorder %s16, 0
    %p157 = por %p155, %p156
    %p158 = scmp.ne.s32.totalorder %s144, %s145
    %p159 = scmp.eq.s32.totalorder %s17, 3
    %p160 = por %p158, %p159
    %p162 = scmp.ne.s32.totalorder %s145, %s161
    %p163 = scmp.eq.s32.totalorder %s17, 0
    %p164 = por %p162, %p163
    %p165 = scmp.le.s32.totalorder 1, %s11
    %p166 = scmp.lt.s32.totalorder %s11, 5
    %p167 = pnand %p165, %p166
    %p168 = pneg %p167
    // Predicated region
    $region9: #{generator_forward.11} parent=5 // pred_check
      _
    $region10: #{generator_forward.11} parent=5 // pred_check_branch
      %170 = sbr.rel (%p167) target = $region12
    $region11: #{generator_forward.11} parent=5 // pred_region
      %s171 = ssub.s32 %s11, 1
    $region12: #{generator_forward.11} parent=5 // pred_fallthru
      _
    %p172 = scmp.lt.s32.totalorder %s11, 4
    // Predicated region
    $region13: #{generator_forward.11} parent=5 // pred_check
      %p173 = pneg %p172
    $region14: #{generator_forward.11} parent=5 // pred_check_branch
      %175 = sbr.rel (%p173) target = $region16
    $region15: #{generator_forward.11} parent=5 // pred_region
      // Predicated region
      $region17: #{generator_forward.11} parent=15 // pred_check
        %p176 = pneg %p43
      $region18: #{generator_forward.11} parent=15 // pred_check_branch
        %178 = sbr.rel (%p176) target = $region20
      $region19: #{generator_forward.11} parent=15 // pred_region
        %p179 = scmp.lt.s32.totalorder %s18, 3
        %s180 = scalar_select %p179, %s18, 3
        %s181 = smul.addr %s180, 8
        %s182 = smul.addr %s181, 4
        %s183 = scalar_lea.vmem %s0, %s182
      $region20: #{generator_forward.11} parent=15 // pred_fallthru
        _
      // Predicated region
      $region21: #{generator_forward.11} parent=15 // pred_check
        %p184 = pneg %p71
      $region22: #{generator_forward.11} parent=15 // pred_check_branch
        %186 = sbr.rel (%p184) target = $region24
      $region23: #{generator_forward.11} parent=15 // pred_region
        %p187 = scmp.lt.s32.totalorder %s18, 3
        %s188 = scalar_select %p187, %s18, 3
        %p189 = scmp.lt.s32.totalorder %s19, 0
        %s190 = scalar_select %p189, %s19, 0
        %s191 = smul.addr %s188, 32
        %s192 = sadd.s32 %s190, %s191
        %s193 = smul.addr %s192, 4
        %s194 = scalar_lea.vmem %s1, %s193
      $region24: #{generator_forward.11} parent=15 // pred_fallthru
        _
    $region16: #{generator_forward.11} parent=5 // pred_fallthru
      _
    %p195 = scmp.le.s32.totalorder 1, %s11
    %p196 = scmp.lt.s32.totalorder %s11, 5
    %p197 = pnand %p195, %p196
    %p198 = pneg %p197
    // Predicated region
    $region25: #{generator_forward.11} parent=5 // pred_check
      _
    $region26: #{generator_forward.11} parent=5 // pred_check_branch
      %200 = sbr.rel (%p197) target = $region28
    $region27: #{generator_forward.11} parent=5 // pred_region
      %s201 = ssub.s32 %s11, 1
      %p202 = scmp.lt.s32.totalorder %s20, 3
      %s203 = scalar_select %p202, %s20, 3
      %s204 = smul.addr %s203, 8
      %s205 = smul.addr %s204, 4
      %s206 = scalar_lea.vmem %s0, %s205
      %p207 = pneg %p49
      %p208 = pneg %p46
      %p209 = scmp.lt.s32.totalorder %s20, 3
      %s210 = scalar_select %p209, %s20, 3
      %p211 = scmp.lt.s32.totalorder %s21, 0
      %s212 = scalar_select %p211, %s21, 0
      %s213 = smul.addr %s210, 32
      %s214 = sadd.s32 %s212, %s213
      %s215 = smul.addr %s214, 4
      %s216 = scalar_lea.vmem %s1, %s215
      %p217 = pneg %p77
      %p218 = pneg %p74
      %p219 = pneg %p105
      %p220 = pneg %p102
      %p221 = scmp.lt.s32.totalorder %s20, 3
      %s222 = scalar_select %p221, %s20, 3
      %p223 = scmp.lt.s32.totalorder %s21, 0
      %s224 = scalar_select %p223, %s21, 0
      %s225 = smul.addr %s222, 4
      %s226 = sadd.s32 %s224, %s225
      %s227 = smul.addr %s226, 4
      %s228 = scalar_lea.vmem %s2, %s227
      %p229 = pneg %p131
      %p230 = pneg %p128
      %p231 = scmp.lt.s32.totalorder %s20, 3
      %s232 = scalar_select %p231, %s20, 3
      %s233 = smul.addr %s232, 4
      %s234 = smul.addr %s233, 8
      %s235 = scalar_lea.vmem %s3, %s234
      %p236 = pneg %p157
      %p237 = pneg %p154
      %p238 = scmp.lt.s32.totalorder %s20, 3
      %s239 = scalar_select %p238, %s20, 3
      %s240 = smul.addr %s239, 4
      %s241 = smul.addr %s240, 8
      %s242 = scalar_lea.vmem %s4, %s241
      %p243 = scmp.lt.s32.totalorder %s20, 3
      %s244 = scalar_select %p243, %s20, 3
      %s245 = smul.addr %s244, 8
      %s246 = smul.addr %s245, 4
      %s247 = scalar_lea.vmem %s0, %s246
      %p248 = scmp.lt.s32.totalorder %s20, 3
      %s249 = scalar_select %p248, %s20, 3
      %p250 = scmp.lt.s32.totalorder %s21, 0
      %s251 = scalar_select %p250, %s21, 0
      %s252 = smul.addr %s249, 32
      %s253 = sadd.s32 %s251, %s252
      %s254 = smul.addr %s253, 4
      %s255 = scalar_lea.vmem %s1, %s254
      %p256 = scmp.lt.s32.totalorder %s20, 3
      %s257 = scalar_select %p256, %s20, 3
      %p258 = scmp.lt.s32.totalorder %s21, 0
      %s259 = scalar_select %p258, %s21, 0
      %s260 = smul.addr %s257, 4
      %s261 = sadd.s32 %s259, %s260
      %s262 = smul.addr %s261, 4
      %s263 = scalar_lea.vmem %s2, %s262
      %p264 = scmp.lt.s32.totalorder %s20, 3
      %s265 = scalar_select %p264, %s20, 3
      %s266 = smul.addr %s265, 4
      %s267 = smul.addr %s266, 8
      %s268 = scalar_lea.vmem %s3, %s267
      %p269 = scmp.lt.s32.totalorder %s20, 3
      %s270 = scalar_select %p269, %s20, 3
      %s271 = smul.addr %s270, 4
      %s272 = smul.addr %s271, 8
      %s273 = scalar_lea.vmem %s4, %s272
      %p275 = scmp.eq.s32.totalorder %s21, 0
      // Predicated region
      $region29: #{generator_forward.11} parent=27 // pred_check
        %p276 = pneg %p275
      $region30: #{generator_forward.11} parent=27 // pred_check_branch
        %278 = sbr.rel (%p276) target = $region32
      $region31: #{generator_forward.11} parent=27 // pred_region
        %279 = vst [vmem:[%s268] sm:$0xff] 0.0
        %280 = vst [vmem:[%s268 + $0x8] sm:$0xff] 0.0
        %281 = vst [vmem:[%s268 + $0x10] sm:$0xff] 0.0
        %282 = vst [vmem:[%s268 + $0x18] sm:$0xff] 0.0
        %283 = vst [vmem:[%s273] sm:$0xff] 0.0
        %284 = vst [vmem:[%s273 + $0x8] sm:$0xff] 0.0
        %285 = vst [vmem:[%s273 + $0x10] sm:$0xff] 0.0
        %286 = vst [vmem:[%s273 + $0x18] sm:$0xff] 0.0
      $region32: #{generator_forward.11} parent=27 // pred_fallthru
        _
      %v287 = vld [vmem:[%s247] sm:$0xff]
      %v288 = vld [vmem:[%s247 + $0x8] sm:$0xff]
      %v289 = vld [vmem:[%s247 + $0x10] sm:$0xff]
      %v290 = vld [vmem:[%s247 + $0x18] sm:$0xff]
      %v291 = vld [vmem:[%s255] sm:$0xf]
      %v292 = vld [vmem:[%s255 + $0x4] sm:$0xf]
      %v293 = vld [vmem:[%s255 + $0x8] sm:$0xf]
      %v294 = vld [vmem:[%s255 + $0xc] sm:$0xf]
      %v295 = vld [vmem:[%s255 + $0x10] sm:$0xf]
      %v296 = vld [vmem:[%s255 + $0x14] sm:$0xf]
      %v297 = vld [vmem:[%s255 + $0x18] sm:$0xf]
      %v298 = vld [vmem:[%s255 + $0x1c] sm:$0xf]
      %v299 = vld [vmem:[%s255 + $0x20] sm:$0xf]
      %v300 = vld [vmem:[%s255 + $0x24] sm:$0xf]
      %v301 = vld [vmem:[%s255 + $0x28] sm:$0xf]
      %v302 = vld [vmem:[%s255 + $0x2c] sm:$0xf]
      %v303 = vld [vmem:[%s255 + $0x30] sm:$0xf]
      %v304 = vld [vmem:[%s255 + $0x34] sm:$0xf]
      %v305 = vld [vmem:[%s255 + $0x38] sm:$0xf]
      %v306 = vld [vmem:[%s255 + $0x3c] sm:$0xf]
      %v307 = vld [vmem:[%s255 + $0x40] sm:$0xf]
      %v308 = vld [vmem:[%s255 + $0x44] sm:$0xf]
      %v309 = vld [vmem:[%s255 + $0x48] sm:$0xf]
      %v310 = vld [vmem:[%s255 + $0x4c] sm:$0xf]
      %v311 = vld [vmem:[%s255 + $0x50] sm:$0xf]
      %v312 = vld [vmem:[%s255 + $0x54] sm:$0xf]
      %v313 = vld [vmem:[%s255 + $0x58] sm:$0xf]
      %v314 = vld [vmem:[%s255 + $0x5c] sm:$0xf]
      %v315 = vld [vmem:[%s255 + $0x60] sm:$0xf]
      %v316 = vld [vmem:[%s255 + $0x64] sm:$0xf]
      %v317 = vld [vmem:[%s255 + $0x68] sm:$0xf]
      %v318 = vld [vmem:[%s255 + $0x6c] sm:$0xf]
      %v319 = vld [vmem:[%s255 + $0x70] sm:$0xf]
      %v320 = vld [vmem:[%s255 + $0x74] sm:$0xf]
      %v321 = vld [vmem:[%s255 + $0x78] sm:$0xf]
      %v322 = vld [vmem:[%s255 + $0x7c] sm:$0xf]
      %v327 = vunpack.c.l.b16 %v287
      %v328 = vunpack.c.h.b16 %v287
      %v329 = vunpack.c.l.b16 %v288
      %v330 = vunpack.c.h.b16 %v288
      %v331 = vunpack.c.l.b16 %v289
      %v332 = vunpack.c.h.b16 %v289
      %v333 = vunpack.c.l.b16 %v290
      %v334 = vunpack.c.h.b16 %v290
      %v335 = vpack.c.b16 %v329, %v327
      %v336 = vpack.c.b16 %v330, %v328
      %v337 = vpack.c.b16 %v333, %v331
      %v338 = vpack.c.b16 %v334, %v332
      %v375 = vunpack.c.l.b16 %v291
      %v376 = vunpack.c.l.b16 %v292
      %v377 = vunpack.c.l.b16 %v293
      %v378 = vunpack.c.l.b16 %v294
      %v379 = vunpack.c.l.b16 %v295
      %v380 = vunpack.c.l.b16 %v296
      %v381 = vunpack.c.l.b16 %v297
      %v382 = vunpack.c.l.b16 %v298
      %v383 = vunpack.c.l.b16 %v299
      %v384 = vunpack.c.l.b16 %v300
      %v385 = vunpack.c.l.b16 %v301
      %v386 = vunpack.c.l.b16 %v302
      %v387 = vunpack.c.l.b16 %v303
      %v388 = vunpack.c.l.b16 %v304
      %v389 = vunpack.c.l.b16 %v305
      %v390 = vunpack.c.l.b16 %v306
      %v391 = vunpack.c.l.b16 %v307
      %v392 = vunpack.c.l.b16 %v308
      %v393 = vunpack.c.l.b16 %v309
      %v394 = vunpack.c.l.b16 %v310
      %v395 = vunpack.c.l.b16 %v311
      %v396 = vunpack.c.l.b16 %v312
      %v397 = vunpack.c.l.b16 %v313
      %v398 = vunpack.c.l.b16 %v314
      %v399 = vunpack.c.l.b16 %v315
      %v400 = vunpack.c.l.b16 %v316
      %v401 = vunpack.c.l.b16 %v317
      %v402 = vunpack.c.l.b16 %v318
      %v403 = vunpack.c.l.b16 %v319
      %v404 = vunpack.c.l.b16 %v320
      %v405 = vunpack.c.l.b16 %v321
      %v406 = vunpack.c.l.b16 %v322
      %v407 = vpack.c.b16 %v376, %v375
      %v408 = vpack.c.b16 %v378, %v377
      %v409 = vpack.c.b16 %v380, %v379
      %v410 = vpack.c.b16 %v382, %v381
      %v411 = vpack.c.b16 %v384, %v383
      %v412 = vpack.c.b16 %v386, %v385
      %v413 = vpack.c.b16 %v388, %v387
      %v414 = vpack.c.b16 %v390, %v389
      %v415 = vpack.c.b16 %v392, %v391
      %v416 = vpack.c.b16 %v394, %v393
      %v417 = vpack.c.b16 %v396, %v395
      %v418 = vpack.c.b16 %v398, %v397
      %v419 = vpack.c.b16 %v400, %v399
      %v420 = vpack.c.b16 %v402, %v401
      %v421 = vpack.c.b16 %v404, %v403
      %v422 = vpack.c.b16 %v406, %v405
      %439 = vmatprep.subr.bf16.mxu0 0
      %440 = vmatpush1.bf16.msra.mxu0 %v407
      %441 = vmatprep.subr.bf16.mxu0 0
      %442 = vmatpush1.bf16.msra.mxu0 %v408
      %443 = vmatprep.subr.bf16.mxu0 0
      %444 = vmatpush1.bf16.msra.mxu0 %v409
      %445 = vmatprep.subr.bf16.mxu0 0
      %446 = vmatpush1.bf16.msra.mxu0 %v410
      %447 = vmatprep.subr.bf16.mxu0 0
      %448 = vmatpush1.bf16.msra.mxu0 %v411
      %449 = vmatprep.subr.bf16.mxu0 0
      %450 = vmatpush1.bf16.msra.mxu0 %v412
      %451 = vmatprep.subr.bf16.mxu0 0
      %452 = vmatpush1.bf16.msra.mxu0 %v413
      %453 = vmatprep.subr.bf16.mxu0 0
      %454 = vmatpush1.bf16.msra.mxu0 %v414
      %455 = vmatprep.subr.bf16.mxu0 0
      %456 = vmatpush1.bf16.msra.mxu0 %v415
      %457 = vmatprep.subr.bf16.mxu0 0
      %458 = vmatpush1.bf16.msra.mxu0 %v416
      %459 = vmatprep.subr.bf16.mxu0 0
      %460 = vmatpush1.bf16.msra.mxu0 %v417
      %461 = vmatprep.subr.bf16.mxu0 0
      %462 = vmatpush1.bf16.msra.mxu0 %v418
      %463 = vmatprep.subr.bf16.mxu0 0
      %464 = vmatpush1.bf16.msra.mxu0 %v419
      %465 = vmatprep.subr.bf16.mxu0 0
      %466 = vmatpush1.bf16.msra.mxu0 %v420
      %467 = vmatprep.subr.bf16.mxu0 0
      %468 = vmatpush1.bf16.msra.mxu0 %v421
      %469 = vmatprep.subr.bf16.mxu0 0
      %470 = vmatpush1.bf16.msra.mxu0 %v422
      %471 = vmatprep.mubr.bf16.mxu0 %v336
      %472 = vmatmul.mubr.bf16.gmra.mrb[0].mxu0 %v335
      %v473 = vpop.f32.mrb[0].mxu0
      %v474 = vadd.f32 0.0, %v473
      %v475 = vpop.f32.mrb[0].mxu0
      %v476 = vpop.f32.mrb[0].mxu0
      %v477 = vadd.f32 0.0, %v476
      %v478 = vpop.f32.mrb[0].mxu0
      %479 = vmatprep.mubr.bf16.mxu0 %v338
      %480 = vmatmul.mubr.bf16.gmra.mrb[0].mxu0 %v337
      %v481 = vpop.f32.mrb[0].mxu0
      %v482 = vadd.f32 0.0, %v481
      %v483 = vpop.f32.mrb[0].mxu0
      %v484 = vpop.f32.mrb[0].mxu0
      %v485 = vadd.f32 0.0, %v484
      %v486 = vpop.f32.mrb[0].mxu0
      %487 = vdwg.mxu0
      %v488 = vpack.c.bf16 %v477, %v474
      %v489 = vpack.c.bf16 %v485, %v482
      %v492 = vunpack.c.l.b16 %v488
      %v493 = vunpack.c.h.b16 %v488
      %v494 = vunpack.c.l.b16 %v489
      %v495 = vunpack.c.h.b16 %v489
      %v496 = vpack.c.b16 %v492, %v492
      %v497 = vpack.c.b16 %v493, %v493
      %v498 = vpack.c.b16 %v494, %v494
      %v499 = vpack.c.b16 %v495, %v495
      %504 = vst [vmem:[%s263] sm:$0xf] %v496
      %505 = vst [vmem:[%s263 + $0x4] sm:$0xf] %v497
      %506 = vst [vmem:[%s263 + $0x8] sm:$0xf] %v498
      %507 = vst [vmem:[%s263 + $0xc] sm:$0xf] %v499
      %508 = vadd.xlane.f32.xlu0 %v474
      %v509 = vpop.xlane.xlu0 %508
      %510 = vadd.xlane.f32.xlu0 %v477
      %v511 = vpop.xlane.xlu0 %510
      %512 = vadd.xlane.f32.xlu0 %v482
      %v513 = vpop.xlane.xlu0 %512
      %514 = vadd.xlane.f32.xlu0 %v485
      %v515 = vpop.xlane.xlu0 %514
      %v516 = vmul.f32 %v474, %v474
      %v517 = vmul.f32 %v477, %v477
      %v518 = vmul.f32 %v482, %v482
      %v519 = vmul.f32 %v485, %v485
      %520 = vadd.xlane.f32.xlu0 %v516
      %v521 = vpop.xlane.xlu0 %520
      %522 = vadd.xlane.f32.xlu0 %v517
      %v523 = vpop.xlane.xlu0 %522
      %524 = vadd.xlane.f32.xlu0 %v518
      %v525 = vpop.xlane.xlu0 %524
      %526 = vadd.xlane.f32.xlu0 %v519
      %v527 = vpop.xlane.xlu0 %526
      %v528 = vld [vmem:[%s268] sm:$0xff]
      %v529 = vld [vmem:[%s268 + $0x8] sm:$0xff]
      %v530 = vld [vmem:[%s268 + $0x10] sm:$0xff]
      %v531 = vld [vmem:[%s268 + $0x18] sm:$0xff]
      %v532 = vadd.f32 %v528, %v509
      %v533 = vadd.f32 %v529, %v511
      %v534 = vadd.f32 %v530, %v513
      %v535 = vadd.f32 %v531, %v515
      %536 = vst [vmem:[%s268] sm:$0xff] %v532
      %537 = vst [vmem:[%s268 + $0x8] sm:$0xff] %v533
      %538 = vst [vmem:[%s268 + $0x10] sm:$0xff] %v534
      %539 = vst [vmem:[%s268 + $0x18] sm:$0xff] %v535
      %v540 = vld [vmem:[%s273] sm:$0xff]
      %v541 = vld [vmem:[%s273 + $0x8] sm:$0xff]
      %v542 = vld [vmem:[%s273 + $0x10] sm:$0xff]
      %v543 = vld [vmem:[%s273 + $0x18] sm:$0xff]
      %v544 = vadd.f32 %v540, %v521
      %v545 = vadd.f32 %v541, %v523
      %v546 = vadd.f32 %v542, %v525
      %v547 = vadd.f32 %v543, %v527
      %548 = vst [vmem:[%s273] sm:$0xff] %v544
      %549 = vst [vmem:[%s273 + $0x8] sm:$0xff] %v545
      %550 = vst [vmem:[%s273 + $0x10] sm:$0xff] %v546
      %551 = vst [vmem:[%s273 + $0x18] sm:$0xff] %v547
      %p552 = scmp.lt.s32.totalorder %s20, 3
      %s553 = scalar_select %p552, %s20, 3
      %p554 = scmp.lt.s32.totalorder %s21, 0
      %s555 = scalar_select %p554, %s21, 0
      %s556 = smul.addr %s553, 4
      %s557 = sadd.s32 %s555, %s556
      %s558 = smul.addr %s557, 4
      %s559 = scalar_lea.vmem %s2, %s558
      %p560 = scmp.lt.s32.totalorder %s20, 3
      %s561 = scalar_select %p560, %s20, 3
      %s562 = smul.addr %s561, 4
      %s563 = smul.addr %s562, 8
      %s564 = scalar_lea.vmem %s3, %s563
      %p565 = scmp.lt.s32.totalorder %s20, 3
      %s566 = scalar_select %p565, %s20, 3
      %s567 = smul.addr %s566, 4
      %s568 = smul.addr %s567, 8
      %s569 = scalar_lea.vmem %s4, %s568
      // Predicated region
      $region33: #{generator_forward.11} parent=27 // pred_check
        %p570 = pneg %p102
      $region34: #{generator_forward.11} parent=27 // pred_check_branch
        %572 = sbr.rel (%p570) target = $region36
      $region35: #{generator_forward.11} parent=27 // pred_region
        _
      $region36: #{generator_forward.11} parent=27 // pred_fallthru
        _
      // Predicated region
      $region37: #{generator_forward.11} parent=27 // pred_check
        %p573 = pneg %p128
      $region38: #{generator_forward.11} parent=27 // pred_check_branch
        %575 = sbr.rel (%p573) target = $region40
      $region39: #{generator_forward.11} parent=27 // pred_region
        _
      $region40: #{generator_forward.11} parent=27 // pred_fallthru
        _
      // Predicated region
      $region41: #{generator_forward.11} parent=27 // pred_check
        %p576 = pneg %p154
      $region42: #{generator_forward.11} parent=27 // pred_check_branch
        %578 = sbr.rel (%p576) target = $region44
      $region43: #{generator_forward.11} parent=27 // pred_region
        _
      $region44: #{generator_forward.11} parent=27 // pred_fallthru
        _
    $region28: #{generator_forward.11} parent=5 // pred_fallthru
      _
    %p579 = scmp.le.s32.totalorder 2, %s11
    // Predicated region
    $region45: #{generator_forward.11} parent=5 // pred_check
      %p580 = pneg %p579
    $region46: #{generator_forward.11} parent=5 // pred_check_branch
      %582 = sbr.rel (%p580) target = $region48
    $region47: #{generator_forward.11} parent=5 // pred_region
      %s583 = ssub.s32 %s11, 2
      // Predicated region
      $region49: #{generator_forward.11} parent=47 // pred_check
        %p584 = pneg %p108
      $region50: #{generator_forward.11} parent=47 // pred_check_branch
        %586 = sbr.rel (%p584) target = $region52
      $region51: #{generator_forward.11} parent=47 // pred_region
        %p587 = scmp.lt.s32.totalorder %s22, 3
        %s588 = scalar_select %p587, %s22, 3
        %p589 = scmp.lt.s32.totalorder %s23, 0
        %s590 = scalar_select %p589, %s23, 0
        %s591 = smul.addr %s588, 4
        %s592 = sadd.s32 %s590, %s591
        %s593 = smul.addr %s592, 4
        %s594 = scalar_lea.vmem %s2, %s593
      $region52: #{generator_forward.11} parent=47 // pred_fallthru
        _
      // Predicated region
      $region53: #{generator_forward.11} parent=47 // pred_check
        %p595 = pneg %p134
      $region54: #{generator_forward.11} parent=47 // pred_check_branch
        %597 = sbr.rel (%p595) target = $region56
      $region55: #{generator_forward.11} parent=47 // pred_region
        %p598 = scmp.lt.s32.totalorder %s22, 3
        %s599 = scalar_select %p598, %s22, 3
        %s600 = smul.addr %s599, 4
        %s601 = smul.addr %s600, 8
        %s602 = scalar_lea.vmem %s3, %s601
      $region56: #{generator_forward.11} parent=47 // pred_fallthru
        _
      // Predicated region
      $region57: #{generator_forward.11} parent=47 // pred_check
        %p603 = pneg %p160
      $region58: #{generator_forward.11} parent=47 // pred_check_branch
        %605 = sbr.rel (%p603) target = $region60
      $region59: #{generator_forward.11} parent=47 // pred_region
        %p606 = scmp.lt.s32.totalorder %s22, 3
        %s607 = scalar_select %p606, %s22, 3
        %s608 = smul.addr %s607, 4
        %s609 = smul.addr %s608, 8
        %s610 = scalar_lea.vmem %s4, %s609
      $region60: #{generator_forward.11} parent=47 // pred_fallthru
        _
    $region48: #{generator_forward.11} parent=5 // pred_fallthru
      _
  $region6: #{generator_forward.11} parent=0 // loop_footer
    %s15 = sadd.s32 1, %s11
  $region7: #{generator_forward.11} parent=0 // loop_footer_branch
    %10 = sbr.rel target = $region3
  $region8: #{generator_forward.11} parent=0 // loop_exit
    _

// kernel: generator_forward.12
$region0: #{generator_forward.12}
  #allocation0 [shape = 'u32[]', space=smem, size = 0x4, offset = 0x4, fixed_abs, tag = 'smem constant byte address 0x4 - core index']
  #allocation1 [shape = 'u32[144,128]{1,0:T(1,128)}', space=vmem, size = 0x12000, scoped, tag = 'internal scratch']
  %s0 = inlined_call_operand.vmem [shape: bf16[4,32,128], index: 0, kind: input, shape index: {}]
  %s1 = inlined_call_operand.vmem [shape: f32[4,32,128], index: 1, kind: input, shape index: {}]
  %s2 = inlined_call_operand.vmem [shape: f32[4,32,128], index: 2, kind: input, shape index: {}]
  %s3 = inlined_call_operand.vmem [shape: f32[32,1], index: 3, kind: input, shape index: {}]
  %s4 = inlined_call_operand.vmem [shape: f32[32,1], index: 4, kind: input, shape index: {}]
  %s5 = inlined_call_operand.vmem [shape: bf16[4,32,128], index: 5, kind: output, shape index: {}]
  %s6 = sld [smem:[#allocation0]]
  $region53: #{generator_forward.12} parent=0
    _
  %s8 = ssub.s32 1, %s6
  %s9 = scalar_select 0, %s8, %s6
  loop: start=0, step=1, limit=6
  $region2: #{generator_forward.12} parent=0 // loop_pre_header
    _
  $region3: #{generator_forward.12} parent=0 // loop_header
    %s11 = sphi 0, %s15
    %p12 = scmp.ge.s32.totalorder %s11, 6
    %s18 = sphi 0, %s30
    %s19 = sphi 0, %s26
    %s20 = sphi 0, %s18
    %s21 = sphi 0, %s19
    %s22 = sphi 0, %s20
    %s23 = sphi 0, %s21
    %s35 = sphi 0, %s37
    %s38 = sphi 0, %s35
    %s39 = sphi 0, %s38
    %s55 = sphi 0, %s39
    %s59 = sphi 0, %s59
    %s61 = sphi 0, %s59
    %s62 = sphi 0, %s61
    %s76 = sphi 0, %s62
    %s80 = sphi 0, %s80
    %s82 = sphi 0, %s80
    %s83 = sphi 0, %s82
    %s97 = sphi 0, %s83
    %s101 = sphi 0, %s101
    %s103 = sphi 0, %s101
    %s104 = sphi 0, %s103
    %s118 = sphi 0, %s104
    %s122 = sphi 0, %s122
    %s124 = sphi 0, %s122
    %s125 = sphi 0, %s124
    %s139 = sphi 0, %s125
    %s147 = sphi 0, %s149
    %s150 = sphi 0, %s147
    %s151 = sphi 0, %s150
    %s167 = sphi 0, %s151
  $region4: #{generator_forward.12} parent=0 // loop_header_branch
    %14 = sbr.rel (%p12) target = $region8
  $region5: #{generator_forward.12} parent=0 // loop_body
    %s16 = ssub.s32 %s11, 1
    %s17 = ssub.s32 %s11, 2
    %s24 = sadd.s32 1, %s19
    %p25 = scmp.ge.s32.totalorder %s24, 1
    %s26 = scalar_select %p25, 0, %s24
    %s27 = sadd.s32 1, %s18
    %s28 = scalar_select %p25, %s27, %s18
    %p29 = scmp.ge.s32.totalorder %s28, 4
    %s30 = scalar_select %p29, 0, %s28
    %s31 = ssub.s32 %s18, %s30
    %s32 = ssub.s32 %s19, %s26
    %s33 = sor.u32 %s31, %s32
    %p34 = scmp.eq.s32.totalorder %s33, 0
    %s36 = sadd.s32 %s35, 1
    %s37 = scalar_select %p34, %s35, %s36
    %p40 = pneg %p34
    %p41 = scmp.eq.s32.totalorder %s11, 3
    %p42 = por %p40, %p41
    %p43 = scmp.ne.s32.totalorder %s35, %s38
    %p44 = scmp.eq.s32.totalorder %s11, 0
    %p45 = por %p43, %p44
    %p46 = scmp.ne.s32.totalorder %s35, %s38
    %p47 = scmp.eq.s32.totalorder %s16, 3
    %p48 = por %p46, %p47
    %p49 = scmp.ne.s32.totalorder %s38, %s39
    %p50 = scmp.eq.s32.totalorder %s16, 0
    %p51 = por %p49, %p50
    %p52 = scmp.ne.s32.totalorder %s38, %s39
    %p53 = scmp.eq.s32.totalorder %s17, 3
    %p54 = por %p52, %p53
    %p56 = scmp.ne.s32.totalorder %s39, %s55
    %p57 = scmp.eq.s32.totalorder %s17, 0
    %p58 = por %p56, %p57
    %s60 = sadd.s32 %s59, 1
    %p63 = scmp.eq.s32.totalorder %s11, 3
    %p64 = scmp.ne.s32.totalorder %s59, %s61
    %p65 = scmp.eq.s32.totalorder %s11, 0
    %p66 = por %p64, %p65
    %p67 = scmp.ne.s32.totalorder %s59, %s61
    %p68 = scmp.eq.s32.totalorder %s16, 3
    %p69 = por %p67, %p68
    %p70 = scmp.ne.s32.totalorder %s61, %s62
    %p71 = scmp.eq.s32.totalorder %s16, 0
    %p72 = por %p70, %p71
    %p73 = scmp.ne.s32.totalorder %s61, %s62
    %p74 = scmp.eq.s32.totalorder %s17, 3
    %p75 = por %p73, %p74
    %p77 = scmp.ne.s32.totalorder %s62, %s76
    %p78 = scmp.eq.s32.totalorder %s17, 0
    %p79 = por %p77, %p78
    %s81 = sadd.s32 %s80, 1
    %p84 = scmp.eq.s32.totalorder %s11, 3
    %p85 = scmp.ne.s32.totalorder %s80, %s82
    %p86 = scmp.eq.s32.totalorder %s11, 0
    %p87 = por %p85, %p86
    %p88 = scmp.ne.s32.totalorder %s80, %s82
    %p89 = scmp.eq.s32.totalorder %s16, 3
    %p90 = por %p88, %p89
    %p91 = scmp.ne.s32.totalorder %s82, %s83
    %p92 = scmp.eq.s32.totalorder %s16, 0
    %p93 = por %p91, %p92
    %p94 = scmp.ne.s32.totalorder %s82, %s83
    %p95 = scmp.eq.s32.totalorder %s17, 3
    %p96 = por %p94, %p95
    %p98 = scmp.ne.s32.totalorder %s83, %s97
    %p99 = scmp.eq.s32.totalorder %s17, 0
    %p100 = por %p98, %p99
    %s102 = sadd.s32 %s101, 1
    %p105 = scmp.eq.s32.totalorder %s11, 3
    %p106 = scmp.ne.s32.totalorder %s101, %s103
    %p107 = scmp.eq.s32.totalorder %s11, 0
    %p108 = por %p106, %p107
    %p109 = scmp.ne.s32.totalorder %s101, %s103
    %p110 = scmp.eq.s32.totalorder %s16, 3
    %p111 = por %p109, %p110
    %p112 = scmp.ne.s32.totalorder %s103, %s104
    %p113 = scmp.eq.s32.totalorder %s16, 0
    %p114 = por %p112, %p113
    %p115 = scmp.ne.s32.totalorder %s103, %s104
    %p116 = scmp.eq.s32.totalorder %s17, 3
    %p117 = por %p115, %p116
    %p119 = scmp.ne.s32.totalorder %s104, %s118
    %p120 = scmp.eq.s32.totalorder %s17, 0
    %p121 = por %p119, %p120
    %s123 = sadd.s32 %s122, 1
    %p126 = scmp.eq.s32.totalorder %s11, 3
    %p127 = scmp.ne.s32.totalorder %s122, %s124
    %p128 = scmp.eq.s32.totalorder %s11, 0
    %p129 = por %p127, %p128
    %p130 = scmp.ne.s32.totalorder %s122, %s124
    %p131 = scmp.eq.s32.totalorder %s16, 3
    %p132 = por %p130, %p131
    %p133 = scmp.ne.s32.totalorder %s124, %s125
    %p134 = scmp.eq.s32.totalorder %s16, 0
    %p135 = por %p133, %p134
    %p136 = scmp.ne.s32.totalorder %s124, %s125
    %p137 = scmp.eq.s32.totalorder %s17, 3
    %p138 = por %p136, %p137
    %p140 = scmp.ne.s32.totalorder %s125, %s139
    %p141 = scmp.eq.s32.totalorder %s17, 0
    %p142 = por %p140, %p141
    %s143 = ssub.s32 %s18, %s30
    %s144 = ssub.s32 %s19, %s26
    %s145 = sor.u32 %s143, %s144
    %p146 = scmp.eq.s32.totalorder %s145, 0
    %s148 = sadd.s32 %s147, 1
    %s149 = scalar_select %p146, %s147, %s148
    %p152 = pneg %p146
    %p153 = scmp.eq.s32.totalorder %s11, 3
    %p154 = por %p152, %p153
    %p155 = scmp.ne.s32.totalorder %s147, %s150
    %p156 = scmp.eq.s32.totalorder %s11, 0
    %p157 = por %p155, %p156
    %p158 = scmp.ne.s32.totalorder %s147, %s150
    %p159 = scmp.eq.s32.totalorder %s16, 3
    %p160 = por %p158, %p159
    %p161 = scmp.ne.s32.totalorder %s150, %s151
    %p162 = scmp.eq.s32.totalorder %s16, 0
    %p163 = por %p161, %p162
    %p164 = scmp.ne.s32.totalorder %s150, %s151
    %p165 = scmp.eq.s32.totalorder %s17, 3
    %p166 = por %p164, %p165
    %p168 = scmp.ne.s32.totalorder %s151, %s167
    %p169 = scmp.eq.s32.totalorder %s17, 0
    %p170 = por %p168, %p169
    %p171 = scmp.le.s32.totalorder 1, %s11
    %p172 = scmp.lt.s32.totalorder %s11, 5
    %p173 = pnand %p171, %p172
    %p174 = pneg %p173
    // Predicated region
    $region9: #{generator_forward.12} parent=5 // pred_check
      _
    $region10: #{generator_forward.12} parent=5 // pred_check_branch
      %176 = sbr.rel (%p173) target = $region12
    $region11: #{generator_forward.12} parent=5 // pred_region
      %s177 = ssub.s32 %s11, 1
      // Predicated region
      $region13: #{generator_forward.12} parent=11 // pred_check
        %p178 = pneg %p72
      $region14: #{generator_forward.12} parent=11 // pred_check_branch
        %180 = sbr.rel (%p178) target = $region16
      $region15: #{generator_forward.12} parent=11 // pred_region
        _
      $region16: #{generator_forward.12} parent=11 // pred_fallthru
        _
      // Predicated region
      $region17: #{generator_forward.12} parent=11 // pred_check
        %p181 = pneg %p93
      $region18: #{generator_forward.12} parent=11 // pred_check_branch
        %183 = sbr.rel (%p181) target = $region20
      $region19: #{generator_forward.12} parent=11 // pred_region
        _
      $region20: #{generator_forward.12} parent=11 // pred_fallthru
        _
      // Predicated region
      $region21: #{generator_forward.12} parent=11 // pred_check
        %p184 = pneg %p114
      $region22: #{generator_forward.12} parent=11 // pred_check_branch
        %186 = sbr.rel (%p184) target = $region24
      $region23: #{generator_forward.12} parent=11 // pred_region
        _
      $region24: #{generator_forward.12} parent=11 // pred_fallthru
        _
      // Predicated region
      $region25: #{generator_forward.12} parent=11 // pred_check
        %p187 = pneg %p135
      $region26: #{generator_forward.12} parent=11 // pred_check_branch
        %189 = sbr.rel (%p187) target = $region28
      $region27: #{generator_forward.12} parent=11 // pred_region
        _
      $region28: #{generator_forward.12} parent=11 // pred_fallthru
        _
    $region12: #{generator_forward.12} parent=5 // pred_fallthru
      _
    %p190 = scmp.lt.s32.totalorder %s11, 4
    // Predicated region
    $region29: #{generator_forward.12} parent=5 // pred_check
      %p191 = pneg %p190
    $region30: #{generator_forward.12} parent=5 // pred_check_branch
      %193 = sbr.rel (%p191) target = $region32
    $region31: #{generator_forward.12} parent=5 // pred_region
      // Predicated region
      $region33: #{generator_forward.12} parent=31 // pred_check
        %p194 = pneg %p45
      $region34: #{generator_forward.12} parent=31 // pred_check_branch
        %196 = sbr.rel (%p194) target = $region36
      $region35: #{generator_forward.12} parent=31 // pred_region
        %p197 = scmp.lt.s32.totalorder %s18, 3
        %s198 = scalar_select %p197, %s18, 3
        %p199 = scmp.lt.s32.totalorder %s19, 0
        %s200 = scalar_select %p199, %s19, 0
        %s201 = smul.addr %s198, 4
        %s202 = sadd.s32 %s200, %s201
        %s203 = smul.addr %s202, 4
        %s204 = scalar_lea.vmem %s0, %s203
      $region36: #{generator_forward.12} parent=31 // pred_fallthru
        _
    $region32: #{generator_forward.12} parent=5 // pred_fallthru
      _
    %p205 = scmp.le.s32.totalorder 1, %s11
    %p206 = scmp.lt.s32.totalorder %s11, 5
    %p207 = pnand %p205, %p206
    %p208 = pneg %p207
    // Predicated region
    $region37: #{generator_forward.12} parent=5 // pred_check
      _
    $region38: #{generator_forward.12} parent=5 // pred_check_branch
      %210 = sbr.rel (%p207) target = $region40
    $region39: #{generator_forward.12} parent=5 // pred_region
      %s211 = ssub.s32 %s11, 1
      %p212 = scmp.lt.s32.totalorder %s20, 3
      %s213 = scalar_select %p212, %s20, 3
      %p214 = scmp.lt.s32.totalorder %s21, 0
      %s215 = scalar_select %p214, %s21, 0
      %s216 = smul.addr %s213, 4
      %s217 = sadd.s32 %s215, %s216
      %s218 = smul.addr %s217, 4
      %s219 = scalar_lea.vmem %s0, %s218
      %p220 = pneg %p51
      %p221 = pneg %p48
      %p222 = pneg %p72
      %p223 = pneg %p69
      %p224 = pneg %p93
      %p225 = pneg %p90
      %p226 = pneg %p114
      %p227 = pneg %p111
      %p228 = pneg %p135
      %p229 = pneg %p132
      %p230 = pneg %p163
      %p231 = pneg %p160
      %p232 = scmp.lt.s32.totalorder %s20, 3
      %s233 = scalar_select %p232, %s20, 3
      %p234 = scmp.lt.s32.totalorder %s21, 0
      %s235 = scalar_select %p234, %s21, 0
      %s236 = smul.addr %s233, 4
      %s237 = sadd.s32 %s235, %s236
      %s238 = smul.addr %s237, 4
      %s239 = scalar_lea.vmem %s5, %s238
      %p240 = scmp.lt.s32.totalorder %s20, 3
      %s241 = scalar_select %p240, %s20, 3
      %p242 = scmp.lt.s32.totalorder %s21, 0
      %s243 = scalar_select %p242, %s21, 0
      %s244 = smul.addr %s241, 4
      %s245 = sadd.s32 %s243, %s244
      %s246 = smul.addr %s245, 4
      %s247 = scalar_lea.vmem %s0, %s246
      %p248 = scmp.lt.s32.totalorder %s20, 3
      %s249 = scalar_select %p248, %s20, 3
      %p250 = scmp.lt.s32.totalorder %s21, 0
      %s251 = scalar_select %p250, %s21, 0
      %s252 = smul.addr %s249, 4
      %s253 = sadd.s32 %s251, %s252
      %s254 = smul.addr %s253, 4
      %s255 = scalar_lea.vmem %s5, %s254
      %v256 = vld [vmem:[%s1] sm:$0xff]
      %v257 = vld [vmem:[%s1 + $0x8] sm:$0xff]
      %v258 = vld [vmem:[%s1 + $0x10] sm:$0xff]
      %v259 = vld [vmem:[%s1 + $0x18] sm:$0xff]
      %v260 = vld [vmem:[%s1 + $0x20] sm:$0xff]
      %v261 = vld [vmem:[%s1 + $0x28] sm:$0xff]
      %v262 = vld [vmem:[%s1 + $0x30] sm:$0xff]
      %v263 = vld [vmem:[%s1 + $0x38] sm:$0xff]
      %v264 = vld [vmem:[%s1 + $0x40] sm:$0xff]
      %v265 = vld [vmem:[%s1 + $0x48] sm:$0xff]
      %v266 = vld [vmem:[%s1 + $0x50] sm:$0xff]
      %v267 = vld [vmem:[%s1 + $0x58] sm:$0xff]
      %v268 = vld [vmem:[%s1 + $0x60] sm:$0xff]
      %v269 = vld [vmem:[%s1 + $0x68] sm:$0xff]
      %v270 = vld [vmem:[%s1 + $0x70] sm:$0xff]
      %v271 = vld [vmem:[%s1 + $0x78] sm:$0xff]
      %v272 = vadd.f32 %v256, %v260
      %v273 = vadd.f32 %v272, %v264
      %v274 = vadd.f32 %v273, %v268
      %v275 = vadd.f32 %v257, %v261
      %v276 = vadd.f32 %v275, %v265
      %v277 = vadd.f32 %v276, %v269
      %v278 = vadd.f32 %v258, %v262
      %v279 = vadd.f32 %v278, %v266
      %v280 = vadd.f32 %v279, %v270
      %v281 = vadd.f32 %v259, %v263
      %v282 = vadd.f32 %v281, %v267
      %v283 = vadd.f32 %v282, %v271
      %v284 = vld [vmem:[%s2] sm:$0xff]
      %v285 = vld [vmem:[%s2 + $0x8] sm:$0xff]
      %v286 = vld [vmem:[%s2 + $0x10] sm:$0xff]
      %v287 = vld [vmem:[%s2 + $0x18] sm:$0xff]
      %v288 = vld [vmem:[%s2 + $0x20] sm:$0xff]
      %v289 = vld [vmem:[%s2 + $0x28] sm:$0xff]
      %v290 = vld [vmem:[%s2 + $0x30] sm:$0xff]
      %v291 = vld [vmem:[%s2 + $0x38] sm:$0xff]
      %v292 = vld [vmem:[%s2 + $0x40] sm:$0xff]
      %v293 = vld [vmem:[%s2 + $0x48] sm:$0xff]
      %v294 = vld [vmem:[%s2 + $0x50] sm:$0xff]
      %v295 = vld [vmem:[%s2 + $0x58] sm:$0xff]
      %v296 = vld [vmem:[%s2 + $0x60] sm:$0xff]
      %v297 = vld [vmem:[%s2 + $0x68] sm:$0xff]
      %v298 = vld [vmem:[%s2 + $0x70] sm:$0xff]
      %v299 = vld [vmem:[%s2 + $0x78] sm:$0xff]
      %v300 = vadd.f32 %v284, %v288
      %v301 = vadd.f32 %v300, %v292
      %v302 = vadd.f32 %v301, %v296
      %v303 = vadd.f32 %v285, %v289
      %v304 = vadd.f32 %v303, %v293
      %v305 = vadd.f32 %v304, %v297
      %v306 = vadd.f32 %v286, %v290
      %v307 = vadd.f32 %v306, %v294
      %v308 = vadd.f32 %v307, %v298
      %v309 = vadd.f32 %v287, %v291
      %v310 = vadd.f32 %v309, %v295
      %v311 = vadd.f32 %v310, %v299
      %v312 = vmul.f32 %v274, 0.0078125
      %v313 = vmul.f32 %v277, 0.0078125
      %v314 = vmul.f32 %v280, 0.0078125
      %v315 = vmul.f32 %v283, 0.0078125
      %v316 = vmul.f32 %v302, 0.0078125
      %v317 = vmul.f32 %v305, 0.0078125
      %v318 = vmul.f32 %v308, 0.0078125
      %v319 = vmul.f32 %v311, 0.0078125
      %v320 = vmul.f32 %v312, %v312
      %v321 = vmul.f32 %v313, %v313
      %v322 = vmul.f32 %v314, %v314
      %v323 = vmul.f32 %v315, %v315
      %v324 = vsub.f32 %v316, %v320
      %v325 = vsub.f32 %v317, %v321
      %v326 = vsub.f32 %v318, %v322
      %v327 = vsub.f32 %v319, %v323
      %v328 = vmax.f32 %v324, 0.0
      %v329 = vmax.f32 %v325, 0.0
      %v330 = vmax.f32 %v326, 0.0
      %v331 = vmax.f32 %v327, 0.0
      %v332 = vadd.f32 %v328, 1e-05
      %v333 = vadd.f32 %v329, 1e-05
      %v334 = vadd.f32 %v330, 1e-05
      %v335 = vadd.f32 %v331, 1e-05
      %v336 = vrsqrt.pop %v332
      %v337 = vrsqrt.pop %v333
      %v338 = vrsqrt.pop %v334
      %v339 = vrsqrt.pop %v335
      %v340 = vld [vmem:[%s3] sm:$0xff]
      %v341 = vld [vmem:[%s3 + $0x8] sm:$0xff]
      %v342 = vld [vmem:[%s3 + $0x10] sm:$0xff]
      %v343 = vld [vmem:[%s3 + $0x18] sm:$0xff]
      %v344 = vmul.f32 %v340, %v336
      %v345 = vmul.f32 %v341, %v337
      %v346 = vmul.f32 %v342, %v338
      %v347 = vmul.f32 %v343, %v339
      %v348 = vld [vmem:[%s4] sm:$0xff]
      %v349 = vld [vmem:[%s4 + $0x8] sm:$0xff]
      %v350 = vld [vmem:[%s4 + $0x10] sm:$0xff]
      %v351 = vld [vmem:[%s4 + $0x18] sm:$0xff]
      %v352 = vmul.f32 %v312, %v344
      %v353 = vmul.f32 %v313, %v345
      %v354 = vmul.f32 %v314, %v346
      %v355 = vmul.f32 %v315, %v347
      %v356 = vsub.f32 %v348, %v352
      %v357 = vsub.f32 %v349, %v353
      %v358 = vsub.f32 %v350, %v354
      %v359 = vsub.f32 %v351, %v355
      %v360 = vld [vmem:[%s247] sm:$0xf]
      %v361 = vld [vmem:[%s247 + $0x4] sm:$0xf]
      %v362 = vld [vmem:[%s247 + $0x8] sm:$0xf]
      %v363 = vld [vmem:[%s247 + $0xc] sm:$0xf]
      %v364 = vunpack.c.l.bf16 %v360
      %v365 = vunpack.c.l.bf16 %v361
      %v366 = vunpack.c.l.bf16 %v362
      %v367 = vunpack.c.l.bf16 %v363
      %369 = vset.pattern.permute.xlu0 0
      %370 = vperm.xlu0 %369, %v344
      %v371 = vpop.permute.xlu0 %370
      %374 = vset.pattern.permute.xlu0 0
      %375 = vperm.xlu0 %374, %v345
      %v376 = vpop.permute.xlu0 %375
      %379 = vset.pattern.permute.xlu0 0
      %380 = vperm.xlu0 %379, %v346
      %v381 = vpop.permute.xlu0 %380
      %384 = vset.pattern.permute.xlu0 0
      %385 = vperm.xlu0 %384, %v347
      %v386 = vpop.permute.xlu0 %385
      %v388 = vmul.f32 %v364, %v371
      %v389 = vmul.f32 %v365, %v376
      %v390 = vmul.f32 %v366, %v381
      %v391 = vmul.f32 %v367, %v386
      %393 = vset.pattern.permute.xlu0 0
      %394 = vperm.xlu0 %393, %v356
      %v395 = vpop.permute.xlu0 %394
      %398 = vset.pattern.permute.xlu0 0
      %399 = vperm.xlu0 %398, %v357
      %v400 = vpop.permute.xlu0 %399
      %403 = vset.pattern.permute.xlu0 0
      %404 = vperm.xlu0 %403, %v358
      %v405 = vpop.permute.xlu0 %404
      %408 = vset.pattern.permute.xlu0 0
      %409 = vperm.xlu0 %408, %v359
      %v410 = vpop.permute.xlu0 %409
      %v412 = vadd.f32 %v388, %v395
      %v413 = vadd.f32 %v389, %v400
      %v414 = vadd.f32 %v390, %v405
      %v415 = vadd.f32 %v391, %v410
      %v416 = vmax.f32 %v412, 0.0
      %v417 = vmax.f32 %v413, 0.0
      %v418 = vmax.f32 %v414, 0.0
      %v419 = vmax.f32 %v415, 0.0
      %v420 = vpack.c.bf16 %v417, %v416
      %v421 = vpack.c.bf16 %v419, %v418
      %v424 = vunpack.c.l.b16 %v420
      %v425 = vunpack.c.h.b16 %v420
      %v426 = vunpack.c.l.b16 %v421
      %v427 = vunpack.c.h.b16 %v421
      %v428 = vpack.c.b16 %v424, %v424
      %v429 = vpack.c.b16 %v425, %v425
      %v430 = vpack.c.b16 %v426, %v426
      %v431 = vpack.c.b16 %v427, %v427
      %436 = vst [vmem:[%s255] sm:$0xf] %v428
      %437 = vst [vmem:[%s255 + $0x4] sm:$0xf] %v429
      %438 = vst [vmem:[%s255 + $0x8] sm:$0xf] %v430
      %439 = vst [vmem:[%s255 + $0xc] sm:$0xf] %v431
      %p440 = scmp.lt.s32.totalorder %s20, 3
      %s441 = scalar_select %p440, %s20, 3
      %p442 = scmp.lt.s32.totalorder %s21, 0
      %s443 = scalar_select %p442, %s21, 0
      %s444 = smul.addr %s441, 4
      %s445 = sadd.s32 %s443, %s444
      %s446 = smul.addr %s445, 4
      %s447 = scalar_lea.vmem %s5, %s446
      // Predicated region
      $region41: #{generator_forward.12} parent=39 // pred_check
        %p448 = pneg %p160
      $region42: #{generator_forward.12} parent=39 // pred_check_branch
        %450 = sbr.rel (%p448) target = $region44
      $region43: #{generator_forward.12} parent=39 // pred_region
        _
      $region44: #{generator_forward.12} parent=39 // pred_fallthru
        _
    $region40: #{generator_forward.12} parent=5 // pred_fallthru
      _
    %p451 = scmp.le.s32.totalorder 2, %s11
    // Predicated region
    $region45: #{generator_forward.12} parent=5 // pred_check
      %p452 = pneg %p451
    $region46: #{generator_forward.12} parent=5 // pred_check_branch
      %454 = sbr.rel (%p452) target = $region48
    $region47: #{generator_forward.12} parent=5 // pred_region
      %s455 = ssub.s32 %s11, 2
      // Predicated region
      $region49: #{generator_forward.12} parent=47 // pred_check
        %p456 = pneg %p166
      $region50: #{generator_forward.12} parent=47 // pred_check_branch
        %458 = sbr.rel (%p456) target = $region52
      $region51: #{generator_forward.12} parent=47 // pred_region
        %p459 = scmp.lt.s32.totalorder %s22, 3
        %s460 = scalar_select %p459, %s22, 3
        %p461 = scmp.lt.s32.totalorder %s23, 0
        %s462 = scalar_select %p461, %s23, 0
        %s463 = smul.addr %s460, 4
        %s464 = sadd.s32 %s462, %s463
        %s465 = smul.addr %s464, 4
        %s466 = scalar_lea.vmem %s5, %s465
      $region52: #{generator_forward.12} parent=47 // pred_fallthru
        _
    $region48: #{generator_forward.12} parent=5 // pred_fallthru
      _
  $region6: #{generator_forward.12} parent=0 // loop_footer
    %s15 = sadd.s32 1, %s11
  $region7: #{generator_forward.12} parent=0 // loop_footer_branch
    %10 = sbr.rel target = $region3
  $region8: #{generator_forward.12} parent=0 // loop_exit
    _

// kernel: generator_forward.13
$region0: #{generator_forward.13}
  #allocation0 [shape = 'u32[]', space=smem, size = 0x4, offset = 0x4, fixed_abs, tag = 'smem constant byte address 0x4 - core index']
  #allocation1 [shape = 'u32[144,128]{1,0:T(1,128)}', space=vmem, size = 0x12000, scoped, tag = 'internal scratch']
  %s0 = inlined_call_operand.vmem [shape: bf16[4,16,128], index: 0, kind: input, shape index: {}]
  %s1 = inlined_call_operand.vmem [shape: bf16[4,128,128], index: 1, kind: input, shape index: {}]
  %s2 = inlined_call_operand.vmem [shape: bf16[4,16,128], index: 2, kind: output, shape index: {0}]
  %s3 = inlined_call_operand.vmem [shape: f32[4,16,128], index: 3, kind: output, shape index: {1}]
  %s4 = inlined_call_operand.vmem [shape: f32[4,16,128], index: 4, kind: output, shape index: {2}]
  %5 = xla_tuple %s2, %s3, %s4
  %s6 = sld [smem:[#allocation0]]
  $region61: #{generator_forward.13} parent=0
    _
  %s8 = ssub.s32 1, %s6
  %s9 = scalar_select 0, %s8, %s6
  loop: start=0, step=1, limit=6
  $region2: #{generator_forward.13} parent=0 // loop_pre_header
    _
  $region3: #{generator_forward.13} parent=0 // loop_header
    %s11 = sphi 0, %s15
    %p12 = scmp.ge.s32.totalorder %s11, 6
    %s18 = sphi 0, %s30
    %s19 = sphi 0, %s26
    %s20 = sphi 0, %s18
    %s21 = sphi 0, %s19
    %s22 = sphi 0, %s20
    %s23 = sphi 0, %s21
    %s33 = sphi 0, %s35
    %s36 = sphi 0, %s33
    %s37 = sphi 0, %s36
    %s53 = sphi 0, %s37
    %s61 = sphi 0, %s63
    %s64 = sphi 0, %s61
    %s65 = sphi 0, %s64
    %s81 = sphi 0, %s65
    %s89 = sphi 0, %s91
    %s92 = sphi 0, %s89
    %s93 = sphi 0, %s92
    %s109 = sphi 0, %s93
    %s115 = sphi 0, %s117
    %s118 = sphi 0, %s115
    %s119 = sphi 0, %s118
    %s135 = sphi 0, %s119
    %s141 = sphi 0, %s143
    %s144 = sphi 0, %s141
    %s145 = sphi 0, %s144
    %s161 = sphi 0, %s145
  $region4: #{generator_forward.13} parent=0 // loop_header_branch
    %14 = sbr.rel (%p12) target = $region8
  $region5: #{generator_forward.13} parent=0 // loop_body
    %s16 = ssub.s32 %s11, 1
    %s17 = ssub.s32 %s11, 2
    %s24 = sadd.s32 1, %s19
    %p25 = scmp.ge.s32.totalorder %s24, 1
    %s26 = scalar_select %p25, 0, %s24
    %s27 = sadd.s32 1, %s18
    %s28 = scalar_select %p25, %s27, %s18
    %p29 = scmp.ge.s32.totalorder %s28, 4
    %s30 = scalar_select %p29, 0, %s28
    %s31 = ssub.s32 %s18, %s30
    %p32 = scmp.eq.s32.totalorder %s31, 0
    %s34 = sadd.s32 %s33, 1
    %s35 = scalar_select %p32, %s33, %s34
    %p38 = pneg %p32
    %p39 = scmp.eq.s32.totalorder %s11, 3
    %p40 = por %p38, %p39
    %p41 = scmp.ne.s32.totalorder %s33, %s36
    %p42 = scmp.eq.s32.totalorder %s11, 0
    %p43 = por %p41, %p42
    %p44 = scmp.ne.s32.totalorder %s33, %s36
    %p45 = scmp.eq.s32.totalorder %s16, 3
    %p46 = por %p44, %p45
    %p47 = scmp.ne.s32.totalorder %s36, %s37
    %p48 = scmp.eq.s32.totalorder %s16, 0
    %p49 = por %p47, %p48
    %p50 = scmp.ne.s32.totalorder %s36, %s37
    %p51 = scmp.eq.s32.totalorder %s17, 3
    %p52 = por %p50, %p51
    %p54 = scmp.ne.s32.totalorder %s37, %s53
    %p55 = scmp.eq.s32.totalorder %s17, 0
    %p56 = por %p54, %p55
    %s57 = ssub.s32 %s18, %s30
    %s58 = ssub.s32 %s19, %s26
    %s59 = sor.u32 %s57, %s58
    %p60 = scmp.eq.s32.totalorder %s59, 0
    %s62 = sadd.s32 %s61, 1
    %s63 = scalar_select %p60, %s61, %s62
    %p66 = pneg %p60
    %p67 = scmp.eq.s32.totalorder %s11, 3
    %p68 = por %p66, %p67
    %p69 = scmp.ne.s32.totalorder %s61, %s64
    %p70 = scmp.eq.s32.totalorder %s11, 0
    %p71 = por %p69, %p70
    %p72 = scmp.ne.s32.totalorder %s61, %s64
    %p73 = scmp.eq.s32.totalorder %s16, 3
    %p74 = por %p72, %p73
    %p75 = scmp.ne.s32.totalorder %s64, %s65
    %p76 = scmp.eq.s32.totalorder %s16, 0
    %p77 = por %p75, %p76
    %p78 = scmp.ne.s32.totalorder %s64, %s65
    %p79 = scmp.eq.s32.totalorder %s17, 3
    %p80 = por %p78, %p79
    %p82 = scmp.ne.s32.totalorder %s65, %s81
    %p83 = scmp.eq.s32.totalorder %s17, 0
    %p84 = por %p82, %p83
    %s85 = ssub.s32 %s18, %s30
    %s86 = ssub.s32 %s19, %s26
    %s87 = sor.u32 %s85, %s86
    %p88 = scmp.eq.s32.totalorder %s87, 0
    %s90 = sadd.s32 %s89, 1
    %s91 = scalar_select %p88, %s89, %s90
    %p94 = pneg %p88
    %p95 = scmp.eq.s32.totalorder %s11, 3
    %p96 = por %p94, %p95
    %p97 = scmp.ne.s32.totalorder %s89, %s92
    %p98 = scmp.eq.s32.totalorder %s11, 0
    %p99 = por %p97, %p98
    %p100 = scmp.ne.s32.totalorder %s89, %s92
    %p101 = scmp.eq.s32.totalorder %s16, 3
    %p102 = por %p100, %p101
    %p103 = scmp.ne.s32.totalorder %s92, %s93
    %p104 = scmp.eq.s32.totalorder %s16, 0
    %p105 = por %p103, %p104
    %p106 = scmp.ne.s32.totalorder %s92, %s93
    %p107 = scmp.eq.s32.totalorder %s17, 3
    %p108 = por %p106, %p107
    %p110 = scmp.ne.s32.totalorder %s93, %s109
    %p111 = scmp.eq.s32.totalorder %s17, 0
    %p112 = por %p110, %p111
    %s113 = ssub.s32 %s18, %s30
    %p114 = scmp.eq.s32.totalorder %s113, 0
    %s116 = sadd.s32 %s115, 1
    %s117 = scalar_select %p114, %s115, %s116
    %p120 = pneg %p114
    %p121 = scmp.eq.s32.totalorder %s11, 3
    %p122 = por %p120, %p121
    %p123 = scmp.ne.s32.totalorder %s115, %s118
    %p124 = scmp.eq.s32.totalorder %s11, 0
    %p125 = por %p123, %p124
    %p126 = scmp.ne.s32.totalorder %s115, %s118
    %p127 = scmp.eq.s32.totalorder %s16, 3
    %p128 = por %p126, %p127
    %p129 = scmp.ne.s32.totalorder %s118, %s119
    %p130 = scmp.eq.s32.totalorder %s16, 0
    %p131 = por %p129, %p130
    %p132 = scmp.ne.s32.totalorder %s118, %s119
    %p133 = scmp.eq.s32.totalorder %s17, 3
    %p134 = por %p132, %p133
    %p136 = scmp.ne.s32.totalorder %s119, %s135
    %p137 = scmp.eq.s32.totalorder %s17, 0
    %p138 = por %p136, %p137
    %s139 = ssub.s32 %s18, %s30
    %p140 = scmp.eq.s32.totalorder %s139, 0
    %s142 = sadd.s32 %s141, 1
    %s143 = scalar_select %p140, %s141, %s142
    %p146 = pneg %p140
    %p147 = scmp.eq.s32.totalorder %s11, 3
    %p148 = por %p146, %p147
    %p149 = scmp.ne.s32.totalorder %s141, %s144
    %p150 = scmp.eq.s32.totalorder %s11, 0
    %p151 = por %p149, %p150
    %p152 = scmp.ne.s32.totalorder %s141, %s144
    %p153 = scmp.eq.s32.totalorder %s16, 3
    %p154 = por %p152, %p153
    %p155 = scmp.ne.s32.totalorder %s144, %s145
    %p156 = scmp.eq.s32.totalorder %s16, 0
    %p157 = por %p155, %p156
    %p158 = scmp.ne.s32.totalorder %s144, %s145
    %p159 = scmp.eq.s32.totalorder %s17, 3
    %p160 = por %p158, %p159
    %p162 = scmp.ne.s32.totalorder %s145, %s161
    %p163 = scmp.eq.s32.totalorder %s17, 0
    %p164 = por %p162, %p163
    %p165 = scmp.le.s32.totalorder 1, %s11
    %p166 = scmp.lt.s32.totalorder %s11, 5
    %p167 = pnand %p165, %p166
    %p168 = pneg %p167
    // Predicated region
    $region9: #{generator_forward.13} parent=5 // pred_check
      _
    $region10: #{generator_forward.13} parent=5 // pred_check_branch
      %170 = sbr.rel (%p167) target = $region12
    $region11: #{generator_forward.13} parent=5 // pred_region
      %s171 = ssub.s32 %s11, 1
    $region12: #{generator_forward.13} parent=5 // pred_fallthru
      _
    %p172 = scmp.lt.s32.totalorder %s11, 4
    // Predicated region
    $region13: #{generator_forward.13} parent=5 // pred_check
      %p173 = pneg %p172
    $region14: #{generator_forward.13} parent=5 // pred_check_branch
      %175 = sbr.rel (%p173) target = $region16
    $region15: #{generator_forward.13} parent=5 // pred_region
      // Predicated region
      $region17: #{generator_forward.13} parent=15 // pred_check
        %p176 = pneg %p43
      $region18: #{generator_forward.13} parent=15 // pred_check_branch
        %178 = sbr.rel (%p176) target = $region20
      $region19: #{generator_forward.13} parent=15 // pred_region
        %p179 = scmp.lt.s32.totalorder %s18, 3
        %s180 = scalar_select %p179, %s18, 3
        %s181 = smul.addr %s180, 2
        %s182 = smul.addr %s181, 4
        %s183 = scalar_lea.vmem %s0, %s182
      $region20: #{generator_forward.13} parent=15 // pred_fallthru
        _
      // Predicated region
      $region21: #{generator_forward.13} parent=15 // pred_check
        %p184 = pneg %p71
      $region22: #{generator_forward.13} parent=15 // pred_check_branch
        %186 = sbr.rel (%p184) target = $region24
      $region23: #{generator_forward.13} parent=15 // pred_region
        %p187 = scmp.lt.s32.totalorder %s18, 3
        %s188 = scalar_select %p187, %s18, 3
        %p189 = scmp.lt.s32.totalorder %s19, 0
        %s190 = scalar_select %p189, %s19, 0
        %s191 = smul.addr %s188, 16
        %s192 = sadd.s32 %s190, %s191
        %s193 = smul.addr %s192, 4
        %s194 = scalar_lea.vmem %s1, %s193
      $region24: #{generator_forward.13} parent=15 // pred_fallthru
        _
    $region16: #{generator_forward.13} parent=5 // pred_fallthru
      _
    %p195 = scmp.le.s32.totalorder 1, %s11
    %p196 = scmp.lt.s32.totalorder %s11, 5
    %p197 = pnand %p195, %p196
    %p198 = pneg %p197
    // Predicated region
    $region25: #{generator_forward.13} parent=5 // pred_check
      _
    $region26: #{generator_forward.13} parent=5 // pred_check_branch
      %200 = sbr.rel (%p197) target = $region28
    $region27: #{generator_forward.13} parent=5 // pred_region
      %s201 = ssub.s32 %s11, 1
      %p202 = scmp.lt.s32.totalorder %s20, 3
      %s203 = scalar_select %p202, %s20, 3
      %s204 = smul.addr %s203, 2
      %s205 = smul.addr %s204, 4
      %s206 = scalar_lea.vmem %s0, %s205
      %p207 = pneg %p49
      %p208 = pneg %p46
      %p209 = scmp.lt.s32.totalorder %s20, 3
      %s210 = scalar_select %p209, %s20, 3
      %p211 = scmp.lt.s32.totalorder %s21, 0
      %s212 = scalar_select %p211, %s21, 0
      %s213 = smul.addr %s210, 16
      %s214 = sadd.s32 %s212, %s213
      %s215 = smul.addr %s214, 4
      %s216 = scalar_lea.vmem %s1, %s215
      %p217 = pneg %p77
      %p218 = pneg %p74
      %p219 = pneg %p105
      %p220 = pneg %p102
      %p221 = scmp.lt.s32.totalorder %s20, 3
      %s222 = scalar_select %p221, %s20, 3
      %p223 = scmp.lt.s32.totalorder %s21, 0
      %s224 = scalar_select %p223, %s21, 0
      %s225 = smul.addr %s222, 2
      %s226 = sadd.s32 %s224, %s225
      %s227 = smul.addr %s226, 4
      %s228 = scalar_lea.vmem %s2, %s227
      %p229 = pneg %p131
      %p230 = pneg %p128
      %p231 = scmp.lt.s32.totalorder %s20, 3
      %s232 = scalar_select %p231, %s20, 3
      %s233 = smul.addr %s232, 2
      %s234 = smul.addr %s233, 8
      %s235 = scalar_lea.vmem %s3, %s234
      %p236 = pneg %p157
      %p237 = pneg %p154
      %p238 = scmp.lt.s32.totalorder %s20, 3
      %s239 = scalar_select %p238, %s20, 3
      %s240 = smul.addr %s239, 2
      %s241 = smul.addr %s240, 8
      %s242 = scalar_lea.vmem %s4, %s241
      %p243 = scmp.lt.s32.totalorder %s20, 3
      %s244 = scalar_select %p243, %s20, 3
      %s245 = smul.addr %s244, 2
      %s246 = smul.addr %s245, 4
      %s247 = scalar_lea.vmem %s0, %s246
      %p248 = scmp.lt.s32.totalorder %s20, 3
      %s249 = scalar_select %p248, %s20, 3
      %p250 = scmp.lt.s32.totalorder %s21, 0
      %s251 = scalar_select %p250, %s21, 0
      %s252 = smul.addr %s249, 16
      %s253 = sadd.s32 %s251, %s252
      %s254 = smul.addr %s253, 4
      %s255 = scalar_lea.vmem %s1, %s254
      %p256 = scmp.lt.s32.totalorder %s20, 3
      %s257 = scalar_select %p256, %s20, 3
      %p258 = scmp.lt.s32.totalorder %s21, 0
      %s259 = scalar_select %p258, %s21, 0
      %s260 = smul.addr %s257, 2
      %s261 = sadd.s32 %s259, %s260
      %s262 = smul.addr %s261, 4
      %s263 = scalar_lea.vmem %s2, %s262
      %p264 = scmp.lt.s32.totalorder %s20, 3
      %s265 = scalar_select %p264, %s20, 3
      %s266 = smul.addr %s265, 2
      %s267 = smul.addr %s266, 8
      %s268 = scalar_lea.vmem %s3, %s267
      %p269 = scmp.lt.s32.totalorder %s20, 3
      %s270 = scalar_select %p269, %s20, 3
      %s271 = smul.addr %s270, 2
      %s272 = smul.addr %s271, 8
      %s273 = scalar_lea.vmem %s4, %s272
      %p275 = scmp.eq.s32.totalorder %s21, 0
      // Predicated region
      $region29: #{generator_forward.13} parent=27 // pred_check
        %p276 = pneg %p275
      $region30: #{generator_forward.13} parent=27 // pred_check_branch
        %278 = sbr.rel (%p276) target = $region32
      $region31: #{generator_forward.13} parent=27 // pred_region
        %279 = vst [vmem:[%s268] sm:$0xff] 0.0
        %280 = vst [vmem:[%s268 + $0x8] sm:$0xff] 0.0
        %281 = vst [vmem:[%s273] sm:$0xff] 0.0
        %282 = vst [vmem:[%s273 + $0x8] sm:$0xff] 0.0
      $region32: #{generator_forward.13} parent=27 // pred_fallthru
        _
      %v283 = vld [vmem:[%s247] sm:$0xf]
      %v284 = vld [vmem:[%s247 + $0x4] sm:$0xf]
      %v285 = vld [vmem:[%s255] sm:$0xf]
      %v286 = vld [vmem:[%s255 + $0x4] sm:$0xf]
      %v287 = vld [vmem:[%s255 + $0x8] sm:$0xf]
      %v288 = vld [vmem:[%s255 + $0xc] sm:$0xf]
      %v289 = vld [vmem:[%s255 + $0x10] sm:$0xf]
      %v290 = vld [vmem:[%s255 + $0x14] sm:$0xf]
      %v291 = vld [vmem:[%s255 + $0x18] sm:$0xf]
      %v292 = vld [vmem:[%s255 + $0x1c] sm:$0xf]
      %v293 = vld [vmem:[%s255 + $0x20] sm:$0xf]
      %v294 = vld [vmem:[%s255 + $0x24] sm:$0xf]
      %v295 = vld [vmem:[%s255 + $0x28] sm:$0xf]
      %v296 = vld [vmem:[%s255 + $0x2c] sm:$0xf]
      %v297 = vld [vmem:[%s255 + $0x30] sm:$0xf]
      %v298 = vld [vmem:[%s255 + $0x34] sm:$0xf]
      %v299 = vld [vmem:[%s255 + $0x38] sm:$0xf]
      %v300 = vld [vmem:[%s255 + $0x3c] sm:$0xf]
      %v303 = vunpack.c.l.b16 %v283
      %v304 = vunpack.c.l.b16 %v284
      %v305 = vpack.c.b16 %v304, %v303
      %v323 = vunpack.c.l.b16 %v285
      %v324 = vunpack.c.l.b16 %v286
      %v325 = vunpack.c.l.b16 %v287
      %v326 = vunpack.c.l.b16 %v288
      %v327 = vunpack.c.l.b16 %v289
      %v328 = vunpack.c.l.b16 %v290
      %v329 = vunpack.c.l.b16 %v291
      %v330 = vunpack.c.l.b16 %v292
      %v331 = vunpack.c.l.b16 %v293
      %v332 = vunpack.c.l.b16 %v294
      %v333 = vunpack.c.l.b16 %v295
      %v334 = vunpack.c.l.b16 %v296
      %v335 = vunpack.c.l.b16 %v297
      %v336 = vunpack.c.l.b16 %v298
      %v337 = vunpack.c.l.b16 %v299
      %v338 = vunpack.c.l.b16 %v300
      %v339 = vpack.c.b16 %v324, %v323
      %v340 = vpack.c.b16 %v326, %v325
      %v341 = vpack.c.b16 %v328, %v327
      %v342 = vpack.c.b16 %v330, %v329
      %v343 = vpack.c.b16 %v332, %v331
      %v344 = vpack.c.b16 %v334, %v333
      %v345 = vpack.c.b16 %v336, %v335
      %v346 = vpack.c.b16 %v338, %v337
      %355 = vmatprep.subr.bf16.mxu0 0
      %356 = vmatpush1.bf16.msra.mxu0 %v339
      %357 = vmatprep.subr.bf16.mxu0 0
      %358 = vmatpush1.bf16.msra.mxu0 %v340
      %359 = vmatprep.subr.bf16.mxu0 0
      %360 = vmatpush1.bf16.msra.mxu0 %v341
      %361 = vmatprep.subr.bf16.mxu0 0
      %362 = vmatpush1.bf16.msra.mxu0 %v342
      %363 = vmatprep.subr.bf16.mxu0 0
      %364 = vmatpush1.bf16.msra.mxu0 %v343
      %365 = vmatprep.subr.bf16.mxu0 0
      %366 = vmatpush1.bf16.msra.mxu0 %v344
      %367 = vmatprep.subr.bf16.mxu0 0
      %368 = vmatpush1.bf16.msra.mxu0 %v345
      %369 = vmatprep.subr.bf16.mxu0 0
      %370 = vmatpush1.bf16.msra.mxu0 %v346
      %371 = vmatprep.subr.bf16.mxu0 0
      %372 = vmatpush1.bf16.msra.mxu0 0
      %373 = vmatprep.subr.bf16.mxu0 0
      %374 = vmatpush1.bf16.msra.mxu0 0
      %375 = vmatprep.subr.bf16.mxu0 0
      %376 = vmatpush1.bf16.msra.mxu0 0
      %377 = vmatprep.subr.bf16.mxu0 0
      %378 = vmatpush1.bf16.msra.mxu0 0
      %379 = vmatprep.subr.bf16.mxu0 0
      %380 = vmatpush1.bf16.msra.mxu0 0
      %381 = vmatprep.subr.bf16.mxu0 0
      %382 = vmatpush1.bf16.msra.mxu0 0
      %383 = vmatprep.subr.bf16.mxu0 0
      %384 = vmatpush1.bf16.msra.mxu0 0
      %385 = vmatprep.subr.bf16.mxu0 0
      %386 = vmatpush1.bf16.msra.mxu0 0
      %387 = vmatprep.mubr.bf16.mxu0 0
      %388 = vmatmul.mubr.bf16.gmra.mrb[0].mxu0 %v305
      %v389 = vpop.f32.mrb[0].mxu0
      %v390 = vadd.f32 0.0, %v389
      %v391 = vpop.f32.mrb[0].mxu0
      %v392 = vpop.f32.mrb[0].mxu0
      %v393 = vadd.f32 0.0, %v392
      %v394 = vpop.f32.mrb[0].mxu0
      %395 = vdwg.mxu0
      %v396 = vpack.c.bf16 %v393, %v390
      %v398 = vunpack.c.l.b16 %v396
      %v399 = vunpack.c.h.b16 %v396
      %v400 = vpack.c.b16 %v398, %v398
      %v401 = vpack.c.b16 %v399, %v399
      %404 = vst [vmem:[%s263] sm:$0xf] %v400
      %405 = vst [vmem:[%s263 + $0x4] sm:$0xf] %v401
      %406 = vadd.xlane.f32.xlu0 %v390
      %v407 = vpop.xlane.xlu0 %406
      %408 = vadd.xlane.f32.xlu0 %v393
      %v409 = vpop.xlane.xlu0 %408
      %v410 = vmul.f32 %v390, %v390
      %v411 = vmul.f32 %v393, %v393
      %412 = vadd.xlane.f32.xlu0 %v410
      %v413 = vpop.xlane.xlu0 %412
      %414 = vadd.xlane.f32.xlu0 %v411
      %v415 = vpop.xlane.xlu0 %414
      %v416 = vld [vmem:[%s268] sm:$0xff]
      %v417 = vld [vmem:[%s268 + $0x8] sm:$0xff]
      %v418 = vadd.f32 %v416, %v407
      %v419 = vadd.f32 %v417, %v409
      %420 = vst [vmem:[%s268] sm:$0xff] %v418
      %421 = vst [vmem:[%s268 + $0x8] sm:$0xff] %v419
      %v422 = vld [vmem:[%s273] sm:$0xff]
      %v423 = vld [vmem:[%s273 + $0x8] sm:$0xff]
      %v424 = vadd.f32 %v422, %v413
      %v425 = vadd.f32 %v423, %v415
      %426 = vst [vmem:[%s273] sm:$0xff] %v424
      %427 = vst [vmem:[%s273 + $0x8] sm:$0xff] %v425
      %p428 = scmp.lt.s32.totalorder %s20, 3
      %s429 = scalar_select %p428, %s20, 3
      %p430 = scmp.lt.s32.totalorder %s21, 0
      %s431 = scalar_select %p430, %s21, 0
      %s432 = smul.addr %s429, 2
      %s433 = sadd.s32 %s431, %s432
      %s434 = smul.addr %s433, 4
      %s435 = scalar_lea.vmem %s2, %s434
      %p436 = scmp.lt.s32.totalorder %s20, 3
      %s437 = scalar_select %p436, %s20, 3
      %s438 = smul.addr %s437, 2
      %s439 = smul.addr %s438, 8
      %s440 = scalar_lea.vmem %s3, %s439
      %p441 = scmp.lt.s32.totalorder %s20, 3
      %s442 = scalar_select %p441, %s20, 3
      %s443 = smul.addr %s442, 2
      %s444 = smul.addr %s443, 8
      %s445 = scalar_lea.vmem %s4, %s444
      // Predicated region
      $region33: #{generator_forward.13} parent=27 // pred_check
        %p446 = pneg %p102
      $region34: #{generator_forward.13} parent=27 // pred_check_branch
        %448 = sbr.rel (%p446) target = $region36
      $region35: #{generator_forward.13} parent=27 // pred_region
        _
      $region36: #{generator_forward.13} parent=27 // pred_fallthru
        _
      // Predicated region
      $region37: #{generator_forward.13} parent=27 // pred_check
        %p449 = pneg %p128
      $region38: #{generator_forward.13} parent=27 // pred_check_branch
        %451 = sbr.rel (%p449) target = $region40
      $region39: #{generator_forward.13} parent=27 // pred_region
        _
      $region40: #{generator_forward.13} parent=27 // pred_fallthru
        _
      // Predicated region
      $region41: #{generator_forward.13} parent=27 // pred_check
        %p452 = pneg %p154
      $region42: #{generator_forward.13} parent=27 // pred_check_branch
        %454 = sbr.rel (%p452) target = $region44
      $region43: #{generator_forward.13} parent=27 // pred_region
        _
      $region44: #{generator_forward.13} parent=27 // pred_fallthru
        _
    $region28: #{generator_forward.13} parent=5 // pred_fallthru
      _
    %p455 = scmp.le.s32.totalorder 2, %s11
    // Predicated region
    $region45: #{generator_forward.13} parent=5 // pred_check
      %p456 = pneg %p455
    $region46: #{generator_forward.13} parent=5 // pred_check_branch
      %458 = sbr.rel (%p456) target = $region48
    $region47: #{generator_forward.13} parent=5 // pred_region
      %s459 = ssub.s32 %s11, 2
      // Predicated region
      $region49: #{generator_forward.13} parent=47 // pred_check
        %p460 = pneg %p108
      $region50: #{generator_forward.13} parent=47 // pred_check_branch
        %462 = sbr.rel (%p460) target = $region52
      $region51: #{generator_forward.13} parent=47 // pred_region
        %p463 = scmp.lt.s32.totalorder %s22, 3
        %s464 = scalar_select %p463, %s22, 3
        %p465 = scmp.lt.s32.totalorder %s23, 0
        %s466 = scalar_select %p465, %s23, 0
        %s467 = smul.addr %s464, 2
        %s468 = sadd.s32 %s466, %s467
        %s469 = smul.addr %s468, 4
        %s470 = scalar_lea.vmem %s2, %s469
      $region52: #{generator_forward.13} parent=47 // pred_fallthru
        _
      // Predicated region
      $region53: #{generator_forward.13} parent=47 // pred_check
        %p471 = pneg %p134
      $region54: #{generator_forward.13} parent=47 // pred_check_branch
        %473 = sbr.rel (%p471) target = $region56
      $region55: #{generator_forward.13} parent=47 // pred_region
        %p474 = scmp.lt.s32.totalorder %s22, 3
        %s475 = scalar_select %p474, %s22, 3
        %s476 = smul.addr %s475, 2
        %s477 = smul.addr %s476, 8
        %s478 = scalar_lea.vmem %s3, %s477
      $region56: #{generator_forward.13} parent=47 // pred_fallthru
        _
      // Predicated region
      $region57: #{generator_forward.13} parent=47 // pred_check
        %p479 = pneg %p160
      $region58: #{generator_forward.13} parent=47 // pred_check_branch
        %481 = sbr.rel (%p479) target = $region60
      $region59: #{generator_forward.13} parent=47 // pred_region
        %p482 = scmp.lt.s32.totalorder %s22, 3
        %s483 = scalar_select %p482, %s22, 3
        %s484 = smul.addr %s483, 2
        %s485 = smul.addr %s484, 8
        %s486 = scalar_lea.vmem %s4, %s485
      $region60: #{generator_forward.13} parent=47 // pred_fallthru
        _
    $region48: #{generator_forward.13} parent=5 // pred_fallthru
      _
  $region6: #{generator_forward.13} parent=0 // loop_footer
    %s15 = sadd.s32 1, %s11
  $region7: #{generator_forward.13} parent=0 // loop_footer_branch
    %10 = sbr.rel target = $region3
  $region8: #{generator_forward.13} parent=0 // loop_exit
    _

// kernel: generator_forward.14
$region0: #{generator_forward.14}
  #allocation0 [shape = 'u32[]', space=smem, size = 0x4, offset = 0x4, fixed_abs, tag = 'smem constant byte address 0x4 - core index']
  #allocation1 [shape = 'u32[144,128]{1,0:T(1,128)}', space=vmem, size = 0x12000, scoped, tag = 'internal scratch']
  %s0 = inlined_call_operand.vmem [shape: bf16[4,16,128], index: 0, kind: input, shape index: {}]
  %s1 = inlined_call_operand.vmem [shape: f32[4,16,128], index: 1, kind: input, shape index: {}]
  %s2 = inlined_call_operand.vmem [shape: f32[4,16,128], index: 2, kind: input, shape index: {}]
  %s3 = inlined_call_operand.vmem [shape: f32[16,1], index: 3, kind: input, shape index: {}]
  %s4 = inlined_call_operand.vmem [shape: f32[16,1], index: 4, kind: input, shape index: {}]
  %s5 = inlined_call_operand.vmem [shape: bf16[4,16,128], index: 5, kind: output, shape index: {}]
  %s6 = sld [smem:[#allocation0]]
  $region53: #{generator_forward.14} parent=0
    _
  %s8 = ssub.s32 1, %s6
  %s9 = scalar_select 0, %s8, %s6
  loop: start=0, step=1, limit=6
  $region2: #{generator_forward.14} parent=0 // loop_pre_header
    _
  $region3: #{generator_forward.14} parent=0 // loop_header
    %s11 = sphi 0, %s15
    %p12 = scmp.ge.s32.totalorder %s11, 6
    %s18 = sphi 0, %s30
    %s19 = sphi 0, %s26
    %s20 = sphi 0, %s18
    %s21 = sphi 0, %s19
    %s22 = sphi 0, %s20
    %s23 = sphi 0, %s21
    %s35 = sphi 0, %s37
    %s38 = sphi 0, %s35
    %s39 = sphi 0, %s38
    %s55 = sphi 0, %s39
    %s59 = sphi 0, %s59
    %s61 = sphi 0, %s59
    %s62 = sphi 0, %s61
    %s76 = sphi 0, %s62
    %s80 = sphi 0, %s80
    %s82 = sphi 0, %s80
    %s83 = sphi 0, %s82
    %s97 = sphi 0, %s83
    %s101 = sphi 0, %s101
    %s103 = sphi 0, %s101
    %s104 = sphi 0, %s103
    %s118 = sphi 0, %s104
    %s122 = sphi 0, %s122
    %s124 = sphi 0, %s122
    %s125 = sphi 0, %s124
    %s139 = sphi 0, %s125
    %s147 = sphi 0, %s149
    %s150 = sphi 0, %s147
    %s151 = sphi 0, %s150
    %s167 = sphi 0, %s151
  $region4: #{generator_forward.14} parent=0 // loop_header_branch
    %14 = sbr.rel (%p12) target = $region8
  $region5: #{generator_forward.14} parent=0 // loop_body
    %s16 = ssub.s32 %s11, 1
    %s17 = ssub.s32 %s11, 2
    %s24 = sadd.s32 1, %s19
    %p25 = scmp.ge.s32.totalorder %s24, 1
    %s26 = scalar_select %p25, 0, %s24
    %s27 = sadd.s32 1, %s18
    %s28 = scalar_select %p25, %s27, %s18
    %p29 = scmp.ge.s32.totalorder %s28, 4
    %s30 = scalar_select %p29, 0, %s28
    %s31 = ssub.s32 %s18, %s30
    %s32 = ssub.s32 %s19, %s26
    %s33 = sor.u32 %s31, %s32
    %p34 = scmp.eq.s32.totalorder %s33, 0
    %s36 = sadd.s32 %s35, 1
    %s37 = scalar_select %p34, %s35, %s36
    %p40 = pneg %p34
    %p41 = scmp.eq.s32.totalorder %s11, 3
    %p42 = por %p40, %p41
    %p43 = scmp.ne.s32.totalorder %s35, %s38
    %p44 = scmp.eq.s32.totalorder %s11, 0
    %p45 = por %p43, %p44
    %p46 = scmp.ne.s32.totalorder %s35, %s38
    %p47 = scmp.eq.s32.totalorder %s16, 3
    %p48 = por %p46, %p47
    %p49 = scmp.ne.s32.totalorder %s38, %s39
    %p50 = scmp.eq.s32.totalorder %s16, 0
    %p51 = por %p49, %p50
    %p52 = scmp.ne.s32.totalorder %s38, %s39
    %p53 = scmp.eq.s32.totalorder %s17, 3
    %p54 = por %p52, %p53
    %p56 = scmp.ne.s32.totalorder %s39, %s55
    %p57 = scmp.eq.s32.totalorder %s17, 0
    %p58 = por %p56, %p57
    %s60 = sadd.s32 %s59, 1
    %p63 = scmp.eq.s32.totalorder %s11, 3
    %p64 = scmp.ne.s32.totalorder %s59, %s61
    %p65 = scmp.eq.s32.totalorder %s11, 0
    %p66 = por %p64, %p65
    %p67 = scmp.ne.s32.totalorder %s59, %s61
    %p68 = scmp.eq.s32.totalorder %s16, 3
    %p69 = por %p67, %p68
    %p70 = scmp.ne.s32.totalorder %s61, %s62
    %p71 = scmp.eq.s32.totalorder %s16, 0
    %p72 = por %p70, %p71
    %p73 = scmp.ne.s32.totalorder %s61, %s62
    %p74 = scmp.eq.s32.totalorder %s17, 3
    %p75 = por %p73, %p74
    %p77 = scmp.ne.s32.totalorder %s62, %s76
    %p78 = scmp.eq.s32.totalorder %s17, 0
    %p79 = por %p77, %p78
    %s81 = sadd.s32 %s80, 1
    %p84 = scmp.eq.s32.totalorder %s11, 3
    %p85 = scmp.ne.s32.totalorder %s80, %s82
    %p86 = scmp.eq.s32.totalorder %s11, 0
    %p87 = por %p85, %p86
    %p88 = scmp.ne.s32.totalorder %s80, %s82
    %p89 = scmp.eq.s32.totalorder %s16, 3
    %p90 = por %p88, %p89
    %p91 = scmp.ne.s32.totalorder %s82, %s83
    %p92 = scmp.eq.s32.totalorder %s16, 0
    %p93 = por %p91, %p92
    %p94 = scmp.ne.s32.totalorder %s82, %s83
    %p95 = scmp.eq.s32.totalorder %s17, 3
    %p96 = por %p94, %p95
    %p98 = scmp.ne.s32.totalorder %s83, %s97
    %p99 = scmp.eq.s32.totalorder %s17, 0
    %p100 = por %p98, %p99
    %s102 = sadd.s32 %s101, 1
    %p105 = scmp.eq.s32.totalorder %s11, 3
    %p106 = scmp.ne.s32.totalorder %s101, %s103
    %p107 = scmp.eq.s32.totalorder %s11, 0
    %p108 = por %p106, %p107
    %p109 = scmp.ne.s32.totalorder %s101, %s103
    %p110 = scmp.eq.s32.totalorder %s16, 3
    %p111 = por %p109, %p110
    %p112 = scmp.ne.s32.totalorder %s103, %s104
    %p113 = scmp.eq.s32.totalorder %s16, 0
    %p114 = por %p112, %p113
    %p115 = scmp.ne.s32.totalorder %s103, %s104
    %p116 = scmp.eq.s32.totalorder %s17, 3
    %p117 = por %p115, %p116
    %p119 = scmp.ne.s32.totalorder %s104, %s118
    %p120 = scmp.eq.s32.totalorder %s17, 0
    %p121 = por %p119, %p120
    %s123 = sadd.s32 %s122, 1
    %p126 = scmp.eq.s32.totalorder %s11, 3
    %p127 = scmp.ne.s32.totalorder %s122, %s124
    %p128 = scmp.eq.s32.totalorder %s11, 0
    %p129 = por %p127, %p128
    %p130 = scmp.ne.s32.totalorder %s122, %s124
    %p131 = scmp.eq.s32.totalorder %s16, 3
    %p132 = por %p130, %p131
    %p133 = scmp.ne.s32.totalorder %s124, %s125
    %p134 = scmp.eq.s32.totalorder %s16, 0
    %p135 = por %p133, %p134
    %p136 = scmp.ne.s32.totalorder %s124, %s125
    %p137 = scmp.eq.s32.totalorder %s17, 3
    %p138 = por %p136, %p137
    %p140 = scmp.ne.s32.totalorder %s125, %s139
    %p141 = scmp.eq.s32.totalorder %s17, 0
    %p142 = por %p140, %p141
    %s143 = ssub.s32 %s18, %s30
    %s144 = ssub.s32 %s19, %s26
    %s145 = sor.u32 %s143, %s144
    %p146 = scmp.eq.s32.totalorder %s145, 0
    %s148 = sadd.s32 %s147, 1
    %s149 = scalar_select %p146, %s147, %s148
    %p152 = pneg %p146
    %p153 = scmp.eq.s32.totalorder %s11, 3
    %p154 = por %p152, %p153
    %p155 = scmp.ne.s32.totalorder %s147, %s150
    %p156 = scmp.eq.s32.totalorder %s11, 0
    %p157 = por %p155, %p156
    %p158 = scmp.ne.s32.totalorder %s147, %s150
    %p159 = scmp.eq.s32.totalorder %s16, 3
    %p160 = por %p158, %p159
    %p161 = scmp.ne.s32.totalorder %s150, %s151
    %p162 = scmp.eq.s32.totalorder %s16, 0
    %p163 = por %p161, %p162
    %p164 = scmp.ne.s32.totalorder %s150, %s151
    %p165 = scmp.eq.s32.totalorder %s17, 3
    %p166 = por %p164, %p165
    %p168 = scmp.ne.s32.totalorder %s151, %s167
    %p169 = scmp.eq.s32.totalorder %s17, 0
    %p170 = por %p168, %p169
    %p171 = scmp.le.s32.totalorder 1, %s11
    %p172 = scmp.lt.s32.totalorder %s11, 5
    %p173 = pnand %p171, %p172
    %p174 = pneg %p173
    // Predicated region
    $region9: #{generator_forward.14} parent=5 // pred_check
      _
    $region10: #{generator_forward.14} parent=5 // pred_check_branch
      %176 = sbr.rel (%p173) target = $region12
    $region11: #{generator_forward.14} parent=5 // pred_region
      %s177 = ssub.s32 %s11, 1
      // Predicated region
      $region13: #{generator_forward.14} parent=11 // pred_check
        %p178 = pneg %p72
      $region14: #{generator_forward.14} parent=11 // pred_check_branch
        %180 = sbr.rel (%p178) target = $region16
      $region15: #{generator_forward.14} parent=11 // pred_region
        _
      $region16: #{generator_forward.14} parent=11 // pred_fallthru
        _
      // Predicated region
      $region17: #{generator_forward.14} parent=11 // pred_check
        %p181 = pneg %p93
      $region18: #{generator_forward.14} parent=11 // pred_check_branch
        %183 = sbr.rel (%p181) target = $region20
      $region19: #{generator_forward.14} parent=11 // pred_region
        _
      $region20: #{generator_forward.14} parent=11 // pred_fallthru
        _
      // Predicated region
      $region21: #{generator_forward.14} parent=11 // pred_check
        %p184 = pneg %p114
      $region22: #{generator_forward.14} parent=11 // pred_check_branch
        %186 = sbr.rel (%p184) target = $region24
      $region23: #{generator_forward.14} parent=11 // pred_region
        _
      $region24: #{generator_forward.14} parent=11 // pred_fallthru
        _
      // Predicated region
      $region25: #{generator_forward.14} parent=11 // pred_check
        %p187 = pneg %p135
      $region26: #{generator_forward.14} parent=11 // pred_check_branch
        %189 = sbr.rel (%p187) target = $region28
      $region27: #{generator_forward.14} parent=11 // pred_region
        _
      $region28: #{generator_forward.14} parent=11 // pred_fallthru
        _
    $region12: #{generator_forward.14} parent=5 // pred_fallthru
      _
    %p190 = scmp.lt.s32.totalorder %s11, 4
    // Predicated region
    $region29: #{generator_forward.14} parent=5 // pred_check
      %p191 = pneg %p190
    $region30: #{generator_forward.14} parent=5 // pred_check_branch
      %193 = sbr.rel (%p191) target = $region32
    $region31: #{generator_forward.14} parent=5 // pred_region
      // Predicated region
      $region33: #{generator_forward.14} parent=31 // pred_check
        %p194 = pneg %p45
      $region34: #{generator_forward.14} parent=31 // pred_check_branch
        %196 = sbr.rel (%p194) target = $region36
      $region35: #{generator_forward.14} parent=31 // pred_region
        %p197 = scmp.lt.s32.totalorder %s18, 3
        %s198 = scalar_select %p197, %s18, 3
        %p199 = scmp.lt.s32.totalorder %s19, 0
        %s200 = scalar_select %p199, %s19, 0
        %s201 = smul.addr %s198, 2
        %s202 = sadd.s32 %s200, %s201
        %s203 = smul.addr %s202, 4
        %s204 = scalar_lea.vmem %s0, %s203
      $region36: #{generator_forward.14} parent=31 // pred_fallthru
        _
    $region32: #{generator_forward.14} parent=5 // pred_fallthru
      _
    %p205 = scmp.le.s32.totalorder 1, %s11
    %p206 = scmp.lt.s32.totalorder %s11, 5
    %p207 = pnand %p205, %p206
    %p208 = pneg %p207
    // Predicated region
    $region37: #{generator_forward.14} parent=5 // pred_check
      _
    $region38: #{generator_forward.14} parent=5 // pred_check_branch
      %210 = sbr.rel (%p207) target = $region40
    $region39: #{generator_forward.14} parent=5 // pred_region
      %s211 = ssub.s32 %s11, 1
      %p212 = scmp.lt.s32.totalorder %s20, 3
      %s213 = scalar_select %p212, %s20, 3
      %p214 = scmp.lt.s32.totalorder %s21, 0
      %s215 = scalar_select %p214, %s21, 0
      %s216 = smul.addr %s213, 2
      %s217 = sadd.s32 %s215, %s216
      %s218 = smul.addr %s217, 4
      %s219 = scalar_lea.vmem %s0, %s218
      %p220 = pneg %p51
      %p221 = pneg %p48
      %p222 = pneg %p72
      %p223 = pneg %p69
      %p224 = pneg %p93
      %p225 = pneg %p90
      %p226 = pneg %p114
      %p227 = pneg %p111
      %p228 = pneg %p135
      %p229 = pneg %p132
      %p230 = pneg %p163
      %p231 = pneg %p160
      %p232 = scmp.lt.s32.totalorder %s20, 3
      %s233 = scalar_select %p232, %s20, 3
      %p234 = scmp.lt.s32.totalorder %s21, 0
      %s235 = scalar_select %p234, %s21, 0
      %s236 = smul.addr %s233, 2
      %s237 = sadd.s32 %s235, %s236
      %s238 = smul.addr %s237, 4
      %s239 = scalar_lea.vmem %s5, %s238
      %p240 = scmp.lt.s32.totalorder %s20, 3
      %s241 = scalar_select %p240, %s20, 3
      %p242 = scmp.lt.s32.totalorder %s21, 0
      %s243 = scalar_select %p242, %s21, 0
      %s244 = smul.addr %s241, 2
      %s245 = sadd.s32 %s243, %s244
      %s246 = smul.addr %s245, 4
      %s247 = scalar_lea.vmem %s0, %s246
      %p248 = scmp.lt.s32.totalorder %s20, 3
      %s249 = scalar_select %p248, %s20, 3
      %p250 = scmp.lt.s32.totalorder %s21, 0
      %s251 = scalar_select %p250, %s21, 0
      %s252 = smul.addr %s249, 2
      %s253 = sadd.s32 %s251, %s252
      %s254 = smul.addr %s253, 4
      %s255 = scalar_lea.vmem %s5, %s254
      %v256 = vld [vmem:[%s1] sm:$0xff]
      %v257 = vld [vmem:[%s1 + $0x8] sm:$0xff]
      %v258 = vld [vmem:[%s1 + $0x10] sm:$0xff]
      %v259 = vld [vmem:[%s1 + $0x18] sm:$0xff]
      %v260 = vld [vmem:[%s1 + $0x20] sm:$0xff]
      %v261 = vld [vmem:[%s1 + $0x28] sm:$0xff]
      %v262 = vld [vmem:[%s1 + $0x30] sm:$0xff]
      %v263 = vld [vmem:[%s1 + $0x38] sm:$0xff]
      %v264 = vadd.f32 %v256, %v258
      %v265 = vadd.f32 %v264, %v260
      %v266 = vadd.f32 %v265, %v262
      %v267 = vadd.f32 %v257, %v259
      %v268 = vadd.f32 %v267, %v261
      %v269 = vadd.f32 %v268, %v263
      %v270 = vld [vmem:[%s2] sm:$0xff]
      %v271 = vld [vmem:[%s2 + $0x8] sm:$0xff]
      %v272 = vld [vmem:[%s2 + $0x10] sm:$0xff]
      %v273 = vld [vmem:[%s2 + $0x18] sm:$0xff]
      %v274 = vld [vmem:[%s2 + $0x20] sm:$0xff]
      %v275 = vld [vmem:[%s2 + $0x28] sm:$0xff]
      %v276 = vld [vmem:[%s2 + $0x30] sm:$0xff]
      %v277 = vld [vmem:[%s2 + $0x38] sm:$0xff]
      %v278 = vadd.f32 %v270, %v272
      %v279 = vadd.f32 %v278, %v274
      %v280 = vadd.f32 %v279, %v276
      %v281 = vadd.f32 %v271, %v273
      %v282 = vadd.f32 %v281, %v275
      %v283 = vadd.f32 %v282, %v277
      %v284 = vmul.f32 %v266, 0.001953125
      %v285 = vmul.f32 %v269, 0.001953125
      %v286 = vmul.f32 %v280, 0.001953125
      %v287 = vmul.f32 %v283, 0.001953125
      %v288 = vmul.f32 %v284, %v284
      %v289 = vmul.f32 %v285, %v285
      %v290 = vsub.f32 %v286, %v288
      %v291 = vsub.f32 %v287, %v289
      %v292 = vmax.f32 %v290, 0.0
      %v293 = vmax.f32 %v291, 0.0
      %v294 = vadd.f32 %v292, 1e-05
      %v295 = vadd.f32 %v293, 1e-05
      %v296 = vrsqrt.pop %v294
      %v297 = vrsqrt.pop %v295
      %v298 = vld [vmem:[%s3] sm:$0xff]
      %v299 = vld [vmem:[%s3 + $0x8] sm:$0xff]
      %v300 = vmul.f32 %v298, %v296
      %v301 = vmul.f32 %v299, %v297
      %v302 = vld [vmem:[%s4] sm:$0xff]
      %v303 = vld [vmem:[%s4 + $0x8] sm:$0xff]
      %v304 = vmul.f32 %v284, %v300
      %v305 = vmul.f32 %v285, %v301
      %v306 = vsub.f32 %v302, %v304
      %v307 = vsub.f32 %v303, %v305
      %v308 = vld [vmem:[%s247] sm:$0xf]
      %v309 = vld [vmem:[%s247 + $0x4] sm:$0xf]
      %v310 = vunpack.c.l.bf16 %v308
      %v311 = vunpack.c.l.bf16 %v309
      %313 = vset.pattern.permute.xlu0 0
      %314 = vperm.xlu0 %313, %v300
      %v315 = vpop.permute.xlu0 %314
      %318 = vset.pattern.permute.xlu0 0
      %319 = vperm.xlu0 %318, %v301
      %v320 = vpop.permute.xlu0 %319
      %v322 = vmul.f32 %v310, %v315
      %v323 = vmul.f32 %v311, %v320
      %325 = vset.pattern.permute.xlu0 0
      %326 = vperm.xlu0 %325, %v306
      %v327 = vpop.permute.xlu0 %326
      %330 = vset.pattern.permute.xlu0 0
      %331 = vperm.xlu0 %330, %v307
      %v332 = vpop.permute.xlu0 %331
      %v334 = vadd.f32 %v322, %v327
      %v335 = vadd.f32 %v323, %v332
      %v336 = vmax.f32 %v334, 0.0
      %v337 = vmax.f32 %v335, 0.0
      %v338 = vpack.c.bf16 %v337, %v336
      %v340 = vunpack.c.l.b16 %v338
      %v341 = vunpack.c.h.b16 %v338
      %v342 = vpack.c.b16 %v340, %v340
      %v343 = vpack.c.b16 %v341, %v341
      %346 = vst [vmem:[%s255] sm:$0xf] %v342
      %347 = vst [vmem:[%s255 + $0x4] sm:$0xf] %v343
      %p348 = scmp.lt.s32.totalorder %s20, 3
      %s349 = scalar_select %p348, %s20, 3
      %p350 = scmp.lt.s32.totalorder %s21, 0
      %s351 = scalar_select %p350, %s21, 0
      %s352 = smul.addr %s349, 2
      %s353 = sadd.s32 %s351, %s352
      %s354 = smul.addr %s353, 4
      %s355 = scalar_lea.vmem %s5, %s354
      // Predicated region
      $region41: #{generator_forward.14} parent=39 // pred_check
        %p356 = pneg %p160
      $region42: #{generator_forward.14} parent=39 // pred_check_branch
        %358 = sbr.rel (%p356) target = $region44
      $region43: #{generator_forward.14} parent=39 // pred_region
        _
      $region44: #{generator_forward.14} parent=39 // pred_fallthru
        _
    $region40: #{generator_forward.14} parent=5 // pred_fallthru
      _
    %p359 = scmp.le.s32.totalorder 2, %s11
    // Predicated region
    $region45: #{generator_forward.14} parent=5 // pred_check
      %p360 = pneg %p359
    $region46: #{generator_forward.14} parent=5 // pred_check_branch
      %362 = sbr.rel (%p360) target = $region48
    $region47: #{generator_forward.14} parent=5 // pred_region
      %s363 = ssub.s32 %s11, 2
      // Predicated region
      $region49: #{generator_forward.14} parent=47 // pred_check
        %p364 = pneg %p166
      $region50: #{generator_forward.14} parent=47 // pred_check_branch
        %366 = sbr.rel (%p364) target = $region52
      $region51: #{generator_forward.14} parent=47 // pred_region
        %p367 = scmp.lt.s32.totalorder %s22, 3
        %s368 = scalar_select %p367, %s22, 3
        %p369 = scmp.lt.s32.totalorder %s23, 0
        %s370 = scalar_select %p369, %s23, 0
        %s371 = smul.addr %s368, 2
        %s372 = sadd.s32 %s370, %s371
        %s373 = smul.addr %s372, 4
        %s374 = scalar_lea.vmem %s5, %s373
      $region52: #{generator_forward.14} parent=47 // pred_fallthru
        _
    $region48: #{generator_forward.14} parent=5 // pred_fallthru
      _
  $region6: #{generator_forward.14} parent=0 // loop_footer
    %s15 = sadd.s32 1, %s11
  $region7: #{generator_forward.14} parent=0 // loop_footer_branch
    %10 = sbr.rel target = $region3
  $region8: #{generator_forward.14} parent=0 // loop_exit
    _

// kernel: generator_forward.15
$region0: #{generator_forward.15}
  #allocation0 [shape = 'u32[]', space=smem, size = 0x4, offset = 0x4, fixed_abs, tag = 'smem constant byte address 0x4 - core index']
  #allocation1 [shape = 'u32[144,128]{1,0:T(1,128)}', space=vmem, size = 0x12000, scoped, tag = 'internal scratch']
  %s0 = inlined_call_operand.vmem [shape: bf16[4,16,64], index: 0, kind: input, shape index: {}]
  %s1 = inlined_call_operand.vmem [shape: bf16[4,64,512], index: 1, kind: input, shape index: {}]
  %s2 = inlined_call_operand.vmem [shape: bf16[4,16,512], index: 2, kind: output, shape index: {0}]
  %s3 = inlined_call_operand.vmem [shape: f32[4,16,128], index: 3, kind: output, shape index: {1}]
  %s4 = inlined_call_operand.vmem [shape: f32[4,16,128], index: 4, kind: output, shape index: {2}]
  %5 = xla_tuple %s2, %s3, %s4
  %s6 = sld [smem:[#allocation0]]
  $region61: #{generator_forward.15} parent=0
    _
  %s8 = ssub.s32 1, %s6
  %s9 = scalar_select 0, %s8, %s6
  loop: start=0, step=1, limit=6
  $region2: #{generator_forward.15} parent=0 // loop_pre_header
    _
  $region3: #{generator_forward.15} parent=0 // loop_header
    %s11 = sphi 0, %s15
    %p12 = scmp.ge.s32.totalorder %s11, 6
    %s18 = sphi 0, %s30
    %s19 = sphi 0, %s26
    %s20 = sphi 0, %s18
    %s21 = sphi 0, %s19
    %s22 = sphi 0, %s20
    %s23 = sphi 0, %s21
    %s33 = sphi 0, %s35
    %s36 = sphi 0, %s33
    %s37 = sphi 0, %s36
    %s53 = sphi 0, %s37
    %s61 = sphi 0, %s63
    %s64 = sphi 0, %s61
    %s65 = sphi 0, %s64
    %s81 = sphi 0, %s65
    %s89 = sphi 0, %s91
    %s92 = sphi 0, %s89
    %s93 = sphi 0, %s92
    %s109 = sphi 0, %s93
    %s115 = sphi 0, %s117
    %s118 = sphi 0, %s115
    %s119 = sphi 0, %s118
    %s135 = sphi 0, %s119
    %s141 = sphi 0, %s143
    %s144 = sphi 0, %s141
    %s145 = sphi 0, %s144
    %s161 = sphi 0, %s145
  $region4: #{generator_forward.15} parent=0 // loop_header_branch
    %14 = sbr.rel (%p12) target = $region8
  $region5: #{generator_forward.15} parent=0 // loop_body
    %s16 = ssub.s32 %s11, 1
    %s17 = ssub.s32 %s11, 2
    %s24 = sadd.s32 1, %s19
    %p25 = scmp.ge.s32.totalorder %s24, 1
    %s26 = scalar_select %p25, 0, %s24
    %s27 = sadd.s32 1, %s18
    %s28 = scalar_select %p25, %s27, %s18
    %p29 = scmp.ge.s32.totalorder %s28, 4
    %s30 = scalar_select %p29, 0, %s28
    %s31 = ssub.s32 %s18, %s30
    %p32 = scmp.eq.s32.totalorder %s31, 0
    %s34 = sadd.s32 %s33, 1
    %s35 = scalar_select %p32, %s33, %s34
    %p38 = pneg %p32
    %p39 = scmp.eq.s32.totalorder %s11, 3
    %p40 = por %p38, %p39
    %p41 = scmp.ne.s32.totalorder %s33, %s36
    %p42 = scmp.eq.s32.totalorder %s11, 0
    %p43 = por %p41, %p42
    %p44 = scmp.ne.s32.totalorder %s33, %s36
    %p45 = scmp.eq.s32.totalorder %s16, 3
    %p46 = por %p44, %p45
    %p47 = scmp.ne.s32.totalorder %s36, %s37
    %p48 = scmp.eq.s32.totalorder %s16, 0
    %p49 = por %p47, %p48
    %p50 = scmp.ne.s32.totalorder %s36, %s37
    %p51 = scmp.eq.s32.totalorder %s17, 3
    %p52 = por %p50, %p51
    %p54 = scmp.ne.s32.totalorder %s37, %s53
    %p55 = scmp.eq.s32.totalorder %s17, 0
    %p56 = por %p54, %p55
    %s57 = ssub.s32 %s18, %s30
    %s58 = ssub.s32 %s19, %s26
    %s59 = sor.u32 %s57, %s58
    %p60 = scmp.eq.s32.totalorder %s59, 0
    %s62 = sadd.s32 %s61, 1
    %s63 = scalar_select %p60, %s61, %s62
    %p66 = pneg %p60
    %p67 = scmp.eq.s32.totalorder %s11, 3
    %p68 = por %p66, %p67
    %p69 = scmp.ne.s32.totalorder %s61, %s64
    %p70 = scmp.eq.s32.totalorder %s11, 0
    %p71 = por %p69, %p70
    %p72 = scmp.ne.s32.totalorder %s61, %s64
    %p73 = scmp.eq.s32.totalorder %s16, 3
    %p74 = por %p72, %p73
    %p75 = scmp.ne.s32.totalorder %s64, %s65
    %p76 = scmp.eq.s32.totalorder %s16, 0
    %p77 = por %p75, %p76
    %p78 = scmp.ne.s32.totalorder %s64, %s65
    %p79 = scmp.eq.s32.totalorder %s17, 3
    %p80 = por %p78, %p79
    %p82 = scmp.ne.s32.totalorder %s65, %s81
    %p83 = scmp.eq.s32.totalorder %s17, 0
    %p84 = por %p82, %p83
    %s85 = ssub.s32 %s18, %s30
    %s86 = ssub.s32 %s19, %s26
    %s87 = sor.u32 %s85, %s86
    %p88 = scmp.eq.s32.totalorder %s87, 0
    %s90 = sadd.s32 %s89, 1
    %s91 = scalar_select %p88, %s89, %s90
    %p94 = pneg %p88
    %p95 = scmp.eq.s32.totalorder %s11, 3
    %p96 = por %p94, %p95
    %p97 = scmp.ne.s32.totalorder %s89, %s92
    %p98 = scmp.eq.s32.totalorder %s11, 0
    %p99 = por %p97, %p98
    %p100 = scmp.ne.s32.totalorder %s89, %s92
    %p101 = scmp.eq.s32.totalorder %s16, 3
    %p102 = por %p100, %p101
    %p103 = scmp.ne.s32.totalorder %s92, %s93
    %p104 = scmp.eq.s32.totalorder %s16, 0
    %p105 = por %p103, %p104
    %p106 = scmp.ne.s32.totalorder %s92, %s93
    %p107 = scmp.eq.s32.totalorder %s17, 3
    %p108 = por %p106, %p107
    %p110 = scmp.ne.s32.totalorder %s93, %s109
    %p111 = scmp.eq.s32.totalorder %s17, 0
    %p112 = por %p110, %p111
    %s113 = ssub.s32 %s18, %s30
    %p114 = scmp.eq.s32.totalorder %s113, 0
    %s116 = sadd.s32 %s115, 1
    %s117 = scalar_select %p114, %s115, %s116
    %p120 = pneg %p114
    %p121 = scmp.eq.s32.totalorder %s11, 3
    %p122 = por %p120, %p121
    %p123 = scmp.ne.s32.totalorder %s115, %s118
    %p124 = scmp.eq.s32.totalorder %s11, 0
    %p125 = por %p123, %p124
    %p126 = scmp.ne.s32.totalorder %s115, %s118
    %p127 = scmp.eq.s32.totalorder %s16, 3
    %p128 = por %p126, %p127
    %p129 = scmp.ne.s32.totalorder %s118, %s119
    %p130 = scmp.eq.s32.totalorder %s16, 0
    %p131 = por %p129, %p130
    %p132 = scmp.ne.s32.totalorder %s118, %s119
    %p133 = scmp.eq.s32.totalorder %s17, 3
    %p134 = por %p132, %p133
    %p136 = scmp.ne.s32.totalorder %s119, %s135
    %p137 = scmp.eq.s32.totalorder %s17, 0
    %p138 = por %p136, %p137
    %s139 = ssub.s32 %s18, %s30
    %p140 = scmp.eq.s32.totalorder %s139, 0
    %s142 = sadd.s32 %s141, 1
    %s143 = scalar_select %p140, %s141, %s142
    %p146 = pneg %p140
    %p147 = scmp.eq.s32.totalorder %s11, 3
    %p148 = por %p146, %p147
    %p149 = scmp.ne.s32.totalorder %s141, %s144
    %p150 = scmp.eq.s32.totalorder %s11, 0
    %p151 = por %p149, %p150
    %p152 = scmp.ne.s32.totalorder %s141, %s144
    %p153 = scmp.eq.s32.totalorder %s16, 3
    %p154 = por %p152, %p153
    %p155 = scmp.ne.s32.totalorder %s144, %s145
    %p156 = scmp.eq.s32.totalorder %s16, 0
    %p157 = por %p155, %p156
    %p158 = scmp.ne.s32.totalorder %s144, %s145
    %p159 = scmp.eq.s32.totalorder %s17, 3
    %p160 = por %p158, %p159
    %p162 = scmp.ne.s32.totalorder %s145, %s161
    %p163 = scmp.eq.s32.totalorder %s17, 0
    %p164 = por %p162, %p163
    %p165 = scmp.le.s32.totalorder 1, %s11
    %p166 = scmp.lt.s32.totalorder %s11, 5
    %p167 = pnand %p165, %p166
    %p168 = pneg %p167
    // Predicated region
    $region9: #{generator_forward.15} parent=5 // pred_check
      _
    $region10: #{generator_forward.15} parent=5 // pred_check_branch
      %170 = sbr.rel (%p167) target = $region12
    $region11: #{generator_forward.15} parent=5 // pred_region
      %s171 = ssub.s32 %s11, 1
    $region12: #{generator_forward.15} parent=5 // pred_fallthru
      _
    %p172 = scmp.lt.s32.totalorder %s11, 4
    // Predicated region
    $region13: #{generator_forward.15} parent=5 // pred_check
      %p173 = pneg %p172
    $region14: #{generator_forward.15} parent=5 // pred_check_branch
      %175 = sbr.rel (%p173) target = $region16
    $region15: #{generator_forward.15} parent=5 // pred_region
      // Predicated region
      $region17: #{generator_forward.15} parent=15 // pred_check
        %p176 = pneg %p43
      $region18: #{generator_forward.15} parent=15 // pred_check_branch
        %178 = sbr.rel (%p176) target = $region20
      $region19: #{generator_forward.15} parent=15 // pred_region
        %p179 = scmp.lt.s32.totalorder %s18, 3
        %s180 = scalar_select %p179, %s18, 3
        %s181 = smul.addr %s180, 2
        %s182 = smul.addr %s181, 4
        %s183 = scalar_lea.vmem %s0, %s182
      $region20: #{generator_forward.15} parent=15 // pred_fallthru
        _
      // Predicated region
      $region21: #{generator_forward.15} parent=15 // pred_check
        %p184 = pneg %p71
      $region22: #{generator_forward.15} parent=15 // pred_check_branch
        %186 = sbr.rel (%p184) target = $region24
      $region23: #{generator_forward.15} parent=15 // pred_region
        %s187 = smul.u32 4, %s19
        %p188 = scmp.lt.s32.totalorder %s18, 3
        %s189 = scalar_select %p188, %s18, 3
        %p190 = scmp.lt.s32.totalorder %s187, 3
        %s191 = scalar_select %p190, %s187, 3
        %s192 = smul.addr %s189, 32
        %s193 = sadd.s32 %s191, %s192
        %s194 = smul.addr %s193, 4
        %s195 = scalar_lea.vmem %s1, %s194
        %s196 = smul.u32 4, %s19
      $region24: #{generator_forward.15} parent=15 // pred_fallthru
        _
    $region16: #{generator_forward.15} parent=5 // pred_fallthru
      _
    %p197 = scmp.le.s32.totalorder 1, %s11
    %p198 = scmp.lt.s32.totalorder %s11, 5
    %p199 = pnand %p197, %p198
    %p200 = pneg %p199
    // Predicated region
    $region25: #{generator_forward.15} parent=5 // pred_check
      _
    $region26: #{generator_forward.15} parent=5 // pred_check_branch
      %202 = sbr.rel (%p199) target = $region28
    $region27: #{generator_forward.15} parent=5 // pred_region
      %s203 = ssub.s32 %s11, 1
      %p204 = scmp.lt.s32.totalorder %s20, 3
      %s205 = scalar_select %p204, %s20, 3
      %s206 = smul.addr %s205, 2
      %s207 = smul.addr %s206, 4
      %s208 = scalar_lea.vmem %s0, %s207
      %p209 = pneg %p49
      %p210 = pneg %p46
      %s211 = smul.u32 4, %s21
      %p212 = scmp.lt.s32.totalorder %s20, 3
      %s213 = scalar_select %p212, %s20, 3
      %p214 = scmp.lt.s32.totalorder %s211, 3
      %s215 = scalar_select %p214, %s211, 3
      %s216 = smul.addr %s213, 32
      %s217 = sadd.s32 %s215, %s216
      %s218 = smul.addr %s217, 4
      %s219 = scalar_lea.vmem %s1, %s218
      %p220 = pneg %p77
      %p221 = pneg %p74
      %p222 = pneg %p105
      %p223 = pneg %p102
      %s224 = smul.u32 4, %s21
      %p225 = scmp.lt.s32.totalorder %s20, 3
      %s226 = scalar_select %p225, %s20, 3
      %p227 = scmp.lt.s32.totalorder %s224, 3
      %s228 = scalar_select %p227, %s224, 3
      %s229 = smul.addr %s226, 8
      %s230 = sadd.s32 %s228, %s229
      %s231 = smul.addr %s230, 4
      %s232 = scalar_lea.vmem %s2, %s231
      %p233 = pneg %p131
      %p234 = pneg %p128
      %p235 = scmp.lt.s32.totalorder %s20, 3
      %s236 = scalar_select %p235, %s20, 3
      %s237 = smul.addr %s236, 2
      %s238 = smul.addr %s237, 8
      %s239 = scalar_lea.vmem %s3, %s238
      %p240 = pneg %p157
      %p241 = pneg %p154
      %p242 = scmp.lt.s32.totalorder %s20, 3
      %s243 = scalar_select %p242, %s20, 3
      %s244 = smul.addr %s243, 2
      %s245 = smul.addr %s244, 8
      %s246 = scalar_lea.vmem %s4, %s245
      %p247 = scmp.lt.s32.totalorder %s20, 3
      %s248 = scalar_select %p247, %s20, 3
      %s249 = smul.addr %s248, 2
      %s250 = smul.addr %s249, 4
      %s251 = scalar_lea.vmem %s0, %s250
      %s252 = smul.u32 4, %s21
      %p253 = scmp.lt.s32.totalorder %s20, 3
      %s254 = scalar_select %p253, %s20, 3
      %p255 = scmp.lt.s32.totalorder %s252, 3
      %s256 = scalar_select %p255, %s252, 3
      %s257 = smul.addr %s254, 32
      %s258 = sadd.s32 %s256, %s257
      %s259 = smul.addr %s258, 4
      %s260 = scalar_lea.vmem %s1, %s259
      %s261 = smul.u32 4, %s21
      %s262 = smul.u32 4, %s21
      %p263 = scmp.lt.s32.totalorder %s20, 3
      %s264 = scalar_select %p263, %s20, 3
      %p265 = scmp.lt.s32.totalorder %s262, 3
      %s266 = scalar_select %p265, %s262, 3
      %s267 = smul.addr %s264, 8
      %s268 = sadd.s32 %s266, %s267
      %s269 = smul.addr %s268, 4
      %s270 = scalar_lea.vmem %s2, %s269
      %s271 = smul.u32 4, %s21
      %p272 = scmp.lt.s32.totalorder %s20, 3
      %s273 = scalar_select %p272, %s20, 3
      %s274 = smul.addr %s273, 2
      %s275 = smul.addr %s274, 8
      %s276 = scalar_lea.vmem %s3, %s275
      %p277 = scmp.lt.s32.totalorder %s20, 3
      %s278 = scalar_select %p277, %s20, 3
      %s279 = smul.addr %s278, 2
      %s280 = smul.addr %s279, 8
      %s281 = scalar_lea.vmem %s4, %s280
      %p283 = scmp.eq.s32.totalorder %s21, 0
      // Predicated region
      $region29: #{generator_forward.15} parent=27 // pred_check
        %p284 = pneg %p283
      $region30: #{generator_forward.15} parent=27 // pred_check_branch
        %286 = sbr.rel (%p284) target = $region32
      $region31: #{generator_forward.15} parent=27 // pred_region
        %287 = vst [vmem:[%s276] sm:$0xff] 0.0
        %288 = vst [vmem:[%s276 + $0x8] sm:$0xff] 0.0
        %289 = vst [vmem:[%s281] sm:$0xff] 0.0
        %290 = vst [vmem:[%s281 + $0x8] sm:$0xff] 0.0
      $region32: #{generator_forward.15} parent=27 // pred_fallthru
        _
      %v291 = vld [vmem:[%s251] sm:$0xf]
      %v292 = vld [vmem:[%s251 + $0x4] sm:$0xf]
      %v293 = vld [vmem:[%s260] sm:$0xff]
      %v294 = vld [vmem:[%s260 + $0x8] sm:$0xff]
      %v295 = vld [vmem:[%s260 + $0x10] sm:$0xff]
      %v296 = vld [vmem:[%s260 + $0x18] sm:$0xff]
      %v297 = vld [vmem:[%s260 + $0x20] sm:$0xff]
      %v298 = vld [vmem:[%s260 + $0x28] sm:$0xff]
      %v299 = vld [vmem:[%s260 + $0x30] sm:$0xff]
      %v300 = vld [vmem:[%s260 + $0x38] sm:$0xff]
      %v301 = vld [vmem:[%s260 + $0x40] sm:$0xff]
      %v302 = vld [vmem:[%s260 + $0x48] sm:$0xff]
      %v303 = vld [vmem:[%s260 + $0x50] sm:$0xff]
      %v304 = vld [vmem:[%s260 + $0x58] sm:$0xff]
      %v305 = vld [vmem:[%s260 + $0x60] sm:$0xff]
      %v306 = vld [vmem:[%s260 + $0x68] sm:$0xff]
      %v307 = vld [vmem:[%s260 + $0x70] sm:$0xff]
      %v308 = vld [vmem:[%s260 + $0x78] sm:$0xff]
      %v311 = vunpack.c.l.b16 %v291
      %v312 = vunpack.c.l.b16 %v292
      %v313 = vpack.c.b16 %v312, %v311
      %v330 = vunpack.c.l.b16 %v293
      %v331 = vunpack.c.h.b16 %v293
      %v332 = vunpack.c.l.b16 %v294
      %v333 = vunpack.c.h.b16 %v294
      %v334 = vunpack.c.l.b16 %v295
      %v335 = vunpack.c.h.b16 %v295
      %v336 = vunpack.c.l.b16 %v296
      %v337 = vunpack.c.h.b16 %v296
      %v338 = vunpack.c.l.b16 %v297
      %v339 = vunpack.c.h.b16 %v297
      %v340 = vunpack.c.l.b16 %v298
      %v341 = vunpack.c.h.b16 %v298
      %v342 = vunpack.c.l.b16 %v299
      %v343 = vunpack.c.h.b16 %v299
      %v344 = vunpack.c.l.b16 %v300
      %v345 = vunpack.c.h.b16 %v300
      %v346 = vunpack.c.l.b16 %v301
      %v347 = vunpack.c.h.b16 %v301
      %v348 = vunpack.c.l.b16 %v302
      %v349 = vunpack.c.h.b16 %v302
      %v350 = vunpack.c.l.b16 %v303
      %v351 = vunpack.c.h.b16 %v303
      %v352 = vunpack.c.l.b16 %v304
      %v353 = vunpack.c.h.b16 %v304
      %v354 = vunpack.c.l.b16 %v305
      %v355 = vunpack.c.h.b16 %v305
      %v356 = vunpack.c.l.b16 %v306
      %v357 = vunpack.c.h.b16 %v306
      %v358 = vunpack.c.l.b16 %v307
      %v359 = vunpack.c.h.b16 %v307
      %v360 = vunpack.c.l.b16 %v308
      %v361 = vunpack.c.h.b16 %v308
      %v362 = vpack.c.b16 %v334, %v330
      %v363 = vpack.c.b16 %v335, %v331
      %v364 = vpack.c.b16 %v336, %v332
      %v365 = vpack.c.b16 %v337, %v333
      %v366 = vpack.c.b16 %v342, %v338
      %v367 = vpack.c.b16 %v343, %v339
      %v368 = vpack.c.b16 %v344, %v340
      %v369 = vpack.c.b16 %v345, %v341
      %v370 = vpack.c.b16 %v350, %v346
      %v371 = vpack.c.b16 %v351, %v347
      %v372 = vpack.c.b16 %v352, %v348
      %v373 = vpack.c.b16 %v353, %v349
      %v374 = vpack.c.b16 %v358, %v354
      %v375 = vpack.c.b16 %v359, %v355
      %v376 = vpack.c.b16 %v360, %v356
      %v377 = vpack.c.b16 %v361, %v357
      %vm394 = vcmask 523264
      %v396 = vsel %vm394, %v313, 0
      %398 = vmatprep.subr.bf16.mxu0 %v363
      %399 = vmatpush1.bf16.msra.mxu0 %v362
      %400 = vmatprep.subr.bf16.mxu0 %v367
      %401 = vmatpush1.bf16.msra.mxu0 %v366
      %402 = vmatprep.subr.bf16.mxu0 %v371
      %403 = vmatpush1.bf16.msra.mxu0 %v370
      %404 = vmatprep.subr.bf16.mxu0 %v375
      %405 = vmatpush1.bf16.msra.mxu0 %v374
      %406 = vmatprep.subr.bf16.mxu0 0
      %407 = vmatpush1.bf16.msra.mxu0 0
      %408 = vmatprep.subr.bf16.mxu0 0
      %409 = vmatpush1.bf16.msra.mxu0 0
      %410 = vmatprep.subr.bf16.mxu0 0
      %411 = vmatpush1.bf16.msra.mxu0 0
      %412 = vmatprep.subr.bf16.mxu0 0
      %413 = vmatpush1.bf16.msra.mxu0 0
      %414 = vmatprep.subr.bf16.mxu0 0
      %415 = vmatpush1.bf16.msra.mxu0 0
      %416 = vmatprep.subr.bf16.mxu0 0
      %417 = vmatpush1.bf16.msra.mxu0 0
      %418 = vmatprep.subr.bf16.mxu0 0
      %419 = vmatpush1.bf16.msra.mxu0 0
      %420 = vmatprep.subr.bf16.mxu0 0
      %421 = vmatpush1.bf16.msra.mxu0 0
      %422 = vmatprep.subr.bf16.mxu0 0
      %423 = vmatpush1.bf16.msra.mxu0 0
      %424 = vmatprep.subr.bf16.mxu0 0
      %425 = vmatpush1.bf16.msra.mxu0 0
      %426 = vmatprep.subr.bf16.mxu0 0
      %427 = vmatpush1.bf16.msra.mxu0 0
      %428 = vmatprep.subr.bf16.mxu0 0
      %429 = vmatpush1.bf16.msra.mxu0 0
      %430 = vmatprep.mubr.bf16.mxu0 0
      %431 = vmatmul.mubr.bf16.gmra.mrb[0].mxu0 %v396
      %v432 = vpop.f32.mrb[0].mxu0
      %v433 = vadd.f32 0.0, %v432
      %v434 = vpop.f32.mrb[0].mxu0
      %v435 = vadd.f32 0.0, %v434
      %v436 = vpop.f32.mrb[0].mxu0
      %v437 = vadd.f32 0.0, %v436
      %v438 = vpop.f32.mrb[0].mxu0
      %v439 = vadd.f32 0.0, %v438
      %440 = vdwg.mxu0
      %441 = vmatprep.subr.bf16.mxu0 %v365
      %442 = vmatpush1.bf16.msra.mxu0 %v364
      %443 = vmatprep.subr.bf16.mxu0 %v369
      %444 = vmatpush1.bf16.msra.mxu0 %v368
      %445 = vmatprep.subr.bf16.mxu0 %v373
      %446 = vmatpush1.bf16.msra.mxu0 %v372
      %447 = vmatprep.subr.bf16.mxu0 %v377
      %448 = vmatpush1.bf16.msra.mxu0 %v376
      %449 = vmatprep.subr.bf16.mxu0 0
      %450 = vmatpush1.bf16.msra.mxu0 0
      %451 = vmatprep.subr.bf16.mxu0 0
      %452 = vmatpush1.bf16.msra.mxu0 0
      %453 = vmatprep.subr.bf16.mxu0 0
      %454 = vmatpush1.bf16.msra.mxu0 0
      %455 = vmatprep.subr.bf16.mxu0 0
      %456 = vmatpush1.bf16.msra.mxu0 0
      %457 = vmatprep.subr.bf16.mxu0 0
      %458 = vmatpush1.bf16.msra.mxu0 0
      %459 = vmatprep.subr.bf16.mxu0 0
      %460 = vmatpush1.bf16.msra.mxu0 0
      %461 = vmatprep.subr.bf16.mxu0 0
      %462 = vmatpush1.bf16.msra.mxu0 0
      %463 = vmatprep.subr.bf16.mxu0 0
      %464 = vmatpush1.bf16.msra.mxu0 0
      %465 = vmatprep.subr.bf16.mxu0 0
      %466 = vmatpush1.bf16.msra.mxu0 0
      %467 = vmatprep.subr.bf16.mxu0 0
      %468 = vmatpush1.bf16.msra.mxu0 0
      %469 = vmatprep.subr.bf16.mxu0 0
      %470 = vmatpush1.bf16.msra.mxu0 0
      %471 = vmatprep.subr.bf16.mxu0 0
      %472 = vmatpush1.bf16.msra.mxu0 0
      %473 = vmatprep.mubr.bf16.mxu0 0
      %474 = vmatmul.mubr.bf16.gmra.mrb[0].mxu0 %v396
      %v475 = vpop.f32.mrb[0].mxu0
      %v476 = vadd.f32 0.0, %v475
      %v477 = vpop.f32.mrb[0].mxu0
      %v478 = vadd.f32 0.0, %v477
      %v479 = vpop.f32.mrb[0].mxu0
      %v480 = vadd.f32 0.0, %v479
      %v481 = vpop.f32.mrb[0].mxu0
      %v482 = vadd.f32 0.0, %v481
      %483 = vdwg.mxu0
      %v484 = vpack.c.bf16 %v437, %v433
      %v485 = vpack.c.bf16 %v439, %v435
      %v486 = vpack.c.bf16 %v480, %v476
      %v487 = vpack.c.bf16 %v482, %v478
      %v492 = vunpack.c.l.b16 %v484
      %v493 = vunpack.c.l.b16 %v485
      %v494 = vunpack.c.l.b16 %v486
      %v495 = vunpack.c.l.b16 %v487
      %v496 = vunpack.c.h.b16 %v484
      %v497 = vunpack.c.h.b16 %v485
      %v498 = vunpack.c.h.b16 %v486
      %v499 = vunpack.c.h.b16 %v487
      %v500 = vpack.c.b16 %v493, %v492
      %v501 = vpack.c.b16 %v495, %v494
      %v502 = vpack.c.b16 %v497, %v496
      %v503 = vpack.c.b16 %v499, %v498
      %508 = vst [vmem:[%s270] sm:$0xff] %v500
      %509 = vst [vmem:[%s270 + $0x8] sm:$0xff] %v501
      %510 = vst [vmem:[%s270 + $0x10] sm:$0xff] %v502
      %511 = vst [vmem:[%s270 + $0x18] sm:$0xff] %v503
      %v512 = vadd.f32 %v433, %v435
      %v513 = vadd.f32 %v512, %v476
      %v514 = vadd.f32 %v513, %v478
      %515 = vadd.xlane.f32.xlu0 %v514
      %v516 = vpop.xlane.xlu0 %515
      %v517 = vadd.f32 %v437, %v439
      %v518 = vadd.f32 %v517, %v480
      %v519 = vadd.f32 %v518, %v482
      %520 = vadd.xlane.f32.xlu0 %v519
      %v521 = vpop.xlane.xlu0 %520
      %v522 = vmul.f32 %v433, %v433
      %v523 = vmul.f32 %v435, %v435
      %v524 = vmul.f32 %v476, %v476
      %v525 = vmul.f32 %v478, %v478
      %v526 = vmul.f32 %v437, %v437
      %v527 = vmul.f32 %v439, %v439
      %v528 = vmul.f32 %v480, %v480
      %v529 = vmul.f32 %v482, %v482
      %v530 = vadd.f32 %v522, %v523
      %v531 = vadd.f32 %v530, %v524
      %v532 = vadd.f32 %v531, %v525
      %533 = vadd.xlane.f32.xlu0 %v532
      %v534 = vpop.xlane.xlu0 %533
      %v535 = vadd.f32 %v526, %v527
      %v536 = vadd.f32 %v535, %v528
      %v537 = vadd.f32 %v536, %v529
      %538 = vadd.xlane.f32.xlu0 %v537
      %v539 = vpop.xlane.xlu0 %538
      %v540 = vld [vmem:[%s276] sm:$0xff]
      %v541 = vld [vmem:[%s276 + $0x8] sm:$0xff]
      %v542 = vadd.f32 %v540, %v516
      %v543 = vadd.f32 %v541, %v521
      %544 = vst [vmem:[%s276] sm:$0xff] %v542
      %545 = vst [vmem:[%s276 + $0x8] sm:$0xff] %v543
      %v546 = vld [vmem:[%s281] sm:$0xff]
      %v547 = vld [vmem:[%s281 + $0x8] sm:$0xff]
      %v548 = vadd.f32 %v546, %v534
      %v549 = vadd.f32 %v547, %v539
      %550 = vst [vmem:[%s281] sm:$0xff] %v548
      %551 = vst [vmem:[%s281 + $0x8] sm:$0xff] %v549
      %s552 = smul.u32 4, %s21
      %p553 = scmp.lt.s32.totalorder %s20, 3
      %s554 = scalar_select %p553, %s20, 3
      %p555 = scmp.lt.s32.totalorder %s552, 3
      %s556 = scalar_select %p555, %s552, 3
      %s557 = smul.addr %s554, 8
      %s558 = sadd.s32 %s556, %s557
      %s559 = smul.addr %s558, 4
      %s560 = scalar_lea.vmem %s2, %s559
      %p561 = scmp.lt.s32.totalorder %s20, 3
      %s562 = scalar_select %p561, %s20, 3
      %s563 = smul.addr %s562, 2
      %s564 = smul.addr %s563, 8
      %s565 = scalar_lea.vmem %s3, %s564
      %p566 = scmp.lt.s32.totalorder %s20, 3
      %s567 = scalar_select %p566, %s20, 3
      %s568 = smul.addr %s567, 2
      %s569 = smul.addr %s568, 8
      %s570 = scalar_lea.vmem %s4, %s569
      // Predicated region
      $region33: #{generator_forward.15} parent=27 // pred_check
        %p571 = pneg %p102
      $region34: #{generator_forward.15} parent=27 // pred_check_branch
        %573 = sbr.rel (%p571) target = $region36
      $region35: #{generator_forward.15} parent=27 // pred_region
        %s574 = smul.u32 4, %s21
      $region36: #{generator_forward.15} parent=27 // pred_fallthru
        _
      // Predicated region
      $region37: #{generator_forward.15} parent=27 // pred_check
        %p575 = pneg %p128
      $region38: #{generator_forward.15} parent=27 // pred_check_branch
        %577 = sbr.rel (%p575) target = $region40
      $region39: #{generator_forward.15} parent=27 // pred_region
        _
      $region40: #{generator_forward.15} parent=27 // pred_fallthru
        _
      // Predicated region
      $region41: #{generator_forward.15} parent=27 // pred_check
        %p578 = pneg %p154
      $region42: #{generator_forward.15} parent=27 // pred_check_branch
        %580 = sbr.rel (%p578) target = $region44
      $region43: #{generator_forward.15} parent=27 // pred_region
        _
      $region44: #{generator_forward.15} parent=27 // pred_fallthru
        _
    $region28: #{generator_forward.15} parent=5 // pred_fallthru
      _
    %p581 = scmp.le.s32.totalorder 2, %s11
    // Predicated region
    $region45: #{generator_forward.15} parent=5 // pred_check
      %p582 = pneg %p581
    $region46: #{generator_forward.15} parent=5 // pred_check_branch
      %584 = sbr.rel (%p582) target = $region48
    $region47: #{generator_forward.15} parent=5 // pred_region
      %s585 = ssub.s32 %s11, 2
      // Predicated region
      $region49: #{generator_forward.15} parent=47 // pred_check
        %p586 = pneg %p108
      $region50: #{generator_forward.15} parent=47 // pred_check_branch
        %588 = sbr.rel (%p586) target = $region52
      $region51: #{generator_forward.15} parent=47 // pred_region
        %s589 = smul.u32 4, %s23
        %p590 = scmp.lt.s32.totalorder %s22, 3
        %s591 = scalar_select %p590, %s22, 3
        %p592 = scmp.lt.s32.totalorder %s589, 3
        %s593 = scalar_select %p592, %s589, 3
        %s594 = smul.addr %s591, 8
        %s595 = sadd.s32 %s593, %s594
        %s596 = smul.addr %s595, 4
        %s597 = scalar_lea.vmem %s2, %s596
      $region52: #{generator_forward.15} parent=47 // pred_fallthru
        _
      // Predicated region
      $region53: #{generator_forward.15} parent=47 // pred_check
        %p598 = pneg %p134
      $region54: #{generator_forward.15} parent=47 // pred_check_branch
        %600 = sbr.rel (%p598) target = $region56
      $region55: #{generator_forward.15} parent=47 // pred_region
        %p601 = scmp.lt.s32.totalorder %s22, 3
        %s602 = scalar_select %p601, %s22, 3
        %s603 = smul.addr %s602, 2
        %s604 = smul.addr %s603, 8
        %s605 = scalar_lea.vmem %s3, %s604
      $region56: #{generator_forward.15} parent=47 // pred_fallthru
        _
      // Predicated region
      $region57: #{generator_forward.15} parent=47 // pred_check
        %p606 = pneg %p160
      $region58: #{generator_forward.15} parent=47 // pred_check_branch
        %608 = sbr.rel (%p606) target = $region60
      $region59: #{generator_forward.15} parent=47 // pred_region
        %p609 = scmp.lt.s32.totalorder %s22, 3
        %s610 = scalar_select %p609, %s22, 3
        %s611 = smul.addr %s610, 2
        %s612 = smul.addr %s611, 8
        %s613 = scalar_lea.vmem %s4, %s612
      $region60: #{generator_forward.15} parent=47 // pred_fallthru
        _
    $region48: #{generator_forward.15} parent=5 // pred_fallthru
      _
  $region6: #{generator_forward.15} parent=0 // loop_footer
    %s15 = sadd.s32 1, %s11
  $region7: #{generator_forward.15} parent=0 // loop_footer_branch
    %10 = sbr.rel target = $region3
  $region8: #{generator_forward.15} parent=0 // loop_exit
    _

// kernel: generator_forward.16
$region0: #{generator_forward.16}
  #allocation0 [shape = 'u32[]', space=smem, size = 0x4, offset = 0x4, fixed_abs, tag = 'smem constant byte address 0x4 - core index']
  #allocation1 [shape = 'u32[144,128]{1,0:T(1,128)}', space=vmem, size = 0x12000, scoped, tag = 'internal scratch']
  %s0 = inlined_call_operand.vmem [shape: bf16[4,16,512], index: 0, kind: input, shape index: {}]
  %s1 = inlined_call_operand.vmem [shape: f32[4,16,128], index: 1, kind: input, shape index: {}]
  %s2 = inlined_call_operand.vmem [shape: f32[4,16,128], index: 2, kind: input, shape index: {}]
  %s3 = inlined_call_operand.vmem [shape: f32[16,1], index: 3, kind: input, shape index: {}]
  %s4 = inlined_call_operand.vmem [shape: f32[16,1], index: 4, kind: input, shape index: {}]
  %s5 = inlined_call_operand.vmem [shape: bf16[4,16,512], index: 5, kind: output, shape index: {}]
  %s6 = sld [smem:[#allocation0]]
  $region53: #{generator_forward.16} parent=0
    _
  %s8 = ssub.s32 1, %s6
  %s9 = scalar_select 0, %s8, %s6
  loop: start=0, step=1, limit=6
  $region2: #{generator_forward.16} parent=0 // loop_pre_header
    _
  $region3: #{generator_forward.16} parent=0 // loop_header
    %s11 = sphi 0, %s15
    %p12 = scmp.ge.s32.totalorder %s11, 6
    %s18 = sphi 0, %s30
    %s19 = sphi 0, %s26
    %s20 = sphi 0, %s18
    %s21 = sphi 0, %s19
    %s22 = sphi 0, %s20
    %s23 = sphi 0, %s21
    %s35 = sphi 0, %s37
    %s38 = sphi 0, %s35
    %s39 = sphi 0, %s38
    %s55 = sphi 0, %s39
    %s59 = sphi 0, %s59
    %s61 = sphi 0, %s59
    %s62 = sphi 0, %s61
    %s76 = sphi 0, %s62
    %s80 = sphi 0, %s80
    %s82 = sphi 0, %s80
    %s83 = sphi 0, %s82
    %s97 = sphi 0, %s83
    %s101 = sphi 0, %s101
    %s103 = sphi 0, %s101
    %s104 = sphi 0, %s103
    %s118 = sphi 0, %s104
    %s122 = sphi 0, %s122
    %s124 = sphi 0, %s122
    %s125 = sphi 0, %s124
    %s139 = sphi 0, %s125
    %s147 = sphi 0, %s149
    %s150 = sphi 0, %s147
    %s151 = sphi 0, %s150
    %s167 = sphi 0, %s151
  $region4: #{generator_forward.16} parent=0 // loop_header_branch
    %14 = sbr.rel (%p12) target = $region8
  $region5: #{generator_forward.16} parent=0 // loop_body
    %s16 = ssub.s32 %s11, 1
    %s17 = ssub.s32 %s11, 2
    %s24 = sadd.s32 1, %s19
    %p25 = scmp.ge.s32.totalorder %s24, 1
    %s26 = scalar_select %p25, 0, %s24
    %s27 = sadd.s32 1, %s18
    %s28 = scalar_select %p25, %s27, %s18
    %p29 = scmp.ge.s32.totalorder %s28, 4
    %s30 = scalar_select %p29, 0, %s28
    %s31 = ssub.s32 %s18, %s30
    %s32 = ssub.s32 %s19, %s26
    %s33 = sor.u32 %s31, %s32
    %p34 = scmp.eq.s32.totalorder %s33, 0
    %s36 = sadd.s32 %s35, 1
    %s37 = scalar_select %p34, %s35, %s36
    %p40 = pneg %p34
    %p41 = scmp.eq.s32.totalorder %s11, 3
    %p42 = por %p40, %p41
    %p43 = scmp.ne.s32.totalorder %s35, %s38
    %p44 = scmp.eq.s32.totalorder %s11, 0
    %p45 = por %p43, %p44
    %p46 = scmp.ne.s32.totalorder %s35, %s38
    %p47 = scmp.eq.s32.totalorder %s16, 3
    %p48 = por %p46, %p47
    %p49 = scmp.ne.s32.totalorder %s38, %s39
    %p50 = scmp.eq.s32.totalorder %s16, 0
    %p51 = por %p49, %p50
    %p52 = scmp.ne.s32.totalorder %s38, %s39
    %p53 = scmp.eq.s32.totalorder %s17, 3
    %p54 = por %p52, %p53
    %p56 = scmp.ne.s32.totalorder %s39, %s55
    %p57 = scmp.eq.s32.totalorder %s17, 0
    %p58 = por %p56, %p57
    %s60 = sadd.s32 %s59, 1
    %p63 = scmp.eq.s32.totalorder %s11, 3
    %p64 = scmp.ne.s32.totalorder %s59, %s61
    %p65 = scmp.eq.s32.totalorder %s11, 0
    %p66 = por %p64, %p65
    %p67 = scmp.ne.s32.totalorder %s59, %s61
    %p68 = scmp.eq.s32.totalorder %s16, 3
    %p69 = por %p67, %p68
    %p70 = scmp.ne.s32.totalorder %s61, %s62
    %p71 = scmp.eq.s32.totalorder %s16, 0
    %p72 = por %p70, %p71
    %p73 = scmp.ne.s32.totalorder %s61, %s62
    %p74 = scmp.eq.s32.totalorder %s17, 3
    %p75 = por %p73, %p74
    %p77 = scmp.ne.s32.totalorder %s62, %s76
    %p78 = scmp.eq.s32.totalorder %s17, 0
    %p79 = por %p77, %p78
    %s81 = sadd.s32 %s80, 1
    %p84 = scmp.eq.s32.totalorder %s11, 3
    %p85 = scmp.ne.s32.totalorder %s80, %s82
    %p86 = scmp.eq.s32.totalorder %s11, 0
    %p87 = por %p85, %p86
    %p88 = scmp.ne.s32.totalorder %s80, %s82
    %p89 = scmp.eq.s32.totalorder %s16, 3
    %p90 = por %p88, %p89
    %p91 = scmp.ne.s32.totalorder %s82, %s83
    %p92 = scmp.eq.s32.totalorder %s16, 0
    %p93 = por %p91, %p92
    %p94 = scmp.ne.s32.totalorder %s82, %s83
    %p95 = scmp.eq.s32.totalorder %s17, 3
    %p96 = por %p94, %p95
    %p98 = scmp.ne.s32.totalorder %s83, %s97
    %p99 = scmp.eq.s32.totalorder %s17, 0
    %p100 = por %p98, %p99
    %s102 = sadd.s32 %s101, 1
    %p105 = scmp.eq.s32.totalorder %s11, 3
    %p106 = scmp.ne.s32.totalorder %s101, %s103
    %p107 = scmp.eq.s32.totalorder %s11, 0
    %p108 = por %p106, %p107
    %p109 = scmp.ne.s32.totalorder %s101, %s103
    %p110 = scmp.eq.s32.totalorder %s16, 3
    %p111 = por %p109, %p110
    %p112 = scmp.ne.s32.totalorder %s103, %s104
    %p113 = scmp.eq.s32.totalorder %s16, 0
    %p114 = por %p112, %p113
    %p115 = scmp.ne.s32.totalorder %s103, %s104
    %p116 = scmp.eq.s32.totalorder %s17, 3
    %p117 = por %p115, %p116
    %p119 = scmp.ne.s32.totalorder %s104, %s118
    %p120 = scmp.eq.s32.totalorder %s17, 0
    %p121 = por %p119, %p120
    %s123 = sadd.s32 %s122, 1
    %p126 = scmp.eq.s32.totalorder %s11, 3
    %p127 = scmp.ne.s32.totalorder %s122, %s124
    %p128 = scmp.eq.s32.totalorder %s11, 0
    %p129 = por %p127, %p128
    %p130 = scmp.ne.s32.totalorder %s122, %s124
    %p131 = scmp.eq.s32.totalorder %s16, 3
    %p132 = por %p130, %p131
    %p133 = scmp.ne.s32.totalorder %s124, %s125
    %p134 = scmp.eq.s32.totalorder %s16, 0
    %p135 = por %p133, %p134
    %p136 = scmp.ne.s32.totalorder %s124, %s125
    %p137 = scmp.eq.s32.totalorder %s17, 3
    %p138 = por %p136, %p137
    %p140 = scmp.ne.s32.totalorder %s125, %s139
    %p141 = scmp.eq.s32.totalorder %s17, 0
    %p142 = por %p140, %p141
    %s143 = ssub.s32 %s18, %s30
    %s144 = ssub.s32 %s19, %s26
    %s145 = sor.u32 %s143, %s144
    %p146 = scmp.eq.s32.totalorder %s145, 0
    %s148 = sadd.s32 %s147, 1
    %s149 = scalar_select %p146, %s147, %s148
    %p152 = pneg %p146
    %p153 = scmp.eq.s32.totalorder %s11, 3
    %p154 = por %p152, %p153
    %p155 = scmp.ne.s32.totalorder %s147, %s150
    %p156 = scmp.eq.s32.totalorder %s11, 0
    %p157 = por %p155, %p156
    %p158 = scmp.ne.s32.totalorder %s147, %s150
    %p159 = scmp.eq.s32.totalorder %s16, 3
    %p160 = por %p158, %p159
    %p161 = scmp.ne.s32.totalorder %s150, %s151
    %p162 = scmp.eq.s32.totalorder %s16, 0
    %p163 = por %p161, %p162
    %p164 = scmp.ne.s32.totalorder %s150, %s151
    %p165 = scmp.eq.s32.totalorder %s17, 3
    %p166 = por %p164, %p165
    %p168 = scmp.ne.s32.totalorder %s151, %s167
    %p169 = scmp.eq.s32.totalorder %s17, 0
    %p170 = por %p168, %p169
    %p171 = scmp.le.s32.totalorder 1, %s11
    %p172 = scmp.lt.s32.totalorder %s11, 5
    %p173 = pnand %p171, %p172
    %p174 = pneg %p173
    // Predicated region
    $region9: #{generator_forward.16} parent=5 // pred_check
      _
    $region10: #{generator_forward.16} parent=5 // pred_check_branch
      %176 = sbr.rel (%p173) target = $region12
    $region11: #{generator_forward.16} parent=5 // pred_region
      %s177 = ssub.s32 %s11, 1
      // Predicated region
      $region13: #{generator_forward.16} parent=11 // pred_check
        %p178 = pneg %p72
      $region14: #{generator_forward.16} parent=11 // pred_check_branch
        %180 = sbr.rel (%p178) target = $region16
      $region15: #{generator_forward.16} parent=11 // pred_region
        _
      $region16: #{generator_forward.16} parent=11 // pred_fallthru
        _
      // Predicated region
      $region17: #{generator_forward.16} parent=11 // pred_check
        %p181 = pneg %p93
      $region18: #{generator_forward.16} parent=11 // pred_check_branch
        %183 = sbr.rel (%p181) target = $region20
      $region19: #{generator_forward.16} parent=11 // pred_region
        _
      $region20: #{generator_forward.16} parent=11 // pred_fallthru
        _
      // Predicated region
      $region21: #{generator_forward.16} parent=11 // pred_check
        %p184 = pneg %p114
      $region22: #{generator_forward.16} parent=11 // pred_check_branch
        %186 = sbr.rel (%p184) target = $region24
      $region23: #{generator_forward.16} parent=11 // pred_region
        _
      $region24: #{generator_forward.16} parent=11 // pred_fallthru
        _
      // Predicated region
      $region25: #{generator_forward.16} parent=11 // pred_check
        %p187 = pneg %p135
      $region26: #{generator_forward.16} parent=11 // pred_check_branch
        %189 = sbr.rel (%p187) target = $region28
      $region27: #{generator_forward.16} parent=11 // pred_region
        _
      $region28: #{generator_forward.16} parent=11 // pred_fallthru
        _
    $region12: #{generator_forward.16} parent=5 // pred_fallthru
      _
    %p190 = scmp.lt.s32.totalorder %s11, 4
    // Predicated region
    $region29: #{generator_forward.16} parent=5 // pred_check
      %p191 = pneg %p190
    $region30: #{generator_forward.16} parent=5 // pred_check_branch
      %193 = sbr.rel (%p191) target = $region32
    $region31: #{generator_forward.16} parent=5 // pred_region
      // Predicated region
      $region33: #{generator_forward.16} parent=31 // pred_check
        %p194 = pneg %p45
      $region34: #{generator_forward.16} parent=31 // pred_check_branch
        %196 = sbr.rel (%p194) target = $region36
      $region35: #{generator_forward.16} parent=31 // pred_region
        %s197 = smul.u32 4, %s19
        %p198 = scmp.lt.s32.totalorder %s18, 3
        %s199 = scalar_select %p198, %s18, 3
        %p200 = scmp.lt.s32.totalorder %s197, 3
        %s201 = scalar_select %p200, %s197, 3
        %s202 = smul.addr %s199, 8
        %s203 = sadd.s32 %s201, %s202
        %s204 = smul.addr %s203, 4
        %s205 = scalar_lea.vmem %s0, %s204
        %s206 = smul.u32 4, %s19
      $region36: #{generator_forward.16} parent=31 // pred_fallthru
        _
    $region32: #{generator_forward.16} parent=5 // pred_fallthru
      _
    %p207 = scmp.le.s32.totalorder 1, %s11
    %p208 = scmp.lt.s32.totalorder %s11, 5
    %p209 = pnand %p207, %p208
    %p210 = pneg %p209
    // Predicated region
    $region37: #{generator_forward.16} parent=5 // pred_check
      _
    $region38: #{generator_forward.16} parent=5 // pred_check_branch
      %212 = sbr.rel (%p209) target = $region40
    $region39: #{generator_forward.16} parent=5 // pred_region
      %s213 = ssub.s32 %s11, 1
      %s214 = smul.u32 4, %s21
      %p215 = scmp.lt.s32.totalorder %s20, 3
      %s216 = scalar_select %p215, %s20, 3
      %p217 = scmp.lt.s32.totalorder %s214, 3
      %s218 = scalar_select %p217, %s214, 3
      %s219 = smul.addr %s216, 8
      %s220 = sadd.s32 %s218, %s219
      %s221 = smul.addr %s220, 4
      %s222 = scalar_lea.vmem %s0, %s221
      %p223 = pneg %p51
      %p224 = pneg %p48
      %p225 = pneg %p72
      %p226 = pneg %p69
      %p227 = pneg %p93
      %p228 = pneg %p90
      %p229 = pneg %p114
      %p230 = pneg %p111
      %p231 = pneg %p135
      %p232 = pneg %p132
      %p233 = pneg %p163
      %p234 = pneg %p160
      %s235 = smul.u32 4, %s21
      %p236 = scmp.lt.s32.totalorder %s20, 3
      %s237 = scalar_select %p236, %s20, 3
      %p238 = scmp.lt.s32.totalorder %s235, 3
      %s239 = scalar_select %p238, %s235, 3
      %s240 = smul.addr %s237, 8
      %s241 = sadd.s32 %s239, %s240
      %s242 = smul.addr %s241, 4
      %s243 = scalar_lea.vmem %s5, %s242
      %s244 = smul.u32 4, %s21
      %p245 = scmp.lt.s32.totalorder %s20, 3
      %s246 = scalar_select %p245, %s20, 3
      %p247 = scmp.lt.s32.totalorder %s244, 3
      %s248 = scalar_select %p247, %s244, 3
      %s249 = smul.addr %s246, 8
      %s250 = sadd.s32 %s248, %s249
      %s251 = smul.addr %s250, 4
      %s252 = scalar_lea.vmem %s0, %s251
      %s253 = smul.u32 4, %s21
      %s254 = smul.u32 4, %s21
      %p255 = scmp.lt.s32.totalorder %s20, 3
      %s256 = scalar_select %p255, %s20, 3
      %p257 = scmp.lt.s32.totalorder %s254, 3
      %s258 = scalar_select %p257, %s254, 3
      %s259 = smul.addr %s256, 8
      %s260 = sadd.s32 %s258, %s259
      %s261 = smul.addr %s260, 4
      %s262 = scalar_lea.vmem %s5, %s261
      %s263 = smul.u32 4, %s21
      %v264 = vld [vmem:[%s1] sm:$0xff]
      %v265 = vld [vmem:[%s1 + $0x8] sm:$0xff]
      %v266 = vld [vmem:[%s1 + $0x10] sm:$0xff]
      %v267 = vld [vmem:[%s1 + $0x18] sm:$0xff]
      %v268 = vld [vmem:[%s1 + $0x20] sm:$0xff]
      %v269 = vld [vmem:[%s1 + $0x28] sm:$0xff]
      %v270 = vld [vmem:[%s1 + $0x30] sm:$0xff]
      %v271 = vld [vmem:[%s1 + $0x38] sm:$0xff]
      %v272 = vadd.f32 %v264, %v266
      %v273 = vadd.f32 %v272, %v268
      %v274 = vadd.f32 %v273, %v270
      %v275 = vadd.f32 %v265, %v267
      %v276 = vadd.f32 %v275, %v269
      %v277 = vadd.f32 %v276, %v271
      %v278 = vld [vmem:[%s2] sm:$0xff]
      %v279 = vld [vmem:[%s2 + $0x8] sm:$0xff]
      %v280 = vld [vmem:[%s2 + $0x10] sm:$0xff]
      %v281 = vld [vmem:[%s2 + $0x18] sm:$0xff]
      %v282 = vld [vmem:[%s2 + $0x20] sm:$0xff]
      %v283 = vld [vmem:[%s2 + $0x28] sm:$0xff]
      %v284 = vld [vmem:[%s2 + $0x30] sm:$0xff]
      %v285 = vld [vmem:[%s2 + $0x38] sm:$0xff]
      %v286 = vadd.f32 %v278, %v280
      %v287 = vadd.f32 %v286, %v282
      %v288 = vadd.f32 %v287, %v284
      %v289 = vadd.f32 %v279, %v281
      %v290 = vadd.f32 %v289, %v283
      %v291 = vadd.f32 %v290, %v285
      %v292 = vmul.f32 %v274, 0.00048828125
      %v293 = vmul.f32 %v277, 0.00048828125
      %v294 = vmul.f32 %v288, 0.00048828125
      %v295 = vmul.f32 %v291, 0.00048828125
      %v296 = vmul.f32 %v292, %v292
      %v297 = vmul.f32 %v293, %v293
      %v298 = vsub.f32 %v294, %v296
      %v299 = vsub.f32 %v295, %v297
      %v300 = vmax.f32 %v298, 0.0
      %v301 = vmax.f32 %v299, 0.0
      %v302 = vadd.f32 %v300, 1e-05
      %v303 = vadd.f32 %v301, 1e-05
      %v304 = vrsqrt.pop %v302
      %v305 = vrsqrt.pop %v303
      %v306 = vld [vmem:[%s3] sm:$0xff]
      %v307 = vld [vmem:[%s3 + $0x8] sm:$0xff]
      %v308 = vmul.f32 %v306, %v304
      %v309 = vmul.f32 %v307, %v305
      %v310 = vld [vmem:[%s4] sm:$0xff]
      %v311 = vld [vmem:[%s4 + $0x8] sm:$0xff]
      %v312 = vmul.f32 %v292, %v308
      %v313 = vmul.f32 %v293, %v309
      %v314 = vsub.f32 %v310, %v312
      %v315 = vsub.f32 %v311, %v313
      %v316 = vld [vmem:[%s252] sm:$0xff]
      %v317 = vld [vmem:[%s252 + $0x8] sm:$0xff]
      %v318 = vld [vmem:[%s252 + $0x10] sm:$0xff]
      %v319 = vld [vmem:[%s252 + $0x18] sm:$0xff]
      %v320 = vunpack.c.l.bf16 %v316
      %v321 = vunpack.c.h.bf16 %v316
      %v322 = vunpack.c.l.bf16 %v317
      %v323 = vunpack.c.h.bf16 %v317
      %v324 = vunpack.c.l.bf16 %v318
      %v325 = vunpack.c.h.bf16 %v318
      %v326 = vunpack.c.l.bf16 %v319
      %v327 = vunpack.c.h.bf16 %v319
      %329 = vset.pattern.permute.xlu0 0
      %330 = vperm.xlu0 %329, %v308
      %v331 = vpop.permute.xlu0 %330
      %334 = vset.pattern.permute.xlu0 0
      %335 = vperm.xlu0 %334, %v309
      %v336 = vpop.permute.xlu0 %335
      %v338 = vmul.f32 %v320, %v331
      %v339 = vmul.f32 %v321, %v331
      %v340 = vmul.f32 %v322, %v331
      %v341 = vmul.f32 %v323, %v331
      %v342 = vmul.f32 %v324, %v336
      %v343 = vmul.f32 %v325, %v336
      %v344 = vmul.f32 %v326, %v336
      %v345 = vmul.f32 %v327, %v336
      %347 = vset.pattern.permute.xlu0 0
      %348 = vperm.xlu0 %347, %v314
      %v349 = vpop.permute.xlu0 %348
      %352 = vset.pattern.permute.xlu0 0
      %353 = vperm.xlu0 %352, %v315
      %v354 = vpop.permute.xlu0 %353
      %v356 = vadd.f32 %v338, %v349
      %v357 = vadd.f32 %v339, %v349
      %v358 = vadd.f32 %v340, %v349
      %v359 = vadd.f32 %v341, %v349
      %v360 = vadd.f32 %v342, %v354
      %v361 = vadd.f32 %v343, %v354
      %v362 = vadd.f32 %v344, %v354
      %v363 = vadd.f32 %v345, %v354
      %v364 = vmax.f32 %v356, 0.0
      %v365 = vmax.f32 %v357, 0.0
      %v366 = vmax.f32 %v358, 0.0
      %v367 = vmax.f32 %v359, 0.0
      %v368 = vmax.f32 %v360, 0.0
      %v369 = vmax.f32 %v361, 0.0
      %v370 = vmax.f32 %v362, 0.0
      %v371 = vmax.f32 %v363, 0.0
      %v372 = vpack.c.bf16 %v368, %v364
      %v373 = vpack.c.bf16 %v369, %v365
      %v374 = vpack.c.bf16 %v370, %v366
      %v375 = vpack.c.bf16 %v371, %v367
      %v380 = vunpack.c.l.b16 %v372
      %v381 = vunpack.c.l.b16 %v373
      %v382 = vunpack.c.l.b16 %v374
      %v383 = vunpack.c.l.b16 %v375
      %v384 = vunpack.c.h.b16 %v372
      %v385 = vunpack.c.h.b16 %v373
      %v386 = vunpack.c.h.b16 %v374
      %v387 = vunpack.c.h.b16 %v375
      %v388 = vpack.c.b16 %v381, %v380
      %v389 = vpack.c.b16 %v383, %v382
      %v390 = vpack.c.b16 %v385, %v384
      %v391 = vpack.c.b16 %v387, %v386
      %396 = vst [vmem:[%s262] sm:$0xff] %v388
      %397 = vst [vmem:[%s262 + $0x8] sm:$0xff] %v389
      %398 = vst [vmem:[%s262 + $0x10] sm:$0xff] %v390
      %399 = vst [vmem:[%s262 + $0x18] sm:$0xff] %v391
      %s400 = smul.u32 4, %s21
      %p401 = scmp.lt.s32.totalorder %s20, 3
      %s402 = scalar_select %p401, %s20, 3
      %p403 = scmp.lt.s32.totalorder %s400, 3
      %s404 = scalar_select %p403, %s400, 3
      %s405 = smul.addr %s402, 8
      %s406 = sadd.s32 %s404, %s405
      %s407 = smul.addr %s406, 4
      %s408 = scalar_lea.vmem %s5, %s407
      // Predicated region
      $region41: #{generator_forward.16} parent=39 // pred_check
        %p409 = pneg %p160
      $region42: #{generator_forward.16} parent=39 // pred_check_branch
        %411 = sbr.rel (%p409) target = $region44
      $region43: #{generator_forward.16} parent=39 // pred_region
        %s412 = smul.u32 4, %s21
      $region44: #{generator_forward.16} parent=39 // pred_fallthru
        _
    $region40: #{generator_forward.16} parent=5 // pred_fallthru
      _
    %p413 = scmp.le.s32.totalorder 2, %s11
    // Predicated region
    $region45: #{generator_forward.16} parent=5 // pred_check
      %p414 = pneg %p413
    $region46: #{generator_forward.16} parent=5 // pred_check_branch
      %416 = sbr.rel (%p414) target = $region48
    $region47: #{generator_forward.16} parent=5 // pred_region
      %s417 = ssub.s32 %s11, 2
      // Predicated region
      $region49: #{generator_forward.16} parent=47 // pred_check
        %p418 = pneg %p166
      $region50: #{generator_forward.16} parent=47 // pred_check_branch
        %420 = sbr.rel (%p418) target = $region52
      $region51: #{generator_forward.16} parent=47 // pred_region
        %s421 = smul.u32 4, %s23
        %p422 = scmp.lt.s32.totalorder %s22, 3
        %s423 = scalar_select %p422, %s22, 3
        %p424 = scmp.lt.s32.totalorder %s421, 3
        %s425 = scalar_select %p424, %s421, 3
        %s426 = smul.addr %s423, 8
        %s427 = sadd.s32 %s425, %s426
        %s428 = smul.addr %s427, 4
        %s429 = scalar_lea.vmem %s5, %s428
      $region52: #{generator_forward.16} parent=47 // pred_fallthru
        _
    $region48: #{generator_forward.16} parent=5 // pred_fallthru
      _
  $region6: #{generator_forward.16} parent=0 // loop_footer
    %s15 = sadd.s32 1, %s11
  $region7: #{generator_forward.16} parent=0 // loop_footer_branch
    %10 = sbr.rel target = $region3
  $region8: #{generator_forward.16} parent=0 // loop_exit
    _

// kernel: generator_forward.17
$region0: #{generator_forward.17}
  #allocation0 [shape = 'u32[]', space=smem, size = 0x4, offset = 0x4, fixed_abs, tag = 'smem constant byte address 0x4 - core index']
  #allocation1 [shape = 'u32[144,128]{1,0:T(1,128)}', space=vmem, size = 0x12000, scoped, tag = 'internal scratch']
  %s0 = inlined_call_operand.vmem [shape: bf16[4,16,32], index: 0, kind: input, shape index: {}]
  %s1 = inlined_call_operand.vmem [shape: bf16[4,32,2048], index: 1, kind: input, shape index: {}]
  %s2 = inlined_call_operand.vmem [shape: f32[4,16,2048], index: 2, kind: output, shape index: {}]
  %s3 = sld [smem:[#allocation0]]
  $region41: #{generator_forward.17} parent=0
    _
  %s5 = ssub.s32 1, %s3
  %s6 = scalar_select 0, %s5, %s3
  loop: start=0, step=1, limit=6
  $region2: #{generator_forward.17} parent=0 // loop_pre_header
    _
  $region3: #{generator_forward.17} parent=0 // loop_header
    %s8 = sphi 0, %s12
    %p9 = scmp.ge.s32.totalorder %s8, 6
    %s15 = sphi 0, %s27
    %s16 = sphi 0, %s23
    %s17 = sphi 0, %s15
    %s18 = sphi 0, %s16
    %s19 = sphi 0, %s17
    %s20 = sphi 0, %s18
    %s30 = sphi 0, %s32
    %s33 = sphi 0, %s30
    %s34 = sphi 0, %s33
    %s50 = sphi 0, %s34
    %s58 = sphi 0, %s60
    %s61 = sphi 0, %s58
    %s62 = sphi 0, %s61
    %s78 = sphi 0, %s62
    %s86 = sphi 0, %s88
    %s89 = sphi 0, %s86
    %s90 = sphi 0, %s89
    %s106 = sphi 0, %s90
  $region4: #{generator_forward.17} parent=0 // loop_header_branch
    %11 = sbr.rel (%p9) target = $region8
  $region5: #{generator_forward.17} parent=0 // loop_body
    %s13 = ssub.s32 %s8, 1
    %s14 = ssub.s32 %s8, 2
    %s21 = sadd.s32 1, %s16
    %p22 = scmp.ge.s32.totalorder %s21, 1
    %s23 = scalar_select %p22, 0, %s21
    %s24 = sadd.s32 1, %s15
    %s25 = scalar_select %p22, %s24, %s15
    %p26 = scmp.ge.s32.totalorder %s25, 4
    %s27 = scalar_select %p26, 0, %s25
    %s28 = ssub.s32 %s15, %s27
    %p29 = scmp.eq.s32.totalorder %s28, 0
    %s31 = sadd.s32 %s30, 1
    %s32 = scalar_select %p29, %s30, %s31
    %p35 = pneg %p29
    %p36 = scmp.eq.s32.totalorder %s8, 3
    %p37 = por %p35, %p36
    %p38 = scmp.ne.s32.totalorder %s30, %s33
    %p39 = scmp.eq.s32.totalorder %s8, 0
    %p40 = por %p38, %p39
    %p41 = scmp.ne.s32.totalorder %s30, %s33
    %p42 = scmp.eq.s32.totalorder %s13, 3
    %p43 = por %p41, %p42
    %p44 = scmp.ne.s32.totalorder %s33, %s34
    %p45 = scmp.eq.s32.totalorder %s13, 0
    %p46 = por %p44, %p45
    %p47 = scmp.ne.s32.totalorder %s33, %s34
    %p48 = scmp.eq.s32.totalorder %s14, 3
    %p49 = por %p47, %p48
    %p51 = scmp.ne.s32.totalorder %s34, %s50
    %p52 = scmp.eq.s32.totalorder %s14, 0
    %p53 = por %p51, %p52
    %s54 = ssub.s32 %s15, %s27
    %s55 = ssub.s32 %s16, %s23
    %s56 = sor.u32 %s54, %s55
    %p57 = scmp.eq.s32.totalorder %s56, 0
    %s59 = sadd.s32 %s58, 1
    %s60 = scalar_select %p57, %s58, %s59
    %p63 = pneg %p57
    %p64 = scmp.eq.s32.totalorder %s8, 3
    %p65 = por %p63, %p64
    %p66 = scmp.ne.s32.totalorder %s58, %s61
    %p67 = scmp.eq.s32.totalorder %s8, 0
    %p68 = por %p66, %p67
    %p69 = scmp.ne.s32.totalorder %s58, %s61
    %p70 = scmp.eq.s32.totalorder %s13, 3
    %p71 = por %p69, %p70
    %p72 = scmp.ne.s32.totalorder %s61, %s62
    %p73 = scmp.eq.s32.totalorder %s13, 0
    %p74 = por %p72, %p73
    %p75 = scmp.ne.s32.totalorder %s61, %s62
    %p76 = scmp.eq.s32.totalorder %s14, 3
    %p77 = por %p75, %p76
    %p79 = scmp.ne.s32.totalorder %s62, %s78
    %p80 = scmp.eq.s32.totalorder %s14, 0
    %p81 = por %p79, %p80
    %s82 = ssub.s32 %s15, %s27
    %s83 = ssub.s32 %s16, %s23
    %s84 = sor.u32 %s82, %s83
    %p85 = scmp.eq.s32.totalorder %s84, 0
    %s87 = sadd.s32 %s86, 1
    %s88 = scalar_select %p85, %s86, %s87
    %p91 = pneg %p85
    %p92 = scmp.eq.s32.totalorder %s8, 3
    %p93 = por %p91, %p92
    %p94 = scmp.ne.s32.totalorder %s86, %s89
    %p95 = scmp.eq.s32.totalorder %s8, 0
    %p96 = por %p94, %p95
    %p97 = scmp.ne.s32.totalorder %s86, %s89
    %p98 = scmp.eq.s32.totalorder %s13, 3
    %p99 = por %p97, %p98
    %p100 = scmp.ne.s32.totalorder %s89, %s90
    %p101 = scmp.eq.s32.totalorder %s13, 0
    %p102 = por %p100, %p101
    %p103 = scmp.ne.s32.totalorder %s89, %s90
    %p104 = scmp.eq.s32.totalorder %s14, 3
    %p105 = por %p103, %p104
    %p107 = scmp.ne.s32.totalorder %s90, %s106
    %p108 = scmp.eq.s32.totalorder %s14, 0
    %p109 = por %p107, %p108
    %p110 = scmp.le.s32.totalorder 1, %s8
    %p111 = scmp.lt.s32.totalorder %s8, 5
    %p112 = pnand %p110, %p111
    %p113 = pneg %p112
    // Predicated region
    $region9: #{generator_forward.17} parent=5 // pred_check
      _
    $region10: #{generator_forward.17} parent=5 // pred_check_branch
      %115 = sbr.rel (%p112) target = $region12
    $region11: #{generator_forward.17} parent=5 // pred_region
      %s116 = ssub.s32 %s8, 1
    $region12: #{generator_forward.17} parent=5 // pred_fallthru
      _
    %p117 = scmp.lt.s32.totalorder %s8, 4
    // Predicated region
    $region13: #{generator_forward.17} parent=5 // pred_check
      %p118 = pneg %p117
    $region14: #{generator_forward.17} parent=5 // pred_check_branch
      %120 = sbr.rel (%p118) target = $region16
    $region15: #{generator_forward.17} parent=5 // pred_region
      // Predicated region
      $region17: #{generator_forward.17} parent=15 // pred_check
        %p121 = pneg %p40
      $region18: #{generator_forward.17} parent=15 // pred_check_branch
        %123 = sbr.rel (%p121) target = $region20
      $region19: #{generator_forward.17} parent=15 // pred_region
        %p124 = scmp.lt.s32.totalorder %s15, 3
        %s125 = scalar_select %p124, %s15, 3
        %s126 = smul.addr %s125, 2
        %s127 = smul.addr %s126, 4
        %s128 = scalar_lea.vmem %s0, %s127
      $region20: #{generator_forward.17} parent=15 // pred_fallthru
        _
      // Predicated region
      $region21: #{generator_forward.17} parent=15 // pred_check
        %p129 = pneg %p68
      $region22: #{generator_forward.17} parent=15 // pred_check_branch
        %131 = sbr.rel (%p129) target = $region24
      $region23: #{generator_forward.17} parent=15 // pred_region
        %s132 = smul.u32 16, %s16
        %p133 = scmp.lt.s32.totalorder %s15, 3
        %s134 = scalar_select %p133, %s15, 3
        %p135 = scmp.lt.s32.totalorder %s132, 15
        %s136 = scalar_select %p135, %s132, 15
        %s137 = smul.addr %s134, 64
        %s138 = sadd.s32 %s136, %s137
        %s139 = smul.addr %s138, 4
        %s140 = scalar_lea.vmem %s1, %s139
        %s141 = smul.u32 16, %s16
      $region24: #{generator_forward.17} parent=15 // pred_fallthru
        _
    $region16: #{generator_forward.17} parent=5 // pred_fallthru
      _
    %p142 = scmp.le.s32.totalorder 1, %s8
    %p143 = scmp.lt.s32.totalorder %s8, 5
    %p144 = pnand %p142, %p143
    %p145 = pneg %p144
    // Predicated region
    $region25: #{generator_forward.17} parent=5 // pred_check
      _
    $region26: #{generator_forward.17} parent=5 // pred_check_branch
      %147 = sbr.rel (%p144) target = $region28
    $region27: #{generator_forward.17} parent=5 // pred_region
      %s148 = ssub.s32 %s8, 1
      %p149 = scmp.lt.s32.totalorder %s17, 3
      %s150 = scalar_select %p149, %s17, 3
      %s151 = smul.addr %s150, 2
      %s152 = smul.addr %s151, 4
      %s153 = scalar_lea.vmem %s0, %s152
      %p154 = pneg %p46
      %p155 = pneg %p43
      %s156 = smul.u32 16, %s18
      %p157 = scmp.lt.s32.totalorder %s17, 3
      %s158 = scalar_select %p157, %s17, 3
      %p159 = scmp.lt.s32.totalorder %s156, 15
      %s160 = scalar_select %p159, %s156, 15
      %s161 = smul.addr %s158, 64
      %s162 = sadd.s32 %s160, %s161
      %s163 = smul.addr %s162, 4
      %s164 = scalar_lea.vmem %s1, %s163
      %p165 = pneg %p74
      %p166 = pneg %p71
      %p167 = pneg %p102
      %p168 = pneg %p99
      %s169 = smul.u32 16, %s18
      %p170 = scmp.lt.s32.totalorder %s17, 3
      %s171 = scalar_select %p170, %s17, 3
      %p172 = scmp.lt.s32.totalorder %s169, 15
      %s173 = scalar_select %p172, %s169, 15
      %s174 = smul.addr %s171, 32
      %s175 = sadd.s32 %s173, %s174
      %s176 = smul.addr %s175, 8
      %s177 = scalar_lea.vmem %s2, %s176
      %p178 = scmp.lt.s32.totalorder %s17, 3
      %s179 = scalar_select %p178, %s17, 3
      %s180 = smul.addr %s179, 2
      %s181 = smul.addr %s180, 4
      %s182 = scalar_lea.vmem %s0, %s181
      %s183 = smul.u32 16, %s18
      %p184 = scmp.lt.s32.totalorder %s17, 3
      %s185 = scalar_select %p184, %s17, 3
      %p186 = scmp.lt.s32.totalorder %s183, 15
      %s187 = scalar_select %p186, %s183, 15
      %s188 = smul.addr %s185, 64
      %s189 = sadd.s32 %s187, %s188
      %s190 = smul.addr %s189, 4
      %s191 = scalar_lea.vmem %s1, %s190
      %s192 = smul.u32 16, %s18
      %s193 = smul.u32 16, %s18
      %p194 = scmp.lt.s32.totalorder %s17, 3
      %s195 = scalar_select %p194, %s17, 3
      %p196 = scmp.lt.s32.totalorder %s193, 15
      %s197 = scalar_select %p196, %s193, 15
      %s198 = smul.addr %s195, 32
      %s199 = sadd.s32 %s197, %s198
      %s200 = smul.addr %s199, 8
      %s201 = scalar_lea.vmem %s2, %s200
      %s202 = smul.u32 16, %s18
      %v204 = vld [vmem:[%s182] sm:$0xf]
      %v205 = vld [vmem:[%s182 + $0x4] sm:$0xf]
      %v206 = vld [vmem:[%s191] sm:$0xff]
      %v207 = vld [vmem:[%s191 + $0x8] sm:$0xff]
      %v208 = vld [vmem:[%s191 + $0x10] sm:$0xff]
      %v209 = vld [vmem:[%s191 + $0x18] sm:$0xff]
      %v210 = vld [vmem:[%s191 + $0x20] sm:$0xff]
      %v211 = vld [vmem:[%s191 + $0x28] sm:$0xff]
      %v212 = vld [vmem:[%s191 + $0x30] sm:$0xff]
      %v213 = vld [vmem:[%s191 + $0x38] sm:$0xff]
      %v214 = vld [vmem:[%s191 + $0x40] sm:$0xff]
      %v215 = vld [vmem:[%s191 + $0x48] sm:$0xff]
      %v216 = vld [vmem:[%s191 + $0x50] sm:$0xff]
      %v217 = vld [vmem:[%s191 + $0x58] sm:$0xff]
      %v218 = vld [vmem:[%s191 + $0x60] sm:$0xff]
      %v219 = vld [vmem:[%s191 + $0x68] sm:$0xff]
      %v220 = vld [vmem:[%s191 + $0x70] sm:$0xff]
      %v221 = vld [vmem:[%s191 + $0x78] sm:$0xff]
      %v222 = vld [vmem:[%s191 + $0x80] sm:$0xff]
      %v223 = vld [vmem:[%s191 + $0x88] sm:$0xff]
      %v224 = vld [vmem:[%s191 + $0x90] sm:$0xff]
      %v225 = vld [vmem:[%s191 + $0x98] sm:$0xff]
      %v226 = vld [vmem:[%s191 + $0xa0] sm:$0xff]
      %v227 = vld [vmem:[%s191 + $0xa8] sm:$0xff]
      %v228 = vld [vmem:[%s191 + $0xb0] sm:$0xff]
      %v229 = vld [vmem:[%s191 + $0xb8] sm:$0xff]
      %v230 = vld [vmem:[%s191 + $0xc0] sm:$0xff]
      %v231 = vld [vmem:[%s191 + $0xc8] sm:$0xff]
      %v232 = vld [vmem:[%s191 + $0xd0] sm:$0xff]
      %v233 = vld [vmem:[%s191 + $0xd8] sm:$0xff]
      %v234 = vld [vmem:[%s191 + $0xe0] sm:$0xff]
      %v235 = vld [vmem:[%s191 + $0xe8] sm:$0xff]
      %v236 = vld [vmem:[%s191 + $0xf0] sm:$0xff]
      %v237 = vld [vmem:[%s191 + $0xf8] sm:$0xff]
      %v240 = vunpack.c.l.b16 %v204
      %v241 = vunpack.c.l.b16 %v205
      %v242 = vpack.c.b16 %v241, %v240
      %v275 = vunpack.c.l.b16 %v206
      %v276 = vunpack.c.h.b16 %v206
      %v277 = vunpack.c.l.b16 %v207
      %v278 = vunpack.c.h.b16 %v207
      %v279 = vunpack.c.l.b16 %v208
      %v280 = vunpack.c.h.b16 %v208
      %v281 = vunpack.c.l.b16 %v209
      %v282 = vunpack.c.h.b16 %v209
      %v283 = vunpack.c.l.b16 %v210
      %v284 = vunpack.c.h.b16 %v210
      %v285 = vunpack.c.l.b16 %v211
      %v286 = vunpack.c.h.b16 %v211
      %v287 = vunpack.c.l.b16 %v212
      %v288 = vunpack.c.h.b16 %v212
      %v289 = vunpack.c.l.b16 %v213
      %v290 = vunpack.c.h.b16 %v213
      %v291 = vunpack.c.l.b16 %v214
      %v292 = vunpack.c.h.b16 %v214
      %v293 = vunpack.c.l.b16 %v215
      %v294 = vunpack.c.h.b16 %v215
      %v295 = vunpack.c.l.b16 %v216
      %v296 = vunpack.c.h.b16 %v216
      %v297 = vunpack.c.l.b16 %v217
      %v298 = vunpack.c.h.b16 %v217
      %v299 = vunpack.c.l.b16 %v218
      %v300 = vunpack.c.h.b16 %v218
      %v301 = vunpack.c.l.b16 %v219
      %v302 = vunpack.c.h.b16 %v219
      %v303 = vunpack.c.l.b16 %v220
      %v304 = vunpack.c.h.b16 %v220
      %v305 = vunpack.c.l.b16 %v221
      %v306 = vunpack.c.h.b16 %v221
      %v307 = vunpack.c.l.b16 %v222
      %v308 = vunpack.c.h.b16 %v222
      %v309 = vunpack.c.l.b16 %v223
      %v310 = vunpack.c.h.b16 %v223
      %v311 = vunpack.c.l.b16 %v224
      %v312 = vunpack.c.h.b16 %v224
      %v313 = vunpack.c.l.b16 %v225
      %v314 = vunpack.c.h.b16 %v225
      %v315 = vunpack.c.l.b16 %v226
      %v316 = vunpack.c.h.b16 %v226
      %v317 = vunpack.c.l.b16 %v227
      %v318 = vunpack.c.h.b16 %v227
      %v319 = vunpack.c.l.b16 %v228
      %v320 = vunpack.c.h.b16 %v228
      %v321 = vunpack.c.l.b16 %v229
      %v322 = vunpack.c.h.b16 %v229
      %v323 = vunpack.c.l.b16 %v230
      %v324 = vunpack.c.h.b16 %v230
      %v325 = vunpack.c.l.b16 %v231
      %v326 = vunpack.c.h.b16 %v231
      %v327 = vunpack.c.l.b16 %v232
      %v328 = vunpack.c.h.b16 %v232
      %v329 = vunpack.c.l.b16 %v233
      %v330 = vunpack.c.h.b16 %v233
      %v331 = vunpack.c.l.b16 %v234
      %v332 = vunpack.c.h.b16 %v234
      %v333 = vunpack.c.l.b16 %v235
      %v334 = vunpack.c.h.b16 %v235
      %v335 = vunpack.c.l.b16 %v236
      %v336 = vunpack.c.h.b16 %v236
      %v337 = vunpack.c.l.b16 %v237
      %v338 = vunpack.c.h.b16 %v237
      %v339 = vpack.c.b16 %v291, %v275
      %v340 = vpack.c.b16 %v292, %v276
      %v341 = vpack.c.b16 %v293, %v277
      %v342 = vpack.c.b16 %v294, %v278
      %v343 = vpack.c.b16 %v295, %v279
      %v344 = vpack.c.b16 %v296, %v280
      %v345 = vpack.c.b16 %v297, %v281
      %v346 = vpack.c.b16 %v298, %v282
      %v347 = vpack.c.b16 %v299, %v283
      %v348 = vpack.c.b16 %v300, %v284
      %v349 = vpack.c.b16 %v301, %v285
      %v350 = vpack.c.b16 %v302, %v286
      %v351 = vpack.c.b16 %v303, %v287
      %v352 = vpack.c.b16 %v304, %v288
      %v353 = vpack.c.b16 %v305, %v289
      %v354 = vpack.c.b16 %v306, %v290
      %v355 = vpack.c.b16 %v323, %v307
      %v356 = vpack.c.b16 %v324, %v308
      %v357 = vpack.c.b16 %v325, %v309
      %v358 = vpack.c.b16 %v326, %v310
      %v359 = vpack.c.b16 %v327, %v311
      %v360 = vpack.c.b16 %v328, %v312
      %v361 = vpack.c.b16 %v329, %v313
      %v362 = vpack.c.b16 %v330, %v314
      %v363 = vpack.c.b16 %v331, %v315
      %v364 = vpack.c.b16 %v332, %v316
      %v365 = vpack.c.b16 %v333, %v317
      %v366 = vpack.c.b16 %v334, %v318
      %v367 = vpack.c.b16 %v335, %v319
      %v368 = vpack.c.b16 %v336, %v320
      %v369 = vpack.c.b16 %v337, %v321
      %v370 = vpack.c.b16 %v338, %v322
      %vm403 = vcmask 261120
      %v405 = vsel %vm403, %v242, 0
      %407 = vmatprep.subr.bf16.mxu0 %v340
      %408 = vmatpush1.bf16.msra.mxu0 %v339
      %409 = vmatprep.subr.bf16.mxu0 %v356
      %410 = vmatpush1.bf16.msra.mxu0 %v355
      %411 = vmatprep.subr.bf16.mxu0 0
      %412 = vmatpush1.bf16.msra.mxu0 0
      %413 = vmatprep.subr.bf16.mxu0 0
      %414 = vmatpush1.bf16.msra.mxu0 0
      %415 = vmatprep.subr.bf16.mxu0 0
      %416 = vmatpush1.bf16.msra.mxu0 0
      %417 = vmatprep.subr.bf16.mxu0 0
      %418 = vmatpush1.bf16.msra.mxu0 0
      %419 = vmatprep.subr.bf16.mxu0 0
      %420 = vmatpush1.bf16.msra.mxu0 0
      %421 = vmatprep.subr.bf16.mxu0 0
      %422 = vmatpush1.bf16.msra.mxu0 0
      %423 = vmatprep.subr.bf16.mxu0 0
      %424 = vmatpush1.bf16.msra.mxu0 0
      %425 = vmatprep.subr.bf16.mxu0 0
      %426 = vmatpush1.bf16.msra.mxu0 0
      %427 = vmatprep.subr.bf16.mxu0 0
      %428 = vmatpush1.bf16.msra.mxu0 0
      %429 = vmatprep.subr.bf16.mxu0 0
      %430 = vmatpush1.bf16.msra.mxu0 0
      %431 = vmatprep.subr.bf16.mxu0 0
      %432 = vmatpush1.bf16.msra.mxu0 0
      %433 = vmatprep.subr.bf16.mxu0 0
      %434 = vmatpush1.bf16.msra.mxu0 0
      %435 = vmatprep.subr.bf16.mxu0 0
      %436 = vmatpush1.bf16.msra.mxu0 0
      %437 = vmatprep.subr.bf16.mxu0 0
      %438 = vmatpush1.bf16.msra.mxu0 0
      %439 = vmatprep.mubr.bf16.mxu0 0
      %440 = vmatmul.mubr.bf16.gmra.mrb[0].mxu0 %v405
      %v441 = vpop.f32.mrb[0].mxu0
      %v442 = vadd.f32 0.0, %v441
      %v443 = vpop.f32.mrb[0].mxu0
      %v444 = vadd.f32 0.0, %v443
      %v445 = vpop.f32.mrb[0].mxu0
      %v446 = vadd.f32 0.0, %v445
      %v447 = vpop.f32.mrb[0].mxu0
      %v448 = vadd.f32 0.0, %v447
      %449 = vdwg.mxu0
      %450 = vmatprep.subr.bf16.mxu0 %v342
      %451 = vmatpush1.bf16.msra.mxu0 %v341
      %452 = vmatprep.subr.bf16.mxu0 %v358
      %453 = vmatpush1.bf16.msra.mxu0 %v357
      %454 = vmatprep.subr.bf16.mxu0 0
      %455 = vmatpush1.bf16.msra.mxu0 0
      %456 = vmatprep.subr.bf16.mxu0 0
      %457 = vmatpush1.bf16.msra.mxu0 0
      %458 = vmatprep.subr.bf16.mxu0 0
      %459 = vmatpush1.bf16.msra.mxu0 0
      %460 = vmatprep.subr.bf16.mxu0 0
      %461 = vmatpush1.bf16.msra.mxu0 0
      %462 = vmatprep.subr.bf16.mxu0 0
      %463 = vmatpush1.bf16.msra.mxu0 0
      %464 = vmatprep.subr.bf16.mxu0 0
      %465 = vmatpush1.bf16.msra.mxu0 0
      %466 = vmatprep.subr.bf16.mxu0 0
      %467 = vmatpush1.bf16.msra.mxu0 0
      %468 = vmatprep.subr.bf16.mxu0 0
      %469 = vmatpush1.bf16.msra.mxu0 0
      %470 = vmatprep.subr.bf16.mxu0 0
      %471 = vmatpush1.bf16.msra.mxu0 0
      %472 = vmatprep.subr.bf16.mxu0 0
      %473 = vmatpush1.bf16.msra.mxu0 0
      %474 = vmatprep.subr.bf16.mxu0 0
      %475 = vmatpush1.bf16.msra.mxu0 0
      %476 = vmatprep.subr.bf16.mxu0 0
      %477 = vmatpush1.bf16.msra.mxu0 0
      %478 = vmatprep.subr.bf16.mxu0 0
      %479 = vmatpush1.bf16.msra.mxu0 0
      %480 = vmatprep.subr.bf16.mxu0 0
      %481 = vmatpush1.bf16.msra.mxu0 0
      %482 = vmatprep.mubr.bf16.mxu0 0
      %483 = vmatmul.mubr.bf16.gmra.mrb[0].mxu0 %v405
      %v484 = vpop.f32.mrb[0].mxu0
      %v485 = vadd.f32 0.0, %v484
      %v486 = vpop.f32.mrb[0].mxu0
      %v487 = vadd.f32 0.0, %v486
      %v488 = vpop.f32.mrb[0].mxu0
      %v489 = vadd.f32 0.0, %v488
      %v490 = vpop.f32.mrb[0].mxu0
      %v491 = vadd.f32 0.0, %v490
      %492 = vdwg.mxu0
      %493 = vmatprep.subr.bf16.mxu0 %v344
      %494 = vmatpush1.bf16.msra.mxu0 %v343
      %495 = vmatprep.subr.bf16.mxu0 %v360
      %496 = vmatpush1.bf16.msra.mxu0 %v359
      %497 = vmatprep.subr.bf16.mxu0 0
      %498 = vmatpush1.bf16.msra.mxu0 0
      %499 = vmatprep.subr.bf16.mxu0 0
      %500 = vmatpush1.bf16.msra.mxu0 0
      %501 = vmatprep.subr.bf16.mxu0 0
      %502 = vmatpush1.bf16.msra.mxu0 0
      %503 = vmatprep.subr.bf16.mxu0 0
      %504 = vmatpush1.bf16.msra.mxu0 0
      %505 = vmatprep.subr.bf16.mxu0 0
      %506 = vmatpush1.bf16.msra.mxu0 0
      %507 = vmatprep.subr.bf16.mxu0 0
      %508 = vmatpush1.bf16.msra.mxu0 0
      %509 = vmatprep.subr.bf16.mxu0 0
      %510 = vmatpush1.bf16.msra.mxu0 0
      %511 = vmatprep.subr.bf16.mxu0 0
      %512 = vmatpush1.bf16.msra.mxu0 0
      %513 = vmatprep.subr.bf16.mxu0 0
      %514 = vmatpush1.bf16.msra.mxu0 0
      %515 = vmatprep.subr.bf16.mxu0 0
      %516 = vmatpush1.bf16.msra.mxu0 0
      %517 = vmatprep.subr.bf16.mxu0 0
      %518 = vmatpush1.bf16.msra.mxu0 0
      %519 = vmatprep.subr.bf16.mxu0 0
      %520 = vmatpush1.bf16.msra.mxu0 0
      %521 = vmatprep.subr.bf16.mxu0 0
      %522 = vmatpush1.bf16.msra.mxu0 0
      %523 = vmatprep.subr.bf16.mxu0 0
      %524 = vmatpush1.bf16.msra.mxu0 0
      %525 = vmatprep.mubr.bf16.mxu0 0
      %526 = vmatmul.mubr.bf16.gmra.mrb[0].mxu0 %v405
      %v527 = vpop.f32.mrb[0].mxu0
      %v528 = vadd.f32 0.0, %v527
      %v529 = vpop.f32.mrb[0].mxu0
      %v530 = vadd.f32 0.0, %v529
      %v531 = vpop.f32.mrb[0].mxu0
      %v532 = vadd.f32 0.0, %v531
      %v533 = vpop.f32.mrb[0].mxu0
      %v534 = vadd.f32 0.0, %v533
      %535 = vdwg.mxu0
      %536 = vmatprep.subr.bf16.mxu0 %v346
      %537 = vmatpush1.bf16.msra.mxu0 %v345
      %538 = vmatprep.subr.bf16.mxu0 %v362
      %539 = vmatpush1.bf16.msra.mxu0 %v361
      %540 = vmatprep.subr.bf16.mxu0 0
      %541 = vmatpush1.bf16.msra.mxu0 0
      %542 = vmatprep.subr.bf16.mxu0 0
      %543 = vmatpush1.bf16.msra.mxu0 0
      %544 = vmatprep.subr.bf16.mxu0 0
      %545 = vmatpush1.bf16.msra.mxu0 0
      %546 = vmatprep.subr.bf16.mxu0 0
      %547 = vmatpush1.bf16.msra.mxu0 0
      %548 = vmatprep.subr.bf16.mxu0 0
      %549 = vmatpush1.bf16.msra.mxu0 0
      %550 = vmatprep.subr.bf16.mxu0 0
      %551 = vmatpush1.bf16.msra.mxu0 0
      %552 = vmatprep.subr.bf16.mxu0 0
      %553 = vmatpush1.bf16.msra.mxu0 0
      %554 = vmatprep.subr.bf16.mxu0 0
      %555 = vmatpush1.bf16.msra.mxu0 0
      %556 = vmatprep.subr.bf16.mxu0 0
      %557 = vmatpush1.bf16.msra.mxu0 0
      %558 = vmatprep.subr.bf16.mxu0 0
      %559 = vmatpush1.bf16.msra.mxu0 0
      %560 = vmatprep.subr.bf16.mxu0 0
      %561 = vmatpush1.bf16.msra.mxu0 0
      %562 = vmatprep.subr.bf16.mxu0 0
      %563 = vmatpush1.bf16.msra.mxu0 0
      %564 = vmatprep.subr.bf16.mxu0 0
      %565 = vmatpush1.bf16.msra.mxu0 0
      %566 = vmatprep.subr.bf16.mxu0 0
      %567 = vmatpush1.bf16.msra.mxu0 0
      %568 = vmatprep.mubr.bf16.mxu0 0
      %569 = vmatmul.mubr.bf16.gmra.mrb[0].mxu0 %v405
      %v570 = vpop.f32.mrb[0].mxu0
      %v571 = vadd.f32 0.0, %v570
      %v572 = vpop.f32.mrb[0].mxu0
      %v573 = vadd.f32 0.0, %v572
      %v574 = vpop.f32.mrb[0].mxu0
      %v575 = vadd.f32 0.0, %v574
      %v576 = vpop.f32.mrb[0].mxu0
      %v577 = vadd.f32 0.0, %v576
      %578 = vdwg.mxu0
      %579 = vmatprep.subr.bf16.mxu0 %v348
      %580 = vmatpush1.bf16.msra.mxu0 %v347
      %581 = vmatprep.subr.bf16.mxu0 %v364
      %582 = vmatpush1.bf16.msra.mxu0 %v363
      %583 = vmatprep.subr.bf16.mxu0 0
      %584 = vmatpush1.bf16.msra.mxu0 0
      %585 = vmatprep.subr.bf16.mxu0 0
      %586 = vmatpush1.bf16.msra.mxu0 0
      %587 = vmatprep.subr.bf16.mxu0 0
      %588 = vmatpush1.bf16.msra.mxu0 0
      %589 = vmatprep.subr.bf16.mxu0 0
      %590 = vmatpush1.bf16.msra.mxu0 0
      %591 = vmatprep.subr.bf16.mxu0 0
      %592 = vmatpush1.bf16.msra.mxu0 0
      %593 = vmatprep.subr.bf16.mxu0 0
      %594 = vmatpush1.bf16.msra.mxu0 0
      %595 = vmatprep.subr.bf16.mxu0 0
      %596 = vmatpush1.bf16.msra.mxu0 0
      %597 = vmatprep.subr.bf16.mxu0 0
      %598 = vmatpush1.bf16.msra.mxu0 0
      %599 = vmatprep.subr.bf16.mxu0 0
      %600 = vmatpush1.bf16.msra.mxu0 0
      %601 = vmatprep.subr.bf16.mxu0 0
      %602 = vmatpush1.bf16.msra.mxu0 0
      %603 = vmatprep.subr.bf16.mxu0 0
      %604 = vmatpush1.bf16.msra.mxu0 0
      %605 = vmatprep.subr.bf16.mxu0 0
      %606 = vmatpush1.bf16.msra.mxu0 0
      %607 = vmatprep.subr.bf16.mxu0 0
      %608 = vmatpush1.bf16.msra.mxu0 0
      %609 = vmatprep.subr.bf16.mxu0 0
      %610 = vmatpush1.bf16.msra.mxu0 0
      %611 = vmatprep.mubr.bf16.mxu0 0
      %612 = vmatmul.mubr.bf16.gmra.mrb[0].mxu0 %v405
      %v613 = vpop.f32.mrb[0].mxu0
      %v614 = vadd.f32 0.0, %v613
      %v615 = vpop.f32.mrb[0].mxu0
      %v616 = vadd.f32 0.0, %v615
      %v617 = vpop.f32.mrb[0].mxu0
      %v618 = vadd.f32 0.0, %v617
      %v619 = vpop.f32.mrb[0].mxu0
      %v620 = vadd.f32 0.0, %v619
      %621 = vdwg.mxu0
      %622 = vmatprep.subr.bf16.mxu0 %v350
      %623 = vmatpush1.bf16.msra.mxu0 %v349
      %624 = vmatprep.subr.bf16.mxu0 %v366
      %625 = vmatpush1.bf16.msra.mxu0 %v365
      %626 = vmatprep.subr.bf16.mxu0 0
      %627 = vmatpush1.bf16.msra.mxu0 0
      %628 = vmatprep.subr.bf16.mxu0 0
      %629 = vmatpush1.bf16.msra.mxu0 0
      %630 = vmatprep.subr.bf16.mxu0 0
      %631 = vmatpush1.bf16.msra.mxu0 0
      %632 = vmatprep.subr.bf16.mxu0 0
      %633 = vmatpush1.bf16.msra.mxu0 0
      %634 = vmatprep.subr.bf16.mxu0 0
      %635 = vmatpush1.bf16.msra.mxu0 0
      %636 = vmatprep.subr.bf16.mxu0 0
      %637 = vmatpush1.bf16.msra.mxu0 0
      %638 = vmatprep.subr.bf16.mxu0 0
      %639 = vmatpush1.bf16.msra.mxu0 0
      %640 = vmatprep.subr.bf16.mxu0 0
      %641 = vmatpush1.bf16.msra.mxu0 0
      %642 = vmatprep.subr.bf16.mxu0 0
      %643 = vmatpush1.bf16.msra.mxu0 0
      %644 = vmatprep.subr.bf16.mxu0 0
      %645 = vmatpush1.bf16.msra.mxu0 0
      %646 = vmatprep.subr.bf16.mxu0 0
      %647 = vmatpush1.bf16.msra.mxu0 0
      %648 = vmatprep.subr.bf16.mxu0 0
      %649 = vmatpush1.bf16.msra.mxu0 0
      %650 = vmatprep.subr.bf16.mxu0 0
      %651 = vmatpush1.bf16.msra.mxu0 0
      %652 = vmatprep.subr.bf16.mxu0 0
      %653 = vmatpush1.bf16.msra.mxu0 0
      %654 = vmatprep.mubr.bf16.mxu0 0
      %655 = vmatmul.mubr.bf16.gmra.mrb[0].mxu0 %v405
      %v656 = vpop.f32.mrb[0].mxu0
      %v657 = vadd.f32 0.0, %v656
      %v658 = vpop.f32.mrb[0].mxu0
      %v659 = vadd.f32 0.0, %v658
      %v660 = vpop.f32.mrb[0].mxu0
      %v661 = vadd.f32 0.0, %v660
      %v662 = vpop.f32.mrb[0].mxu0
      %v663 = vadd.f32 0.0, %v662
      %664 = vdwg.mxu0
      %665 = vmatprep.subr.bf16.mxu0 %v352
      %666 = vmatpush1.bf16.msra.mxu0 %v351
      %667 = vmatprep.subr.bf16.mxu0 %v368
      %668 = vmatpush1.bf16.msra.mxu0 %v367
      %669 = vmatprep.subr.bf16.mxu0 0
      %670 = vmatpush1.bf16.msra.mxu0 0
      %671 = vmatprep.subr.bf16.mxu0 0
      %672 = vmatpush1.bf16.msra.mxu0 0
      %673 = vmatprep.subr.bf16.mxu0 0
      %674 = vmatpush1.bf16.msra.mxu0 0
      %675 = vmatprep.subr.bf16.mxu0 0
      %676 = vmatpush1.bf16.msra.mxu0 0
      %677 = vmatprep.subr.bf16.mxu0 0
      %678 = vmatpush1.bf16.msra.mxu0 0
      %679 = vmatprep.subr.bf16.mxu0 0
      %680 = vmatpush1.bf16.msra.mxu0 0
      %681 = vmatprep.subr.bf16.mxu0 0
      %682 = vmatpush1.bf16.msra.mxu0 0
      %683 = vmatprep.subr.bf16.mxu0 0
      %684 = vmatpush1.bf16.msra.mxu0 0
      %685 = vmatprep.subr.bf16.mxu0 0
      %686 = vmatpush1.bf16.msra.mxu0 0
      %687 = vmatprep.subr.bf16.mxu0 0
      %688 = vmatpush1.bf16.msra.mxu0 0
      %689 = vmatprep.subr.bf16.mxu0 0
      %690 = vmatpush1.bf16.msra.mxu0 0
      %691 = vmatprep.subr.bf16.mxu0 0
      %692 = vmatpush1.bf16.msra.mxu0 0
      %693 = vmatprep.subr.bf16.mxu0 0
      %694 = vmatpush1.bf16.msra.mxu0 0
      %695 = vmatprep.subr.bf16.mxu0 0
      %696 = vmatpush1.bf16.msra.mxu0 0
      %697 = vmatprep.mubr.bf16.mxu0 0
      %698 = vmatmul.mubr.bf16.gmra.mrb[0].mxu0 %v405
      %v699 = vpop.f32.mrb[0].mxu0
      %v700 = vadd.f32 0.0, %v699
      %v701 = vpop.f32.mrb[0].mxu0
      %v702 = vadd.f32 0.0, %v701
      %v703 = vpop.f32.mrb[0].mxu0
      %v704 = vadd.f32 0.0, %v703
      %v705 = vpop.f32.mrb[0].mxu0
      %v706 = vadd.f32 0.0, %v705
      %707 = vdwg.mxu0
      %708 = vmatprep.subr.bf16.mxu0 %v354
      %709 = vmatpush1.bf16.msra.mxu0 %v353
      %710 = vmatprep.subr.bf16.mxu0 %v370
      %711 = vmatpush1.bf16.msra.mxu0 %v369
      %712 = vmatprep.subr.bf16.mxu0 0
      %713 = vmatpush1.bf16.msra.mxu0 0
      %714 = vmatprep.subr.bf16.mxu0 0
      %715 = vmatpush1.bf16.msra.mxu0 0
      %716 = vmatprep.subr.bf16.mxu0 0
      %717 = vmatpush1.bf16.msra.mxu0 0
      %718 = vmatprep.subr.bf16.mxu0 0
      %719 = vmatpush1.bf16.msra.mxu0 0
      %720 = vmatprep.subr.bf16.mxu0 0
      %721 = vmatpush1.bf16.msra.mxu0 0
      %722 = vmatprep.subr.bf16.mxu0 0
      %723 = vmatpush1.bf16.msra.mxu0 0
      %724 = vmatprep.subr.bf16.mxu0 0
      %725 = vmatpush1.bf16.msra.mxu0 0
      %726 = vmatprep.subr.bf16.mxu0 0
      %727 = vmatpush1.bf16.msra.mxu0 0
      %728 = vmatprep.subr.bf16.mxu0 0
      %729 = vmatpush1.bf16.msra.mxu0 0
      %730 = vmatprep.subr.bf16.mxu0 0
      %731 = vmatpush1.bf16.msra.mxu0 0
      %732 = vmatprep.subr.bf16.mxu0 0
      %733 = vmatpush1.bf16.msra.mxu0 0
      %734 = vmatprep.subr.bf16.mxu0 0
      %735 = vmatpush1.bf16.msra.mxu0 0
      %736 = vmatprep.subr.bf16.mxu0 0
      %737 = vmatpush1.bf16.msra.mxu0 0
      %738 = vmatprep.subr.bf16.mxu0 0
      %739 = vmatpush1.bf16.msra.mxu0 0
      %740 = vmatprep.mubr.bf16.mxu0 0
      %741 = vmatmul.mubr.bf16.gmra.mrb[0].mxu0 %v405
      %v742 = vpop.f32.mrb[0].mxu0
      %v743 = vadd.f32 0.0, %v742
      %v744 = vpop.f32.mrb[0].mxu0
      %v745 = vadd.f32 0.0, %v744
      %v746 = vpop.f32.mrb[0].mxu0
      %v747 = vadd.f32 0.0, %v746
      %v748 = vpop.f32.mrb[0].mxu0
      %v749 = vadd.f32 0.0, %v748
      %750 = vdwg.mxu0
      %v751 = vtanh.pop %v442
      %v752 = vtanh.pop %v444
      %v753 = vtanh.pop %v485
      %v754 = vtanh.pop %v487
      %v755 = vtanh.pop %v528
      %v756 = vtanh.pop %v530
      %v757 = vtanh.pop %v571
      %v758 = vtanh.pop %v573
      %v759 = vtanh.pop %v614
      %v760 = vtanh.pop %v616
      %v761 = vtanh.pop %v657
      %v762 = vtanh.pop %v659
      %v763 = vtanh.pop %v700
      %v764 = vtanh.pop %v702
      %v765 = vtanh.pop %v743
      %v766 = vtanh.pop %v745
      %v767 = vtanh.pop %v446
      %v768 = vtanh.pop %v448
      %v769 = vtanh.pop %v489
      %v770 = vtanh.pop %v491
      %v771 = vtanh.pop %v532
      %v772 = vtanh.pop %v534
      %v773 = vtanh.pop %v575
      %v774 = vtanh.pop %v577
      %v775 = vtanh.pop %v618
      %v776 = vtanh.pop %v620
      %v777 = vtanh.pop %v661
      %v778 = vtanh.pop %v663
      %v779 = vtanh.pop %v704
      %v780 = vtanh.pop %v706
      %v781 = vtanh.pop %v747
      %v782 = vtanh.pop %v749
      %783 = vst [vmem:[%s201] sm:$0xff] %v751
      %784 = vst [vmem:[%s201 + $0x8] sm:$0xff] %v752
      %785 = vst [vmem:[%s201 + $0x10] sm:$0xff] %v753
      %786 = vst [vmem:[%s201 + $0x18] sm:$0xff] %v754
      %787 = vst [vmem:[%s201 + $0x20] sm:$0xff] %v755
      %788 = vst [vmem:[%s201 + $0x28] sm:$0xff] %v756
      %789 = vst [vmem:[%s201 + $0x30] sm:$0xff] %v757
      %790 = vst [vmem:[%s201 + $0x38] sm:$0xff] %v758
      %791 = vst [vmem:[%s201 + $0x40] sm:$0xff] %v759
      %792 = vst [vmem:[%s201 + $0x48] sm:$0xff] %v760
      %793 = vst [vmem:[%s201 + $0x50] sm:$0xff] %v761
      %794 = vst [vmem:[%s201 + $0x58] sm:$0xff] %v762
      %795 = vst [vmem:[%s201 + $0x60] sm:$0xff] %v763
      %796 = vst [vmem:[%s201 + $0x68] sm:$0xff] %v764
      %797 = vst [vmem:[%s201 + $0x70] sm:$0xff] %v765
      %798 = vst [vmem:[%s201 + $0x78] sm:$0xff] %v766
      %799 = vst [vmem:[%s201 + $0x80] sm:$0xff] %v767
      %800 = vst [vmem:[%s201 + $0x88] sm:$0xff] %v768
      %801 = vst [vmem:[%s201 + $0x90] sm:$0xff] %v769
      %802 = vst [vmem:[%s201 + $0x98] sm:$0xff] %v770
      %803 = vst [vmem:[%s201 + $0xa0] sm:$0xff] %v771
      %804 = vst [vmem:[%s201 + $0xa8] sm:$0xff] %v772
      %805 = vst [vmem:[%s201 + $0xb0] sm:$0xff] %v773
      %806 = vst [vmem:[%s201 + $0xb8] sm:$0xff] %v774
      %807 = vst [vmem:[%s201 + $0xc0] sm:$0xff] %v775
      %808 = vst [vmem:[%s201 + $0xc8] sm:$0xff] %v776
      %809 = vst [vmem:[%s201 + $0xd0] sm:$0xff] %v777
      %810 = vst [vmem:[%s201 + $0xd8] sm:$0xff] %v778
      %811 = vst [vmem:[%s201 + $0xe0] sm:$0xff] %v779
      %812 = vst [vmem:[%s201 + $0xe8] sm:$0xff] %v780
      %813 = vst [vmem:[%s201 + $0xf0] sm:$0xff] %v781
      %814 = vst [vmem:[%s201 + $0xf8] sm:$0xff] %v782
      %s815 = smul.u32 16, %s18
      %p816 = scmp.lt.s32.totalorder %s17, 3
      %s817 = scalar_select %p816, %s17, 3
      %p818 = scmp.lt.s32.totalorder %s815, 15
      %s819 = scalar_select %p818, %s815, 15
      %s820 = smul.addr %s817, 32
      %s821 = sadd.s32 %s819, %s820
      %s822 = smul.addr %s821, 8
      %s823 = scalar_lea.vmem %s2, %s822
      // Predicated region
      $region29: #{generator_forward.17} parent=27 // pred_check
        %p824 = pneg %p99
      $region30: #{generator_forward.17} parent=27 // pred_check_branch
        %826 = sbr.rel (%p824) target = $region32
      $region31: #{generator_forward.17} parent=27 // pred_region
        %s827 = smul.u32 16, %s18
      $region32: #{generator_forward.17} parent=27 // pred_fallthru
        _
    $region28: #{generator_forward.17} parent=5 // pred_fallthru
      _
    %p828 = scmp.le.s32.totalorder 2, %s8
    // Predicated region
    $region33: #{generator_forward.17} parent=5 // pred_check
      %p829 = pneg %p828
    $region34: #{generator_forward.17} parent=5 // pred_check_branch
      %831 = sbr.rel (%p829) target = $region36
    $region35: #{generator_forward.17} parent=5 // pred_region
      %s832 = ssub.s32 %s8, 2
      // Predicated region
      $region37: #{generator_forward.17} parent=35 // pred_check
        %p833 = pneg %p105
      $region38: #{generator_forward.17} parent=35 // pred_check_branch
        %835 = sbr.rel (%p833) target = $region40
      $region39: #{generator_forward.17} parent=35 // pred_region
        %s836 = smul.u32 16, %s20
        %p837 = scmp.lt.s32.totalorder %s19, 3
        %s838 = scalar_select %p837, %s19, 3
        %p839 = scmp.lt.s32.totalorder %s836, 15
        %s840 = scalar_select %p839, %s836, 15
        %s841 = smul.addr %s838, 32
        %s842 = sadd.s32 %s840, %s841
        %s843 = smul.addr %s842, 8
        %s844 = scalar_lea.vmem %s2, %s843
      $region40: #{generator_forward.17} parent=35 // pred_fallthru
        _
    $region36: #{generator_forward.17} parent=5 // pred_fallthru
      _
  $region6: #{generator_forward.17} parent=0 // loop_footer
    %s12 = sadd.s32 1, %s8
  $region7: #{generator_forward.17} parent=0 // loop_footer_branch
    %7 = sbr.rel target = $region3
  $region8: #{generator_forward.17} parent=0 // loop_exit
    _

</llo_original>
